<compile_context>
chip_gen: v7x
topology: tpu7x:2x2x1
jax: 0.10.0
libtpu: 0.0.40
codegen_flags: <defaults>
</compile_context>

<pallas_src>
import functools

import jax
import jax.numpy as jnp
from jax.experimental import pallas as pl
from jax.experimental.pallas import tpu as pltpu


# ---------------------------------------------------------------------------
# Synthetic "small DINOv2 ViT" configuration (stand-in for vit_base_patch14)
# ---------------------------------------------------------------------------

PATCH = 4          # patch size (synthetic stand-in for 14)
STRIDE = 2         # wrapper stride; must evenly divide patch size (4 % 2 == 0)
EMBED = 32         # embed dim
DEPTH = 2          # number of transformer blocks
HEADS = 4          # attention heads
HEAD_DIM = EMBED // HEADS
MLP_HIDDEN = 4 * EMBED
LS_INIT = 1e-5     # LayerScale init value (DINOv2)
IN_CH = 3
LN_EPS = 1e-6


def _round_up(x, m):
    return (x + m - 1) // m * m


def _choose_grid_steps(batch):
    """2 parallel grid steps on v7x (2 TensorCores/chip), 1 elsewhere."""
    try:
        kind = jax.devices()[0].device_kind.lower()
    except Exception:
        kind = ""
    if "v7" in kind and batch >= 2:
        return 2
    return 1


# ---------------------------------------------------------------------------
# Fused ViT forward kernel (one grid step == TB batch elements)
# ---------------------------------------------------------------------------

def _vit_fused_kernel(patches_ref, patch_w_ref, add_ref,
                      ln1_g_ref, ln1_b_ref, qkv_w_ref, qkv_b_ref,
                      proj_w_ref, proj_b_ref, ln2_g_ref, ln2_b_ref,
                      fc1_w_ref, fc1_b_ref, fc2_w_ref, fc2_b_ref,
                      norm_g_ref, norm_b_ref, out_ref,
                      *, depth, heads, head_dim, tb, n_pad, n_real, eps):
    f32 = jnp.float32
    bf16 = jnp.bfloat16

    def layer_norm(x, g, b):
        mu = jnp.mean(x, axis=-1, keepdims=True)
        xc = x - mu
        var = jnp.mean(xc * xc, axis=-1, keepdims=True)
        return xc * jax.lax.rsqrt(var + eps) * g + b

    m = tb * n_pad
    kp_pad = patches_ref.shape[-1]
    # flatten TB samples into one row block: (TB, n_pad, Kp) -> (TB*n_pad, Kp)
    patches = patches_ref[...].reshape(m, kp_pad)

    # --- patch embed: conv bias + CLS token + pos-embed folded into add_ref ---
    tok = jnp.dot(patches, patch_w_ref[...],
                  preferred_element_type=f32) + add_ref[...]       # (M, D) f32
    d_model = tok.shape[-1]

    # additive key-padding mask: 0 for real tokens, -1e30 for padded tokens
    key_ids = jax.lax.broadcasted_iota(jnp.int32, (1, n_pad), 1)
    key_mask = jnp.where(key_ids < n_real, jnp.float32(0.0), jnp.float32(-1e30))

    for d in range(depth):
        # ----------------------- attention branch -----------------------
        y = layer_norm(tok, ln1_g_ref[d:d + 1, :], ln1_b_ref[d:d + 1, :]).astype(bf16)
        # 1/sqrt(head_dim) is pre-folded into the q columns of qkv_w / qkv_b
        qkv = jnp.dot(y, qkv_w_ref[d],
                      preferred_element_type=f32) + qkv_b_ref[d:d + 1, :]   # (M, 3D)

        o_rows = []
        for b in range(tb):                       # per-sample attention
            qkv_b_rows = qkv[b * n_pad:(b + 1) * n_pad, :]          # (N, 3D)
            heads_out = []
            for h in range(heads):
                lo = h * head_dim
                q = qkv_b_rows[:, lo:lo + head_dim].astype(bf16)
                k = qkv_b_rows[:, d_model + lo:d_model + lo + head_dim].astype(bf16)
                v = qkv_b_rows[:, 2 * d_model + lo:2 * d_model + lo + head_dim].astype(bf16)
                s = jax.lax.dot_general(q, k, (((1,), (1,)), ((), ())),
                                        preferred_element_type=f32)        # (N, N)
                s = s + key_mask
                s = s - jnp.max(s, axis=-1, keepdims=True)
                p = jnp.exp(s)                                     # unnormalized
                l = jnp.sum(p, axis=-1, keepdims=True)
                o_h = jnp.dot(p.astype(bf16), v, preferred_element_type=f32)
                # deferred softmax normalization on the small (N, head_dim) tensor
                o_h = o_h * pl.reciprocal(l, approx=True)
                heads_out.append(o_h.astype(bf16))
            o_rows.append(jnp.concatenate(heads_out, axis=-1))      # (N, D) bf16
        o_all = o_rows[0] if tb == 1 else jnp.concatenate(o_rows, axis=0)   # (M, D)

        # single well-filled output projection (LayerScale folded into w/b)
        attn = jnp.dot(o_all, proj_w_ref[d],
                       preferred_element_type=f32) + proj_b_ref[d:d + 1, :]
        tok = tok + attn

        # -------------------------- MLP branch --------------------------
        y = layer_norm(tok, ln2_g_ref[d:d + 1, :], ln2_b_ref[d:d + 1, :]).astype(bf16)
        h1 = jnp.dot(y, fc1_w_ref[d],
                     preferred_element_type=f32) + fc1_b_ref[d:d + 1, :]
        # exact GELU (erf form, matches torch.nn.GELU default)
        h1 = 0.5 * h1 * (1.0 + jax.lax.erf(h1 * 0.7071067811865476))
        h2 = jnp.dot(h1.astype(bf16), fc2_w_ref[d],
                     preferred_element_type=f32) + fc2_b_ref[d:d + 1, :]
        tok = tok + h2                        # LayerScale folded into fc2_w/fc2_b

    # final LayerNorm applied ONLY to the CLS rows ('token' pooling, head=Identity)
    cls = tok.reshape(tb, n_pad, d_model)[:, 0, :]                  # (TB, D)
    cls = layer_norm(cls, norm_g_ref[...], norm_b_ref[...])
    out_ref[...] = cls.reshape(tb, 1, d_model).astype(out_ref.dtype)


# ---------------------------------------------------------------------------
# Glue: im2col for the overlapping patch-embed conv (NCHW input)
# ---------------------------------------------------------------------------

def im2col(x, p, s):
    """x: (B, C, H, W) NCHW -> (B, gh*gw, C*p*p) patches, (c, ky, kx) ordering
    (matches PyTorch conv weight flattening)."""
    B, C, H, W = x.shape
    gh = (H - p) // s + 1
    gw = (W - p) // s + 1
    cols = []
    for ky in range(p):
        for kx in range(p):
            sl = x[:, :, ky:ky + s * (gh - 1) + 1:s, kx:kx + s * (gw - 1) + 1:s]
            cols.append(sl)                                   # (B, C, gh, gw)
    patches = jnp.stack(cols, axis=0).reshape(p, p, B, C, gh, gw)
    patches = patches.transpose(2, 4, 5, 3, 0, 1)             # (B, gh, gw, C, p, p)
    return patches.reshape(B, gh * gw, C * p * p), gh, gw


# ---------------------------------------------------------------------------
# Parameters (synthetic; mirrors the PyTorch module's structure)
# ---------------------------------------------------------------------------

def init_params(key, num_patches):
    ks = jax.random.split(key, 3 + DEPTH)
    init = lambda k, shape: (0.02 * jax.random.normal(k, shape)).astype(jnp.float32)
    params = {
        'patch_w': init(ks[0], (IN_CH * PATCH * PATCH, EMBED)),   # (K, D)
        'patch_b': jnp.zeros((EMBED,), jnp.float32),
        'cls_token': init(ks[1], (1, 1, EMBED)),
        'pos_embed': init(ks[2], (1, num_patches + 1, EMBED)),
        'norm_g': jnp.ones((EMBED,), jnp.float32),
        'norm_b': jnp.zeros((EMBED,), jnp.float32),
        'blocks': [],
    }
    for d in range(DEPTH):
        bk = jax.random.split(ks[3 + d], 4)
        params['blocks'].append({
            'ln1_g': jnp.ones((EMBED,), jnp.float32),
            'ln1_b': jnp.zeros((EMBED,), jnp.float32),
            'qkv_w': init(bk[0], (EMBED, 3 * EMBED)),             # (in, out)
            'qkv_b': jnp.zeros((3 * EMBED,), jnp.float32),
            'proj_w': init(bk[1], (EMBED, EMBED)),
            'proj_b': jnp.zeros((EMBED,), jnp.float32),
            'ls1': jnp.full((EMBED,), LS_INIT, jnp.float32),
            'ln2_g': jnp.ones((EMBED,), jnp.float32),
            'ln2_b': jnp.zeros((EMBED,), jnp.float32),
            'fc1_w': init(bk[2], (EMBED, MLP_HIDDEN)),
            'fc1_b': jnp.zeros((MLP_HIDDEN,), jnp.float32),
            'fc2_w': init(bk[3], (MLP_HIDDEN, EMBED)),
            'fc2_b': jnp.zeros((EMBED,), jnp.float32),
            'ls2': jnp.full((EMBED,), LS_INIT, jnp.float32),
        })
    return params


def _fold_and_stack(params, np_tok, n_pad, kp_pad):
    """Pad/stack/fold weights into the layout the fused kernel consumes."""
    D = EMBED
    kp = params['patch_w'].shape[0]
    pw = jnp.zeros((kp_pad, D), jnp.float32).at[:kp, :].set(params['patch_w'])

    pos = params['pos_embed'][0]          # (Np+1, D)
    cls = params['cls_token'][0, 0]       # (D,)
    add = jnp.zeros((n_pad, D), jnp.float32)
    add = add.at[0, :].set(cls + pos[0])
    add = add.at[1:1 + np_tok, :].set(params['patch_b'][None, :] + pos[1:1 + np_tok])

    st = lambda name: jnp.stack([blk[name] for blk in params['blocks']])
    ls1, ls2 = st('ls1'), st('ls2')

    # fold attention scale into the q columns of qkv (exact algebra)
    scale = HEAD_DIM ** -0.5
    qkv_w = st('qkv_w').at[:, :, :D].multiply(scale)
    qkv_b = st('qkv_b').at[:, :D].multiply(scale)

    return {
        'patch_w': pw.astype(jnp.bfloat16),
        'add': add,
        'ln1_g': st('ln1_g'), 'ln1_b': st('ln1_b'),
        'qkv_w': qkv_w.astype(jnp.bfloat16), 'qkv_b': qkv_b,
        # LayerScale folded exactly:  gamma * (x W + b) = x (W * gamma) + (b * gamma)
        'proj_w': (st('proj_w') * ls1[:, None, :]).astype(jnp.bfloat16),
        'proj_b': st('proj_b') * ls1,
        'ln2_g': st('ln2_g'), 'ln2_b': st('ln2_b'),
        'fc1_w': st('fc1_w').astype(jnp.bfloat16), 'fc1_b': st('fc1_b'),
        'fc2_w': (st('fc2_w') * ls2[:, None, :]).astype(jnp.bfloat16),
        'fc2_b': st('fc2_b') * ls2,
        'norm_g': params['norm_g'].reshape(1, D),
        'norm_b': params['norm_b'].reshape(1, D),
    }


# ---------------------------------------------------------------------------
# Forward pass (ViTWrapper.forward == underlying ViT forward, head = Identity)
# ---------------------------------------------------------------------------

def vit_forward(x, params):
    B = x.shape[0]
    patches, gh, gw = im2col(x, PATCH, STRIDE)        # (B, Np, C*p*p)
    np_tok, kp = patches.shape[1], patches.shape[2]
    n_real = np_tok + 1                               # CLS + patches
    n_pad = _round_up(n_real, 16)                     # bf16 sublane-packing aligned
    kp_pad = _round_up(kp, 128)                       # lane-dense im2col K dim

    num_steps = _choose_grid_steps(B)                 # 2 on v7x, 1 on v5e/v6e
    tb = -(-B // num_steps)                           # batch elements per grid step
    b_pad = num_steps * tb

    # row 0 of each sample reserved for CLS (zeros -> patch matmul contributes
    # nothing there); bias / cls / pos-embed are added via `add` in the kernel.
    patches_pad = jnp.zeros((b_pad, n_pad, kp_pad), jnp.bfloat16)
    patches_pad = patches_pad.at[:B, 1:1 + np_tok, :kp].set(patches.astype(jnp.bfloat16))

    w = _fold_and_stack(params, np_tok, n_pad, kp_pad)
    add_tiled = jnp.tile(w['add'], (tb, 1))           # (tb*n_pad, D), per-step add

    kernel = functools.partial(
        _vit_fused_kernel, depth=DEPTH, heads=HEADS, head_dim=HEAD_DIM,
        tb=tb, n_pad=n_pad, n_real=n_real, eps=LN_EPS)

    def whole(arr):  # whole-array block, re-used (not re-fetched) every grid step
        nd = arr.ndim
        return pl.BlockSpec(arr.shape, lambda g, nd=nd: (0,) * nd)

    args = (patches_pad, w['patch_w'], add_tiled,
            w['ln1_g'], w['ln1_b'], w['qkv_w'], w['qkv_b'],
            w['proj_w'], w['proj_b'], w['ln2_g'], w['ln2_b'],
            w['fc1_w'], w['fc1_b'], w['fc2_w'], w['fc2_b'],
            w['norm_g'], w['norm_b'])

    in_specs = [pl.BlockSpec((tb, n_pad, kp_pad), lambda g: (g, 0, 0))]
    in_specs += [whole(a) for a in args[1:]]

    out = pl.pallas_call(
        kernel,
        out_shape=jax.ShapeDtypeStruct((b_pad, 1, EMBED), jnp.float32),
        grid=(num_steps,),
        in_specs=in_specs,
        out_specs=pl.BlockSpec((tb, 1, EMBED), lambda g: (g, 0, 0)),
        compiler_params=pltpu.CompilerParams(
            dimension_semantics=("parallel",)),   # shards steps across TCs (v7x)
    )(*args)
    return out.reshape(b_pad, EMBED)[:B]


# ---------------------------------------------------------------------------

if __name__ == "__main__":
    key = jax.random.PRNGKey(0)
    kx, kp = jax.random.split(key)

    B, H, W = 2, 16, 16
    x = jax.random.normal(kx, (B, IN_CH, H, W), dtype=jnp.float32)  # NCHW

    gh = (H - PATCH) // STRIDE + 1
    gw = (W - PATCH) // STRIDE + 1
    params = init_params(kp, gh * gw)

    fwd = jax.jit(vit_forward)
    out = jax.block_until_ready(fwd(x, params))
    assert out.shape == (B, EMBED), out.shape
    assert bool(jnp.all(jnp.isfinite(out)))
    print("KERNEL_OK")
</pallas_src>

<mosaic_0001>
module attributes {stable_mosaic.version = 11 : i64} {
  func.func @_vit_fused_kernel(%arg0: i32, %arg1: memref<2x64x128xbf16, #tpu.memory_space<vmem>>, %arg2: memref<128x32xbf16, #tpu.memory_space<vmem>>, %arg3: memref<128x32xf32, #tpu.memory_space<vmem>>, %arg4: memref<2x32xf32, #tpu.memory_space<vmem>>, %arg5: memref<2x32xf32, #tpu.memory_space<vmem>>, %arg6: memref<2x32x96xbf16, #tpu.memory_space<vmem>>, %arg7: memref<2x96xf32, #tpu.memory_space<vmem>>, %arg8: memref<2x32x32xbf16, #tpu.memory_space<vmem>>, %arg9: memref<2x32xf32, #tpu.memory_space<vmem>>, %arg10: memref<2x32xf32, #tpu.memory_space<vmem>>, %arg11: memref<2x32xf32, #tpu.memory_space<vmem>>, %arg12: memref<2x32x128xbf16, #tpu.memory_space<vmem>>, %arg13: memref<2x128xf32, #tpu.memory_space<vmem>>, %arg14: memref<2x128x32xbf16, #tpu.memory_space<vmem>>, %arg15: memref<2x32xf32, #tpu.memory_space<vmem>>, %arg16: memref<1x32xf32, #tpu.memory_space<vmem>>, %arg17: memref<1x32xf32, #tpu.memory_space<vmem>>, %arg18: memref<2x1x32xf32, #tpu.memory_space<vmem>>) attributes {dimension_semantics = [#tpu.dimension_semantics<parallel>], iteration_bounds = array<i64: 1>, scalar_prefetch = 0 : i64, scratch_operands = 0 : i64, tpu.core_type = #tpu.core_type<tc>, window_params = [{transform_indices = @transform_0, window_bounds = array<i64: 2, 64, 128>}, {pipeline_mode = #tpu.pipeline_mode<synchronous>, transform_indices = @transform_1, window_bounds = array<i64: 128, 32>}, {pipeline_mode = #tpu.pipeline_mode<synchronous>, transform_indices = @transform_2, window_bounds = array<i64: 128, 32>}, {pipeline_mode = #tpu.pipeline_mode<synchronous>, transform_indices = @transform_3, window_bounds = array<i64: 2, 32>}, {pipeline_mode = #tpu.pipeline_mode<synchronous>, transform_indices = @transform_4, window_bounds = array<i64: 2, 32>}, {pipeline_mode = #tpu.pipeline_mode<synchronous>, transform_indices = @transform_5, window_bounds = array<i64: 2, 32, 96>}, {pipeline_mode = #tpu.pipeline_mode<synchronous>, transform_indices = @transform_6, window_bounds = array<i64: 2, 96>}, {pipeline_mode = #tpu.pipeline_mode<synchronous>, transform_indices = @transform_7, window_bounds = array<i64: 2, 32, 32>}, {pipeline_mode = #tpu.pipeline_mode<synchronous>, transform_indices = @transform_8, window_bounds = array<i64: 2, 32>}, {pipeline_mode = #tpu.pipeline_mode<synchronous>, transform_indices = @transform_9, window_bounds = array<i64: 2, 32>}, {pipeline_mode = #tpu.pipeline_mode<synchronous>, transform_indices = @transform_10, window_bounds = array<i64: 2, 32>}, {pipeline_mode = #tpu.pipeline_mode<synchronous>, transform_indices = @transform_11, window_bounds = array<i64: 2, 32, 128>}, {pipeline_mode = #tpu.pipeline_mode<synchronous>, transform_indices = @transform_12, window_bounds = array<i64: 2, 128>}, {pipeline_mode = #tpu.pipeline_mode<synchronous>, transform_indices = @transform_13, window_bounds = array<i64: 2, 128, 32>}, {pipeline_mode = #tpu.pipeline_mode<synchronous>, transform_indices = @transform_14, window_bounds = array<i64: 2, 32>}, {pipeline_mode = #tpu.pipeline_mode<synchronous>, transform_indices = @transform_15, window_bounds = array<i64: 1, 32>}, {pipeline_mode = #tpu.pipeline_mode<synchronous>, transform_indices = @transform_16, window_bounds = array<i64: 1, 32>}, {transform_indices = @transform_17, window_bounds = array<i64: 2, 1, 32>}]} {
    %c0 = arith.constant 0 : index
    %c0_0 = arith.constant 0 : index
    %c0_1 = arith.constant 0 : index
    %0 = vector.load %arg1[%c0, %c0_0, %c0_1] : memref<2x64x128xbf16, #tpu.memory_space<vmem>>, vector<2x64x128xbf16>
    %1 = vector.shape_cast %0 : vector<2x64x128xbf16> to vector<128x128xbf16>
    %c0_2 = arith.constant 0 : index
    %c0_3 = arith.constant 0 : index
    %2 = vector.load %arg2[%c0_2, %c0_3] : memref<128x32xbf16, #tpu.memory_space<vmem>>, vector<128x32xbf16>
    %cst = arith.constant dense<0.000000e+00> : vector<128x32xf32>
    %3 = tpu.matmul %1, %2, %cst {dimension_numbers = #tpu.dot_dimension_numbers<[1], [0], [0], [1], [0, 0, 1, 1], [], []>} : vector<128x128xbf16>, vector<128x32xbf16>, vector<128x32xf32> -> vector<128x32xf32>
    %c0_4 = arith.constant 0 : index
    %c0_5 = arith.constant 0 : index
    %4 = vector.load %arg3[%c0_4, %c0_5] : memref<128x32xf32, #tpu.memory_space<vmem>>, vector<128x32xf32>
    %5 = arith.addf %3, %4 : vector<128x32xf32>
    %6 = tpu.iota {dimensions = array<i32: 1>} : vector<1x64xi32>
    %c50_i32 = arith.constant 50 : i32
    %7 = vector.broadcast %c50_i32 : i32 to vector<1x64xi32>
    %8 = arith.cmpi slt, %6, %7 : vector<1x64xi32>
    %cst_6 = arith.constant 0.000000e+00 : f32
    %cst_7 = arith.constant -1.000000e+30 : f32
    %9 = vector.broadcast %cst_6 : f32 to vector<1x64xf32>
    %10 = vector.broadcast %cst_7 : f32 to vector<1x64xf32>
    %11 = arith.select %8, %9, %10 : vector<1x64xi1>, vector<1x64xf32>
    %c0_8 = arith.constant 0 : index
    %c0_9 = arith.constant 0 : index
    %12 = vector.load %arg4[%c0_8, %c0_9] : memref<2x32xf32, #tpu.memory_space<vmem>>, vector<1x32xf32>
    %c0_10 = arith.constant 0 : index
    %c0_11 = arith.constant 0 : index
    %13 = vector.load %arg5[%c0_10, %c0_11] : memref<2x32xf32, #tpu.memory_space<vmem>>, vector<1x32xf32>
    %cst_12 = arith.constant dense<0.000000e+00> : vector<128xf32>
    %14 = vector.multi_reduction <add>, %5, %cst_12 [1] : vector<128x32xf32> to vector<128xf32>
    %15 = vector.shape_cast %14 : vector<128xf32> to vector<128x1xf32>
    %cst_13 = arith.constant 3.200000e+01 : f32
    %16 = vector.broadcast %cst_13 : f32 to vector<128x1xf32>
    %17 = arith.divf %15, %16 : vector<128x1xf32>
    %18 = vector.broadcast %17 : vector<128x1xf32> to vector<128x32xf32>
    %19 = arith.subf %5, %18 : vector<128x32xf32>
    %20 = arith.mulf %19, %19 : vector<128x32xf32>
    %cst_14 = arith.constant dense<0.000000e+00> : vector<128xf32>
    %21 = vector.multi_reduction <add>, %20, %cst_14 [1] : vector<128x32xf32> to vector<128xf32>
    %22 = vector.shape_cast %21 : vector<128xf32> to vector<128x1xf32>
    %cst_15 = arith.constant 3.200000e+01 : f32
    %23 = vector.broadcast %cst_15 : f32 to vector<128x1xf32>
    %24 = arith.divf %22, %23 : vector<128x1xf32>
    %cst_16 = arith.constant 9.99999997E-7 : f32
    %25 = vector.broadcast %cst_16 : f32 to vector<128x1xf32>
    %26 = arith.addf %24, %25 : vector<128x1xf32>
    %27 = math.rsqrt %26 : vector<128x1xf32>
    %28 = vector.broadcast %27 : vector<128x1xf32> to vector<128x32xf32>
    %29 = arith.mulf %19, %28 : vector<128x32xf32>
    %30 = vector.broadcast %12 : vector<1x32xf32> to vector<128x32xf32>
    %31 = arith.mulf %29, %30 : vector<128x32xf32>
    %32 = vector.broadcast %13 : vector<1x32xf32> to vector<128x32xf32>
    %33 = arith.addf %31, %32 : vector<128x32xf32>
    %34 = arith.truncf %33 : vector<128x32xf32> to vector<128x32xbf16>
    %c0_17 = arith.constant 0 : index
    %c0_18 = arith.constant 0 : index
    %c0_19 = arith.constant 0 : index
    %35 = vector.load %arg6[%c0_17, %c0_18, %c0_19] : memref<2x32x96xbf16, #tpu.memory_space<vmem>>, vector<1x32x96xbf16>
    %36 = vector.shape_cast %35 : vector<1x32x96xbf16> to vector<32x96xbf16>
    %cst_20 = arith.constant dense<0.000000e+00> : vector<128x96xf32>
    %37 = tpu.matmul %34, %36, %cst_20 {dimension_numbers = #tpu.dot_dimension_numbers<[1], [0], [0], [1], [0, 0, 1, 1], [], []>} : vector<128x32xbf16>, vector<32x96xbf16>, vector<128x96xf32> -> vector<128x96xf32>
    %c0_21 = arith.constant 0 : index
    %c0_22 = arith.constant 0 : index
    %38 = vector.load %arg7[%c0_21, %c0_22] : memref<2x96xf32, #tpu.memory_space<vmem>>, vector<1x96xf32>
    %39 = vector.broadcast %38 : vector<1x96xf32> to vector<128x96xf32>
    %40 = arith.addf %37, %39 : vector<128x96xf32>
    %41 = vector.extract_strided_slice %40 {offsets = [0, 0], sizes = [64, 96], strides = [1, 1]} : vector<128x96xf32> to vector<64x96xf32>
    %42 = vector.extract_strided_slice %41 {offsets = [0, 0], sizes = [64, 8], strides = [1, 1]} : vector<64x96xf32> to vector<64x8xf32>
    %43 = arith.truncf %42 : vector<64x8xf32> to vector<64x8xbf16>
    %44 = vector.extract_strided_slice %41 {offsets = [0, 32], sizes = [64, 8], strides = [1, 1]} : vector<64x96xf32> to vector<64x8xf32>
    %45 = arith.truncf %44 : vector<64x8xf32> to vector<64x8xbf16>
    %46 = vector.extract_strided_slice %41 {offsets = [0, 64], sizes = [64, 8], strides = [1, 1]} : vector<64x96xf32> to vector<64x8xf32>
    %47 = arith.truncf %46 : vector<64x8xf32> to vector<64x8xbf16>
    %cst_23 = arith.constant dense<0.000000e+00> : vector<64x64xf32>
    %48 = tpu.matmul %43, %45, %cst_23 {dimension_numbers = #tpu.dot_dimension_numbers<[1], [1], [0], [0], [0, 0, 1, 0], [], []>} : vector<64x8xbf16>, vector<64x8xbf16>, vector<64x64xf32> -> vector<64x64xf32>
    %49 = vector.broadcast %11 : vector<1x64xf32> to vector<64x64xf32>
    %50 = arith.addf %48, %49 : vector<64x64xf32>
    %cst_24 = arith.constant dense<0xFF800000> : vector<64xf32>
    %51 = vector.multi_reduction <maximumf>, %50, %cst_24 [1] : vector<64x64xf32> to vector<64xf32>
    %52 = vector.shape_cast %51 : vector<64xf32> to vector<64x1xf32>
    %53 = vector.broadcast %52 : vector<64x1xf32> to vector<64x64xf32>
    %54 = arith.subf %50, %53 : vector<64x64xf32>
    %55 = math.exp %54 : vector<64x64xf32>
    %cst_25 = arith.constant dense<0.000000e+00> : vector<64xf32>
    %56 = vector.multi_reduction <add>, %55, %cst_25 [1] : vector<64x64xf32> to vector<64xf32>
    %57 = vector.shape_cast %56 : vector<64xf32> to vector<64x1xf32>
    %58 = arith.truncf %55 : vector<64x64xf32> to vector<64x64xbf16>
    %cst_26 = arith.constant dense<0.000000e+00> : vector<64x8xf32>
    %59 = tpu.matmul %58, %47, %cst_26 {dimension_numbers = #tpu.dot_dimension_numbers<[1], [0], [0], [1], [0, 0, 1, 1], [], []>} : vector<64x64xbf16>, vector<64x8xbf16>, vector<64x8xf32> -> vector<64x8xf32>
    %60 = tpu.reciprocal %57 {approx = true} : vector<64x1xf32> -> vector<64x1xf32>
    %61 = vector.broadcast %60 : vector<64x1xf32> to vector<64x8xf32>
    %62 = arith.mulf %59, %61 : vector<64x8xf32>
    %63 = arith.truncf %62 : vector<64x8xf32> to vector<64x8xbf16>
    %64 = vector.extract_strided_slice %41 {offsets = [0, 8], sizes = [64, 8], strides = [1, 1]} : vector<64x96xf32> to vector<64x8xf32>
    %65 = arith.truncf %64 : vector<64x8xf32> to vector<64x8xbf16>
    %66 = vector.extract_strided_slice %41 {offsets = [0, 40], sizes = [64, 8], strides = [1, 1]} : vector<64x96xf32> to vector<64x8xf32>
    %67 = arith.truncf %66 : vector<64x8xf32> to vector<64x8xbf16>
    %68 = vector.extract_strided_slice %41 {offsets = [0, 72], sizes = [64, 8], strides = [1, 1]} : vector<64x96xf32> to vector<64x8xf32>
    %69 = arith.truncf %68 : vector<64x8xf32> to vector<64x8xbf16>
    %cst_27 = arith.constant dense<0.000000e+00> : vector<64x64xf32>
    %70 = tpu.matmul %65, %67, %cst_27 {dimension_numbers = #tpu.dot_dimension_numbers<[1], [1], [0], [0], [0, 0, 1, 0], [], []>} : vector<64x8xbf16>, vector<64x8xbf16>, vector<64x64xf32> -> vector<64x64xf32>
    %71 = vector.broadcast %11 : vector<1x64xf32> to vector<64x64xf32>
    %72 = arith.addf %70, %71 : vector<64x64xf32>
    %cst_28 = arith.constant dense<0xFF800000> : vector<64xf32>
    %73 = vector.multi_reduction <maximumf>, %72, %cst_28 [1] : vector<64x64xf32> to vector<64xf32>
    %74 = vector.shape_cast %73 : vector<64xf32> to vector<64x1xf32>
    %75 = vector.broadcast %74 : vector<64x1xf32> to vector<64x64xf32>
    %76 = arith.subf %72, %75 : vector<64x64xf32>
    %77 = math.exp %76 : vector<64x64xf32>
    %cst_29 = arith.constant dense<0.000000e+00> : vector<64xf32>
    %78 = vector.multi_reduction <add>, %77, %cst_29 [1] : vector<64x64xf32> to vector<64xf32>
    %79 = vector.shape_cast %78 : vector<64xf32> to vector<64x1xf32>
    %80 = arith.truncf %77 : vector<64x64xf32> to vector<64x64xbf16>
    %cst_30 = arith.constant dense<0.000000e+00> : vector<64x8xf32>
    %81 = tpu.matmul %80, %69, %cst_30 {dimension_numbers = #tpu.dot_dimension_numbers<[1], [0], [0], [1], [0, 0, 1, 1], [], []>} : vector<64x64xbf16>, vector<64x8xbf16>, vector<64x8xf32> -> vector<64x8xf32>
    %82 = tpu.reciprocal %79 {approx = true} : vector<64x1xf32> -> vector<64x1xf32>
    %83 = vector.broadcast %82 : vector<64x1xf32> to vector<64x8xf32>
    %84 = arith.mulf %81, %83 : vector<64x8xf32>
    %85 = arith.truncf %84 : vector<64x8xf32> to vector<64x8xbf16>
    %86 = vector.extract_strided_slice %41 {offsets = [0, 16], sizes = [64, 8], strides = [1, 1]} : vector<64x96xf32> to vector<64x8xf32>
    %87 = arith.truncf %86 : vector<64x8xf32> to vector<64x8xbf16>
    %88 = vector.extract_strided_slice %41 {offsets = [0, 48], sizes = [64, 8], strides = [1, 1]} : vector<64x96xf32> to vector<64x8xf32>
    %89 = arith.truncf %88 : vector<64x8xf32> to vector<64x8xbf16>
    %90 = vector.extract_strided_slice %41 {offsets = [0, 80], sizes = [64, 8], strides = [1, 1]} : vector<64x96xf32> to vector<64x8xf32>
    %91 = arith.truncf %90 : vector<64x8xf32> to vector<64x8xbf16>
    %cst_31 = arith.constant dense<0.000000e+00> : vector<64x64xf32>
    %92 = tpu.matmul %87, %89, %cst_31 {dimension_numbers = #tpu.dot_dimension_numbers<[1], [1], [0], [0], [0, 0, 1, 0], [], []>} : vector<64x8xbf16>, vector<64x8xbf16>, vector<64x64xf32> -> vector<64x64xf32>
    %93 = vector.broadcast %11 : vector<1x64xf32> to vector<64x64xf32>
    %94 = arith.addf %92, %93 : vector<64x64xf32>
    %cst_32 = arith.constant dense<0xFF800000> : vector<64xf32>
    %95 = vector.multi_reduction <maximumf>, %94, %cst_32 [1] : vector<64x64xf32> to vector<64xf32>
    %96 = vector.shape_cast %95 : vector<64xf32> to vector<64x1xf32>
    %97 = vector.broadcast %96 : vector<64x1xf32> to vector<64x64xf32>
    %98 = arith.subf %94, %97 : vector<64x64xf32>
    %99 = math.exp %98 : vector<64x64xf32>
    %cst_33 = arith.constant dense<0.000000e+00> : vector<64xf32>
    %100 = vector.multi_reduction <add>, %99, %cst_33 [1] : vector<64x64xf32> to vector<64xf32>
    %101 = vector.shape_cast %100 : vector<64xf32> to vector<64x1xf32>
    %102 = arith.truncf %99 : vector<64x64xf32> to vector<64x64xbf16>
    %cst_34 = arith.constant dense<0.000000e+00> : vector<64x8xf32>
    %103 = tpu.matmul %102, %91, %cst_34 {dimension_numbers = #tpu.dot_dimension_numbers<[1], [0], [0], [1], [0, 0, 1, 1], [], []>} : vector<64x64xbf16>, vector<64x8xbf16>, vector<64x8xf32> -> vector<64x8xf32>
    %104 = tpu.reciprocal %101 {approx = true} : vector<64x1xf32> -> vector<64x1xf32>
    %105 = vector.broadcast %104 : vector<64x1xf32> to vector<64x8xf32>
    %106 = arith.mulf %103, %105 : vector<64x8xf32>
    %107 = arith.truncf %106 : vector<64x8xf32> to vector<64x8xbf16>
    %108 = vector.extract_strided_slice %41 {offsets = [0, 24], sizes = [64, 8], strides = [1, 1]} : vector<64x96xf32> to vector<64x8xf32>
    %109 = arith.truncf %108 : vector<64x8xf32> to vector<64x8xbf16>
    %110 = vector.extract_strided_slice %41 {offsets = [0, 56], sizes = [64, 8], strides = [1, 1]} : vector<64x96xf32> to vector<64x8xf32>
    %111 = arith.truncf %110 : vector<64x8xf32> to vector<64x8xbf16>
    %112 = vector.extract_strided_slice %41 {offsets = [0, 88], sizes = [64, 8], strides = [1, 1]} : vector<64x96xf32> to vector<64x8xf32>
    %113 = arith.truncf %112 : vector<64x8xf32> to vector<64x8xbf16>
    %cst_35 = arith.constant dense<0.000000e+00> : vector<64x64xf32>
    %114 = tpu.matmul %109, %111, %cst_35 {dimension_numbers = #tpu.dot_dimension_numbers<[1], [1], [0], [0], [0, 0, 1, 0], [], []>} : vector<64x8xbf16>, vector<64x8xbf16>, vector<64x64xf32> -> vector<64x64xf32>
    %115 = vector.broadcast %11 : vector<1x64xf32> to vector<64x64xf32>
    %116 = arith.addf %114, %115 : vector<64x64xf32>
    %cst_36 = arith.constant dense<0xFF800000> : vector<64xf32>
    %117 = vector.multi_reduction <maximumf>, %116, %cst_36 [1] : vector<64x64xf32> to vector<64xf32>
    %118 = vector.shape_cast %117 : vector<64xf32> to vector<64x1xf32>
    %119 = vector.broadcast %118 : vector<64x1xf32> to vector<64x64xf32>
    %120 = arith.subf %116, %119 : vector<64x64xf32>
    %121 = math.exp %120 : vector<64x64xf32>
    %cst_37 = arith.constant dense<0.000000e+00> : vector<64xf32>
    %122 = vector.multi_reduction <add>, %121, %cst_37 [1] : vector<64x64xf32> to vector<64xf32>
    %123 = vector.shape_cast %122 : vector<64xf32> to vector<64x1xf32>
    %124 = arith.truncf %121 : vector<64x64xf32> to vector<64x64xbf16>
    %cst_38 = arith.constant dense<0.000000e+00> : vector<64x8xf32>
    %125 = tpu.matmul %124, %113, %cst_38 {dimension_numbers = #tpu.dot_dimension_numbers<[1], [0], [0], [1], [0, 0, 1, 1], [], []>} : vector<64x64xbf16>, vector<64x8xbf16>, vector<64x8xf32> -> vector<64x8xf32>
    %126 = tpu.reciprocal %123 {approx = true} : vector<64x1xf32> -> vector<64x1xf32>
    %127 = vector.broadcast %126 : vector<64x1xf32> to vector<64x8xf32>
    %128 = arith.mulf %125, %127 : vector<64x8xf32>
    %129 = arith.truncf %128 : vector<64x8xf32> to vector<64x8xbf16>
    %130 = tpu.concatenate %63, %85, %107, %129 in 1 : vector<64x8xbf16>, vector<64x8xbf16>, vector<64x8xbf16>, vector<64x8xbf16> -> vector<64x32xbf16>
    %131 = vector.extract_strided_slice %40 {offsets = [64, 0], sizes = [64, 96], strides = [1, 1]} : vector<128x96xf32> to vector<64x96xf32>
    %132 = vector.extract_strided_slice %131 {offsets = [0, 0], sizes = [64, 8], strides = [1, 1]} : vector<64x96xf32> to vector<64x8xf32>
    %133 = arith.truncf %132 : vector<64x8xf32> to vector<64x8xbf16>
    %134 = vector.extract_strided_slice %131 {offsets = [0, 32], sizes = [64, 8], strides = [1, 1]} : vector<64x96xf32> to vector<64x8xf32>
    %135 = arith.truncf %134 : vector<64x8xf32> to vector<64x8xbf16>
    %136 = vector.extract_strided_slice %131 {offsets = [0, 64], sizes = [64, 8], strides = [1, 1]} : vector<64x96xf32> to vector<64x8xf32>
    %137 = arith.truncf %136 : vector<64x8xf32> to vector<64x8xbf16>
    %cst_39 = arith.constant dense<0.000000e+00> : vector<64x64xf32>
    %138 = tpu.matmul %133, %135, %cst_39 {dimension_numbers = #tpu.dot_dimension_numbers<[1], [1], [0], [0], [0, 0, 1, 0], [], []>} : vector<64x8xbf16>, vector<64x8xbf16>, vector<64x64xf32> -> vector<64x64xf32>
    %139 = vector.broadcast %11 : vector<1x64xf32> to vector<64x64xf32>
    %140 = arith.addf %138, %139 : vector<64x64xf32>
    %cst_40 = arith.constant dense<0xFF800000> : vector<64xf32>
    %141 = vector.multi_reduction <maximumf>, %140, %cst_40 [1] : vector<64x64xf32> to vector<64xf32>
    %142 = vector.shape_cast %141 : vector<64xf32> to vector<64x1xf32>
    %143 = vector.broadcast %142 : vector<64x1xf32> to vector<64x64xf32>
    %144 = arith.subf %140, %143 : vector<64x64xf32>
    %145 = math.exp %144 : vector<64x64xf32>
    %cst_41 = arith.constant dense<0.000000e+00> : vector<64xf32>
    %146 = vector.multi_reduction <add>, %145, %cst_41 [1] : vector<64x64xf32> to vector<64xf32>
    %147 = vector.shape_cast %146 : vector<64xf32> to vector<64x1xf32>
    %148 = arith.truncf %145 : vector<64x64xf32> to vector<64x64xbf16>
    %cst_42 = arith.constant dense<0.000000e+00> : vector<64x8xf32>
    %149 = tpu.matmul %148, %137, %cst_42 {dimension_numbers = #tpu.dot_dimension_numbers<[1], [0], [0], [1], [0, 0, 1, 1], [], []>} : vector<64x64xbf16>, vector<64x8xbf16>, vector<64x8xf32> -> vector<64x8xf32>
    %150 = tpu.reciprocal %147 {approx = true} : vector<64x1xf32> -> vector<64x1xf32>
    %151 = vector.broadcast %150 : vector<64x1xf32> to vector<64x8xf32>
    %152 = arith.mulf %149, %151 : vector<64x8xf32>
    %153 = arith.truncf %152 : vector<64x8xf32> to vector<64x8xbf16>
    %154 = vector.extract_strided_slice %131 {offsets = [0, 8], sizes = [64, 8], strides = [1, 1]} : vector<64x96xf32> to vector<64x8xf32>
    %155 = arith.truncf %154 : vector<64x8xf32> to vector<64x8xbf16>
    %156 = vector.extract_strided_slice %131 {offsets = [0, 40], sizes = [64, 8], strides = [1, 1]} : vector<64x96xf32> to vector<64x8xf32>
    %157 = arith.truncf %156 : vector<64x8xf32> to vector<64x8xbf16>
    %158 = vector.extract_strided_slice %131 {offsets = [0, 72], sizes = [64, 8], strides = [1, 1]} : vector<64x96xf32> to vector<64x8xf32>
    %159 = arith.truncf %158 : vector<64x8xf32> to vector<64x8xbf16>
    %cst_43 = arith.constant dense<0.000000e+00> : vector<64x64xf32>
    %160 = tpu.matmul %155, %157, %cst_43 {dimension_numbers = #tpu.dot_dimension_numbers<[1], [1], [0], [0], [0, 0, 1, 0], [], []>} : vector<64x8xbf16>, vector<64x8xbf16>, vector<64x64xf32> -> vector<64x64xf32>
    %161 = vector.broadcast %11 : vector<1x64xf32> to vector<64x64xf32>
    %162 = arith.addf %160, %161 : vector<64x64xf32>
    %cst_44 = arith.constant dense<0xFF800000> : vector<64xf32>
    %163 = vector.multi_reduction <maximumf>, %162, %cst_44 [1] : vector<64x64xf32> to vector<64xf32>
    %164 = vector.shape_cast %163 : vector<64xf32> to vector<64x1xf32>
    %165 = vector.broadcast %164 : vector<64x1xf32> to vector<64x64xf32>
    %166 = arith.subf %162, %165 : vector<64x64xf32>
    %167 = math.exp %166 : vector<64x64xf32>
    %cst_45 = arith.constant dense<0.000000e+00> : vector<64xf32>
    %168 = vector.multi_reduction <add>, %167, %cst_45 [1] : vector<64x64xf32> to vector<64xf32>
    %169 = vector.shape_cast %168 : vector<64xf32> to vector<64x1xf32>
    %170 = arith.truncf %167 : vector<64x64xf32> to vector<64x64xbf16>
    %cst_46 = arith.constant dense<0.000000e+00> : vector<64x8xf32>
    %171 = tpu.matmul %170, %159, %cst_46 {dimension_numbers = #tpu.dot_dimension_numbers<[1], [0], [0], [1], [0, 0, 1, 1], [], []>} : vector<64x64xbf16>, vector<64x8xbf16>, vector<64x8xf32> -> vector<64x8xf32>
    %172 = tpu.reciprocal %169 {approx = true} : vector<64x1xf32> -> vector<64x1xf32>
    %173 = vector.broadcast %172 : vector<64x1xf32> to vector<64x8xf32>
    %174 = arith.mulf %171, %173 : vector<64x8xf32>
    %175 = arith.truncf %174 : vector<64x8xf32> to vector<64x8xbf16>
    %176 = vector.extract_strided_slice %131 {offsets = [0, 16], sizes = [64, 8], strides = [1, 1]} : vector<64x96xf32> to vector<64x8xf32>
    %177 = arith.truncf %176 : vector<64x8xf32> to vector<64x8xbf16>
    %178 = vector.extract_strided_slice %131 {offsets = [0, 48], sizes = [64, 8], strides = [1, 1]} : vector<64x96xf32> to vector<64x8xf32>
    %179 = arith.truncf %178 : vector<64x8xf32> to vector<64x8xbf16>
    %180 = vector.extract_strided_slice %131 {offsets = [0, 80], sizes = [64, 8], strides = [1, 1]} : vector<64x96xf32> to vector<64x8xf32>
    %181 = arith.truncf %180 : vector<64x8xf32> to vector<64x8xbf16>
    %cst_47 = arith.constant dense<0.000000e+00> : vector<64x64xf32>
    %182 = tpu.matmul %177, %179, %cst_47 {dimension_numbers = #tpu.dot_dimension_numbers<[1], [1], [0], [0], [0, 0, 1, 0], [], []>} : vector<64x8xbf16>, vector<64x8xbf16>, vector<64x64xf32> -> vector<64x64xf32>
    %183 = vector.broadcast %11 : vector<1x64xf32> to vector<64x64xf32>
    %184 = arith.addf %182, %183 : vector<64x64xf32>
    %cst_48 = arith.constant dense<0xFF800000> : vector<64xf32>
    %185 = vector.multi_reduction <maximumf>, %184, %cst_48 [1] : vector<64x64xf32> to vector<64xf32>
    %186 = vector.shape_cast %185 : vector<64xf32> to vector<64x1xf32>
    %187 = vector.broadcast %186 : vector<64x1xf32> to vector<64x64xf32>
    %188 = arith.subf %184, %187 : vector<64x64xf32>
    %189 = math.exp %188 : vector<64x64xf32>
    %cst_49 = arith.constant dense<0.000000e+00> : vector<64xf32>
    %190 = vector.multi_reduction <add>, %189, %cst_49 [1] : vector<64x64xf32> to vector<64xf32>
    %191 = vector.shape_cast %190 : vector<64xf32> to vector<64x1xf32>
    %192 = arith.truncf %189 : vector<64x64xf32> to vector<64x64xbf16>
    %cst_50 = arith.constant dense<0.000000e+00> : vector<64x8xf32>
    %193 = tpu.matmul %192, %181, %cst_50 {dimension_numbers = #tpu.dot_dimension_numbers<[1], [0], [0], [1], [0, 0, 1, 1], [], []>} : vector<64x64xbf16>, vector<64x8xbf16>, vector<64x8xf32> -> vector<64x8xf32>
    %194 = tpu.reciprocal %191 {approx = true} : vector<64x1xf32> -> vector<64x1xf32>
    %195 = vector.broadcast %194 : vector<64x1xf32> to vector<64x8xf32>
    %196 = arith.mulf %193, %195 : vector<64x8xf32>
    %197 = arith.truncf %196 : vector<64x8xf32> to vector<64x8xbf16>
    %198 = vector.extract_strided_slice %131 {offsets = [0, 24], sizes = [64, 8], strides = [1, 1]} : vector<64x96xf32> to vector<64x8xf32>
    %199 = arith.truncf %198 : vector<64x8xf32> to vector<64x8xbf16>
    %200 = vector.extract_strided_slice %131 {offsets = [0, 56], sizes = [64, 8], strides = [1, 1]} : vector<64x96xf32> to vector<64x8xf32>
    %201 = arith.truncf %200 : vector<64x8xf32> to vector<64x8xbf16>
    %202 = vector.extract_strided_slice %131 {offsets = [0, 88], sizes = [64, 8], strides = [1, 1]} : vector<64x96xf32> to vector<64x8xf32>
    %203 = arith.truncf %202 : vector<64x8xf32> to vector<64x8xbf16>
    %cst_51 = arith.constant dense<0.000000e+00> : vector<64x64xf32>
    %204 = tpu.matmul %199, %201, %cst_51 {dimension_numbers = #tpu.dot_dimension_numbers<[1], [1], [0], [0], [0, 0, 1, 0], [], []>} : vector<64x8xbf16>, vector<64x8xbf16>, vector<64x64xf32> -> vector<64x64xf32>
    %205 = vector.broadcast %11 : vector<1x64xf32> to vector<64x64xf32>
    %206 = arith.addf %204, %205 : vector<64x64xf32>
    %cst_52 = arith.constant dense<0xFF800000> : vector<64xf32>
    %207 = vector.multi_reduction <maximumf>, %206, %cst_52 [1] : vector<64x64xf32> to vector<64xf32>
    %208 = vector.shape_cast %207 : vector<64xf32> to vector<64x1xf32>
    %209 = vector.broadcast %208 : vector<64x1xf32> to vector<64x64xf32>
    %210 = arith.subf %206, %209 : vector<64x64xf32>
    %211 = math.exp %210 : vector<64x64xf32>
    %cst_53 = arith.constant dense<0.000000e+00> : vector<64xf32>
    %212 = vector.multi_reduction <add>, %211, %cst_53 [1] : vector<64x64xf32> to vector<64xf32>
    %213 = vector.shape_cast %212 : vector<64xf32> to vector<64x1xf32>
    %214 = arith.truncf %211 : vector<64x64xf32> to vector<64x64xbf16>
    %cst_54 = arith.constant dense<0.000000e+00> : vector<64x8xf32>
    %215 = tpu.matmul %214, %203, %cst_54 {dimension_numbers = #tpu.dot_dimension_numbers<[1], [0], [0], [1], [0, 0, 1, 1], [], []>} : vector<64x64xbf16>, vector<64x8xbf16>, vector<64x8xf32> -> vector<64x8xf32>
    %216 = tpu.reciprocal %213 {approx = true} : vector<64x1xf32> -> vector<64x1xf32>
    %217 = vector.broadcast %216 : vector<64x1xf32> to vector<64x8xf32>
    %218 = arith.mulf %215, %217 : vector<64x8xf32>
    %219 = arith.truncf %218 : vector<64x8xf32> to vector<64x8xbf16>
    %220 = tpu.concatenate %153, %175, %197, %219 in 1 : vector<64x8xbf16>, vector<64x8xbf16>, vector<64x8xbf16>, vector<64x8xbf16> -> vector<64x32xbf16>
    %221 = tpu.concatenate %130, %220 in 0 : vector<64x32xbf16>, vector<64x32xbf16> -> vector<128x32xbf16>
    %c0_55 = arith.constant 0 : index
    %c0_56 = arith.constant 0 : index
    %c0_57 = arith.constant 0 : index
    %222 = vector.load %arg8[%c0_55, %c0_56, %c0_57] : memref<2x32x32xbf16, #tpu.memory_space<vmem>>, vector<1x32x32xbf16>
    %223 = vector.shape_cast %222 : vector<1x32x32xbf16> to vector<32x32xbf16>
    %cst_58 = arith.constant dense<0.000000e+00> : vector<128x32xf32>
    %224 = tpu.matmul %221, %223, %cst_58 {dimension_numbers = #tpu.dot_dimension_numbers<[1], [0], [0], [1], [0, 0, 1, 1], [], []>} : vector<128x32xbf16>, vector<32x32xbf16>, vector<128x32xf32> -> vector<128x32xf32>
    %c0_59 = arith.constant 0 : index
    %c0_60 = arith.constant 0 : index
    %225 = vector.load %arg9[%c0_59, %c0_60] : memref<2x32xf32, #tpu.memory_space<vmem>>, vector<1x32xf32>
    %226 = vector.broadcast %225 : vector<1x32xf32> to vector<128x32xf32>
    %227 = arith.addf %224, %226 : vector<128x32xf32>
    %228 = arith.addf %5, %227 : vector<128x32xf32>
    %c0_61 = arith.constant 0 : index
    %c0_62 = arith.constant 0 : index
    %229 = vector.load %arg10[%c0_61, %c0_62] : memref<2x32xf32, #tpu.memory_space<vmem>>, vector<1x32xf32>
    %c0_63 = arith.constant 0 : index
    %c0_64 = arith.constant 0 : index
    %230 = vector.load %arg11[%c0_63, %c0_64] : memref<2x32xf32, #tpu.memory_space<vmem>>, vector<1x32xf32>
    %cst_65 = arith.constant dense<0.000000e+00> : vector<128xf32>
    %231 = vector.multi_reduction <add>, %228, %cst_65 [1] : vector<128x32xf32> to vector<128xf32>
    %232 = vector.shape_cast %231 : vector<128xf32> to vector<128x1xf32>
    %cst_66 = arith.constant 3.200000e+01 : f32
    %233 = vector.broadcast %cst_66 : f32 to vector<128x1xf32>
    %234 = arith.divf %232, %233 : vector<128x1xf32>
    %235 = vector.broadcast %234 : vector<128x1xf32> to vector<128x32xf32>
    %236 = arith.subf %228, %235 : vector<128x32xf32>
    %237 = arith.mulf %236, %236 : vector<128x32xf32>
    %cst_67 = arith.constant dense<0.000000e+00> : vector<128xf32>
    %238 = vector.multi_reduction <add>, %237, %cst_67 [1] : vector<128x32xf32> to vector<128xf32>
    %239 = vector.shape_cast %238 : vector<128xf32> to vector<128x1xf32>
    %cst_68 = arith.constant 3.200000e+01 : f32
    %240 = vector.broadcast %cst_68 : f32 to vector<128x1xf32>
    %241 = arith.divf %239, %240 : vector<128x1xf32>
    %cst_69 = arith.constant 9.99999997E-7 : f32
    %242 = vector.broadcast %cst_69 : f32 to vector<128x1xf32>
    %243 = arith.addf %241, %242 : vector<128x1xf32>
    %244 = math.rsqrt %243 : vector<128x1xf32>
    %245 = vector.broadcast %244 : vector<128x1xf32> to vector<128x32xf32>
    %246 = arith.mulf %236, %245 : vector<128x32xf32>
    %247 = vector.broadcast %229 : vector<1x32xf32> to vector<128x32xf32>
    %248 = arith.mulf %246, %247 : vector<128x32xf32>
    %249 = vector.broadcast %230 : vector<1x32xf32> to vector<128x32xf32>
    %250 = arith.addf %248, %249 : vector<128x32xf32>
    %251 = arith.truncf %250 : vector<128x32xf32> to vector<128x32xbf16>
    %c0_70 = arith.constant 0 : index
    %c0_71 = arith.constant 0 : index
    %c0_72 = arith.constant 0 : index
    %252 = vector.load %arg12[%c0_70, %c0_71, %c0_72] : memref<2x32x128xbf16, #tpu.memory_space<vmem>>, vector<1x32x128xbf16>
    %253 = vector.shape_cast %252 : vector<1x32x128xbf16> to vector<32x128xbf16>
    %cst_73 = arith.constant dense<0.000000e+00> : vector<128x128xf32>
    %254 = tpu.matmul %251, %253, %cst_73 {dimension_numbers = #tpu.dot_dimension_numbers<[1], [0], [0], [1], [0, 0, 1, 1], [], []>} : vector<128x32xbf16>, vector<32x128xbf16>, vector<128x128xf32> -> vector<128x128xf32>
    %c0_74 = arith.constant 0 : index
    %c0_75 = arith.constant 0 : index
    %255 = vector.load %arg13[%c0_74, %c0_75] : memref<2x128xf32, #tpu.memory_space<vmem>>, vector<1x128xf32>
    %256 = vector.broadcast %255 : vector<1x128xf32> to vector<128x128xf32>
    %257 = arith.addf %254, %256 : vector<128x128xf32>
    %cst_76 = arith.constant 5.000000e-01 : f32
    %258 = vector.broadcast %cst_76 : f32 to vector<128x128xf32>
    %259 = arith.mulf %258, %257 : vector<128x128xf32>
    %cst_77 = arith.constant 0.707106769 : f32
    %260 = vector.broadcast %cst_77 : f32 to vector<128x128xf32>
    %261 = arith.mulf %257, %260 : vector<128x128xf32>
    %262 = math.erf %261 : vector<128x128xf32>
    %cst_78 = arith.constant 1.000000e+00 : f32
    %263 = vector.broadcast %cst_78 : f32 to vector<128x128xf32>
    %264 = arith.addf %263, %262 : vector<128x128xf32>
    %265 = arith.mulf %259, %264 : vector<128x128xf32>
    %266 = arith.truncf %265 : vector<128x128xf32> to vector<128x128xbf16>
    %c0_79 = arith.constant 0 : index
    %c0_80 = arith.constant 0 : index
    %c0_81 = arith.constant 0 : index
    %267 = vector.load %arg14[%c0_79, %c0_80, %c0_81] : memref<2x128x32xbf16, #tpu.memory_space<vmem>>, vector<1x128x32xbf16>
    %268 = vector.shape_cast %267 : vector<1x128x32xbf16> to vector<128x32xbf16>
    %cst_82 = arith.constant dense<0.000000e+00> : vector<128x32xf32>
    %269 = tpu.matmul %266, %268, %cst_82 {dimension_numbers = #tpu.dot_dimension_numbers<[1], [0], [0], [1], [0, 0, 1, 1], [], []>} : vector<128x128xbf16>, vector<128x32xbf16>, vector<128x32xf32> -> vector<128x32xf32>
    %c0_83 = arith.constant 0 : index
    %c0_84 = arith.constant 0 : index
    %270 = vector.load %arg15[%c0_83, %c0_84] : memref<2x32xf32, #tpu.memory_space<vmem>>, vector<1x32xf32>
    %271 = vector.broadcast %270 : vector<1x32xf32> to vector<128x32xf32>
    %272 = arith.addf %269, %271 : vector<128x32xf32>
    %273 = arith.addf %228, %272 : vector<128x32xf32>
    %c1 = arith.constant 1 : index
    %c0_85 = arith.constant 0 : index
    %274 = vector.load %arg4[%c1, %c0_85] : memref<2x32xf32, #tpu.memory_space<vmem>>, vector<1x32xf32>
    %c1_86 = arith.constant 1 : index
    %c0_87 = arith.constant 0 : index
    %275 = vector.load %arg5[%c1_86, %c0_87] : memref<2x32xf32, #tpu.memory_space<vmem>>, vector<1x32xf32>
    %cst_88 = arith.constant dense<0.000000e+00> : vector<128xf32>
    %276 = vector.multi_reduction <add>, %273, %cst_88 [1] : vector<128x32xf32> to vector<128xf32>
    %277 = vector.shape_cast %276 : vector<128xf32> to vector<128x1xf32>
    %cst_89 = arith.constant 3.200000e+01 : f32
    %278 = vector.broadcast %cst_89 : f32 to vector<128x1xf32>
    %279 = arith.divf %277, %278 : vector<128x1xf32>
    %280 = vector.broadcast %279 : vector<128x1xf32> to vector<128x32xf32>
    %281 = arith.subf %273, %280 : vector<128x32xf32>
    %282 = arith.mulf %281, %281 : vector<128x32xf32>
    %cst_90 = arith.constant dense<0.000000e+00> : vector<128xf32>
    %283 = vector.multi_reduction <add>, %282, %cst_90 [1] : vector<128x32xf32> to vector<128xf32>
    %284 = vector.shape_cast %283 : vector<128xf32> to vector<128x1xf32>
    %cst_91 = arith.constant 3.200000e+01 : f32
    %285 = vector.broadcast %cst_91 : f32 to vector<128x1xf32>
    %286 = arith.divf %284, %285 : vector<128x1xf32>
    %cst_92 = arith.constant 9.99999997E-7 : f32
    %287 = vector.broadcast %cst_92 : f32 to vector<128x1xf32>
    %288 = arith.addf %286, %287 : vector<128x1xf32>
    %289 = math.rsqrt %288 : vector<128x1xf32>
    %290 = vector.broadcast %289 : vector<128x1xf32> to vector<128x32xf32>
    %291 = arith.mulf %281, %290 : vector<128x32xf32>
    %292 = vector.broadcast %274 : vector<1x32xf32> to vector<128x32xf32>
    %293 = arith.mulf %291, %292 : vector<128x32xf32>
    %294 = vector.broadcast %275 : vector<1x32xf32> to vector<128x32xf32>
    %295 = arith.addf %293, %294 : vector<128x32xf32>
    %296 = arith.truncf %295 : vector<128x32xf32> to vector<128x32xbf16>
    %c1_93 = arith.constant 1 : index
    %c0_94 = arith.constant 0 : index
    %c0_95 = arith.constant 0 : index
    %297 = vector.load %arg6[%c1_93, %c0_94, %c0_95] : memref<2x32x96xbf16, #tpu.memory_space<vmem>>, vector<1x32x96xbf16>
    %298 = vector.shape_cast %297 : vector<1x32x96xbf16> to vector<32x96xbf16>
    %cst_96 = arith.constant dense<0.000000e+00> : vector<128x96xf32>
    %299 = tpu.matmul %296, %298, %cst_96 {dimension_numbers = #tpu.dot_dimension_numbers<[1], [0], [0], [1], [0, 0, 1, 1], [], []>} : vector<128x32xbf16>, vector<32x96xbf16>, vector<128x96xf32> -> vector<128x96xf32>
    %c1_97 = arith.constant 1 : index
    %c0_98 = arith.constant 0 : index
    %300 = vector.load %arg7[%c1_97, %c0_98] : memref<2x96xf32, #tpu.memory_space<vmem>>, vector<1x96xf32>
    %301 = vector.broadcast %300 : vector<1x96xf32> to vector<128x96xf32>
    %302 = arith.addf %299, %301 : vector<128x96xf32>
    %303 = vector.extract_strided_slice %302 {offsets = [0, 0], sizes = [64, 96], strides = [1, 1]} : vector<128x96xf32> to vector<64x96xf32>
    %304 = vector.extract_strided_slice %303 {offsets = [0, 0], sizes = [64, 8], strides = [1, 1]} : vector<64x96xf32> to vector<64x8xf32>
    %305 = arith.truncf %304 : vector<64x8xf32> to vector<64x8xbf16>
    %306 = vector.extract_strided_slice %303 {offsets = [0, 32], sizes = [64, 8], strides = [1, 1]} : vector<64x96xf32> to vector<64x8xf32>
    %307 = arith.truncf %306 : vector<64x8xf32> to vector<64x8xbf16>
    %308 = vector.extract_strided_slice %303 {offsets = [0, 64], sizes = [64, 8], strides = [1, 1]} : vector<64x96xf32> to vector<64x8xf32>
    %309 = arith.truncf %308 : vector<64x8xf32> to vector<64x8xbf16>
    %cst_99 = arith.constant dense<0.000000e+00> : vector<64x64xf32>
    %310 = tpu.matmul %305, %307, %cst_99 {dimension_numbers = #tpu.dot_dimension_numbers<[1], [1], [0], [0], [0, 0, 1, 0], [], []>} : vector<64x8xbf16>, vector<64x8xbf16>, vector<64x64xf32> -> vector<64x64xf32>
    %311 = vector.broadcast %11 : vector<1x64xf32> to vector<64x64xf32>
    %312 = arith.addf %310, %311 : vector<64x64xf32>
    %cst_100 = arith.constant dense<0xFF800000> : vector<64xf32>
    %313 = vector.multi_reduction <maximumf>, %312, %cst_100 [1] : vector<64x64xf32> to vector<64xf32>
    %314 = vector.shape_cast %313 : vector<64xf32> to vector<64x1xf32>
    %315 = vector.broadcast %314 : vector<64x1xf32> to vector<64x64xf32>
    %316 = arith.subf %312, %315 : vector<64x64xf32>
    %317 = math.exp %316 : vector<64x64xf32>
    %cst_101 = arith.constant dense<0.000000e+00> : vector<64xf32>
    %318 = vector.multi_reduction <add>, %317, %cst_101 [1] : vector<64x64xf32> to vector<64xf32>
    %319 = vector.shape_cast %318 : vector<64xf32> to vector<64x1xf32>
    %320 = arith.truncf %317 : vector<64x64xf32> to vector<64x64xbf16>
    %cst_102 = arith.constant dense<0.000000e+00> : vector<64x8xf32>
    %321 = tpu.matmul %320, %309, %cst_102 {dimension_numbers = #tpu.dot_dimension_numbers<[1], [0], [0], [1], [0, 0, 1, 1], [], []>} : vector<64x64xbf16>, vector<64x8xbf16>, vector<64x8xf32> -> vector<64x8xf32>
    %322 = tpu.reciprocal %319 {approx = true} : vector<64x1xf32> -> vector<64x1xf32>
    %323 = vector.broadcast %322 : vector<64x1xf32> to vector<64x8xf32>
    %324 = arith.mulf %321, %323 : vector<64x8xf32>
    %325 = arith.truncf %324 : vector<64x8xf32> to vector<64x8xbf16>
    %326 = vector.extract_strided_slice %303 {offsets = [0, 8], sizes = [64, 8], strides = [1, 1]} : vector<64x96xf32> to vector<64x8xf32>
    %327 = arith.truncf %326 : vector<64x8xf32> to vector<64x8xbf16>
    %328 = vector.extract_strided_slice %303 {offsets = [0, 40], sizes = [64, 8], strides = [1, 1]} : vector<64x96xf32> to vector<64x8xf32>
    %329 = arith.truncf %328 : vector<64x8xf32> to vector<64x8xbf16>
    %330 = vector.extract_strided_slice %303 {offsets = [0, 72], sizes = [64, 8], strides = [1, 1]} : vector<64x96xf32> to vector<64x8xf32>
    %331 = arith.truncf %330 : vector<64x8xf32> to vector<64x8xbf16>
    %cst_103 = arith.constant dense<0.000000e+00> : vector<64x64xf32>
    %332 = tpu.matmul %327, %329, %cst_103 {dimension_numbers = #tpu.dot_dimension_numbers<[1], [1], [0], [0], [0, 0, 1, 0], [], []>} : vector<64x8xbf16>, vector<64x8xbf16>, vector<64x64xf32> -> vector<64x64xf32>
    %333 = vector.broadcast %11 : vector<1x64xf32> to vector<64x64xf32>
    %334 = arith.addf %332, %333 : vector<64x64xf32>
    %cst_104 = arith.constant dense<0xFF800000> : vector<64xf32>
    %335 = vector.multi_reduction <maximumf>, %334, %cst_104 [1] : vector<64x64xf32> to vector<64xf32>
    %336 = vector.shape_cast %335 : vector<64xf32> to vector<64x1xf32>
    %337 = vector.broadcast %336 : vector<64x1xf32> to vector<64x64xf32>
    %338 = arith.subf %334, %337 : vector<64x64xf32>
    %339 = math.exp %338 : vector<64x64xf32>
    %cst_105 = arith.constant dense<0.000000e+00> : vector<64xf32>
    %340 = vector.multi_reduction <add>, %339, %cst_105 [1] : vector<64x64xf32> to vector<64xf32>
    %341 = vector.shape_cast %340 : vector<64xf32> to vector<64x1xf32>
    %342 = arith.truncf %339 : vector<64x64xf32> to vector<64x64xbf16>
    %cst_106 = arith.constant dense<0.000000e+00> : vector<64x8xf32>
    %343 = tpu.matmul %342, %331, %cst_106 {dimension_numbers = #tpu.dot_dimension_numbers<[1], [0], [0], [1], [0, 0, 1, 1], [], []>} : vector<64x64xbf16>, vector<64x8xbf16>, vector<64x8xf32> -> vector<64x8xf32>
    %344 = tpu.reciprocal %341 {approx = true} : vector<64x1xf32> -> vector<64x1xf32>
    %345 = vector.broadcast %344 : vector<64x1xf32> to vector<64x8xf32>
    %346 = arith.mulf %343, %345 : vector<64x8xf32>
    %347 = arith.truncf %346 : vector<64x8xf32> to vector<64x8xbf16>
    %348 = vector.extract_strided_slice %303 {offsets = [0, 16], sizes = [64, 8], strides = [1, 1]} : vector<64x96xf32> to vector<64x8xf32>
    %349 = arith.truncf %348 : vector<64x8xf32> to vector<64x8xbf16>
    %350 = vector.extract_strided_slice %303 {offsets = [0, 48], sizes = [64, 8], strides = [1, 1]} : vector<64x96xf32> to vector<64x8xf32>
    %351 = arith.truncf %350 : vector<64x8xf32> to vector<64x8xbf16>
    %352 = vector.extract_strided_slice %303 {offsets = [0, 80], sizes = [64, 8], strides = [1, 1]} : vector<64x96xf32> to vector<64x8xf32>
    %353 = arith.truncf %352 : vector<64x8xf32> to vector<64x8xbf16>
    %cst_107 = arith.constant dense<0.000000e+00> : vector<64x64xf32>
    %354 = tpu.matmul %349, %351, %cst_107 {dimension_numbers = #tpu.dot_dimension_numbers<[1], [1], [0], [0], [0, 0, 1, 0], [], []>} : vector<64x8xbf16>, vector<64x8xbf16>, vector<64x64xf32> -> vector<64x64xf32>
    %355 = vector.broadcast %11 : vector<1x64xf32> to vector<64x64xf32>
    %356 = arith.addf %354, %355 : vector<64x64xf32>
    %cst_108 = arith.constant dense<0xFF800000> : vector<64xf32>
    %357 = vector.multi_reduction <maximumf>, %356, %cst_108 [1] : vector<64x64xf32> to vector<64xf32>
    %358 = vector.shape_cast %357 : vector<64xf32> to vector<64x1xf32>
    %359 = vector.broadcast %358 : vector<64x1xf32> to vector<64x64xf32>
    %360 = arith.subf %356, %359 : vector<64x64xf32>
    %361 = math.exp %360 : vector<64x64xf32>
    %cst_109 = arith.constant dense<0.000000e+00> : vector<64xf32>
    %362 = vector.multi_reduction <add>, %361, %cst_109 [1] : vector<64x64xf32> to vector<64xf32>
    %363 = vector.shape_cast %362 : vector<64xf32> to vector<64x1xf32>
    %364 = arith.truncf %361 : vector<64x64xf32> to vector<64x64xbf16>
    %cst_110 = arith.constant dense<0.000000e+00> : vector<64x8xf32>
    %365 = tpu.matmul %364, %353, %cst_110 {dimension_numbers = #tpu.dot_dimension_numbers<[1], [0], [0], [1], [0, 0, 1, 1], [], []>} : vector<64x64xbf16>, vector<64x8xbf16>, vector<64x8xf32> -> vector<64x8xf32>
    %366 = tpu.reciprocal %363 {approx = true} : vector<64x1xf32> -> vector<64x1xf32>
    %367 = vector.broadcast %366 : vector<64x1xf32> to vector<64x8xf32>
    %368 = arith.mulf %365, %367 : vector<64x8xf32>
    %369 = arith.truncf %368 : vector<64x8xf32> to vector<64x8xbf16>
    %370 = vector.extract_strided_slice %303 {offsets = [0, 24], sizes = [64, 8], strides = [1, 1]} : vector<64x96xf32> to vector<64x8xf32>
    %371 = arith.truncf %370 : vector<64x8xf32> to vector<64x8xbf16>
    %372 = vector.extract_strided_slice %303 {offsets = [0, 56], sizes = [64, 8], strides = [1, 1]} : vector<64x96xf32> to vector<64x8xf32>
    %373 = arith.truncf %372 : vector<64x8xf32> to vector<64x8xbf16>
    %374 = vector.extract_strided_slice %303 {offsets = [0, 88], sizes = [64, 8], strides = [1, 1]} : vector<64x96xf32> to vector<64x8xf32>
    %375 = arith.truncf %374 : vector<64x8xf32> to vector<64x8xbf16>
    %cst_111 = arith.constant dense<0.000000e+00> : vector<64x64xf32>
    %376 = tpu.matmul %371, %373, %cst_111 {dimension_numbers = #tpu.dot_dimension_numbers<[1], [1], [0], [0], [0, 0, 1, 0], [], []>} : vector<64x8xbf16>, vector<64x8xbf16>, vector<64x64xf32> -> vector<64x64xf32>
    %377 = vector.broadcast %11 : vector<1x64xf32> to vector<64x64xf32>
    %378 = arith.addf %376, %377 : vector<64x64xf32>
    %cst_112 = arith.constant dense<0xFF800000> : vector<64xf32>
    %379 = vector.multi_reduction <maximumf>, %378, %cst_112 [1] : vector<64x64xf32> to vector<64xf32>
    %380 = vector.shape_cast %379 : vector<64xf32> to vector<64x1xf32>
    %381 = vector.broadcast %380 : vector<64x1xf32> to vector<64x64xf32>
    %382 = arith.subf %378, %381 : vector<64x64xf32>
    %383 = math.exp %382 : vector<64x64xf32>
    %cst_113 = arith.constant dense<0.000000e+00> : vector<64xf32>
    %384 = vector.multi_reduction <add>, %383, %cst_113 [1] : vector<64x64xf32> to vector<64xf32>
    %385 = vector.shape_cast %384 : vector<64xf32> to vector<64x1xf32>
    %386 = arith.truncf %383 : vector<64x64xf32> to vector<64x64xbf16>
    %cst_114 = arith.constant dense<0.000000e+00> : vector<64x8xf32>
    %387 = tpu.matmul %386, %375, %cst_114 {dimension_numbers = #tpu.dot_dimension_numbers<[1], [0], [0], [1], [0, 0, 1, 1], [], []>} : vector<64x64xbf16>, vector<64x8xbf16>, vector<64x8xf32> -> vector<64x8xf32>
    %388 = tpu.reciprocal %385 {approx = true} : vector<64x1xf32> -> vector<64x1xf32>
    %389 = vector.broadcast %388 : vector<64x1xf32> to vector<64x8xf32>
    %390 = arith.mulf %387, %389 : vector<64x8xf32>
    %391 = arith.truncf %390 : vector<64x8xf32> to vector<64x8xbf16>
    %392 = tpu.concatenate %325, %347, %369, %391 in 1 : vector<64x8xbf16>, vector<64x8xbf16>, vector<64x8xbf16>, vector<64x8xbf16> -> vector<64x32xbf16>
    %393 = vector.extract_strided_slice %302 {offsets = [64, 0], sizes = [64, 96], strides = [1, 1]} : vector<128x96xf32> to vector<64x96xf32>
    %394 = vector.extract_strided_slice %393 {offsets = [0, 0], sizes = [64, 8], strides = [1, 1]} : vector<64x96xf32> to vector<64x8xf32>
    %395 = arith.truncf %394 : vector<64x8xf32> to vector<64x8xbf16>
    %396 = vector.extract_strided_slice %393 {offsets = [0, 32], sizes = [64, 8], strides = [1, 1]} : vector<64x96xf32> to vector<64x8xf32>
    %397 = arith.truncf %396 : vector<64x8xf32> to vector<64x8xbf16>
    %398 = vector.extract_strided_slice %393 {offsets = [0, 64], sizes = [64, 8], strides = [1, 1]} : vector<64x96xf32> to vector<64x8xf32>
    %399 = arith.truncf %398 : vector<64x8xf32> to vector<64x8xbf16>
    %cst_115 = arith.constant dense<0.000000e+00> : vector<64x64xf32>
    %400 = tpu.matmul %395, %397, %cst_115 {dimension_numbers = #tpu.dot_dimension_numbers<[1], [1], [0], [0], [0, 0, 1, 0], [], []>} : vector<64x8xbf16>, vector<64x8xbf16>, vector<64x64xf32> -> vector<64x64xf32>
    %401 = vector.broadcast %11 : vector<1x64xf32> to vector<64x64xf32>
    %402 = arith.addf %400, %401 : vector<64x64xf32>
    %cst_116 = arith.constant dense<0xFF800000> : vector<64xf32>
    %403 = vector.multi_reduction <maximumf>, %402, %cst_116 [1] : vector<64x64xf32> to vector<64xf32>
    %404 = vector.shape_cast %403 : vector<64xf32> to vector<64x1xf32>
    %405 = vector.broadcast %404 : vector<64x1xf32> to vector<64x64xf32>
    %406 = arith.subf %402, %405 : vector<64x64xf32>
    %407 = math.exp %406 : vector<64x64xf32>
    %cst_117 = arith.constant dense<0.000000e+00> : vector<64xf32>
    %408 = vector.multi_reduction <add>, %407, %cst_117 [1] : vector<64x64xf32> to vector<64xf32>
    %409 = vector.shape_cast %408 : vector<64xf32> to vector<64x1xf32>
    %410 = arith.truncf %407 : vector<64x64xf32> to vector<64x64xbf16>
    %cst_118 = arith.constant dense<0.000000e+00> : vector<64x8xf32>
    %411 = tpu.matmul %410, %399, %cst_118 {dimension_numbers = #tpu.dot_dimension_numbers<[1], [0], [0], [1], [0, 0, 1, 1], [], []>} : vector<64x64xbf16>, vector<64x8xbf16>, vector<64x8xf32> -> vector<64x8xf32>
    %412 = tpu.reciprocal %409 {approx = true} : vector<64x1xf32> -> vector<64x1xf32>
    %413 = vector.broadcast %412 : vector<64x1xf32> to vector<64x8xf32>
    %414 = arith.mulf %411, %413 : vector<64x8xf32>
    %415 = arith.truncf %414 : vector<64x8xf32> to vector<64x8xbf16>
    %416 = vector.extract_strided_slice %393 {offsets = [0, 8], sizes = [64, 8], strides = [1, 1]} : vector<64x96xf32> to vector<64x8xf32>
    %417 = arith.truncf %416 : vector<64x8xf32> to vector<64x8xbf16>
    %418 = vector.extract_strided_slice %393 {offsets = [0, 40], sizes = [64, 8], strides = [1, 1]} : vector<64x96xf32> to vector<64x8xf32>
    %419 = arith.truncf %418 : vector<64x8xf32> to vector<64x8xbf16>
    %420 = vector.extract_strided_slice %393 {offsets = [0, 72], sizes = [64, 8], strides = [1, 1]} : vector<64x96xf32> to vector<64x8xf32>
    %421 = arith.truncf %420 : vector<64x8xf32> to vector<64x8xbf16>
    %cst_119 = arith.constant dense<0.000000e+00> : vector<64x64xf32>
    %422 = tpu.matmul %417, %419, %cst_119 {dimension_numbers = #tpu.dot_dimension_numbers<[1], [1], [0], [0], [0, 0, 1, 0], [], []>} : vector<64x8xbf16>, vector<64x8xbf16>, vector<64x64xf32> -> vector<64x64xf32>
    %423 = vector.broadcast %11 : vector<1x64xf32> to vector<64x64xf32>
    %424 = arith.addf %422, %423 : vector<64x64xf32>
    %cst_120 = arith.constant dense<0xFF800000> : vector<64xf32>
    %425 = vector.multi_reduction <maximumf>, %424, %cst_120 [1] : vector<64x64xf32> to vector<64xf32>
    %426 = vector.shape_cast %425 : vector<64xf32> to vector<64x1xf32>
    %427 = vector.broadcast %426 : vector<64x1xf32> to vector<64x64xf32>
    %428 = arith.subf %424, %427 : vector<64x64xf32>
    %429 = math.exp %428 : vector<64x64xf32>
    %cst_121 = arith.constant dense<0.000000e+00> : vector<64xf32>
    %430 = vector.multi_reduction <add>, %429, %cst_121 [1] : vector<64x64xf32> to vector<64xf32>
    %431 = vector.shape_cast %430 : vector<64xf32> to vector<64x1xf32>
    %432 = arith.truncf %429 : vector<64x64xf32> to vector<64x64xbf16>
    %cst_122 = arith.constant dense<0.000000e+00> : vector<64x8xf32>
    %433 = tpu.matmul %432, %421, %cst_122 {dimension_numbers = #tpu.dot_dimension_numbers<[1], [0], [0], [1], [0, 0, 1, 1], [], []>} : vector<64x64xbf16>, vector<64x8xbf16>, vector<64x8xf32> -> vector<64x8xf32>
    %434 = tpu.reciprocal %431 {approx = true} : vector<64x1xf32> -> vector<64x1xf32>
    %435 = vector.broadcast %434 : vector<64x1xf32> to vector<64x8xf32>
    %436 = arith.mulf %433, %435 : vector<64x8xf32>
    %437 = arith.truncf %436 : vector<64x8xf32> to vector<64x8xbf16>
    %438 = vector.extract_strided_slice %393 {offsets = [0, 16], sizes = [64, 8], strides = [1, 1]} : vector<64x96xf32> to vector<64x8xf32>
    %439 = arith.truncf %438 : vector<64x8xf32> to vector<64x8xbf16>
    %440 = vector.extract_strided_slice %393 {offsets = [0, 48], sizes = [64, 8], strides = [1, 1]} : vector<64x96xf32> to vector<64x8xf32>
    %441 = arith.truncf %440 : vector<64x8xf32> to vector<64x8xbf16>
    %442 = vector.extract_strided_slice %393 {offsets = [0, 80], sizes = [64, 8], strides = [1, 1]} : vector<64x96xf32> to vector<64x8xf32>
    %443 = arith.truncf %442 : vector<64x8xf32> to vector<64x8xbf16>
    %cst_123 = arith.constant dense<0.000000e+00> : vector<64x64xf32>
    %444 = tpu.matmul %439, %441, %cst_123 {dimension_numbers = #tpu.dot_dimension_numbers<[1], [1], [0], [0], [0, 0, 1, 0], [], []>} : vector<64x8xbf16>, vector<64x8xbf16>, vector<64x64xf32> -> vector<64x64xf32>
    %445 = vector.broadcast %11 : vector<1x64xf32> to vector<64x64xf32>
    %446 = arith.addf %444, %445 : vector<64x64xf32>
    %cst_124 = arith.constant dense<0xFF800000> : vector<64xf32>
    %447 = vector.multi_reduction <maximumf>, %446, %cst_124 [1] : vector<64x64xf32> to vector<64xf32>
    %448 = vector.shape_cast %447 : vector<64xf32> to vector<64x1xf32>
    %449 = vector.broadcast %448 : vector<64x1xf32> to vector<64x64xf32>
    %450 = arith.subf %446, %449 : vector<64x64xf32>
    %451 = math.exp %450 : vector<64x64xf32>
    %cst_125 = arith.constant dense<0.000000e+00> : vector<64xf32>
    %452 = vector.multi_reduction <add>, %451, %cst_125 [1] : vector<64x64xf32> to vector<64xf32>
    %453 = vector.shape_cast %452 : vector<64xf32> to vector<64x1xf32>
    %454 = arith.truncf %451 : vector<64x64xf32> to vector<64x64xbf16>
    %cst_126 = arith.constant dense<0.000000e+00> : vector<64x8xf32>
    %455 = tpu.matmul %454, %443, %cst_126 {dimension_numbers = #tpu.dot_dimension_numbers<[1], [0], [0], [1], [0, 0, 1, 1], [], []>} : vector<64x64xbf16>, vector<64x8xbf16>, vector<64x8xf32> -> vector<64x8xf32>
    %456 = tpu.reciprocal %453 {approx = true} : vector<64x1xf32> -> vector<64x1xf32>
    %457 = vector.broadcast %456 : vector<64x1xf32> to vector<64x8xf32>
    %458 = arith.mulf %455, %457 : vector<64x8xf32>
    %459 = arith.truncf %458 : vector<64x8xf32> to vector<64x8xbf16>
    %460 = vector.extract_strided_slice %393 {offsets = [0, 24], sizes = [64, 8], strides = [1, 1]} : vector<64x96xf32> to vector<64x8xf32>
    %461 = arith.truncf %460 : vector<64x8xf32> to vector<64x8xbf16>
    %462 = vector.extract_strided_slice %393 {offsets = [0, 56], sizes = [64, 8], strides = [1, 1]} : vector<64x96xf32> to vector<64x8xf32>
    %463 = arith.truncf %462 : vector<64x8xf32> to vector<64x8xbf16>
    %464 = vector.extract_strided_slice %393 {offsets = [0, 88], sizes = [64, 8], strides = [1, 1]} : vector<64x96xf32> to vector<64x8xf32>
    %465 = arith.truncf %464 : vector<64x8xf32> to vector<64x8xbf16>
    %cst_127 = arith.constant dense<0.000000e+00> : vector<64x64xf32>
    %466 = tpu.matmul %461, %463, %cst_127 {dimension_numbers = #tpu.dot_dimension_numbers<[1], [1], [0], [0], [0, 0, 1, 0], [], []>} : vector<64x8xbf16>, vector<64x8xbf16>, vector<64x64xf32> -> vector<64x64xf32>
    %467 = vector.broadcast %11 : vector<1x64xf32> to vector<64x64xf32>
    %468 = arith.addf %466, %467 : vector<64x64xf32>
    %cst_128 = arith.constant dense<0xFF800000> : vector<64xf32>
    %469 = vector.multi_reduction <maximumf>, %468, %cst_128 [1] : vector<64x64xf32> to vector<64xf32>
    %470 = vector.shape_cast %469 : vector<64xf32> to vector<64x1xf32>
    %471 = vector.broadcast %470 : vector<64x1xf32> to vector<64x64xf32>
    %472 = arith.subf %468, %471 : vector<64x64xf32>
    %473 = math.exp %472 : vector<64x64xf32>
    %cst_129 = arith.constant dense<0.000000e+00> : vector<64xf32>
    %474 = vector.multi_reduction <add>, %473, %cst_129 [1] : vector<64x64xf32> to vector<64xf32>
    %475 = vector.shape_cast %474 : vector<64xf32> to vector<64x1xf32>
    %476 = arith.truncf %473 : vector<64x64xf32> to vector<64x64xbf16>
    %cst_130 = arith.constant dense<0.000000e+00> : vector<64x8xf32>
    %477 = tpu.matmul %476, %465, %cst_130 {dimension_numbers = #tpu.dot_dimension_numbers<[1], [0], [0], [1], [0, 0, 1, 1], [], []>} : vector<64x64xbf16>, vector<64x8xbf16>, vector<64x8xf32> -> vector<64x8xf32>
    %478 = tpu.reciprocal %475 {approx = true} : vector<64x1xf32> -> vector<64x1xf32>
    %479 = vector.broadcast %478 : vector<64x1xf32> to vector<64x8xf32>
    %480 = arith.mulf %477, %479 : vector<64x8xf32>
    %481 = arith.truncf %480 : vector<64x8xf32> to vector<64x8xbf16>
    %482 = tpu.concatenate %415, %437, %459, %481 in 1 : vector<64x8xbf16>, vector<64x8xbf16>, vector<64x8xbf16>, vector<64x8xbf16> -> vector<64x32xbf16>
    %483 = tpu.concatenate %392, %482 in 0 : vector<64x32xbf16>, vector<64x32xbf16> -> vector<128x32xbf16>
    %c1_131 = arith.constant 1 : index
    %c0_132 = arith.constant 0 : index
    %c0_133 = arith.constant 0 : index
    %484 = vector.load %arg8[%c1_131, %c0_132, %c0_133] : memref<2x32x32xbf16, #tpu.memory_space<vmem>>, vector<1x32x32xbf16>
    %485 = vector.shape_cast %484 : vector<1x32x32xbf16> to vector<32x32xbf16>
    %cst_134 = arith.constant dense<0.000000e+00> : vector<128x32xf32>
    %486 = tpu.matmul %483, %485, %cst_134 {dimension_numbers = #tpu.dot_dimension_numbers<[1], [0], [0], [1], [0, 0, 1, 1], [], []>} : vector<128x32xbf16>, vector<32x32xbf16>, vector<128x32xf32> -> vector<128x32xf32>
    %c1_135 = arith.constant 1 : index
    %c0_136 = arith.constant 0 : index
    %487 = vector.load %arg9[%c1_135, %c0_136] : memref<2x32xf32, #tpu.memory_space<vmem>>, vector<1x32xf32>
    %488 = vector.broadcast %487 : vector<1x32xf32> to vector<128x32xf32>
    %489 = arith.addf %486, %488 : vector<128x32xf32>
    %490 = arith.addf %273, %489 : vector<128x32xf32>
    %c1_137 = arith.constant 1 : index
    %c0_138 = arith.constant 0 : index
    %491 = vector.load %arg10[%c1_137, %c0_138] : memref<2x32xf32, #tpu.memory_space<vmem>>, vector<1x32xf32>
    %c1_139 = arith.constant 1 : index
    %c0_140 = arith.constant 0 : index
    %492 = vector.load %arg11[%c1_139, %c0_140] : memref<2x32xf32, #tpu.memory_space<vmem>>, vector<1x32xf32>
    %cst_141 = arith.constant dense<0.000000e+00> : vector<128xf32>
    %493 = vector.multi_reduction <add>, %490, %cst_141 [1] : vector<128x32xf32> to vector<128xf32>
    %494 = vector.shape_cast %493 : vector<128xf32> to vector<128x1xf32>
    %cst_142 = arith.constant 3.200000e+01 : f32
    %495 = vector.broadcast %cst_142 : f32 to vector<128x1xf32>
    %496 = arith.divf %494, %495 : vector<128x1xf32>
    %497 = vector.broadcast %496 : vector<128x1xf32> to vector<128x32xf32>
    %498 = arith.subf %490, %497 : vector<128x32xf32>
    %499 = arith.mulf %498, %498 : vector<128x32xf32>
    %cst_143 = arith.constant dense<0.000000e+00> : vector<128xf32>
    %500 = vector.multi_reduction <add>, %499, %cst_143 [1] : vector<128x32xf32> to vector<128xf32>
    %501 = vector.shape_cast %500 : vector<128xf32> to vector<128x1xf32>
    %cst_144 = arith.constant 3.200000e+01 : f32
    %502 = vector.broadcast %cst_144 : f32 to vector<128x1xf32>
    %503 = arith.divf %501, %502 : vector<128x1xf32>
    %cst_145 = arith.constant 9.99999997E-7 : f32
    %504 = vector.broadcast %cst_145 : f32 to vector<128x1xf32>
    %505 = arith.addf %503, %504 : vector<128x1xf32>
    %506 = math.rsqrt %505 : vector<128x1xf32>
    %507 = vector.broadcast %506 : vector<128x1xf32> to vector<128x32xf32>
    %508 = arith.mulf %498, %507 : vector<128x32xf32>
    %509 = vector.broadcast %491 : vector<1x32xf32> to vector<128x32xf32>
    %510 = arith.mulf %508, %509 : vector<128x32xf32>
    %511 = vector.broadcast %492 : vector<1x32xf32> to vector<128x32xf32>
    %512 = arith.addf %510, %511 : vector<128x32xf32>
    %513 = arith.truncf %512 : vector<128x32xf32> to vector<128x32xbf16>
    %c1_146 = arith.constant 1 : index
    %c0_147 = arith.constant 0 : index
    %c0_148 = arith.constant 0 : index
    %514 = vector.load %arg12[%c1_146, %c0_147, %c0_148] : memref<2x32x128xbf16, #tpu.memory_space<vmem>>, vector<1x32x128xbf16>
    %515 = vector.shape_cast %514 : vector<1x32x128xbf16> to vector<32x128xbf16>
    %cst_149 = arith.constant dense<0.000000e+00> : vector<128x128xf32>
    %516 = tpu.matmul %513, %515, %cst_149 {dimension_numbers = #tpu.dot_dimension_numbers<[1], [0], [0], [1], [0, 0, 1, 1], [], []>} : vector<128x32xbf16>, vector<32x128xbf16>, vector<128x128xf32> -> vector<128x128xf32>
    %c1_150 = arith.constant 1 : index
    %c0_151 = arith.constant 0 : index
    %517 = vector.load %arg13[%c1_150, %c0_151] : memref<2x128xf32, #tpu.memory_space<vmem>>, vector<1x128xf32>
    %518 = vector.broadcast %517 : vector<1x128xf32> to vector<128x128xf32>
    %519 = arith.addf %516, %518 : vector<128x128xf32>
    %cst_152 = arith.constant 5.000000e-01 : f32
    %520 = vector.broadcast %cst_152 : f32 to vector<128x128xf32>
    %521 = arith.mulf %520, %519 : vector<128x128xf32>
    %cst_153 = arith.constant 0.707106769 : f32
    %522 = vector.broadcast %cst_153 : f32 to vector<128x128xf32>
    %523 = arith.mulf %519, %522 : vector<128x128xf32>
    %524 = math.erf %523 : vector<128x128xf32>
    %cst_154 = arith.constant 1.000000e+00 : f32
    %525 = vector.broadcast %cst_154 : f32 to vector<128x128xf32>
    %526 = arith.addf %525, %524 : vector<128x128xf32>
    %527 = arith.mulf %521, %526 : vector<128x128xf32>
    %528 = arith.truncf %527 : vector<128x128xf32> to vector<128x128xbf16>
    %c1_155 = arith.constant 1 : index
    %c0_156 = arith.constant 0 : index
    %c0_157 = arith.constant 0 : index
    %529 = vector.load %arg14[%c1_155, %c0_156, %c0_157] : memref<2x128x32xbf16, #tpu.memory_space<vmem>>, vector<1x128x32xbf16>
    %530 = vector.shape_cast %529 : vector<1x128x32xbf16> to vector<128x32xbf16>
    %cst_158 = arith.constant dense<0.000000e+00> : vector<128x32xf32>
    %531 = tpu.matmul %528, %530, %cst_158 {dimension_numbers = #tpu.dot_dimension_numbers<[1], [0], [0], [1], [0, 0, 1, 1], [], []>} : vector<128x128xbf16>, vector<128x32xbf16>, vector<128x32xf32> -> vector<128x32xf32>
    %c1_159 = arith.constant 1 : index
    %c0_160 = arith.constant 0 : index
    %532 = vector.load %arg15[%c1_159, %c0_160] : memref<2x32xf32, #tpu.memory_space<vmem>>, vector<1x32xf32>
    %533 = vector.broadcast %532 : vector<1x32xf32> to vector<128x32xf32>
    %534 = arith.addf %531, %533 : vector<128x32xf32>
    %535 = arith.addf %490, %534 : vector<128x32xf32>
    %536 = vector.shape_cast %535 : vector<128x32xf32> to vector<2x64x32xf32>
    %537 = vector.extract_strided_slice %536 {offsets = [0, 0, 0], sizes = [2, 1, 32], strides = [1, 1, 1]} : vector<2x64x32xf32> to vector<2x1x32xf32>
    %538 = vector.shape_cast %537 : vector<2x1x32xf32> to vector<2x32xf32>
    %c0_161 = arith.constant 0 : index
    %c0_162 = arith.constant 0 : index
    %539 = vector.load %arg16[%c0_161, %c0_162] : memref<1x32xf32, #tpu.memory_space<vmem>>, vector<1x32xf32>
    %c0_163 = arith.constant 0 : index
    %c0_164 = arith.constant 0 : index
    %540 = vector.load %arg17[%c0_163, %c0_164] : memref<1x32xf32, #tpu.memory_space<vmem>>, vector<1x32xf32>
    %cst_165 = arith.constant dense<0.000000e+00> : vector<2xf32>
    %541 = vector.multi_reduction <add>, %538, %cst_165 [1] : vector<2x32xf32> to vector<2xf32>
    %542 = vector.shape_cast %541 : vector<2xf32> to vector<2x1xf32>
    %cst_166 = arith.constant 3.200000e+01 : f32
    %543 = vector.broadcast %cst_166 : f32 to vector<2x1xf32>
    %544 = arith.divf %542, %543 : vector<2x1xf32>
    %545 = vector.broadcast %544 : vector<2x1xf32> to vector<2x32xf32>
    %546 = arith.subf %538, %545 : vector<2x32xf32>
    %547 = arith.mulf %546, %546 : vector<2x32xf32>
    %cst_167 = arith.constant dense<0.000000e+00> : vector<2xf32>
    %548 = vector.multi_reduction <add>, %547, %cst_167 [1] : vector<2x32xf32> to vector<2xf32>
    %549 = vector.shape_cast %548 : vector<2xf32> to vector<2x1xf32>
    %cst_168 = arith.constant 3.200000e+01 : f32
    %550 = vector.broadcast %cst_168 : f32 to vector<2x1xf32>
    %551 = arith.divf %549, %550 : vector<2x1xf32>
    %cst_169 = arith.constant 9.99999997E-7 : f32
    %552 = vector.broadcast %cst_169 : f32 to vector<2x1xf32>
    %553 = arith.addf %551, %552 : vector<2x1xf32>
    %554 = math.rsqrt %553 : vector<2x1xf32>
    %555 = vector.broadcast %554 : vector<2x1xf32> to vector<2x32xf32>
    %556 = arith.mulf %546, %555 : vector<2x32xf32>
    %557 = vector.broadcast %539 : vector<1x32xf32> to vector<2x32xf32>
    %558 = arith.mulf %556, %557 : vector<2x32xf32>
    %559 = vector.broadcast %540 : vector<1x32xf32> to vector<2x32xf32>
    %560 = arith.addf %558, %559 : vector<2x32xf32>
    %561 = vector.shape_cast %560 : vector<2x32xf32> to vector<2x1x32xf32>
    %c0_170 = arith.constant 0 : index
    %c0_171 = arith.constant 0 : index
    %c0_172 = arith.constant 0 : index
    %562 = vector.load %arg18[%c0_170, %c0_171, %c0_172] : memref<2x1x32xf32, #tpu.memory_space<vmem>>, vector<2x1x32xf32>
    tpu.vector_store %arg18[%c0_170, %c0_171, %c0_172], %561 {strides = array<i32>} : memref<2x1x32xf32, #tpu.memory_space<vmem>>, vector<2x1x32xf32>,
    return
  }
  func.func @transform_0(%arg0: i32) -> (i32, i32, i32) {
    %c0_i32 = arith.constant 0 : i32
    %c0_i32_0 = arith.constant 0 : i32
    %c0_i32_1 = arith.constant 0 : i32
    return %arg0, %c0_i32, %c0_i32_0 : i32, i32, i32
  }
  func.func @transform_1(%arg0: i32) -> (i32, i32) {
    %c0_i32 = arith.constant 0 : i32
    %c0_i32_0 = arith.constant 0 : i32
    %c0_i32_1 = arith.constant 0 : i32
    return %c0_i32, %c0_i32_0 : i32, i32
  }
  func.func @transform_2(%arg0: i32) -> (i32, i32) {
    %c0_i32 = arith.constant 0 : i32
    %c0_i32_0 = arith.constant 0 : i32
    %c0_i32_1 = arith.constant 0 : i32
    return %c0_i32, %c0_i32_0 : i32, i32
  }
  func.func @transform_3(%arg0: i32) -> (i32, i32) {
    %c0_i32 = arith.constant 0 : i32
    %c0_i32_0 = arith.constant 0 : i32
    %c0_i32_1 = arith.constant 0 : i32
    return %c0_i32, %c0_i32_0 : i32, i32
  }
  func.func @transform_4(%arg0: i32) -> (i32, i32) {
    %c0_i32 = arith.constant 0 : i32
    %c0_i32_0 = arith.constant 0 : i32
    %c0_i32_1 = arith.constant 0 : i32
    return %c0_i32, %c0_i32_0 : i32, i32
  }
  func.func @transform_5(%arg0: i32) -> (i32, i32, i32) {
    %c0_i32 = arith.constant 0 : i32
    %c0_i32_0 = arith.constant 0 : i32
    %c0_i32_1 = arith.constant 0 : i32
    %c0_i32_2 = arith.constant 0 : i32
    return %c0_i32, %c0_i32_0, %c0_i32_1 : i32, i32, i32
  }
  func.func @transform_6(%arg0: i32) -> (i32, i32) {
    %c0_i32 = arith.constant 0 : i32
    %c0_i32_0 = arith.constant 0 : i32
    %c0_i32_1 = arith.constant 0 : i32
    return %c0_i32, %c0_i32_0 : i32, i32
  }
  func.func @transform_7(%arg0: i32) -> (i32, i32, i32) {
    %c0_i32 = arith.constant 0 : i32
    %c0_i32_0 = arith.constant 0 : i32
    %c0_i32_1 = arith.constant 0 : i32
    %c0_i32_2 = arith.constant 0 : i32
    return %c0_i32, %c0_i32_0, %c0_i32_1 : i32, i32, i32
  }
  func.func @transform_8(%arg0: i32) -> (i32, i32) {
    %c0_i32 = arith.constant 0 : i32
    %c0_i32_0 = arith.constant 0 : i32
    %c0_i32_1 = arith.constant 0 : i32
    return %c0_i32, %c0_i32_0 : i32, i32
  }
  func.func @transform_9(%arg0: i32) -> (i32, i32) {
    %c0_i32 = arith.constant 0 : i32
    %c0_i32_0 = arith.constant 0 : i32
    %c0_i32_1 = arith.constant 0 : i32
    return %c0_i32, %c0_i32_0 : i32, i32
  }
  func.func @transform_10(%arg0: i32) -> (i32, i32) {
    %c0_i32 = arith.constant 0 : i32
    %c0_i32_0 = arith.constant 0 : i32
    %c0_i32_1 = arith.constant 0 : i32
    return %c0_i32, %c0_i32_0 : i32, i32
  }
  func.func @transform_11(%arg0: i32) -> (i32, i32, i32) {
    %c0_i32 = arith.constant 0 : i32
    %c0_i32_0 = arith.constant 0 : i32
    %c0_i32_1 = arith.constant 0 : i32
    %c0_i32_2 = arith.constant 0 : i32
    return %c0_i32, %c0_i32_0, %c0_i32_1 : i32, i32, i32
  }
  func.func @transform_12(%arg0: i32) -> (i32, i32) {
    %c0_i32 = arith.constant 0 : i32
    %c0_i32_0 = arith.constant 0 : i32
    %c0_i32_1 = arith.constant 0 : i32
    return %c0_i32, %c0_i32_0 : i32, i32
  }
  func.func @transform_13(%arg0: i32) -> (i32, i32, i32) {
    %c0_i32 = arith.constant 0 : i32
    %c0_i32_0 = arith.constant 0 : i32
    %c0_i32_1 = arith.constant 0 : i32
    %c0_i32_2 = arith.constant 0 : i32
    return %c0_i32, %c0_i32_0, %c0_i32_1 : i32, i32, i32
  }
  func.func @transform_14(%arg0: i32) -> (i32, i32) {
    %c0_i32 = arith.constant 0 : i32
    %c0_i32_0 = arith.constant 0 : i32
    %c0_i32_1 = arith.constant 0 : i32
    return %c0_i32, %c0_i32_0 : i32, i32
  }
  func.func @transform_15(%arg0: i32) -> (i32, i32) {
    %c0_i32 = arith.constant 0 : i32
    %c0_i32_0 = arith.constant 0 : i32
    %c0_i32_1 = arith.constant 0 : i32
    return %c0_i32, %c0_i32_0 : i32, i32
  }
  func.func @transform_16(%arg0: i32) -> (i32, i32) {
    %c0_i32 = arith.constant 0 : i32
    %c0_i32_0 = arith.constant 0 : i32
    %c0_i32_1 = arith.constant 0 : i32
    return %c0_i32, %c0_i32_0 : i32, i32
  }
  func.func @transform_17(%arg0: i32) -> (i32, i32, i32) {
    %c0_i32 = arith.constant 0 : i32
    %c0_i32_0 = arith.constant 0 : i32
    %c0_i32_1 = arith.constant 0 : i32
    return %arg0, %c0_i32, %c0_i32_0 : i32, i32, i32
  }
}

</mosaic_0001>

<llo_original>
// kernel: vit_forward.1
$region0: #{vit_forward.1}
  #allocation0 [shape = 'u32[]', space=smem, size = 0x4, offset = 0x4, fixed_abs, tag = 'smem constant byte address 0x4 - core index']
  #allocation1 [shape = 'u32[144,128]{1,0:T(1,128)}', space=vmem, size = 0x12000, scoped, tag = 'internal scratch']
  %s0 = inlined_call_operand.vmem [shape: bf16[2,64,128], index: 0, kind: input, shape index: {}]
  %s1 = inlined_call_operand.vmem [shape: bf16[128,32], index: 1, kind: input, shape index: {}]
  %s2 = inlined_call_operand.vmem [shape: f32[128,32], index: 2, kind: input, shape index: {}]
  %s3 = inlined_call_operand.vmem [shape: f32[2,32], index: 3, kind: input, shape index: {}]
  %s4 = inlined_call_operand.vmem [shape: f32[2,32], index: 4, kind: input, shape index: {}]
  %s5 = inlined_call_operand.vmem [shape: bf16[2,32,96], index: 5, kind: input, shape index: {}]
  %s6 = inlined_call_operand.vmem [shape: f32[2,96], index: 6, kind: input, shape index: {}]
  %s7 = inlined_call_operand.vmem [shape: bf16[2,32,32], index: 7, kind: input, shape index: {}]
  %s8 = inlined_call_operand.vmem [shape: f32[2,32], index: 8, kind: input, shape index: {}]
  %s9 = inlined_call_operand.vmem [shape: f32[2,32], index: 9, kind: input, shape index: {}]
  %s10 = inlined_call_operand.vmem [shape: f32[2,32], index: 10, kind: input, shape index: {}]
  %s11 = inlined_call_operand.vmem [shape: bf16[2,32,128], index: 11, kind: input, shape index: {}]
  %s12 = inlined_call_operand.vmem [shape: f32[2,128], index: 12, kind: input, shape index: {}]
  %s13 = inlined_call_operand.vmem [shape: bf16[2,128,32], index: 13, kind: input, shape index: {}]
  %s14 = inlined_call_operand.vmem [shape: f32[2,32], index: 14, kind: input, shape index: {}]
  %s15 = inlined_call_operand.vmem [shape: f32[1,32], index: 15, kind: input, shape index: {}]
  %s16 = inlined_call_operand.vmem [shape: f32[1,32], index: 16, kind: input, shape index: {}]
  %s17 = inlined_call_operand.hbm [shape: f32[2,1,32], index: 17, kind: output, shape index: {}]
  %s18 = sld [smem:[#allocation0]]
  $region78: #{vit_forward.1} parent=0
    _
  %s20 = ssub.s32 1, %s18
  %s21 = scalar_select 0, %s20, %s18
  $region1: #{vit_forward.1} parent=0
    #allocation2 [shape = 'u8[1024]{0}', space=vmem, size = 0x400, scoped, tag = 'output window, operand 0, single buffered']
    #allocation3 [shape = 's32[1]{0}', space=sflag, size = 0x4, scoped, tag = 'scoped memory for vit_forward.1']
    %22 = vsyncpa [#allocation3], 0
    // Predicated region
    $region2: #{vit_forward.1} parent=1 // pred_check
      _
    $region3: #{vit_forward.1} parent=1 // pred_check_branch
      %24 = sbr.rel (0) target = $region5
    $region4: #{vit_forward.1} parent=1 // pred_region
      _
    $region5: #{vit_forward.1} parent=1 // pred_fallthru
      _
    // Predicated region
    $region6: #{vit_forward.1} parent=1 // pred_check
      _
    $region7: #{vit_forward.1} parent=1 // pred_check_branch
      %26 = sbr.rel (0) target = $region9
    $region8: #{vit_forward.1} parent=1 // pred_region
      _
    $region9: #{vit_forward.1} parent=1 // pred_fallthru
      _
    // Predicated region
    $region10: #{vit_forward.1} parent=1 // pred_check
      _
    $region11: #{vit_forward.1} parent=1 // pred_check_branch
      %28 = sbr.rel (0) target = $region13
    $region12: #{vit_forward.1} parent=1 // pred_region
      _
    $region13: #{vit_forward.1} parent=1 // pred_fallthru
      _
    // Predicated region
    $region14: #{vit_forward.1} parent=1 // pred_check
      _
    $region15: #{vit_forward.1} parent=1 // pred_check_branch
      %30 = sbr.rel (0) target = $region17
    $region16: #{vit_forward.1} parent=1 // pred_region
      _
    $region17: #{vit_forward.1} parent=1 // pred_fallthru
      _
    // Predicated region
    $region18: #{vit_forward.1} parent=1 // pred_check
      _
    $region19: #{vit_forward.1} parent=1 // pred_check_branch
      %32 = sbr.rel (0) target = $region21
    $region20: #{vit_forward.1} parent=1 // pred_region
      _
    $region21: #{vit_forward.1} parent=1 // pred_fallthru
      _
    // Predicated region
    $region22: #{vit_forward.1} parent=1 // pred_check
      _
    $region23: #{vit_forward.1} parent=1 // pred_check_branch
      %34 = sbr.rel (0) target = $region25
    $region24: #{vit_forward.1} parent=1 // pred_region
      _
    $region25: #{vit_forward.1} parent=1 // pred_fallthru
      _
    // Predicated region
    $region26: #{vit_forward.1} parent=1 // pred_check
      _
    $region27: #{vit_forward.1} parent=1 // pred_check_branch
      %36 = sbr.rel (0) target = $region29
    $region28: #{vit_forward.1} parent=1 // pred_region
      _
    $region29: #{vit_forward.1} parent=1 // pred_fallthru
      _
    // Predicated region
    $region30: #{vit_forward.1} parent=1 // pred_check
      _
    $region31: #{vit_forward.1} parent=1 // pred_check_branch
      %38 = sbr.rel (0) target = $region33
    $region32: #{vit_forward.1} parent=1 // pred_region
      _
    $region33: #{vit_forward.1} parent=1 // pred_fallthru
      _
    // Predicated region
    $region34: #{vit_forward.1} parent=1 // pred_check
      _
    $region35: #{vit_forward.1} parent=1 // pred_check_branch
      %40 = sbr.rel (0) target = $region37
    $region36: #{vit_forward.1} parent=1 // pred_region
      _
    $region37: #{vit_forward.1} parent=1 // pred_fallthru
      _
    // Predicated region
    $region38: #{vit_forward.1} parent=1 // pred_check
      _
    $region39: #{vit_forward.1} parent=1 // pred_check_branch
      %42 = sbr.rel (0) target = $region41
    $region40: #{vit_forward.1} parent=1 // pred_region
      _
    $region41: #{vit_forward.1} parent=1 // pred_fallthru
      _
    // Predicated region
    $region42: #{vit_forward.1} parent=1 // pred_check
      _
    $region43: #{vit_forward.1} parent=1 // pred_check_branch
      %44 = sbr.rel (0) target = $region45
    $region44: #{vit_forward.1} parent=1 // pred_region
      _
    $region45: #{vit_forward.1} parent=1 // pred_fallthru
      _
    // Predicated region
    $region46: #{vit_forward.1} parent=1 // pred_check
      _
    $region47: #{vit_forward.1} parent=1 // pred_check_branch
      %46 = sbr.rel (0) target = $region49
    $region48: #{vit_forward.1} parent=1 // pred_region
      _
    $region49: #{vit_forward.1} parent=1 // pred_fallthru
      _
    // Predicated region
    $region50: #{vit_forward.1} parent=1 // pred_check
      _
    $region51: #{vit_forward.1} parent=1 // pred_check_branch
      %48 = sbr.rel (0) target = $region53
    $region52: #{vit_forward.1} parent=1 // pred_region
      _
    $region53: #{vit_forward.1} parent=1 // pred_fallthru
      _
    // Predicated region
    $region54: #{vit_forward.1} parent=1 // pred_check
      _
    $region55: #{vit_forward.1} parent=1 // pred_check_branch
      %50 = sbr.rel (0) target = $region57
    $region56: #{vit_forward.1} parent=1 // pred_region
      _
    $region57: #{vit_forward.1} parent=1 // pred_fallthru
      _
    // Predicated region
    $region58: #{vit_forward.1} parent=1 // pred_check
      _
    $region59: #{vit_forward.1} parent=1 // pred_check_branch
      %52 = sbr.rel (0) target = $region61
    $region60: #{vit_forward.1} parent=1 // pred_region
      _
    $region61: #{vit_forward.1} parent=1 // pred_fallthru
      _
    // Predicated region
    $region62: #{vit_forward.1} parent=1 // pred_check
      _
    $region63: #{vit_forward.1} parent=1 // pred_check_branch
      %54 = sbr.rel (0) target = $region65
    $region64: #{vit_forward.1} parent=1 // pred_region
      _
    $region65: #{vit_forward.1} parent=1 // pred_fallthru
      _
    // Predicated region
    $region66: #{vit_forward.1} parent=1 // pred_check
      _
    $region67: #{vit_forward.1} parent=1 // pred_check_branch
      %56 = sbr.rel (0) target = $region69
    $region68: #{vit_forward.1} parent=1 // pred_region
      _
    $region69: #{vit_forward.1} parent=1 // pred_fallthru
      _
    %v58 = vld [vmem:[%s0] sm:$0xf]
    %v59 = vld [vmem:[%s0 + $0x4] sm:$0xf]
    %v60 = vld [vmem:[%s0 + $0x8] sm:$0xf]
    %v61 = vld [vmem:[%s0 + $0xc] sm:$0xf]
    %v62 = vld [vmem:[%s0 + $0x10] sm:$0xf]
    %v63 = vld [vmem:[%s0 + $0x14] sm:$0xf]
    %v64 = vld [vmem:[%s0 + $0x18] sm:$0xf]
    %v65 = vld [vmem:[%s0 + $0x1c] sm:$0xf]
    %v66 = vld [vmem:[%s0 + $0x20] sm:$0xf]
    %v67 = vld [vmem:[%s0 + $0x24] sm:$0xf]
    %v68 = vld [vmem:[%s0 + $0x28] sm:$0xf]
    %v69 = vld [vmem:[%s0 + $0x2c] sm:$0xf]
    %v70 = vld [vmem:[%s0 + $0x30] sm:$0xf]
    %v71 = vld [vmem:[%s0 + $0x34] sm:$0xf]
    %v72 = vld [vmem:[%s0 + $0x38] sm:$0xf]
    %v73 = vld [vmem:[%s0 + $0x3c] sm:$0xf]
    %v74 = vld [vmem:[%s1] sm:$0xf]
    %v75 = vld [vmem:[%s1 + $0x4] sm:$0xf]
    %v76 = vld [vmem:[%s1 + $0x8] sm:$0xf]
    %v77 = vld [vmem:[%s1 + $0xc] sm:$0xf]
    %v78 = vld [vmem:[%s1 + $0x10] sm:$0xf]
    %v79 = vld [vmem:[%s1 + $0x14] sm:$0xf]
    %v80 = vld [vmem:[%s1 + $0x18] sm:$0xf]
    %v81 = vld [vmem:[%s1 + $0x1c] sm:$0xf]
    %v82 = vld [vmem:[%s1 + $0x20] sm:$0xf]
    %v83 = vld [vmem:[%s1 + $0x24] sm:$0xf]
    %v84 = vld [vmem:[%s1 + $0x28] sm:$0xf]
    %v85 = vld [vmem:[%s1 + $0x2c] sm:$0xf]
    %v86 = vld [vmem:[%s1 + $0x30] sm:$0xf]
    %v87 = vld [vmem:[%s1 + $0x34] sm:$0xf]
    %v88 = vld [vmem:[%s1 + $0x38] sm:$0xf]
    %v89 = vld [vmem:[%s1 + $0x3c] sm:$0xf]
    %v90 = vld [vmem:[%s2] sm:$0xff]
    %v91 = vld [vmem:[%s2 + $0x8] sm:$0xff]
    %v92 = vld [vmem:[%s2 + $0x10] sm:$0xff]
    %v93 = vld [vmem:[%s2 + $0x18] sm:$0xff]
    %v94 = vld [vmem:[%s2 + $0x20] sm:$0xff]
    %v95 = vld [vmem:[%s2 + $0x28] sm:$0xff]
    %v96 = vld [vmem:[%s2 + $0x30] sm:$0xff]
    %v97 = vld [vmem:[%s2 + $0x38] sm:$0xff]
    %v98 = vld [vmem:[%s2 + $0x40] sm:$0xff]
    %v99 = vld [vmem:[%s2 + $0x48] sm:$0xff]
    %v100 = vld [vmem:[%s2 + $0x50] sm:$0xff]
    %v101 = vld [vmem:[%s2 + $0x58] sm:$0xff]
    %v102 = vld [vmem:[%s2 + $0x60] sm:$0xff]
    %v103 = vld [vmem:[%s2 + $0x68] sm:$0xff]
    %v104 = vld [vmem:[%s2 + $0x70] sm:$0xff]
    %v105 = vld [vmem:[%s2 + $0x78] sm:$0xff]
    %v122 = vunpack.c.l.b16 %v58
    %v123 = vunpack.c.l.b16 %v59
    %v124 = vunpack.c.l.b16 %v60
    %v125 = vunpack.c.l.b16 %v61
    %v126 = vunpack.c.l.b16 %v62
    %v127 = vunpack.c.l.b16 %v63
    %v128 = vunpack.c.l.b16 %v64
    %v129 = vunpack.c.l.b16 %v65
    %v130 = vunpack.c.l.b16 %v66
    %v131 = vunpack.c.l.b16 %v67
    %v132 = vunpack.c.l.b16 %v68
    %v133 = vunpack.c.l.b16 %v69
    %v134 = vunpack.c.l.b16 %v70
    %v135 = vunpack.c.l.b16 %v71
    %v136 = vunpack.c.l.b16 %v72
    %v137 = vunpack.c.l.b16 %v73
    %v138 = vpack.c.b16 %v123, %v122
    %v139 = vpack.c.b16 %v125, %v124
    %v140 = vpack.c.b16 %v127, %v126
    %v141 = vpack.c.b16 %v129, %v128
    %v142 = vpack.c.b16 %v131, %v130
    %v143 = vpack.c.b16 %v133, %v132
    %v144 = vpack.c.b16 %v135, %v134
    %v145 = vpack.c.b16 %v137, %v136
    %v170 = vunpack.c.l.b16 %v74
    %v171 = vunpack.c.l.b16 %v75
    %v172 = vunpack.c.l.b16 %v76
    %v173 = vunpack.c.l.b16 %v77
    %v174 = vunpack.c.l.b16 %v78
    %v175 = vunpack.c.l.b16 %v79
    %v176 = vunpack.c.l.b16 %v80
    %v177 = vunpack.c.l.b16 %v81
    %v178 = vunpack.c.l.b16 %v82
    %v179 = vunpack.c.l.b16 %v83
    %v180 = vunpack.c.l.b16 %v84
    %v181 = vunpack.c.l.b16 %v85
    %v182 = vunpack.c.l.b16 %v86
    %v183 = vunpack.c.l.b16 %v87
    %v184 = vunpack.c.l.b16 %v88
    %v185 = vunpack.c.l.b16 %v89
    %v186 = vpack.c.b16 %v171, %v170
    %v187 = vpack.c.b16 %v173, %v172
    %v188 = vpack.c.b16 %v175, %v174
    %v189 = vpack.c.b16 %v177, %v176
    %v190 = vpack.c.b16 %v179, %v178
    %v191 = vpack.c.b16 %v181, %v180
    %v192 = vpack.c.b16 %v183, %v182
    %v193 = vpack.c.b16 %v185, %v184
    %202 = vmatprep.subr.bf16.mxu0 0
    %203 = vmatpush1.bf16.msra.mxu0 %v186
    %204 = vmatprep.subr.bf16.mxu0 0
    %205 = vmatpush1.bf16.msra.mxu0 %v187
    %206 = vmatprep.subr.bf16.mxu0 0
    %207 = vmatpush1.bf16.msra.mxu0 %v188
    %208 = vmatprep.subr.bf16.mxu0 0
    %209 = vmatpush1.bf16.msra.mxu0 %v189
    %210 = vmatprep.subr.bf16.mxu0 0
    %211 = vmatpush1.bf16.msra.mxu0 %v190
    %212 = vmatprep.subr.bf16.mxu0 0
    %213 = vmatpush1.bf16.msra.mxu0 %v191
    %214 = vmatprep.subr.bf16.mxu0 0
    %215 = vmatpush1.bf16.msra.mxu0 %v192
    %216 = vmatprep.subr.bf16.mxu0 0
    %217 = vmatpush1.bf16.msra.mxu0 %v193
    %218 = vmatprep.subr.bf16.mxu0 0
    %219 = vmatpush1.bf16.msra.mxu0 0
    %220 = vmatprep.subr.bf16.mxu0 0
    %221 = vmatpush1.bf16.msra.mxu0 0
    %222 = vmatprep.subr.bf16.mxu0 0
    %223 = vmatpush1.bf16.msra.mxu0 0
    %224 = vmatprep.subr.bf16.mxu0 0
    %225 = vmatpush1.bf16.msra.mxu0 0
    %226 = vmatprep.subr.bf16.mxu0 0
    %227 = vmatpush1.bf16.msra.mxu0 0
    %228 = vmatprep.subr.bf16.mxu0 0
    %229 = vmatpush1.bf16.msra.mxu0 0
    %230 = vmatprep.subr.bf16.mxu0 0
    %231 = vmatpush1.bf16.msra.mxu0 0
    %232 = vmatprep.subr.bf16.mxu0 0
    %233 = vmatpush1.bf16.msra.mxu0 0
    %234 = vmatprep.mubr.bf16.mxu0 0
    %235 = vmatmul.mubr.bf16.gmra.mrb[0].mxu0 %v138
    %v236 = vpop.f32.mrb[0].mxu0
    %v237 = vadd.f32 %v90, %v236
    %v238 = vpop.f32.mrb[0].mxu0
    %v239 = vpop.f32.mrb[0].mxu0
    %v240 = vadd.f32 %v91, %v239
    %v241 = vpop.f32.mrb[0].mxu0
    %242 = vmatprep.mubr.bf16.mxu0 0
    %243 = vmatmul.mubr.bf16.gmra.mrb[0].mxu0 %v139
    %v244 = vpop.f32.mrb[0].mxu0
    %v245 = vadd.f32 %v92, %v244
    %v246 = vpop.f32.mrb[0].mxu0
    %v247 = vpop.f32.mrb[0].mxu0
    %v248 = vadd.f32 %v93, %v247
    %v249 = vpop.f32.mrb[0].mxu0
    %250 = vmatprep.mubr.bf16.mxu0 0
    %251 = vmatmul.mubr.bf16.gmra.mrb[0].mxu0 %v140
    %v252 = vpop.f32.mrb[0].mxu0
    %v253 = vadd.f32 %v94, %v252
    %v254 = vpop.f32.mrb[0].mxu0
    %v255 = vpop.f32.mrb[0].mxu0
    %v256 = vadd.f32 %v95, %v255
    %v257 = vpop.f32.mrb[0].mxu0
    %258 = vmatprep.mubr.bf16.mxu0 0
    %259 = vmatmul.mubr.bf16.gmra.mrb[0].mxu0 %v141
    %v260 = vpop.f32.mrb[0].mxu0
    %v261 = vadd.f32 %v96, %v260
    %v262 = vpop.f32.mrb[0].mxu0
    %v263 = vpop.f32.mrb[0].mxu0
    %v264 = vadd.f32 %v97, %v263
    %v265 = vpop.f32.mrb[0].mxu0
    %266 = vmatprep.mubr.bf16.mxu0 0
    %267 = vmatmul.mubr.bf16.gmra.mrb[0].mxu0 %v142
    %v268 = vpop.f32.mrb[0].mxu0
    %v269 = vadd.f32 %v98, %v268
    %v270 = vpop.f32.mrb[0].mxu0
    %v271 = vpop.f32.mrb[0].mxu0
    %v272 = vadd.f32 %v99, %v271
    %v273 = vpop.f32.mrb[0].mxu0
    %274 = vmatprep.mubr.bf16.mxu0 0
    %275 = vmatmul.mubr.bf16.gmra.mrb[0].mxu0 %v143
    %v276 = vpop.f32.mrb[0].mxu0
    %v277 = vadd.f32 %v100, %v276
    %v278 = vpop.f32.mrb[0].mxu0
    %v279 = vpop.f32.mrb[0].mxu0
    %v280 = vadd.f32 %v101, %v279
    %v281 = vpop.f32.mrb[0].mxu0
    %282 = vmatprep.mubr.bf16.mxu0 0
    %283 = vmatmul.mubr.bf16.gmra.mrb[0].mxu0 %v144
    %v284 = vpop.f32.mrb[0].mxu0
    %v285 = vadd.f32 %v102, %v284
    %v286 = vpop.f32.mrb[0].mxu0
    %v287 = vpop.f32.mrb[0].mxu0
    %v288 = vadd.f32 %v103, %v287
    %v289 = vpop.f32.mrb[0].mxu0
    %290 = vmatprep.mubr.bf16.mxu0 0
    %291 = vmatmul.mubr.bf16.gmra.mrb[0].mxu0 %v145
    %v292 = vpop.f32.mrb[0].mxu0
    %v293 = vadd.f32 %v104, %v292
    %v294 = vpop.f32.mrb[0].mxu0
    %v295 = vpop.f32.mrb[0].mxu0
    %v296 = vadd.f32 %v105, %v295
    %v297 = vpop.f32.mrb[0].mxu0
    %298 = vdwg.mxu0
    %v299 = vlaneseq
    %v300 = vand.u32 %v299, 127
    %vm301 = vcmp.lt.s32.totalorder %v300, 50
    %v302 = vsel %vm301, 0.0, -1e+30
    %v303 = vld [vmem:[%s3] sm:$0x1]
    %v304 = vld [vmem:[%s4] sm:$0x1]
    %vm305 = vcmask 261120
    %v306 = vsel %vm305, %v237, 0.0
    %307 = vadd.xlane.f32.xlu0 %v306
    %v308 = vpop.xlane.xlu0 %307
    %v309 = vsel %vm305, %v240, 0.0
    %310 = vadd.xlane.f32.xlu0 %v309
    %v311 = vpop.xlane.xlu0 %310
    %v312 = vsel %vm305, %v245, 0.0
    %313 = vadd.xlane.f32.xlu0 %v312
    %v314 = vpop.xlane.xlu0 %313
    %v315 = vsel %vm305, %v248, 0.0
    %316 = vadd.xlane.f32.xlu0 %v315
    %v317 = vpop.xlane.xlu0 %316
    %v318 = vsel %vm305, %v253, 0.0
    %319 = vadd.xlane.f32.xlu0 %v318
    %v320 = vpop.xlane.xlu0 %319
    %v321 = vsel %vm305, %v256, 0.0
    %322 = vadd.xlane.f32.xlu0 %v321
    %v323 = vpop.xlane.xlu0 %322
    %v324 = vsel %vm305, %v261, 0.0
    %325 = vadd.xlane.f32.xlu0 %v324
    %v326 = vpop.xlane.xlu0 %325
    %v327 = vsel %vm305, %v264, 0.0
    %328 = vadd.xlane.f32.xlu0 %v327
    %v329 = vpop.xlane.xlu0 %328
    %v330 = vsel %vm305, %v269, 0.0
    %331 = vadd.xlane.f32.xlu0 %v330
    %v332 = vpop.xlane.xlu0 %331
    %v333 = vsel %vm305, %v272, 0.0
    %334 = vadd.xlane.f32.xlu0 %v333
    %v335 = vpop.xlane.xlu0 %334
    %v336 = vsel %vm305, %v277, 0.0
    %337 = vadd.xlane.f32.xlu0 %v336
    %v338 = vpop.xlane.xlu0 %337
    %v339 = vsel %vm305, %v280, 0.0
    %340 = vadd.xlane.f32.xlu0 %v339
    %v341 = vpop.xlane.xlu0 %340
    %v342 = vsel %vm305, %v285, 0.0
    %343 = vadd.xlane.f32.xlu0 %v342
    %v344 = vpop.xlane.xlu0 %343
    %v345 = vsel %vm305, %v288, 0.0
    %346 = vadd.xlane.f32.xlu0 %v345
    %v347 = vpop.xlane.xlu0 %346
    %v348 = vsel %vm305, %v293, 0.0
    %349 = vadd.xlane.f32.xlu0 %v348
    %v350 = vpop.xlane.xlu0 %349
    %v351 = vsel %vm305, %v296, 0.0
    %352 = vadd.xlane.f32.xlu0 %v351
    %v353 = vpop.xlane.xlu0 %352
    %v354 = vrcp.pop 32.0
    %v355 = vmul.f32 %v308, %v354
    %v356 = vmul.f32 %v311, %v354
    %v357 = vmul.f32 %v314, %v354
    %v358 = vmul.f32 %v317, %v354
    %v359 = vmul.f32 %v320, %v354
    %v360 = vmul.f32 %v323, %v354
    %v361 = vmul.f32 %v326, %v354
    %v362 = vmul.f32 %v329, %v354
    %v363 = vmul.f32 %v332, %v354
    %v364 = vmul.f32 %v335, %v354
    %v365 = vmul.f32 %v338, %v354
    %v366 = vmul.f32 %v341, %v354
    %v367 = vmul.f32 %v344, %v354
    %v368 = vmul.f32 %v347, %v354
    %v369 = vmul.f32 %v350, %v354
    %v370 = vmul.f32 %v353, %v354
    %v371 = vsub.f32 %v237, %v355
    %v372 = vsub.f32 %v240, %v356
    %v373 = vsub.f32 %v245, %v357
    %v374 = vsub.f32 %v248, %v358
    %v375 = vsub.f32 %v253, %v359
    %v376 = vsub.f32 %v256, %v360
    %v377 = vsub.f32 %v261, %v361
    %v378 = vsub.f32 %v264, %v362
    %v379 = vsub.f32 %v269, %v363
    %v380 = vsub.f32 %v272, %v364
    %v381 = vsub.f32 %v277, %v365
    %v382 = vsub.f32 %v280, %v366
    %v383 = vsub.f32 %v285, %v367
    %v384 = vsub.f32 %v288, %v368
    %v385 = vsub.f32 %v293, %v369
    %v386 = vsub.f32 %v296, %v370
    %v387 = vmul.f32 %v371, %v371
    %v388 = vmul.f32 %v372, %v372
    %v389 = vmul.f32 %v373, %v373
    %v390 = vmul.f32 %v374, %v374
    %v391 = vmul.f32 %v375, %v375
    %v392 = vmul.f32 %v376, %v376
    %v393 = vmul.f32 %v377, %v377
    %v394 = vmul.f32 %v378, %v378
    %v395 = vmul.f32 %v379, %v379
    %v396 = vmul.f32 %v380, %v380
    %v397 = vmul.f32 %v381, %v381
    %v398 = vmul.f32 %v382, %v382
    %v399 = vmul.f32 %v383, %v383
    %v400 = vmul.f32 %v384, %v384
    %v401 = vmul.f32 %v385, %v385
    %v402 = vmul.f32 %v386, %v386
    %v403 = vsel %vm305, %v387, 0.0
    %404 = vadd.xlane.f32.xlu0 %v403
    %v405 = vpop.xlane.xlu0 %404
    %v406 = vsel %vm305, %v388, 0.0
    %407 = vadd.xlane.f32.xlu0 %v406
    %v408 = vpop.xlane.xlu0 %407
    %v409 = vsel %vm305, %v389, 0.0
    %410 = vadd.xlane.f32.xlu0 %v409
    %v411 = vpop.xlane.xlu0 %410
    %v412 = vsel %vm305, %v390, 0.0
    %413 = vadd.xlane.f32.xlu0 %v412
    %v414 = vpop.xlane.xlu0 %413
    %v415 = vsel %vm305, %v391, 0.0
    %416 = vadd.xlane.f32.xlu0 %v415
    %v417 = vpop.xlane.xlu0 %416
    %v418 = vsel %vm305, %v392, 0.0
    %419 = vadd.xlane.f32.xlu0 %v418
    %v420 = vpop.xlane.xlu0 %419
    %v421 = vsel %vm305, %v393, 0.0
    %422 = vadd.xlane.f32.xlu0 %v421
    %v423 = vpop.xlane.xlu0 %422
    %v424 = vsel %vm305, %v394, 0.0
    %425 = vadd.xlane.f32.xlu0 %v424
    %v426 = vpop.xlane.xlu0 %425
    %v427 = vsel %vm305, %v395, 0.0
    %428 = vadd.xlane.f32.xlu0 %v427
    %v429 = vpop.xlane.xlu0 %428
    %v430 = vsel %vm305, %v396, 0.0
    %431 = vadd.xlane.f32.xlu0 %v430
    %v432 = vpop.xlane.xlu0 %431
    %v433 = vsel %vm305, %v397, 0.0
    %434 = vadd.xlane.f32.xlu0 %v433
    %v435 = vpop.xlane.xlu0 %434
    %v436 = vsel %vm305, %v398, 0.0
    %437 = vadd.xlane.f32.xlu0 %v436
    %v438 = vpop.xlane.xlu0 %437
    %v439 = vsel %vm305, %v399, 0.0
    %440 = vadd.xlane.f32.xlu0 %v439
    %v441 = vpop.xlane.xlu0 %440
    %v442 = vsel %vm305, %v400, 0.0
    %443 = vadd.xlane.f32.xlu0 %v442
    %v444 = vpop.xlane.xlu0 %443
    %v445 = vsel %vm305, %v401, 0.0
    %446 = vadd.xlane.f32.xlu0 %v445
    %v447 = vpop.xlane.xlu0 %446
    %v448 = vsel %vm305, %v402, 0.0
    %449 = vadd.xlane.f32.xlu0 %v448
    %v450 = vpop.xlane.xlu0 %449
    %v451 = vmul.f32 %v405, %v354
    %v452 = vmul.f32 %v408, %v354
    %v453 = vmul.f32 %v411, %v354
    %v454 = vmul.f32 %v414, %v354
    %v455 = vmul.f32 %v417, %v354
    %v456 = vmul.f32 %v420, %v354
    %v457 = vmul.f32 %v423, %v354
    %v458 = vmul.f32 %v426, %v354
    %v459 = vmul.f32 %v429, %v354
    %v460 = vmul.f32 %v432, %v354
    %v461 = vmul.f32 %v435, %v354
    %v462 = vmul.f32 %v438, %v354
    %v463 = vmul.f32 %v441, %v354
    %v464 = vmul.f32 %v444, %v354
    %v465 = vmul.f32 %v447, %v354
    %v466 = vmul.f32 %v450, %v354
    %v467 = vadd.f32 %v451, 1e-06
    %v468 = vadd.f32 %v452, 1e-06
    %v469 = vadd.f32 %v453, 1e-06
    %v470 = vadd.f32 %v454, 1e-06
    %v471 = vadd.f32 %v455, 1e-06
    %v472 = vadd.f32 %v456, 1e-06
    %v473 = vadd.f32 %v457, 1e-06
    %v474 = vadd.f32 %v458, 1e-06
    %v475 = vadd.f32 %v459, 1e-06
    %v476 = vadd.f32 %v460, 1e-06
    %v477 = vadd.f32 %v461, 1e-06
    %v478 = vadd.f32 %v462, 1e-06
    %v479 = vadd.f32 %v463, 1e-06
    %v480 = vadd.f32 %v464, 1e-06
    %v481 = vadd.f32 %v465, 1e-06
    %v482 = vadd.f32 %v466, 1e-06
    %v483 = vrsqrt.pop %v467
    %v484 = vrsqrt.pop %v468
    %v485 = vrsqrt.pop %v469
    %v486 = vrsqrt.pop %v470
    %v487 = vrsqrt.pop %v471
    %v488 = vrsqrt.pop %v472
    %v489 = vrsqrt.pop %v473
    %v490 = vrsqrt.pop %v474
    %v491 = vrsqrt.pop %v475
    %v492 = vrsqrt.pop %v476
    %v493 = vrsqrt.pop %v477
    %v494 = vrsqrt.pop %v478
    %v495 = vrsqrt.pop %v479
    %v496 = vrsqrt.pop %v480
    %v497 = vrsqrt.pop %v481
    %v498 = vrsqrt.pop %v482
    %v499 = vmul.f32 %v371, %v483
    %v500 = vmul.f32 %v372, %v484
    %v501 = vmul.f32 %v373, %v485
    %v502 = vmul.f32 %v374, %v486
    %v503 = vmul.f32 %v375, %v487
    %v504 = vmul.f32 %v376, %v488
    %v505 = vmul.f32 %v377, %v489
    %v506 = vmul.f32 %v378, %v490
    %v507 = vmul.f32 %v379, %v491
    %v508 = vmul.f32 %v380, %v492
    %v509 = vmul.f32 %v381, %v493
    %v510 = vmul.f32 %v382, %v494
    %v511 = vmul.f32 %v383, %v495
    %v512 = vmul.f32 %v384, %v496
    %v513 = vmul.f32 %v385, %v497
    %v514 = vmul.f32 %v386, %v498
    %v515 = vlaneseq
    %v516 = vshrl.u32 %v515, 7
    %v517 = vsub.s32 0, %v516
    %v518 = vrot.slane %v303, %v517
    %v519 = vmul.f32 %v499, %v518
    %v520 = vmul.f32 %v500, %v518
    %v521 = vmul.f32 %v501, %v518
    %v522 = vmul.f32 %v502, %v518
    %v523 = vmul.f32 %v503, %v518
    %v524 = vmul.f32 %v504, %v518
    %v525 = vmul.f32 %v505, %v518
    %v526 = vmul.f32 %v506, %v518
    %v527 = vmul.f32 %v507, %v518
    %v528 = vmul.f32 %v508, %v518
    %v529 = vmul.f32 %v509, %v518
    %v530 = vmul.f32 %v510, %v518
    %v531 = vmul.f32 %v511, %v518
    %v532 = vmul.f32 %v512, %v518
    %v533 = vmul.f32 %v513, %v518
    %v534 = vmul.f32 %v514, %v518
    %v535 = vlaneseq
    %v536 = vshrl.u32 %v535, 7
    %v537 = vsub.s32 0, %v536
    %v538 = vrot.slane %v304, %v537
    %v539 = vadd.f32 %v519, %v538
    %v540 = vadd.f32 %v520, %v538
    %v541 = vadd.f32 %v521, %v538
    %v542 = vadd.f32 %v522, %v538
    %v543 = vadd.f32 %v523, %v538
    %v544 = vadd.f32 %v524, %v538
    %v545 = vadd.f32 %v525, %v538
    %v546 = vadd.f32 %v526, %v538
    %v547 = vadd.f32 %v527, %v538
    %v548 = vadd.f32 %v528, %v538
    %v549 = vadd.f32 %v529, %v538
    %v550 = vadd.f32 %v530, %v538
    %v551 = vadd.f32 %v531, %v538
    %v552 = vadd.f32 %v532, %v538
    %v553 = vadd.f32 %v533, %v538
    %v554 = vadd.f32 %v534, %v538
    %v555 = vpack.c.bf16 %v540, %v539
    %v556 = vpack.c.bf16 %v542, %v541
    %v557 = vpack.c.bf16 %v544, %v543
    %v558 = vpack.c.bf16 %v546, %v545
    %v559 = vpack.c.bf16 %v548, %v547
    %v560 = vpack.c.bf16 %v550, %v549
    %v561 = vpack.c.bf16 %v552, %v551
    %v562 = vpack.c.bf16 %v554, %v553
    %v563 = vld [vmem:[%s5] sm:$0xf]
    %v564 = vld [vmem:[%s5 + $0x4] sm:$0xf]
    %v565 = vld [vmem:[%s5 + $0x8] sm:$0xf]
    %v566 = vld [vmem:[%s5 + $0xc] sm:$0xf]
    %v567 = vld [vmem:[%s6] sm:$0x1]
    %v568 = vlaneseq
    %v569 = vshrl.u32 %v568, 7
    %v570 = vsub.s32 0, %v569
    %v571 = vrot.slane %v567, %v570
    %v576 = vunpack.c.l.b16 %v563
    %v577 = vunpack.c.l.b16 %v564
    %v578 = vunpack.c.l.b16 %v565
    %v579 = vunpack.c.l.b16 %v566
    %v580 = vpack.c.b16 %v577, %v576
    %v581 = vpack.c.b16 %v579, %v578
    %v585 = vsel %vm305, %v555, 0
    %v588 = vsel %vm305, %v556, 0
    %v591 = vsel %vm305, %v557, 0
    %v594 = vsel %vm305, %v558, 0
    %v597 = vsel %vm305, %v559, 0
    %v600 = vsel %vm305, %v560, 0
    %v603 = vsel %vm305, %v561, 0
    %v606 = vsel %vm305, %v562, 0
    %608 = vmatprep.subr.bf16.mxu0 0
    %609 = vmatpush1.bf16.msra.mxu0 %v580
    %610 = vmatprep.subr.bf16.mxu0 0
    %611 = vmatpush1.bf16.msra.mxu0 %v581
    %612 = vmatprep.subr.bf16.mxu0 0
    %613 = vmatpush1.bf16.msra.mxu0 0
    %614 = vmatprep.subr.bf16.mxu0 0
    %615 = vmatpush1.bf16.msra.mxu0 0
    %616 = vmatprep.subr.bf16.mxu0 0
    %617 = vmatpush1.bf16.msra.mxu0 0
    %618 = vmatprep.subr.bf16.mxu0 0
    %619 = vmatpush1.bf16.msra.mxu0 0
    %620 = vmatprep.subr.bf16.mxu0 0
    %621 = vmatpush1.bf16.msra.mxu0 0
    %622 = vmatprep.subr.bf16.mxu0 0
    %623 = vmatpush1.bf16.msra.mxu0 0
    %624 = vmatprep.subr.bf16.mxu0 0
    %625 = vmatpush1.bf16.msra.mxu0 0
    %626 = vmatprep.subr.bf16.mxu0 0
    %627 = vmatpush1.bf16.msra.mxu0 0
    %628 = vmatprep.subr.bf16.mxu0 0
    %629 = vmatpush1.bf16.msra.mxu0 0
    %630 = vmatprep.subr.bf16.mxu0 0
    %631 = vmatpush1.bf16.msra.mxu0 0
    %632 = vmatprep.subr.bf16.mxu0 0
    %633 = vmatpush1.bf16.msra.mxu0 0
    %634 = vmatprep.subr.bf16.mxu0 0
    %635 = vmatpush1.bf16.msra.mxu0 0
    %636 = vmatprep.subr.bf16.mxu0 0
    %637 = vmatpush1.bf16.msra.mxu0 0
    %638 = vmatprep.subr.bf16.mxu0 0
    %639 = vmatpush1.bf16.msra.mxu0 0
    %640 = vmatprep.mubr.bf16.mxu0 0
    %641 = vmatmul.mubr.bf16.gmra.mrb[0].mxu0 %v585
    %v642 = vpop.f32.mrb[0].mxu0
    %v643 = vadd.f32 %v571, %v642
    %v644 = vpop.f32.mrb[0].mxu0
    %v645 = vpop.f32.mrb[0].mxu0
    %v646 = vadd.f32 %v571, %v645
    %v647 = vpop.f32.mrb[0].mxu0
    %648 = vmatprep.mubr.bf16.mxu0 0
    %649 = vmatmul.mubr.bf16.gmra.mrb[0].mxu0 %v588
    %v650 = vpop.f32.mrb[0].mxu0
    %v651 = vadd.f32 %v571, %v650
    %v652 = vpop.f32.mrb[0].mxu0
    %v653 = vpop.f32.mrb[0].mxu0
    %v654 = vadd.f32 %v571, %v653
    %v655 = vpop.f32.mrb[0].mxu0
    %656 = vmatprep.mubr.bf16.mxu0 0
    %657 = vmatmul.mubr.bf16.gmra.mrb[0].mxu0 %v591
    %v658 = vpop.f32.mrb[0].mxu0
    %v659 = vadd.f32 %v571, %v658
    %v660 = vpop.f32.mrb[0].mxu0
    %v661 = vpop.f32.mrb[0].mxu0
    %v662 = vadd.f32 %v571, %v661
    %v663 = vpop.f32.mrb[0].mxu0
    %664 = vmatprep.mubr.bf16.mxu0 0
    %665 = vmatmul.mubr.bf16.gmra.mrb[0].mxu0 %v594
    %v666 = vpop.f32.mrb[0].mxu0
    %v667 = vadd.f32 %v571, %v666
    %v668 = vpop.f32.mrb[0].mxu0
    %v669 = vpop.f32.mrb[0].mxu0
    %v670 = vadd.f32 %v571, %v669
    %v671 = vpop.f32.mrb[0].mxu0
    %672 = vmatprep.mubr.bf16.mxu0 0
    %673 = vmatmul.mubr.bf16.gmra.mrb[0].mxu0 %v597
    %v674 = vpop.f32.mrb[0].mxu0
    %v675 = vadd.f32 %v571, %v674
    %v676 = vpop.f32.mrb[0].mxu0
    %v677 = vpop.f32.mrb[0].mxu0
    %v678 = vadd.f32 %v571, %v677
    %v679 = vpop.f32.mrb[0].mxu0
    %680 = vmatprep.mubr.bf16.mxu0 0
    %681 = vmatmul.mubr.bf16.gmra.mrb[0].mxu0 %v600
    %v682 = vpop.f32.mrb[0].mxu0
    %v683 = vadd.f32 %v571, %v682
    %v684 = vpop.f32.mrb[0].mxu0
    %v685 = vpop.f32.mrb[0].mxu0
    %v686 = vadd.f32 %v571, %v685
    %v687 = vpop.f32.mrb[0].mxu0
    %688 = vmatprep.mubr.bf16.mxu0 0
    %689 = vmatmul.mubr.bf16.gmra.mrb[0].mxu0 %v603
    %v690 = vpop.f32.mrb[0].mxu0
    %v691 = vadd.f32 %v571, %v690
    %v692 = vpop.f32.mrb[0].mxu0
    %v693 = vpop.f32.mrb[0].mxu0
    %v694 = vadd.f32 %v571, %v693
    %v695 = vpop.f32.mrb[0].mxu0
    %696 = vmatprep.mubr.bf16.mxu0 0
    %697 = vmatmul.mubr.bf16.gmra.mrb[0].mxu0 %v606
    %v698 = vpop.f32.mrb[0].mxu0
    %v699 = vadd.f32 %v571, %v698
    %v700 = vpop.f32.mrb[0].mxu0
    %v701 = vpop.f32.mrb[0].mxu0
    %v702 = vadd.f32 %v571, %v701
    %v703 = vpop.f32.mrb[0].mxu0
    %704 = vdwg.mxu0
    %v705 = vpack.c.bf16 %v646, %v643
    %v706 = vpack.c.bf16 %v654, %v651
    %v707 = vpack.c.bf16 %v662, %v659
    %v708 = vpack.c.bf16 %v670, %v667
    %713 = vrot.lane.b32.xlu0 %v705, 96
    %v714 = vpop.permute.xlu0 %713
    %715 = vrot.lane.b32.xlu0 %v706, 96
    %v716 = vpop.permute.xlu0 %715
    %717 = vrot.lane.b32.xlu0 %v707, 96
    %v718 = vpop.permute.xlu0 %717
    %719 = vrot.lane.b32.xlu0 %v708, 96
    %v720 = vpop.permute.xlu0 %719
    %vm721 = vcmask 64512
    %v723 = vsel %vm721, %v705, 0
    %v726 = vsel %vm721, %v706, 0
    %v729 = vsel %vm721, %v707, 0
    %v732 = vsel %vm721, %v708, 0
    %v735 = vsel %vm721, %v714, 0
    %v738 = vsel %vm721, %v716, 0
    %v741 = vsel %vm721, %v718, 0
    %v744 = vsel %vm721, %v720, 0
    %746 = vmatprep.subr.bf16.mxu0 0
    %747 = vmatpush1.bf16.xpose.msra.mxu0 %v735
    %748 = vmatprep.subr.bf16.mxu0 0
    %749 = vmatpush1.bf16.xpose.msra.mxu0 %v738
    %750 = vmatprep.subr.bf16.mxu0 0
    %751 = vmatpush1.bf16.xpose.msra.mxu0 %v741
    %752 = vmatprep.subr.bf16.mxu0 0
    %753 = vmatpush1.bf16.xpose.msra.mxu0 %v744
    %754 = vmatprep.subr.bf16.mxu0 0
    %755 = vmatpush1.bf16.xpose.msra.mxu0 0
    %756 = vmatprep.subr.bf16.mxu0 0
    %757 = vmatpush1.bf16.xpose.msra.mxu0 0
    %758 = vmatprep.subr.bf16.mxu0 0
    %759 = vmatpush1.bf16.xpose.msra.mxu0 0
    %760 = vmatprep.subr.bf16.mxu0 0
    %761 = vmatpush1.bf16.xpose.msra.mxu0 0
    %762 = vmatprep.subr.bf16.mxu0 0
    %763 = vmatpush1.bf16.xpose.msra.mxu0 0
    %764 = vmatprep.subr.bf16.mxu0 0
    %765 = vmatpush1.bf16.xpose.msra.mxu0 0
    %766 = vmatprep.subr.bf16.mxu0 0
    %767 = vmatpush1.bf16.xpose.msra.mxu0 0
    %768 = vmatprep.subr.bf16.mxu0 0
    %769 = vmatpush1.bf16.xpose.msra.mxu0 0
    %770 = vmatprep.subr.bf16.mxu0 0
    %771 = vmatpush1.bf16.xpose.msra.mxu0 0
    %772 = vmatprep.subr.bf16.mxu0 0
    %773 = vmatpush1.bf16.xpose.msra.mxu0 0
    %774 = vmatprep.subr.bf16.mxu0 0
    %775 = vmatpush1.bf16.xpose.msra.mxu0 0
    %776 = vmatprep.subr.bf16.mxu0 0
    %777 = vmatpush1.bf16.xpose.msra.mxu0 0
    %778 = vmatprep.mubr.bf16.mxu0 0
    %779 = vmatmul.mubr.bf16.gmra.mrb[0].mxu0 %v723
    %v780 = vpop.f32.mrb[0].mxu0
    %v781 = vadd.f32 %v302, %v780
    %v782 = vpop.f32.mrb[0].mxu0
    %v783 = vpop.f32.mrb[0].mxu0
    %v784 = vadd.f32 %v302, %v783
    %v785 = vpop.f32.mrb[0].mxu0
    %786 = vmatprep.mubr.bf16.mxu0 0
    %787 = vmatmul.mubr.bf16.gmra.mrb[0].mxu0 %v726
    %v788 = vpop.f32.mrb[0].mxu0
    %v789 = vadd.f32 %v302, %v788
    %v790 = vpop.f32.mrb[0].mxu0
    %v791 = vpop.f32.mrb[0].mxu0
    %v792 = vadd.f32 %v302, %v791
    %v793 = vpop.f32.mrb[0].mxu0
    %794 = vmatprep.mubr.bf16.mxu0 0
    %795 = vmatmul.mubr.bf16.gmra.mrb[0].mxu0 %v729
    %v796 = vpop.f32.mrb[0].mxu0
    %v797 = vadd.f32 %v302, %v796
    %v798 = vpop.f32.mrb[0].mxu0
    %v799 = vpop.f32.mrb[0].mxu0
    %v800 = vadd.f32 %v302, %v799
    %v801 = vpop.f32.mrb[0].mxu0
    %802 = vmatprep.mubr.bf16.mxu0 0
    %803 = vmatmul.mubr.bf16.gmra.mrb[0].mxu0 %v732
    %v804 = vpop.f32.mrb[0].mxu0
    %v805 = vadd.f32 %v302, %v804
    %v806 = vpop.f32.mrb[0].mxu0
    %v807 = vpop.f32.mrb[0].mxu0
    %v808 = vadd.f32 %v302, %v807
    %v809 = vpop.f32.mrb[0].mxu0
    %810 = vdwg.mxu0
    %vm811 = vcmask 523264
    %v812 = vsel %vm811, %v781, -inf
    %813 = vmax.xlane.f32.xlu0 %v812
    %v814 = vpop.xlane.xlu0 %813
    %v815 = vsel %vm811, %v784, -inf
    %816 = vmax.xlane.f32.xlu0 %v815
    %v817 = vpop.xlane.xlu0 %816
    %v818 = vsel %vm811, %v789, -inf
    %819 = vmax.xlane.f32.xlu0 %v818
    %v820 = vpop.xlane.xlu0 %819
    %v821 = vsel %vm811, %v792, -inf
    %822 = vmax.xlane.f32.xlu0 %v821
    %v823 = vpop.xlane.xlu0 %822
    %v824 = vsel %vm811, %v797, -inf
    %825 = vmax.xlane.f32.xlu0 %v824
    %v826 = vpop.xlane.xlu0 %825
    %v827 = vsel %vm811, %v800, -inf
    %828 = vmax.xlane.f32.xlu0 %v827
    %v829 = vpop.xlane.xlu0 %828
    %v830 = vsel %vm811, %v805, -inf
    %831 = vmax.xlane.f32.xlu0 %v830
    %v832 = vpop.xlane.xlu0 %831
    %v833 = vsel %vm811, %v808, -inf
    %834 = vmax.xlane.f32.xlu0 %v833
    %v835 = vpop.xlane.xlu0 %834
    %v836 = vsub.f32 %v781, %v814
    %v837 = vsub.f32 %v784, %v817
    %v838 = vsub.f32 %v789, %v820
    %v839 = vsub.f32 %v792, %v823
    %v840 = vsub.f32 %v797, %v826
    %v841 = vsub.f32 %v800, %v829
    %v842 = vsub.f32 %v805, %v832
    %v843 = vsub.f32 %v808, %v835
    %v844 = vmul.f32 %v836, 1.442695
    %v845 = vpow.pop %v844
    %v846 = vmul.f32 %v837, 1.442695
    %v847 = vpow.pop %v846
    %v848 = vmul.f32 %v838, 1.442695
    %v849 = vpow.pop %v848
    %v850 = vmul.f32 %v839, 1.442695
    %v851 = vpow.pop %v850
    %v852 = vmul.f32 %v840, 1.442695
    %v853 = vpow.pop %v852
    %v854 = vmul.f32 %v841, 1.442695
    %v855 = vpow.pop %v854
    %v856 = vmul.f32 %v842, 1.442695
    %v857 = vpow.pop %v856
    %v858 = vmul.f32 %v843, 1.442695
    %v859 = vpow.pop %v858
    %v860 = vsel %vm811, %v845, 0.0
    %861 = vadd.xlane.f32.xlu0 %v860
    %v862 = vpop.xlane.xlu0 %861
    %v863 = vsel %vm811, %v847, 0.0
    %864 = vadd.xlane.f32.xlu0 %v863
    %v865 = vpop.xlane.xlu0 %864
    %v866 = vsel %vm811, %v849, 0.0
    %867 = vadd.xlane.f32.xlu0 %v866
    %v868 = vpop.xlane.xlu0 %867
    %v869 = vsel %vm811, %v851, 0.0
    %870 = vadd.xlane.f32.xlu0 %v869
    %v871 = vpop.xlane.xlu0 %870
    %v872 = vsel %vm811, %v853, 0.0
    %873 = vadd.xlane.f32.xlu0 %v872
    %v874 = vpop.xlane.xlu0 %873
    %v875 = vsel %vm811, %v855, 0.0
    %876 = vadd.xlane.f32.xlu0 %v875
    %v877 = vpop.xlane.xlu0 %876
    %v878 = vsel %vm811, %v857, 0.0
    %879 = vadd.xlane.f32.xlu0 %v878
    %v880 = vpop.xlane.xlu0 %879
    %v881 = vsel %vm811, %v859, 0.0
    %882 = vadd.xlane.f32.xlu0 %v881
    %v883 = vpop.xlane.xlu0 %882
    %v884 = vpack.c.bf16 %v847, %v845
    %v885 = vpack.c.bf16 %v851, %v849
    %v886 = vpack.c.bf16 %v855, %v853
    %v887 = vpack.c.bf16 %v859, %v857
    %888 = vrot.lane.b32.xlu0 %v705, 64
    %v889 = vpop.permute.xlu0 %888
    %890 = vrot.lane.b32.xlu0 %v706, 64
    %v891 = vpop.permute.xlu0 %890
    %892 = vrot.lane.b32.xlu0 %v707, 64
    %v893 = vpop.permute.xlu0 %892
    %894 = vrot.lane.b32.xlu0 %v708, 64
    %v895 = vpop.permute.xlu0 %894
    %v901 = vsel %vm811, %v884, 0
    %v904 = vsel %vm811, %v885, 0
    %v907 = vsel %vm811, %v886, 0
    %v910 = vsel %vm811, %v887, 0
    %912 = vmatprep.subr.bf16.mxu0 0
    %913 = vmatpush1.bf16.msra.mxu0 %v889
    %914 = vmatprep.subr.bf16.mxu0 0
    %915 = vmatpush1.bf16.msra.mxu0 %v891
    %916 = vmatprep.subr.bf16.mxu0 0
    %917 = vmatpush1.bf16.msra.mxu0 %v893
    %918 = vmatprep.subr.bf16.mxu0 0
    %919 = vmatpush1.bf16.msra.mxu0 %v895
    %920 = vmatprep.subr.bf16.mxu0 0
    %921 = vmatpush1.bf16.msra.mxu0 0
    %922 = vmatprep.subr.bf16.mxu0 0
    %923 = vmatpush1.bf16.msra.mxu0 0
    %924 = vmatprep.subr.bf16.mxu0 0
    %925 = vmatpush1.bf16.msra.mxu0 0
    %926 = vmatprep.subr.bf16.mxu0 0
    %927 = vmatpush1.bf16.msra.mxu0 0
    %928 = vmatprep.subr.bf16.mxu0 0
    %929 = vmatpush1.bf16.msra.mxu0 0
    %930 = vmatprep.subr.bf16.mxu0 0
    %931 = vmatpush1.bf16.msra.mxu0 0
    %932 = vmatprep.subr.bf16.mxu0 0
    %933 = vmatpush1.bf16.msra.mxu0 0
    %934 = vmatprep.subr.bf16.mxu0 0
    %935 = vmatpush1.bf16.msra.mxu0 0
    %936 = vmatprep.subr.bf16.mxu0 0
    %937 = vmatpush1.bf16.msra.mxu0 0
    %938 = vmatprep.subr.bf16.mxu0 0
    %939 = vmatpush1.bf16.msra.mxu0 0
    %940 = vmatprep.subr.bf16.mxu0 0
    %941 = vmatpush1.bf16.msra.mxu0 0
    %942 = vmatprep.subr.bf16.mxu0 0
    %943 = vmatpush1.bf16.msra.mxu0 0
    %944 = vmatprep.mubr.bf16.mxu0 0
    %945 = vmatmul.mubr.bf16.gmra.mrb[0].mxu0 %v901
    %v946 = vpop.f32.mrb[0].mxu0
    %v947 = vadd.f32 0.0, %v946
    %v948 = vpop.f32.mrb[0].mxu0
    %v949 = vpop.f32.mrb[0].mxu0
    %v950 = vadd.f32 0.0, %v949
    %v951 = vpop.f32.mrb[0].mxu0
    %952 = vmatprep.mubr.bf16.mxu0 0
    %953 = vmatmul.mubr.bf16.gmra.mrb[0].mxu0 %v904
    %v954 = vpop.f32.mrb[0].mxu0
    %v955 = vadd.f32 0.0, %v954
    %v956 = vpop.f32.mrb[0].mxu0
    %v957 = vpop.f32.mrb[0].mxu0
    %v958 = vadd.f32 0.0, %v957
    %v959 = vpop.f32.mrb[0].mxu0
    %960 = vmatprep.mubr.bf16.mxu0 0
    %961 = vmatmul.mubr.bf16.gmra.mrb[0].mxu0 %v907
    %v962 = vpop.f32.mrb[0].mxu0
    %v963 = vadd.f32 0.0, %v962
    %v964 = vpop.f32.mrb[0].mxu0
    %v965 = vpop.f32.mrb[0].mxu0
    %v966 = vadd.f32 0.0, %v965
    %v967 = vpop.f32.mrb[0].mxu0
    %968 = vmatprep.mubr.bf16.mxu0 0
    %969 = vmatmul.mubr.bf16.gmra.mrb[0].mxu0 %v910
    %v970 = vpop.f32.mrb[0].mxu0
    %v971 = vadd.f32 0.0, %v970
    %v972 = vpop.f32.mrb[0].mxu0
    %v973 = vpop.f32.mrb[0].mxu0
    %v974 = vadd.f32 0.0, %v973
    %v975 = vpop.f32.mrb[0].mxu0
    %976 = vdwg.mxu0
    %v977 = vrcp.pop %v862
    %v978 = vrcp.pop %v865
    %v979 = vrcp.pop %v868
    %v980 = vrcp.pop %v871
    %v981 = vrcp.pop %v874
    %v982 = vrcp.pop %v877
    %v983 = vrcp.pop %v880
    %v984 = vrcp.pop %v883
    %v985 = vmul.f32 %v947, %v977
    %v986 = vmul.f32 %v950, %v978
    %v987 = vmul.f32 %v955, %v979
    %v988 = vmul.f32 %v958, %v980
    %v989 = vmul.f32 %v963, %v981
    %v990 = vmul.f32 %v966, %v982
    %v991 = vmul.f32 %v971, %v983
    %v992 = vmul.f32 %v974, %v984
    %v993 = vpack.c.bf16 %v986, %v985
    %v994 = vpack.c.bf16 %v988, %v987
    %v995 = vpack.c.bf16 %v990, %v989
    %v996 = vpack.c.bf16 %v992, %v991
    %997 = vrot.lane.b32.xlu0 %v705, 120
    %v998 = vpop.permute.xlu0 %997
    %999 = vrot.lane.b32.xlu0 %v706, 120
    %v1000 = vpop.permute.xlu0 %999
    %1001 = vrot.lane.b32.xlu0 %v707, 120
    %v1002 = vpop.permute.xlu0 %1001
    %1003 = vrot.lane.b32.xlu0 %v708, 120
    %v1004 = vpop.permute.xlu0 %1003
    %1005 = vrot.lane.b32.xlu0 %v705, 88
    %v1006 = vpop.permute.xlu0 %1005
    %1007 = vrot.lane.b32.xlu0 %v706, 88
    %v1008 = vpop.permute.xlu0 %1007
    %1009 = vrot.lane.b32.xlu0 %v707, 88
    %v1010 = vpop.permute.xlu0 %1009
    %1011 = vrot.lane.b32.xlu0 %v708, 88
    %v1012 = vpop.permute.xlu0 %1011
    %v1014 = vsel %vm721, %v998, 0
    %v1017 = vsel %vm721, %v1000, 0
    %v1020 = vsel %vm721, %v1002, 0
    %v1023 = vsel %vm721, %v1004, 0
    %v1026 = vsel %vm721, %v1006, 0
    %v1029 = vsel %vm721, %v1008, 0
    %v1032 = vsel %vm721, %v1010, 0
    %v1035 = vsel %vm721, %v1012, 0
    %1037 = vmatprep.subr.bf16.mxu0 0
    %1038 = vmatpush1.bf16.xpose.msra.mxu0 %v1026
    %1039 = vmatprep.subr.bf16.mxu0 0
    %1040 = vmatpush1.bf16.xpose.msra.mxu0 %v1029
    %1041 = vmatprep.subr.bf16.mxu0 0
    %1042 = vmatpush1.bf16.xpose.msra.mxu0 %v1032
    %1043 = vmatprep.subr.bf16.mxu0 0
    %1044 = vmatpush1.bf16.xpose.msra.mxu0 %v1035
    %1045 = vmatprep.subr.bf16.mxu0 0
    %1046 = vmatpush1.bf16.xpose.msra.mxu0 0
    %1047 = vmatprep.subr.bf16.mxu0 0
    %1048 = vmatpush1.bf16.xpose.msra.mxu0 0
    %1049 = vmatprep.subr.bf16.mxu0 0
    %1050 = vmatpush1.bf16.xpose.msra.mxu0 0
    %1051 = vmatprep.subr.bf16.mxu0 0
    %1052 = vmatpush1.bf16.xpose.msra.mxu0 0
    %1053 = vmatprep.subr.bf16.mxu0 0
    %1054 = vmatpush1.bf16.xpose.msra.mxu0 0
    %1055 = vmatprep.subr.bf16.mxu0 0
    %1056 = vmatpush1.bf16.xpose.msra.mxu0 0
    %1057 = vmatprep.subr.bf16.mxu0 0
    %1058 = vmatpush1.bf16.xpose.msra.mxu0 0
    %1059 = vmatprep.subr.bf16.mxu0 0
    %1060 = vmatpush1.bf16.xpose.msra.mxu0 0
    %1061 = vmatprep.subr.bf16.mxu0 0
    %1062 = vmatpush1.bf16.xpose.msra.mxu0 0
    %1063 = vmatprep.subr.bf16.mxu0 0
    %1064 = vmatpush1.bf16.xpose.msra.mxu0 0
    %1065 = vmatprep.subr.bf16.mxu0 0
    %1066 = vmatpush1.bf16.xpose.msra.mxu0 0
    %1067 = vmatprep.subr.bf16.mxu0 0
    %1068 = vmatpush1.bf16.xpose.msra.mxu0 0
    %1069 = vmatprep.mubr.bf16.mxu0 0
    %1070 = vmatmul.mubr.bf16.gmra.mrb[0].mxu0 %v1014
    %v1071 = vpop.f32.mrb[0].mxu0
    %v1072 = vadd.f32 %v302, %v1071
    %v1073 = vpop.f32.mrb[0].mxu0
    %v1074 = vpop.f32.mrb[0].mxu0
    %v1075 = vadd.f32 %v302, %v1074
    %v1076 = vpop.f32.mrb[0].mxu0
    %1077 = vmatprep.mubr.bf16.mxu0 0
    %1078 = vmatmul.mubr.bf16.gmra.mrb[0].mxu0 %v1017
    %v1079 = vpop.f32.mrb[0].mxu0
    %v1080 = vadd.f32 %v302, %v1079
    %v1081 = vpop.f32.mrb[0].mxu0
    %v1082 = vpop.f32.mrb[0].mxu0
    %v1083 = vadd.f32 %v302, %v1082
    %v1084 = vpop.f32.mrb[0].mxu0
    %1085 = vmatprep.mubr.bf16.mxu0 0
    %1086 = vmatmul.mubr.bf16.gmra.mrb[0].mxu0 %v1020
    %v1087 = vpop.f32.mrb[0].mxu0
    %v1088 = vadd.f32 %v302, %v1087
    %v1089 = vpop.f32.mrb[0].mxu0
    %v1090 = vpop.f32.mrb[0].mxu0
    %v1091 = vadd.f32 %v302, %v1090
    %v1092 = vpop.f32.mrb[0].mxu0
    %1093 = vmatprep.mubr.bf16.mxu0 0
    %1094 = vmatmul.mubr.bf16.gmra.mrb[0].mxu0 %v1023
    %v1095 = vpop.f32.mrb[0].mxu0
    %v1096 = vadd.f32 %v302, %v1095
    %v1097 = vpop.f32.mrb[0].mxu0
    %v1098 = vpop.f32.mrb[0].mxu0
    %v1099 = vadd.f32 %v302, %v1098
    %v1100 = vpop.f32.mrb[0].mxu0
    %1101 = vdwg.mxu0
    %v1102 = vsel %vm811, %v1072, -inf
    %1103 = vmax.xlane.f32.xlu0 %v1102
    %v1104 = vpop.xlane.xlu0 %1103
    %v1105 = vsel %vm811, %v1075, -inf
    %1106 = vmax.xlane.f32.xlu0 %v1105
    %v1107 = vpop.xlane.xlu0 %1106
    %v1108 = vsel %vm811, %v1080, -inf
    %1109 = vmax.xlane.f32.xlu0 %v1108
    %v1110 = vpop.xlane.xlu0 %1109
    %v1111 = vsel %vm811, %v1083, -inf
    %1112 = vmax.xlane.f32.xlu0 %v1111
    %v1113 = vpop.xlane.xlu0 %1112
    %v1114 = vsel %vm811, %v1088, -inf
    %1115 = vmax.xlane.f32.xlu0 %v1114
    %v1116 = vpop.xlane.xlu0 %1115
    %v1117 = vsel %vm811, %v1091, -inf
    %1118 = vmax.xlane.f32.xlu0 %v1117
    %v1119 = vpop.xlane.xlu0 %1118
    %v1120 = vsel %vm811, %v1096, -inf
    %1121 = vmax.xlane.f32.xlu0 %v1120
    %v1122 = vpop.xlane.xlu0 %1121
    %v1123 = vsel %vm811, %v1099, -inf
    %1124 = vmax.xlane.f32.xlu0 %v1123
    %v1125 = vpop.xlane.xlu0 %1124
    %v1126 = vsub.f32 %v1072, %v1104
    %v1127 = vsub.f32 %v1075, %v1107
    %v1128 = vsub.f32 %v1080, %v1110
    %v1129 = vsub.f32 %v1083, %v1113
    %v1130 = vsub.f32 %v1088, %v1116
    %v1131 = vsub.f32 %v1091, %v1119
    %v1132 = vsub.f32 %v1096, %v1122
    %v1133 = vsub.f32 %v1099, %v1125
    %v1134 = vmul.f32 %v1126, 1.442695
    %v1135 = vpow.pop %v1134
    %v1136 = vmul.f32 %v1127, 1.442695
    %v1137 = vpow.pop %v1136
    %v1138 = vmul.f32 %v1128, 1.442695
    %v1139 = vpow.pop %v1138
    %v1140 = vmul.f32 %v1129, 1.442695
    %v1141 = vpow.pop %v1140
    %v1142 = vmul.f32 %v1130, 1.442695
    %v1143 = vpow.pop %v1142
    %v1144 = vmul.f32 %v1131, 1.442695
    %v1145 = vpow.pop %v1144
    %v1146 = vmul.f32 %v1132, 1.442695
    %v1147 = vpow.pop %v1146
    %v1148 = vmul.f32 %v1133, 1.442695
    %v1149 = vpow.pop %v1148
    %v1150 = vsel %vm811, %v1135, 0.0
    %1151 = vadd.xlane.f32.xlu0 %v1150
    %v1152 = vpop.xlane.xlu0 %1151
    %v1153 = vsel %vm811, %v1137, 0.0
    %1154 = vadd.xlane.f32.xlu0 %v1153
    %v1155 = vpop.xlane.xlu0 %1154
    %v1156 = vsel %vm811, %v1139, 0.0
    %1157 = vadd.xlane.f32.xlu0 %v1156
    %v1158 = vpop.xlane.xlu0 %1157
    %v1159 = vsel %vm811, %v1141, 0.0
    %1160 = vadd.xlane.f32.xlu0 %v1159
    %v1161 = vpop.xlane.xlu0 %1160
    %v1162 = vsel %vm811, %v1143, 0.0
    %1163 = vadd.xlane.f32.xlu0 %v1162
    %v1164 = vpop.xlane.xlu0 %1163
    %v1165 = vsel %vm811, %v1145, 0.0
    %1166 = vadd.xlane.f32.xlu0 %v1165
    %v1167 = vpop.xlane.xlu0 %1166
    %v1168 = vsel %vm811, %v1147, 0.0
    %1169 = vadd.xlane.f32.xlu0 %v1168
    %v1170 = vpop.xlane.xlu0 %1169
    %v1171 = vsel %vm811, %v1149, 0.0
    %1172 = vadd.xlane.f32.xlu0 %v1171
    %v1173 = vpop.xlane.xlu0 %1172
    %v1174 = vpack.c.bf16 %v1137, %v1135
    %v1175 = vpack.c.bf16 %v1141, %v1139
    %v1176 = vpack.c.bf16 %v1145, %v1143
    %v1177 = vpack.c.bf16 %v1149, %v1147
    %1178 = vrot.lane.b32.xlu0 %v705, 56
    %v1179 = vpop.permute.xlu0 %1178
    %1180 = vrot.lane.b32.xlu0 %v706, 56
    %v1181 = vpop.permute.xlu0 %1180
    %1182 = vrot.lane.b32.xlu0 %v707, 56
    %v1183 = vpop.permute.xlu0 %1182
    %1184 = vrot.lane.b32.xlu0 %v708, 56
    %v1185 = vpop.permute.xlu0 %1184
    %v1191 = vsel %vm811, %v1174, 0
    %v1194 = vsel %vm811, %v1175, 0
    %v1197 = vsel %vm811, %v1176, 0
    %v1200 = vsel %vm811, %v1177, 0
    %1202 = vmatprep.subr.bf16.mxu0 0
    %1203 = vmatpush1.bf16.msra.mxu0 %v1179
    %1204 = vmatprep.subr.bf16.mxu0 0
    %1205 = vmatpush1.bf16.msra.mxu0 %v1181
    %1206 = vmatprep.subr.bf16.mxu0 0
    %1207 = vmatpush1.bf16.msra.mxu0 %v1183
    %1208 = vmatprep.subr.bf16.mxu0 0
    %1209 = vmatpush1.bf16.msra.mxu0 %v1185
    %1210 = vmatprep.subr.bf16.mxu0 0
    %1211 = vmatpush1.bf16.msra.mxu0 0
    %1212 = vmatprep.subr.bf16.mxu0 0
    %1213 = vmatpush1.bf16.msra.mxu0 0
    %1214 = vmatprep.subr.bf16.mxu0 0
    %1215 = vmatpush1.bf16.msra.mxu0 0
    %1216 = vmatprep.subr.bf16.mxu0 0
    %1217 = vmatpush1.bf16.msra.mxu0 0
    %1218 = vmatprep.subr.bf16.mxu0 0
    %1219 = vmatpush1.bf16.msra.mxu0 0
    %1220 = vmatprep.subr.bf16.mxu0 0
    %1221 = vmatpush1.bf16.msra.mxu0 0
    %1222 = vmatprep.subr.bf16.mxu0 0
    %1223 = vmatpush1.bf16.msra.mxu0 0
    %1224 = vmatprep.subr.bf16.mxu0 0
    %1225 = vmatpush1.bf16.msra.mxu0 0
    %1226 = vmatprep.subr.bf16.mxu0 0
    %1227 = vmatpush1.bf16.msra.mxu0 0
    %1228 = vmatprep.subr.bf16.mxu0 0
    %1229 = vmatpush1.bf16.msra.mxu0 0
    %1230 = vmatprep.subr.bf16.mxu0 0
    %1231 = vmatpush1.bf16.msra.mxu0 0
    %1232 = vmatprep.subr.bf16.mxu0 0
    %1233 = vmatpush1.bf16.msra.mxu0 0
    %1234 = vmatprep.mubr.bf16.mxu0 0
    %1235 = vmatmul.mubr.bf16.gmra.mrb[0].mxu0 %v1191
    %v1236 = vpop.f32.mrb[0].mxu0
    %v1237 = vadd.f32 0.0, %v1236
    %v1238 = vpop.f32.mrb[0].mxu0
    %v1239 = vpop.f32.mrb[0].mxu0
    %v1240 = vadd.f32 0.0, %v1239
    %v1241 = vpop.f32.mrb[0].mxu0
    %1242 = vmatprep.mubr.bf16.mxu0 0
    %1243 = vmatmul.mubr.bf16.gmra.mrb[0].mxu0 %v1194
    %v1244 = vpop.f32.mrb[0].mxu0
    %v1245 = vadd.f32 0.0, %v1244
    %v1246 = vpop.f32.mrb[0].mxu0
    %v1247 = vpop.f32.mrb[0].mxu0
    %v1248 = vadd.f32 0.0, %v1247
    %v1249 = vpop.f32.mrb[0].mxu0
    %1250 = vmatprep.mubr.bf16.mxu0 0
    %1251 = vmatmul.mubr.bf16.gmra.mrb[0].mxu0 %v1197
    %v1252 = vpop.f32.mrb[0].mxu0
    %v1253 = vadd.f32 0.0, %v1252
    %v1254 = vpop.f32.mrb[0].mxu0
    %v1255 = vpop.f32.mrb[0].mxu0
    %v1256 = vadd.f32 0.0, %v1255
    %v1257 = vpop.f32.mrb[0].mxu0
    %1258 = vmatprep.mubr.bf16.mxu0 0
    %1259 = vmatmul.mubr.bf16.gmra.mrb[0].mxu0 %v1200
    %v1260 = vpop.f32.mrb[0].mxu0
    %v1261 = vadd.f32 0.0, %v1260
    %v1262 = vpop.f32.mrb[0].mxu0
    %v1263 = vpop.f32.mrb[0].mxu0
    %v1264 = vadd.f32 0.0, %v1263
    %v1265 = vpop.f32.mrb[0].mxu0
    %1266 = vdwg.mxu0
    %v1267 = vrcp.pop %v1152
    %v1268 = vrcp.pop %v1155
    %v1269 = vrcp.pop %v1158
    %v1270 = vrcp.pop %v1161
    %v1271 = vrcp.pop %v1164
    %v1272 = vrcp.pop %v1167
    %v1273 = vrcp.pop %v1170
    %v1274 = vrcp.pop %v1173
    %v1275 = vmul.f32 %v1237, %v1267
    %v1276 = vmul.f32 %v1240, %v1268
    %v1277 = vmul.f32 %v1245, %v1269
    %v1278 = vmul.f32 %v1248, %v1270
    %v1279 = vmul.f32 %v1253, %v1271
    %v1280 = vmul.f32 %v1256, %v1272
    %v1281 = vmul.f32 %v1261, %v1273
    %v1282 = vmul.f32 %v1264, %v1274
    %v1283 = vpack.c.bf16 %v1276, %v1275
    %v1284 = vpack.c.bf16 %v1278, %v1277
    %v1285 = vpack.c.bf16 %v1280, %v1279
    %v1286 = vpack.c.bf16 %v1282, %v1281
    %1287 = vrot.lane.b32.xlu0 %v705, 112
    %v1288 = vpop.permute.xlu0 %1287
    %1289 = vrot.lane.b32.xlu0 %v706, 112
    %v1290 = vpop.permute.xlu0 %1289
    %1291 = vrot.lane.b32.xlu0 %v707, 112
    %v1292 = vpop.permute.xlu0 %1291
    %1293 = vrot.lane.b32.xlu0 %v708, 112
    %v1294 = vpop.permute.xlu0 %1293
    %1295 = vrot.lane.b32.xlu0 %v705, 80
    %v1296 = vpop.permute.xlu0 %1295
    %1297 = vrot.lane.b32.xlu0 %v706, 80
    %v1298 = vpop.permute.xlu0 %1297
    %1299 = vrot.lane.b32.xlu0 %v707, 80
    %v1300 = vpop.permute.xlu0 %1299
    %1301 = vrot.lane.b32.xlu0 %v708, 80
    %v1302 = vpop.permute.xlu0 %1301
    %v1304 = vsel %vm721, %v1288, 0
    %v1307 = vsel %vm721, %v1290, 0
    %v1310 = vsel %vm721, %v1292, 0
    %v1313 = vsel %vm721, %v1294, 0
    %v1316 = vsel %vm721, %v1296, 0
    %v1319 = vsel %vm721, %v1298, 0
    %v1322 = vsel %vm721, %v1300, 0
    %v1325 = vsel %vm721, %v1302, 0
    %1327 = vmatprep.subr.bf16.mxu0 0
    %1328 = vmatpush1.bf16.xpose.msra.mxu0 %v1316
    %1329 = vmatprep.subr.bf16.mxu0 0
    %1330 = vmatpush1.bf16.xpose.msra.mxu0 %v1319
    %1331 = vmatprep.subr.bf16.mxu0 0
    %1332 = vmatpush1.bf16.xpose.msra.mxu0 %v1322
    %1333 = vmatprep.subr.bf16.mxu0 0
    %1334 = vmatpush1.bf16.xpose.msra.mxu0 %v1325
    %1335 = vmatprep.subr.bf16.mxu0 0
    %1336 = vmatpush1.bf16.xpose.msra.mxu0 0
    %1337 = vmatprep.subr.bf16.mxu0 0
    %1338 = vmatpush1.bf16.xpose.msra.mxu0 0
    %1339 = vmatprep.subr.bf16.mxu0 0
    %1340 = vmatpush1.bf16.xpose.msra.mxu0 0
    %1341 = vmatprep.subr.bf16.mxu0 0
    %1342 = vmatpush1.bf16.xpose.msra.mxu0 0
    %1343 = vmatprep.subr.bf16.mxu0 0
    %1344 = vmatpush1.bf16.xpose.msra.mxu0 0
    %1345 = vmatprep.subr.bf16.mxu0 0
    %1346 = vmatpush1.bf16.xpose.msra.mxu0 0
    %1347 = vmatprep.subr.bf16.mxu0 0
    %1348 = vmatpush1.bf16.xpose.msra.mxu0 0
    %1349 = vmatprep.subr.bf16.mxu0 0
    %1350 = vmatpush1.bf16.xpose.msra.mxu0 0
    %1351 = vmatprep.subr.bf16.mxu0 0
    %1352 = vmatpush1.bf16.xpose.msra.mxu0 0
    %1353 = vmatprep.subr.bf16.mxu0 0
    %1354 = vmatpush1.bf16.xpose.msra.mxu0 0
    %1355 = vmatprep.subr.bf16.mxu0 0
    %1356 = vmatpush1.bf16.xpose.msra.mxu0 0
    %1357 = vmatprep.subr.bf16.mxu0 0
    %1358 = vmatpush1.bf16.xpose.msra.mxu0 0
    %1359 = vmatprep.mubr.bf16.mxu0 0
    %1360 = vmatmul.mubr.bf16.gmra.mrb[0].mxu0 %v1304
    %v1361 = vpop.f32.mrb[0].mxu0
    %v1362 = vadd.f32 %v302, %v1361
    %v1363 = vpop.f32.mrb[0].mxu0
    %v1364 = vpop.f32.mrb[0].mxu0
    %v1365 = vadd.f32 %v302, %v1364
    %v1366 = vpop.f32.mrb[0].mxu0
    %1367 = vmatprep.mubr.bf16.mxu0 0
    %1368 = vmatmul.mubr.bf16.gmra.mrb[0].mxu0 %v1307
    %v1369 = vpop.f32.mrb[0].mxu0
    %v1370 = vadd.f32 %v302, %v1369
    %v1371 = vpop.f32.mrb[0].mxu0
    %v1372 = vpop.f32.mrb[0].mxu0
    %v1373 = vadd.f32 %v302, %v1372
    %v1374 = vpop.f32.mrb[0].mxu0
    %1375 = vmatprep.mubr.bf16.mxu0 0
    %1376 = vmatmul.mubr.bf16.gmra.mrb[0].mxu0 %v1310
    %v1377 = vpop.f32.mrb[0].mxu0
    %v1378 = vadd.f32 %v302, %v1377
    %v1379 = vpop.f32.mrb[0].mxu0
    %v1380 = vpop.f32.mrb[0].mxu0
    %v1381 = vadd.f32 %v302, %v1380
    %v1382 = vpop.f32.mrb[0].mxu0
    %1383 = vmatprep.mubr.bf16.mxu0 0
    %1384 = vmatmul.mubr.bf16.gmra.mrb[0].mxu0 %v1313
    %v1385 = vpop.f32.mrb[0].mxu0
    %v1386 = vadd.f32 %v302, %v1385
    %v1387 = vpop.f32.mrb[0].mxu0
    %v1388 = vpop.f32.mrb[0].mxu0
    %v1389 = vadd.f32 %v302, %v1388
    %v1390 = vpop.f32.mrb[0].mxu0
    %1391 = vdwg.mxu0
    %v1392 = vsel %vm811, %v1362, -inf
    %1393 = vmax.xlane.f32.xlu0 %v1392
    %v1394 = vpop.xlane.xlu0 %1393
    %v1395 = vsel %vm811, %v1365, -inf
    %1396 = vmax.xlane.f32.xlu0 %v1395
    %v1397 = vpop.xlane.xlu0 %1396
    %v1398 = vsel %vm811, %v1370, -inf
    %1399 = vmax.xlane.f32.xlu0 %v1398
    %v1400 = vpop.xlane.xlu0 %1399
    %v1401 = vsel %vm811, %v1373, -inf
    %1402 = vmax.xlane.f32.xlu0 %v1401
    %v1403 = vpop.xlane.xlu0 %1402
    %v1404 = vsel %vm811, %v1378, -inf
    %1405 = vmax.xlane.f32.xlu0 %v1404
    %v1406 = vpop.xlane.xlu0 %1405
    %v1407 = vsel %vm811, %v1381, -inf
    %1408 = vmax.xlane.f32.xlu0 %v1407
    %v1409 = vpop.xlane.xlu0 %1408
    %v1410 = vsel %vm811, %v1386, -inf
    %1411 = vmax.xlane.f32.xlu0 %v1410
    %v1412 = vpop.xlane.xlu0 %1411
    %v1413 = vsel %vm811, %v1389, -inf
    %1414 = vmax.xlane.f32.xlu0 %v1413
    %v1415 = vpop.xlane.xlu0 %1414
    %v1416 = vsub.f32 %v1362, %v1394
    %v1417 = vsub.f32 %v1365, %v1397
    %v1418 = vsub.f32 %v1370, %v1400
    %v1419 = vsub.f32 %v1373, %v1403
    %v1420 = vsub.f32 %v1378, %v1406
    %v1421 = vsub.f32 %v1381, %v1409
    %v1422 = vsub.f32 %v1386, %v1412
    %v1423 = vsub.f32 %v1389, %v1415
    %v1424 = vmul.f32 %v1416, 1.442695
    %v1425 = vpow.pop %v1424
    %v1426 = vmul.f32 %v1417, 1.442695
    %v1427 = vpow.pop %v1426
    %v1428 = vmul.f32 %v1418, 1.442695
    %v1429 = vpow.pop %v1428
    %v1430 = vmul.f32 %v1419, 1.442695
    %v1431 = vpow.pop %v1430
    %v1432 = vmul.f32 %v1420, 1.442695
    %v1433 = vpow.pop %v1432
    %v1434 = vmul.f32 %v1421, 1.442695
    %v1435 = vpow.pop %v1434
    %v1436 = vmul.f32 %v1422, 1.442695
    %v1437 = vpow.pop %v1436
    %v1438 = vmul.f32 %v1423, 1.442695
    %v1439 = vpow.pop %v1438
    %v1440 = vsel %vm811, %v1425, 0.0
    %1441 = vadd.xlane.f32.xlu0 %v1440
    %v1442 = vpop.xlane.xlu0 %1441
    %v1443 = vsel %vm811, %v1427, 0.0
    %1444 = vadd.xlane.f32.xlu0 %v1443
    %v1445 = vpop.xlane.xlu0 %1444
    %v1446 = vsel %vm811, %v1429, 0.0
    %1447 = vadd.xlane.f32.xlu0 %v1446
    %v1448 = vpop.xlane.xlu0 %1447
    %v1449 = vsel %vm811, %v1431, 0.0
    %1450 = vadd.xlane.f32.xlu0 %v1449
    %v1451 = vpop.xlane.xlu0 %1450
    %v1452 = vsel %vm811, %v1433, 0.0
    %1453 = vadd.xlane.f32.xlu0 %v1452
    %v1454 = vpop.xlane.xlu0 %1453
    %v1455 = vsel %vm811, %v1435, 0.0
    %1456 = vadd.xlane.f32.xlu0 %v1455
    %v1457 = vpop.xlane.xlu0 %1456
    %v1458 = vsel %vm811, %v1437, 0.0
    %1459 = vadd.xlane.f32.xlu0 %v1458
    %v1460 = vpop.xlane.xlu0 %1459
    %v1461 = vsel %vm811, %v1439, 0.0
    %1462 = vadd.xlane.f32.xlu0 %v1461
    %v1463 = vpop.xlane.xlu0 %1462
    %v1464 = vpack.c.bf16 %v1427, %v1425
    %v1465 = vpack.c.bf16 %v1431, %v1429
    %v1466 = vpack.c.bf16 %v1435, %v1433
    %v1467 = vpack.c.bf16 %v1439, %v1437
    %1468 = vrot.lane.b32.xlu0 %v705, 48
    %v1469 = vpop.permute.xlu0 %1468
    %1470 = vrot.lane.b32.xlu0 %v706, 48
    %v1471 = vpop.permute.xlu0 %1470
    %1472 = vrot.lane.b32.xlu0 %v707, 48
    %v1473 = vpop.permute.xlu0 %1472
    %1474 = vrot.lane.b32.xlu0 %v708, 48
    %v1475 = vpop.permute.xlu0 %1474
    %v1481 = vsel %vm811, %v1464, 0
    %v1484 = vsel %vm811, %v1465, 0
    %v1487 = vsel %vm811, %v1466, 0
    %v1490 = vsel %vm811, %v1467, 0
    %1492 = vmatprep.subr.bf16.mxu0 0
    %1493 = vmatpush1.bf16.msra.mxu0 %v1469
    %1494 = vmatprep.subr.bf16.mxu0 0
    %1495 = vmatpush1.bf16.msra.mxu0 %v1471
    %1496 = vmatprep.subr.bf16.mxu0 0
    %1497 = vmatpush1.bf16.msra.mxu0 %v1473
    %1498 = vmatprep.subr.bf16.mxu0 0
    %1499 = vmatpush1.bf16.msra.mxu0 %v1475
    %1500 = vmatprep.subr.bf16.mxu0 0
    %1501 = vmatpush1.bf16.msra.mxu0 0
    %1502 = vmatprep.subr.bf16.mxu0 0
    %1503 = vmatpush1.bf16.msra.mxu0 0
    %1504 = vmatprep.subr.bf16.mxu0 0
    %1505 = vmatpush1.bf16.msra.mxu0 0
    %1506 = vmatprep.subr.bf16.mxu0 0
    %1507 = vmatpush1.bf16.msra.mxu0 0
    %1508 = vmatprep.subr.bf16.mxu0 0
    %1509 = vmatpush1.bf16.msra.mxu0 0
    %1510 = vmatprep.subr.bf16.mxu0 0
    %1511 = vmatpush1.bf16.msra.mxu0 0
    %1512 = vmatprep.subr.bf16.mxu0 0
    %1513 = vmatpush1.bf16.msra.mxu0 0
    %1514 = vmatprep.subr.bf16.mxu0 0
    %1515 = vmatpush1.bf16.msra.mxu0 0
    %1516 = vmatprep.subr.bf16.mxu0 0
    %1517 = vmatpush1.bf16.msra.mxu0 0
    %1518 = vmatprep.subr.bf16.mxu0 0
    %1519 = vmatpush1.bf16.msra.mxu0 0
    %1520 = vmatprep.subr.bf16.mxu0 0
    %1521 = vmatpush1.bf16.msra.mxu0 0
    %1522 = vmatprep.subr.bf16.mxu0 0
    %1523 = vmatpush1.bf16.msra.mxu0 0
    %1524 = vmatprep.mubr.bf16.mxu0 0
    %1525 = vmatmul.mubr.bf16.gmra.mrb[0].mxu0 %v1481
    %v1526 = vpop.f32.mrb[0].mxu0
    %v1527 = vadd.f32 0.0, %v1526
    %v1528 = vpop.f32.mrb[0].mxu0
    %v1529 = vpop.f32.mrb[0].mxu0
    %v1530 = vadd.f32 0.0, %v1529
    %v1531 = vpop.f32.mrb[0].mxu0
    %1532 = vmatprep.mubr.bf16.mxu0 0
    %1533 = vmatmul.mubr.bf16.gmra.mrb[0].mxu0 %v1484
    %v1534 = vpop.f32.mrb[0].mxu0
    %v1535 = vadd.f32 0.0, %v1534
    %v1536 = vpop.f32.mrb[0].mxu0
    %v1537 = vpop.f32.mrb[0].mxu0
    %v1538 = vadd.f32 0.0, %v1537
    %v1539 = vpop.f32.mrb[0].mxu0
    %1540 = vmatprep.mubr.bf16.mxu0 0
    %1541 = vmatmul.mubr.bf16.gmra.mrb[0].mxu0 %v1487
    %v1542 = vpop.f32.mrb[0].mxu0
    %v1543 = vadd.f32 0.0, %v1542
    %v1544 = vpop.f32.mrb[0].mxu0
    %v1545 = vpop.f32.mrb[0].mxu0
    %v1546 = vadd.f32 0.0, %v1545
    %v1547 = vpop.f32.mrb[0].mxu0
    %1548 = vmatprep.mubr.bf16.mxu0 0
    %1549 = vmatmul.mubr.bf16.gmra.mrb[0].mxu0 %v1490
    %v1550 = vpop.f32.mrb[0].mxu0
    %v1551 = vadd.f32 0.0, %v1550
    %v1552 = vpop.f32.mrb[0].mxu0
    %v1553 = vpop.f32.mrb[0].mxu0
    %v1554 = vadd.f32 0.0, %v1553
    %v1555 = vpop.f32.mrb[0].mxu0
    %1556 = vdwg.mxu0
    %v1557 = vrcp.pop %v1442
    %v1558 = vrcp.pop %v1445
    %v1559 = vrcp.pop %v1448
    %v1560 = vrcp.pop %v1451
    %v1561 = vrcp.pop %v1454
    %v1562 = vrcp.pop %v1457
    %v1563 = vrcp.pop %v1460
    %v1564 = vrcp.pop %v1463
    %v1565 = vmul.f32 %v1527, %v1557
    %v1566 = vmul.f32 %v1530, %v1558
    %v1567 = vmul.f32 %v1535, %v1559
    %v1568 = vmul.f32 %v1538, %v1560
    %v1569 = vmul.f32 %v1543, %v1561
    %v1570 = vmul.f32 %v1546, %v1562
    %v1571 = vmul.f32 %v1551, %v1563
    %v1572 = vmul.f32 %v1554, %v1564
    %v1573 = vpack.c.bf16 %v1566, %v1565
    %v1574 = vpack.c.bf16 %v1568, %v1567
    %v1575 = vpack.c.bf16 %v1570, %v1569
    %v1576 = vpack.c.bf16 %v1572, %v1571
    %1577 = vrot.lane.b32.xlu0 %v705, 104
    %v1578 = vpop.permute.xlu0 %1577
    %1579 = vrot.lane.b32.xlu0 %v706, 104
    %v1580 = vpop.permute.xlu0 %1579
    %1581 = vrot.lane.b32.xlu0 %v707, 104
    %v1582 = vpop.permute.xlu0 %1581
    %1583 = vrot.lane.b32.xlu0 %v708, 104
    %v1584 = vpop.permute.xlu0 %1583
    %1585 = vrot.lane.b32.xlu0 %v705, 72
    %v1586 = vpop.permute.xlu0 %1585
    %1587 = vrot.lane.b32.xlu0 %v706, 72
    %v1588 = vpop.permute.xlu0 %1587
    %1589 = vrot.lane.b32.xlu0 %v707, 72
    %v1590 = vpop.permute.xlu0 %1589
    %1591 = vrot.lane.b32.xlu0 %v708, 72
    %v1592 = vpop.permute.xlu0 %1591
    %v1594 = vsel %vm721, %v1578, 0
    %v1597 = vsel %vm721, %v1580, 0
    %v1600 = vsel %vm721, %v1582, 0
    %v1603 = vsel %vm721, %v1584, 0
    %v1606 = vsel %vm721, %v1586, 0
    %v1609 = vsel %vm721, %v1588, 0
    %v1612 = vsel %vm721, %v1590, 0
    %v1615 = vsel %vm721, %v1592, 0
    %1617 = vmatprep.subr.bf16.mxu0 0
    %1618 = vmatpush1.bf16.xpose.msra.mxu0 %v1606
    %1619 = vmatprep.subr.bf16.mxu0 0
    %1620 = vmatpush1.bf16.xpose.msra.mxu0 %v1609
    %1621 = vmatprep.subr.bf16.mxu0 0
    %1622 = vmatpush1.bf16.xpose.msra.mxu0 %v1612
    %1623 = vmatprep.subr.bf16.mxu0 0
    %1624 = vmatpush1.bf16.xpose.msra.mxu0 %v1615
    %1625 = vmatprep.subr.bf16.mxu0 0
    %1626 = vmatpush1.bf16.xpose.msra.mxu0 0
    %1627 = vmatprep.subr.bf16.mxu0 0
    %1628 = vmatpush1.bf16.xpose.msra.mxu0 0
    %1629 = vmatprep.subr.bf16.mxu0 0
    %1630 = vmatpush1.bf16.xpose.msra.mxu0 0
    %1631 = vmatprep.subr.bf16.mxu0 0
    %1632 = vmatpush1.bf16.xpose.msra.mxu0 0
    %1633 = vmatprep.subr.bf16.mxu0 0
    %1634 = vmatpush1.bf16.xpose.msra.mxu0 0
    %1635 = vmatprep.subr.bf16.mxu0 0
    %1636 = vmatpush1.bf16.xpose.msra.mxu0 0
    %1637 = vmatprep.subr.bf16.mxu0 0
    %1638 = vmatpush1.bf16.xpose.msra.mxu0 0
    %1639 = vmatprep.subr.bf16.mxu0 0
    %1640 = vmatpush1.bf16.xpose.msra.mxu0 0
    %1641 = vmatprep.subr.bf16.mxu0 0
    %1642 = vmatpush1.bf16.xpose.msra.mxu0 0
    %1643 = vmatprep.subr.bf16.mxu0 0
    %1644 = vmatpush1.bf16.xpose.msra.mxu0 0
    %1645 = vmatprep.subr.bf16.mxu0 0
    %1646 = vmatpush1.bf16.xpose.msra.mxu0 0
    %1647 = vmatprep.subr.bf16.mxu0 0
    %1648 = vmatpush1.bf16.xpose.msra.mxu0 0
    %1649 = vmatprep.mubr.bf16.mxu0 0
    %1650 = vmatmul.mubr.bf16.gmra.mrb[0].mxu0 %v1594
    %v1651 = vpop.f32.mrb[0].mxu0
    %v1652 = vadd.f32 %v302, %v1651
    %v1653 = vpop.f32.mrb[0].mxu0
    %v1654 = vpop.f32.mrb[0].mxu0
    %v1655 = vadd.f32 %v302, %v1654
    %v1656 = vpop.f32.mrb[0].mxu0
    %1657 = vmatprep.mubr.bf16.mxu0 0
    %1658 = vmatmul.mubr.bf16.gmra.mrb[0].mxu0 %v1597
    %v1659 = vpop.f32.mrb[0].mxu0
    %v1660 = vadd.f32 %v302, %v1659
    %v1661 = vpop.f32.mrb[0].mxu0
    %v1662 = vpop.f32.mrb[0].mxu0
    %v1663 = vadd.f32 %v302, %v1662
    %v1664 = vpop.f32.mrb[0].mxu0
    %1665 = vmatprep.mubr.bf16.mxu0 0
    %1666 = vmatmul.mubr.bf16.gmra.mrb[0].mxu0 %v1600
    %v1667 = vpop.f32.mrb[0].mxu0
    %v1668 = vadd.f32 %v302, %v1667
    %v1669 = vpop.f32.mrb[0].mxu0
    %v1670 = vpop.f32.mrb[0].mxu0
    %v1671 = vadd.f32 %v302, %v1670
    %v1672 = vpop.f32.mrb[0].mxu0
    %1673 = vmatprep.mubr.bf16.mxu0 0
    %1674 = vmatmul.mubr.bf16.gmra.mrb[0].mxu0 %v1603
    %v1675 = vpop.f32.mrb[0].mxu0
    %v1676 = vadd.f32 %v302, %v1675
    %v1677 = vpop.f32.mrb[0].mxu0
    %v1678 = vpop.f32.mrb[0].mxu0
    %v1679 = vadd.f32 %v302, %v1678
    %v1680 = vpop.f32.mrb[0].mxu0
    %1681 = vdwg.mxu0
    %v1682 = vsel %vm811, %v1652, -inf
    %1683 = vmax.xlane.f32.xlu0 %v1682
    %v1684 = vpop.xlane.xlu0 %1683
    %v1685 = vsel %vm811, %v1655, -inf
    %1686 = vmax.xlane.f32.xlu0 %v1685
    %v1687 = vpop.xlane.xlu0 %1686
    %v1688 = vsel %vm811, %v1660, -inf
    %1689 = vmax.xlane.f32.xlu0 %v1688
    %v1690 = vpop.xlane.xlu0 %1689
    %v1691 = vsel %vm811, %v1663, -inf
    %1692 = vmax.xlane.f32.xlu0 %v1691
    %v1693 = vpop.xlane.xlu0 %1692
    %v1694 = vsel %vm811, %v1668, -inf
    %1695 = vmax.xlane.f32.xlu0 %v1694
    %v1696 = vpop.xlane.xlu0 %1695
    %v1697 = vsel %vm811, %v1671, -inf
    %1698 = vmax.xlane.f32.xlu0 %v1697
    %v1699 = vpop.xlane.xlu0 %1698
    %v1700 = vsel %vm811, %v1676, -inf
    %1701 = vmax.xlane.f32.xlu0 %v1700
    %v1702 = vpop.xlane.xlu0 %1701
    %v1703 = vsel %vm811, %v1679, -inf
    %1704 = vmax.xlane.f32.xlu0 %v1703
    %v1705 = vpop.xlane.xlu0 %1704
    %v1706 = vsub.f32 %v1652, %v1684
    %v1707 = vsub.f32 %v1655, %v1687
    %v1708 = vsub.f32 %v1660, %v1690
    %v1709 = vsub.f32 %v1663, %v1693
    %v1710 = vsub.f32 %v1668, %v1696
    %v1711 = vsub.f32 %v1671, %v1699
    %v1712 = vsub.f32 %v1676, %v1702
    %v1713 = vsub.f32 %v1679, %v1705
    %v1714 = vmul.f32 %v1706, 1.442695
    %v1715 = vpow.pop %v1714
    %v1716 = vmul.f32 %v1707, 1.442695
    %v1717 = vpow.pop %v1716
    %v1718 = vmul.f32 %v1708, 1.442695
    %v1719 = vpow.pop %v1718
    %v1720 = vmul.f32 %v1709, 1.442695
    %v1721 = vpow.pop %v1720
    %v1722 = vmul.f32 %v1710, 1.442695
    %v1723 = vpow.pop %v1722
    %v1724 = vmul.f32 %v1711, 1.442695
    %v1725 = vpow.pop %v1724
    %v1726 = vmul.f32 %v1712, 1.442695
    %v1727 = vpow.pop %v1726
    %v1728 = vmul.f32 %v1713, 1.442695
    %v1729 = vpow.pop %v1728
    %v1730 = vsel %vm811, %v1715, 0.0
    %1731 = vadd.xlane.f32.xlu0 %v1730
    %v1732 = vpop.xlane.xlu0 %1731
    %v1733 = vsel %vm811, %v1717, 0.0
    %1734 = vadd.xlane.f32.xlu0 %v1733
    %v1735 = vpop.xlane.xlu0 %1734
    %v1736 = vsel %vm811, %v1719, 0.0
    %1737 = vadd.xlane.f32.xlu0 %v1736
    %v1738 = vpop.xlane.xlu0 %1737
    %v1739 = vsel %vm811, %v1721, 0.0
    %1740 = vadd.xlane.f32.xlu0 %v1739
    %v1741 = vpop.xlane.xlu0 %1740
    %v1742 = vsel %vm811, %v1723, 0.0
    %1743 = vadd.xlane.f32.xlu0 %v1742
    %v1744 = vpop.xlane.xlu0 %1743
    %v1745 = vsel %vm811, %v1725, 0.0
    %1746 = vadd.xlane.f32.xlu0 %v1745
    %v1747 = vpop.xlane.xlu0 %1746
    %v1748 = vsel %vm811, %v1727, 0.0
    %1749 = vadd.xlane.f32.xlu0 %v1748
    %v1750 = vpop.xlane.xlu0 %1749
    %v1751 = vsel %vm811, %v1729, 0.0
    %1752 = vadd.xlane.f32.xlu0 %v1751
    %v1753 = vpop.xlane.xlu0 %1752
    %v1754 = vpack.c.bf16 %v1717, %v1715
    %v1755 = vpack.c.bf16 %v1721, %v1719
    %v1756 = vpack.c.bf16 %v1725, %v1723
    %v1757 = vpack.c.bf16 %v1729, %v1727
    %1758 = vrot.lane.b32.xlu0 %v705, 40
    %v1759 = vpop.permute.xlu0 %1758
    %1760 = vrot.lane.b32.xlu0 %v706, 40
    %v1761 = vpop.permute.xlu0 %1760
    %1762 = vrot.lane.b32.xlu0 %v707, 40
    %v1763 = vpop.permute.xlu0 %1762
    %1764 = vrot.lane.b32.xlu0 %v708, 40
    %v1765 = vpop.permute.xlu0 %1764
    %v1771 = vsel %vm811, %v1754, 0
    %v1774 = vsel %vm811, %v1755, 0
    %v1777 = vsel %vm811, %v1756, 0
    %v1780 = vsel %vm811, %v1757, 0
    %1782 = vmatprep.subr.bf16.mxu0 0
    %1783 = vmatpush1.bf16.msra.mxu0 %v1759
    %1784 = vmatprep.subr.bf16.mxu0 0
    %1785 = vmatpush1.bf16.msra.mxu0 %v1761
    %1786 = vmatprep.subr.bf16.mxu0 0
    %1787 = vmatpush1.bf16.msra.mxu0 %v1763
    %1788 = vmatprep.subr.bf16.mxu0 0
    %1789 = vmatpush1.bf16.msra.mxu0 %v1765
    %1790 = vmatprep.subr.bf16.mxu0 0
    %1791 = vmatpush1.bf16.msra.mxu0 0
    %1792 = vmatprep.subr.bf16.mxu0 0
    %1793 = vmatpush1.bf16.msra.mxu0 0
    %1794 = vmatprep.subr.bf16.mxu0 0
    %1795 = vmatpush1.bf16.msra.mxu0 0
    %1796 = vmatprep.subr.bf16.mxu0 0
    %1797 = vmatpush1.bf16.msra.mxu0 0
    %1798 = vmatprep.subr.bf16.mxu0 0
    %1799 = vmatpush1.bf16.msra.mxu0 0
    %1800 = vmatprep.subr.bf16.mxu0 0
    %1801 = vmatpush1.bf16.msra.mxu0 0
    %1802 = vmatprep.subr.bf16.mxu0 0
    %1803 = vmatpush1.bf16.msra.mxu0 0
    %1804 = vmatprep.subr.bf16.mxu0 0
    %1805 = vmatpush1.bf16.msra.mxu0 0
    %1806 = vmatprep.subr.bf16.mxu0 0
    %1807 = vmatpush1.bf16.msra.mxu0 0
    %1808 = vmatprep.subr.bf16.mxu0 0
    %1809 = vmatpush1.bf16.msra.mxu0 0
    %1810 = vmatprep.subr.bf16.mxu0 0
    %1811 = vmatpush1.bf16.msra.mxu0 0
    %1812 = vmatprep.subr.bf16.mxu0 0
    %1813 = vmatpush1.bf16.msra.mxu0 0
    %1814 = vmatprep.mubr.bf16.mxu0 0
    %1815 = vmatmul.mubr.bf16.gmra.mrb[0].mxu0 %v1771
    %v1816 = vpop.f32.mrb[0].mxu0
    %v1817 = vadd.f32 0.0, %v1816
    %v1818 = vpop.f32.mrb[0].mxu0
    %v1819 = vpop.f32.mrb[0].mxu0
    %v1820 = vadd.f32 0.0, %v1819
    %v1821 = vpop.f32.mrb[0].mxu0
    %1822 = vmatprep.mubr.bf16.mxu0 0
    %1823 = vmatmul.mubr.bf16.gmra.mrb[0].mxu0 %v1774
    %v1824 = vpop.f32.mrb[0].mxu0
    %v1825 = vadd.f32 0.0, %v1824
    %v1826 = vpop.f32.mrb[0].mxu0
    %v1827 = vpop.f32.mrb[0].mxu0
    %v1828 = vadd.f32 0.0, %v1827
    %v1829 = vpop.f32.mrb[0].mxu0
    %1830 = vmatprep.mubr.bf16.mxu0 0
    %1831 = vmatmul.mubr.bf16.gmra.mrb[0].mxu0 %v1777
    %v1832 = vpop.f32.mrb[0].mxu0
    %v1833 = vadd.f32 0.0, %v1832
    %v1834 = vpop.f32.mrb[0].mxu0
    %v1835 = vpop.f32.mrb[0].mxu0
    %v1836 = vadd.f32 0.0, %v1835
    %v1837 = vpop.f32.mrb[0].mxu0
    %1838 = vmatprep.mubr.bf16.mxu0 0
    %1839 = vmatmul.mubr.bf16.gmra.mrb[0].mxu0 %v1780
    %v1840 = vpop.f32.mrb[0].mxu0
    %v1841 = vadd.f32 0.0, %v1840
    %v1842 = vpop.f32.mrb[0].mxu0
    %v1843 = vpop.f32.mrb[0].mxu0
    %v1844 = vadd.f32 0.0, %v1843
    %v1845 = vpop.f32.mrb[0].mxu0
    %1846 = vdwg.mxu0
    %v1847 = vrcp.pop %v1732
    %v1848 = vrcp.pop %v1735
    %v1849 = vrcp.pop %v1738
    %v1850 = vrcp.pop %v1741
    %v1851 = vrcp.pop %v1744
    %v1852 = vrcp.pop %v1747
    %v1853 = vrcp.pop %v1750
    %v1854 = vrcp.pop %v1753
    %v1855 = vmul.f32 %v1817, %v1847
    %v1856 = vmul.f32 %v1820, %v1848
    %v1857 = vmul.f32 %v1825, %v1849
    %v1858 = vmul.f32 %v1828, %v1850
    %v1859 = vmul.f32 %v1833, %v1851
    %v1860 = vmul.f32 %v1836, %v1852
    %v1861 = vmul.f32 %v1841, %v1853
    %v1862 = vmul.f32 %v1844, %v1854
    %v1863 = vpack.c.bf16 %v1856, %v1855
    %v1864 = vpack.c.bf16 %v1858, %v1857
    %v1865 = vpack.c.bf16 %v1860, %v1859
    %v1866 = vpack.c.bf16 %v1862, %v1861
    %1871 = vrot.lane.b32.xlu0 %v1283, 8
    %v1872 = vpop.permute.xlu0 %1871
    %1873 = vrot.lane.b32.xlu0 %v1284, 8
    %v1874 = vpop.permute.xlu0 %1873
    %1875 = vrot.lane.b32.xlu0 %v1285, 8
    %v1876 = vpop.permute.xlu0 %1875
    %1877 = vrot.lane.b32.xlu0 %v1286, 8
    %v1878 = vpop.permute.xlu0 %1877
    %1883 = vrot.lane.b32.xlu0 %v1573, 16
    %v1884 = vpop.permute.xlu0 %1883
    %1885 = vrot.lane.b32.xlu0 %v1574, 16
    %v1886 = vpop.permute.xlu0 %1885
    %1887 = vrot.lane.b32.xlu0 %v1575, 16
    %v1888 = vpop.permute.xlu0 %1887
    %1889 = vrot.lane.b32.xlu0 %v1576, 16
    %v1890 = vpop.permute.xlu0 %1889
    %1895 = vrot.lane.b32.xlu0 %v1863, 24
    %v1896 = vpop.permute.xlu0 %1895
    %1897 = vrot.lane.b32.xlu0 %v1864, 24
    %v1898 = vpop.permute.xlu0 %1897
    %1899 = vrot.lane.b32.xlu0 %v1865, 24
    %v1900 = vpop.permute.xlu0 %1899
    %1901 = vrot.lane.b32.xlu0 %v1866, 24
    %v1902 = vpop.permute.xlu0 %1901
    %v1905 = vsel %vm721, %v993, %v1872
    %v1908 = vsel %vm721, %v994, %v1874
    %v1911 = vsel %vm721, %v995, %v1876
    %v1914 = vsel %vm721, %v996, %v1878
    %vm1915 = vcmask 130048
    %v1917 = vsel %vm1915, %v1905, %v1884
    %v1919 = vsel %vm1915, %v1908, %v1886
    %v1921 = vsel %vm1915, %v1911, %v1888
    %v1923 = vsel %vm1915, %v1914, %v1890
    %vm1924 = vcmask 195584
    %v1926 = vsel %vm1924, %v1917, %v1896
    %v1928 = vsel %vm1924, %v1919, %v1898
    %v1930 = vsel %vm1924, %v1921, %v1900
    %v1932 = vsel %vm1924, %v1923, %v1902
    %v1933 = vpack.c.bf16 %v678, %v675
    %v1934 = vpack.c.bf16 %v686, %v683
    %v1935 = vpack.c.bf16 %v694, %v691
    %v1936 = vpack.c.bf16 %v702, %v699
    %1941 = vrot.lane.b32.xlu0 %v1933, 96
    %v1942 = vpop.permute.xlu0 %1941
    %1943 = vrot.lane.b32.xlu0 %v1934, 96
    %v1944 = vpop.permute.xlu0 %1943
    %1945 = vrot.lane.b32.xlu0 %v1935, 96
    %v1946 = vpop.permute.xlu0 %1945
    %1947 = vrot.lane.b32.xlu0 %v1936, 96
    %v1948 = vpop.permute.xlu0 %1947
    %v1950 = vsel %vm721, %v1933, 0
    %v1953 = vsel %vm721, %v1934, 0
    %v1956 = vsel %vm721, %v1935, 0
    %v1959 = vsel %vm721, %v1936, 0
    %v1962 = vsel %vm721, %v1942, 0
    %v1965 = vsel %vm721, %v1944, 0
    %v1968 = vsel %vm721, %v1946, 0
    %v1971 = vsel %vm721, %v1948, 0
    %1973 = vmatprep.subr.bf16.mxu0 0
    %1974 = vmatpush1.bf16.xpose.msra.mxu0 %v1962
    %1975 = vmatprep.subr.bf16.mxu0 0
    %1976 = vmatpush1.bf16.xpose.msra.mxu0 %v1965
    %1977 = vmatprep.subr.bf16.mxu0 0
    %1978 = vmatpush1.bf16.xpose.msra.mxu0 %v1968
    %1979 = vmatprep.subr.bf16.mxu0 0
    %1980 = vmatpush1.bf16.xpose.msra.mxu0 %v1971
    %1981 = vmatprep.subr.bf16.mxu0 0
    %1982 = vmatpush1.bf16.xpose.msra.mxu0 0
    %1983 = vmatprep.subr.bf16.mxu0 0
    %1984 = vmatpush1.bf16.xpose.msra.mxu0 0
    %1985 = vmatprep.subr.bf16.mxu0 0
    %1986 = vmatpush1.bf16.xpose.msra.mxu0 0
    %1987 = vmatprep.subr.bf16.mxu0 0
    %1988 = vmatpush1.bf16.xpose.msra.mxu0 0
    %1989 = vmatprep.subr.bf16.mxu0 0
    %1990 = vmatpush1.bf16.xpose.msra.mxu0 0
    %1991 = vmatprep.subr.bf16.mxu0 0
    %1992 = vmatpush1.bf16.xpose.msra.mxu0 0
    %1993 = vmatprep.subr.bf16.mxu0 0
    %1994 = vmatpush1.bf16.xpose.msra.mxu0 0
    %1995 = vmatprep.subr.bf16.mxu0 0
    %1996 = vmatpush1.bf16.xpose.msra.mxu0 0
    %1997 = vmatprep.subr.bf16.mxu0 0
    %1998 = vmatpush1.bf16.xpose.msra.mxu0 0
    %1999 = vmatprep.subr.bf16.mxu0 0
    %2000 = vmatpush1.bf16.xpose.msra.mxu0 0
    %2001 = vmatprep.subr.bf16.mxu0 0
    %2002 = vmatpush1.bf16.xpose.msra.mxu0 0
    %2003 = vmatprep.subr.bf16.mxu0 0
    %2004 = vmatpush1.bf16.xpose.msra.mxu0 0
    %2005 = vmatprep.mubr.bf16.mxu0 0
    %2006 = vmatmul.mubr.bf16.gmra.mrb[0].mxu0 %v1950
    %v2007 = vpop.f32.mrb[0].mxu0
    %v2008 = vadd.f32 %v302, %v2007
    %v2009 = vpop.f32.mrb[0].mxu0
    %v2010 = vpop.f32.mrb[0].mxu0
    %v2011 = vadd.f32 %v302, %v2010
    %v2012 = vpop.f32.mrb[0].mxu0
    %2013 = vmatprep.mubr.bf16.mxu0 0
    %2014 = vmatmul.mubr.bf16.gmra.mrb[0].mxu0 %v1953
    %v2015 = vpop.f32.mrb[0].mxu0
    %v2016 = vadd.f32 %v302, %v2015
    %v2017 = vpop.f32.mrb[0].mxu0
    %v2018 = vpop.f32.mrb[0].mxu0
    %v2019 = vadd.f32 %v302, %v2018
    %v2020 = vpop.f32.mrb[0].mxu0
    %2021 = vmatprep.mubr.bf16.mxu0 0
    %2022 = vmatmul.mubr.bf16.gmra.mrb[0].mxu0 %v1956
    %v2023 = vpop.f32.mrb[0].mxu0
    %v2024 = vadd.f32 %v302, %v2023
    %v2025 = vpop.f32.mrb[0].mxu0
    %v2026 = vpop.f32.mrb[0].mxu0
    %v2027 = vadd.f32 %v302, %v2026
    %v2028 = vpop.f32.mrb[0].mxu0
    %2029 = vmatprep.mubr.bf16.mxu0 0
    %2030 = vmatmul.mubr.bf16.gmra.mrb[0].mxu0 %v1959
    %v2031 = vpop.f32.mrb[0].mxu0
    %v2032 = vadd.f32 %v302, %v2031
    %v2033 = vpop.f32.mrb[0].mxu0
    %v2034 = vpop.f32.mrb[0].mxu0
    %v2035 = vadd.f32 %v302, %v2034
    %v2036 = vpop.f32.mrb[0].mxu0
    %2037 = vdwg.mxu0
    %v2038 = vsel %vm811, %v2008, -inf
    %2039 = vmax.xlane.f32.xlu0 %v2038
    %v2040 = vpop.xlane.xlu0 %2039
    %v2041 = vsel %vm811, %v2011, -inf
    %2042 = vmax.xlane.f32.xlu0 %v2041
    %v2043 = vpop.xlane.xlu0 %2042
    %v2044 = vsel %vm811, %v2016, -inf
    %2045 = vmax.xlane.f32.xlu0 %v2044
    %v2046 = vpop.xlane.xlu0 %2045
    %v2047 = vsel %vm811, %v2019, -inf
    %2048 = vmax.xlane.f32.xlu0 %v2047
    %v2049 = vpop.xlane.xlu0 %2048
    %v2050 = vsel %vm811, %v2024, -inf
    %2051 = vmax.xlane.f32.xlu0 %v2050
    %v2052 = vpop.xlane.xlu0 %2051
    %v2053 = vsel %vm811, %v2027, -inf
    %2054 = vmax.xlane.f32.xlu0 %v2053
    %v2055 = vpop.xlane.xlu0 %2054
    %v2056 = vsel %vm811, %v2032, -inf
    %2057 = vmax.xlane.f32.xlu0 %v2056
    %v2058 = vpop.xlane.xlu0 %2057
    %v2059 = vsel %vm811, %v2035, -inf
    %2060 = vmax.xlane.f32.xlu0 %v2059
    %v2061 = vpop.xlane.xlu0 %2060
    %v2062 = vsub.f32 %v2008, %v2040
    %v2063 = vsub.f32 %v2011, %v2043
    %v2064 = vsub.f32 %v2016, %v2046
    %v2065 = vsub.f32 %v2019, %v2049
    %v2066 = vsub.f32 %v2024, %v2052
    %v2067 = vsub.f32 %v2027, %v2055
    %v2068 = vsub.f32 %v2032, %v2058
    %v2069 = vsub.f32 %v2035, %v2061
    %v2070 = vmul.f32 %v2062, 1.442695
    %v2071 = vpow.pop %v2070
    %v2072 = vmul.f32 %v2063, 1.442695
    %v2073 = vpow.pop %v2072
    %v2074 = vmul.f32 %v2064, 1.442695
    %v2075 = vpow.pop %v2074
    %v2076 = vmul.f32 %v2065, 1.442695
    %v2077 = vpow.pop %v2076
    %v2078 = vmul.f32 %v2066, 1.442695
    %v2079 = vpow.pop %v2078
    %v2080 = vmul.f32 %v2067, 1.442695
    %v2081 = vpow.pop %v2080
    %v2082 = vmul.f32 %v2068, 1.442695
    %v2083 = vpow.pop %v2082
    %v2084 = vmul.f32 %v2069, 1.442695
    %v2085 = vpow.pop %v2084
    %v2086 = vsel %vm811, %v2071, 0.0
    %2087 = vadd.xlane.f32.xlu0 %v2086
    %v2088 = vpop.xlane.xlu0 %2087
    %v2089 = vsel %vm811, %v2073, 0.0
    %2090 = vadd.xlane.f32.xlu0 %v2089
    %v2091 = vpop.xlane.xlu0 %2090
    %v2092 = vsel %vm811, %v2075, 0.0
    %2093 = vadd.xlane.f32.xlu0 %v2092
    %v2094 = vpop.xlane.xlu0 %2093
    %v2095 = vsel %vm811, %v2077, 0.0
    %2096 = vadd.xlane.f32.xlu0 %v2095
    %v2097 = vpop.xlane.xlu0 %2096
    %v2098 = vsel %vm811, %v2079, 0.0
    %2099 = vadd.xlane.f32.xlu0 %v2098
    %v2100 = vpop.xlane.xlu0 %2099
    %v2101 = vsel %vm811, %v2081, 0.0
    %2102 = vadd.xlane.f32.xlu0 %v2101
    %v2103 = vpop.xlane.xlu0 %2102
    %v2104 = vsel %vm811, %v2083, 0.0
    %2105 = vadd.xlane.f32.xlu0 %v2104
    %v2106 = vpop.xlane.xlu0 %2105
    %v2107 = vsel %vm811, %v2085, 0.0
    %2108 = vadd.xlane.f32.xlu0 %v2107
    %v2109 = vpop.xlane.xlu0 %2108
    %v2110 = vpack.c.bf16 %v2073, %v2071
    %v2111 = vpack.c.bf16 %v2077, %v2075
    %v2112 = vpack.c.bf16 %v2081, %v2079
    %v2113 = vpack.c.bf16 %v2085, %v2083
    %2114 = vrot.lane.b32.xlu0 %v1933, 64
    %v2115 = vpop.permute.xlu0 %2114
    %2116 = vrot.lane.b32.xlu0 %v1934, 64
    %v2117 = vpop.permute.xlu0 %2116
    %2118 = vrot.lane.b32.xlu0 %v1935, 64
    %v2119 = vpop.permute.xlu0 %2118
    %2120 = vrot.lane.b32.xlu0 %v1936, 64
    %v2121 = vpop.permute.xlu0 %2120
    %v2127 = vsel %vm811, %v2110, 0
    %v2130 = vsel %vm811, %v2111, 0
    %v2133 = vsel %vm811, %v2112, 0
    %v2136 = vsel %vm811, %v2113, 0
    %2138 = vmatprep.subr.bf16.mxu0 0
    %2139 = vmatpush1.bf16.msra.mxu0 %v2115
    %2140 = vmatprep.subr.bf16.mxu0 0
    %2141 = vmatpush1.bf16.msra.mxu0 %v2117
    %2142 = vmatprep.subr.bf16.mxu0 0
    %2143 = vmatpush1.bf16.msra.mxu0 %v2119
    %2144 = vmatprep.subr.bf16.mxu0 0
    %2145 = vmatpush1.bf16.msra.mxu0 %v2121
    %2146 = vmatprep.subr.bf16.mxu0 0
    %2147 = vmatpush1.bf16.msra.mxu0 0
    %2148 = vmatprep.subr.bf16.mxu0 0
    %2149 = vmatpush1.bf16.msra.mxu0 0
    %2150 = vmatprep.subr.bf16.mxu0 0
    %2151 = vmatpush1.bf16.msra.mxu0 0
    %2152 = vmatprep.subr.bf16.mxu0 0
    %2153 = vmatpush1.bf16.msra.mxu0 0
    %2154 = vmatprep.subr.bf16.mxu0 0
    %2155 = vmatpush1.bf16.msra.mxu0 0
    %2156 = vmatprep.subr.bf16.mxu0 0
    %2157 = vmatpush1.bf16.msra.mxu0 0
    %2158 = vmatprep.subr.bf16.mxu0 0
    %2159 = vmatpush1.bf16.msra.mxu0 0
    %2160 = vmatprep.subr.bf16.mxu0 0
    %2161 = vmatpush1.bf16.msra.mxu0 0
    %2162 = vmatprep.subr.bf16.mxu0 0
    %2163 = vmatpush1.bf16.msra.mxu0 0
    %2164 = vmatprep.subr.bf16.mxu0 0
    %2165 = vmatpush1.bf16.msra.mxu0 0
    %2166 = vmatprep.subr.bf16.mxu0 0
    %2167 = vmatpush1.bf16.msra.mxu0 0
    %2168 = vmatprep.subr.bf16.mxu0 0
    %2169 = vmatpush1.bf16.msra.mxu0 0
    %2170 = vmatprep.mubr.bf16.mxu0 0
    %2171 = vmatmul.mubr.bf16.gmra.mrb[0].mxu0 %v2127
    %v2172 = vpop.f32.mrb[0].mxu0
    %v2173 = vadd.f32 0.0, %v2172
    %v2174 = vpop.f32.mrb[0].mxu0
    %v2175 = vpop.f32.mrb[0].mxu0
    %v2176 = vadd.f32 0.0, %v2175
    %v2177 = vpop.f32.mrb[0].mxu0
    %2178 = vmatprep.mubr.bf16.mxu0 0
    %2179 = vmatmul.mubr.bf16.gmra.mrb[0].mxu0 %v2130
    %v2180 = vpop.f32.mrb[0].mxu0
    %v2181 = vadd.f32 0.0, %v2180
    %v2182 = vpop.f32.mrb[0].mxu0
    %v2183 = vpop.f32.mrb[0].mxu0
    %v2184 = vadd.f32 0.0, %v2183
    %v2185 = vpop.f32.mrb[0].mxu0
    %2186 = vmatprep.mubr.bf16.mxu0 0
    %2187 = vmatmul.mubr.bf16.gmra.mrb[0].mxu0 %v2133
    %v2188 = vpop.f32.mrb[0].mxu0
    %v2189 = vadd.f32 0.0, %v2188
    %v2190 = vpop.f32.mrb[0].mxu0
    %v2191 = vpop.f32.mrb[0].mxu0
    %v2192 = vadd.f32 0.0, %v2191
    %v2193 = vpop.f32.mrb[0].mxu0
    %2194 = vmatprep.mubr.bf16.mxu0 0
    %2195 = vmatmul.mubr.bf16.gmra.mrb[0].mxu0 %v2136
    %v2196 = vpop.f32.mrb[0].mxu0
    %v2197 = vadd.f32 0.0, %v2196
    %v2198 = vpop.f32.mrb[0].mxu0
    %v2199 = vpop.f32.mrb[0].mxu0
    %v2200 = vadd.f32 0.0, %v2199
    %v2201 = vpop.f32.mrb[0].mxu0
    %2202 = vdwg.mxu0
    %v2203 = vrcp.pop %v2088
    %v2204 = vrcp.pop %v2091
    %v2205 = vrcp.pop %v2094
    %v2206 = vrcp.pop %v2097
    %v2207 = vrcp.pop %v2100
    %v2208 = vrcp.pop %v2103
    %v2209 = vrcp.pop %v2106
    %v2210 = vrcp.pop %v2109
    %v2211 = vmul.f32 %v2173, %v2203
    %v2212 = vmul.f32 %v2176, %v2204
    %v2213 = vmul.f32 %v2181, %v2205
    %v2214 = vmul.f32 %v2184, %v2206
    %v2215 = vmul.f32 %v2189, %v2207
    %v2216 = vmul.f32 %v2192, %v2208
    %v2217 = vmul.f32 %v2197, %v2209
    %v2218 = vmul.f32 %v2200, %v2210
    %v2219 = vpack.c.bf16 %v2212, %v2211
    %v2220 = vpack.c.bf16 %v2214, %v2213
    %v2221 = vpack.c.bf16 %v2216, %v2215
    %v2222 = vpack.c.bf16 %v2218, %v2217
    %2223 = vrot.lane.b32.xlu0 %v1933, 120
    %v2224 = vpop.permute.xlu0 %2223
    %2225 = vrot.lane.b32.xlu0 %v1934, 120
    %v2226 = vpop.permute.xlu0 %2225
    %2227 = vrot.lane.b32.xlu0 %v1935, 120
    %v2228 = vpop.permute.xlu0 %2227
    %2229 = vrot.lane.b32.xlu0 %v1936, 120
    %v2230 = vpop.permute.xlu0 %2229
    %2231 = vrot.lane.b32.xlu0 %v1933, 88
    %v2232 = vpop.permute.xlu0 %2231
    %2233 = vrot.lane.b32.xlu0 %v1934, 88
    %v2234 = vpop.permute.xlu0 %2233
    %2235 = vrot.lane.b32.xlu0 %v1935, 88
    %v2236 = vpop.permute.xlu0 %2235
    %2237 = vrot.lane.b32.xlu0 %v1936, 88
    %v2238 = vpop.permute.xlu0 %2237
    %v2240 = vsel %vm721, %v2224, 0
    %v2243 = vsel %vm721, %v2226, 0
    %v2246 = vsel %vm721, %v2228, 0
    %v2249 = vsel %vm721, %v2230, 0
    %v2252 = vsel %vm721, %v2232, 0
    %v2255 = vsel %vm721, %v2234, 0
    %v2258 = vsel %vm721, %v2236, 0
    %v2261 = vsel %vm721, %v2238, 0
    %2263 = vmatprep.subr.bf16.mxu0 0
    %2264 = vmatpush1.bf16.xpose.msra.mxu0 %v2252
    %2265 = vmatprep.subr.bf16.mxu0 0
    %2266 = vmatpush1.bf16.xpose.msra.mxu0 %v2255
    %2267 = vmatprep.subr.bf16.mxu0 0
    %2268 = vmatpush1.bf16.xpose.msra.mxu0 %v2258
    %2269 = vmatprep.subr.bf16.mxu0 0
    %2270 = vmatpush1.bf16.xpose.msra.mxu0 %v2261
    %2271 = vmatprep.subr.bf16.mxu0 0
    %2272 = vmatpush1.bf16.xpose.msra.mxu0 0
    %2273 = vmatprep.subr.bf16.mxu0 0
    %2274 = vmatpush1.bf16.xpose.msra.mxu0 0
    %2275 = vmatprep.subr.bf16.mxu0 0
    %2276 = vmatpush1.bf16.xpose.msra.mxu0 0
    %2277 = vmatprep.subr.bf16.mxu0 0
    %2278 = vmatpush1.bf16.xpose.msra.mxu0 0
    %2279 = vmatprep.subr.bf16.mxu0 0
    %2280 = vmatpush1.bf16.xpose.msra.mxu0 0
    %2281 = vmatprep.subr.bf16.mxu0 0
    %2282 = vmatpush1.bf16.xpose.msra.mxu0 0
    %2283 = vmatprep.subr.bf16.mxu0 0
    %2284 = vmatpush1.bf16.xpose.msra.mxu0 0
    %2285 = vmatprep.subr.bf16.mxu0 0
    %2286 = vmatpush1.bf16.xpose.msra.mxu0 0
    %2287 = vmatprep.subr.bf16.mxu0 0
    %2288 = vmatpush1.bf16.xpose.msra.mxu0 0
    %2289 = vmatprep.subr.bf16.mxu0 0
    %2290 = vmatpush1.bf16.xpose.msra.mxu0 0
    %2291 = vmatprep.subr.bf16.mxu0 0
    %2292 = vmatpush1.bf16.xpose.msra.mxu0 0
    %2293 = vmatprep.subr.bf16.mxu0 0
    %2294 = vmatpush1.bf16.xpose.msra.mxu0 0
    %2295 = vmatprep.mubr.bf16.mxu0 0
    %2296 = vmatmul.mubr.bf16.gmra.mrb[0].mxu0 %v2240
    %v2297 = vpop.f32.mrb[0].mxu0
    %v2298 = vadd.f32 %v302, %v2297
    %v2299 = vpop.f32.mrb[0].mxu0
    %v2300 = vpop.f32.mrb[0].mxu0
    %v2301 = vadd.f32 %v302, %v2300
    %v2302 = vpop.f32.mrb[0].mxu0
    %2303 = vmatprep.mubr.bf16.mxu0 0
    %2304 = vmatmul.mubr.bf16.gmra.mrb[0].mxu0 %v2243
    %v2305 = vpop.f32.mrb[0].mxu0
    %v2306 = vadd.f32 %v302, %v2305
    %v2307 = vpop.f32.mrb[0].mxu0
    %v2308 = vpop.f32.mrb[0].mxu0
    %v2309 = vadd.f32 %v302, %v2308
    %v2310 = vpop.f32.mrb[0].mxu0
    %2311 = vmatprep.mubr.bf16.mxu0 0
    %2312 = vmatmul.mubr.bf16.gmra.mrb[0].mxu0 %v2246
    %v2313 = vpop.f32.mrb[0].mxu0
    %v2314 = vadd.f32 %v302, %v2313
    %v2315 = vpop.f32.mrb[0].mxu0
    %v2316 = vpop.f32.mrb[0].mxu0
    %v2317 = vadd.f32 %v302, %v2316
    %v2318 = vpop.f32.mrb[0].mxu0
    %2319 = vmatprep.mubr.bf16.mxu0 0
    %2320 = vmatmul.mubr.bf16.gmra.mrb[0].mxu0 %v2249
    %v2321 = vpop.f32.mrb[0].mxu0
    %v2322 = vadd.f32 %v302, %v2321
    %v2323 = vpop.f32.mrb[0].mxu0
    %v2324 = vpop.f32.mrb[0].mxu0
    %v2325 = vadd.f32 %v302, %v2324
    %v2326 = vpop.f32.mrb[0].mxu0
    %2327 = vdwg.mxu0
    %v2328 = vsel %vm811, %v2298, -inf
    %2329 = vmax.xlane.f32.xlu0 %v2328
    %v2330 = vpop.xlane.xlu0 %2329
    %v2331 = vsel %vm811, %v2301, -inf
    %2332 = vmax.xlane.f32.xlu0 %v2331
    %v2333 = vpop.xlane.xlu0 %2332
    %v2334 = vsel %vm811, %v2306, -inf
    %2335 = vmax.xlane.f32.xlu0 %v2334
    %v2336 = vpop.xlane.xlu0 %2335
    %v2337 = vsel %vm811, %v2309, -inf
    %2338 = vmax.xlane.f32.xlu0 %v2337
    %v2339 = vpop.xlane.xlu0 %2338
    %v2340 = vsel %vm811, %v2314, -inf
    %2341 = vmax.xlane.f32.xlu0 %v2340
    %v2342 = vpop.xlane.xlu0 %2341
    %v2343 = vsel %vm811, %v2317, -inf
    %2344 = vmax.xlane.f32.xlu0 %v2343
    %v2345 = vpop.xlane.xlu0 %2344
    %v2346 = vsel %vm811, %v2322, -inf
    %2347 = vmax.xlane.f32.xlu0 %v2346
    %v2348 = vpop.xlane.xlu0 %2347
    %v2349 = vsel %vm811, %v2325, -inf
    %2350 = vmax.xlane.f32.xlu0 %v2349
    %v2351 = vpop.xlane.xlu0 %2350
    %v2352 = vsub.f32 %v2298, %v2330
    %v2353 = vsub.f32 %v2301, %v2333
    %v2354 = vsub.f32 %v2306, %v2336
    %v2355 = vsub.f32 %v2309, %v2339
    %v2356 = vsub.f32 %v2314, %v2342
    %v2357 = vsub.f32 %v2317, %v2345
    %v2358 = vsub.f32 %v2322, %v2348
    %v2359 = vsub.f32 %v2325, %v2351
    %v2360 = vmul.f32 %v2352, 1.442695
    %v2361 = vpow.pop %v2360
    %v2362 = vmul.f32 %v2353, 1.442695
    %v2363 = vpow.pop %v2362
    %v2364 = vmul.f32 %v2354, 1.442695
    %v2365 = vpow.pop %v2364
    %v2366 = vmul.f32 %v2355, 1.442695
    %v2367 = vpow.pop %v2366
    %v2368 = vmul.f32 %v2356, 1.442695
    %v2369 = vpow.pop %v2368
    %v2370 = vmul.f32 %v2357, 1.442695
    %v2371 = vpow.pop %v2370
    %v2372 = vmul.f32 %v2358, 1.442695
    %v2373 = vpow.pop %v2372
    %v2374 = vmul.f32 %v2359, 1.442695
    %v2375 = vpow.pop %v2374
    %v2376 = vsel %vm811, %v2361, 0.0
    %2377 = vadd.xlane.f32.xlu0 %v2376
    %v2378 = vpop.xlane.xlu0 %2377
    %v2379 = vsel %vm811, %v2363, 0.0
    %2380 = vadd.xlane.f32.xlu0 %v2379
    %v2381 = vpop.xlane.xlu0 %2380
    %v2382 = vsel %vm811, %v2365, 0.0
    %2383 = vadd.xlane.f32.xlu0 %v2382
    %v2384 = vpop.xlane.xlu0 %2383
    %v2385 = vsel %vm811, %v2367, 0.0
    %2386 = vadd.xlane.f32.xlu0 %v2385
    %v2387 = vpop.xlane.xlu0 %2386
    %v2388 = vsel %vm811, %v2369, 0.0
    %2389 = vadd.xlane.f32.xlu0 %v2388
    %v2390 = vpop.xlane.xlu0 %2389
    %v2391 = vsel %vm811, %v2371, 0.0
    %2392 = vadd.xlane.f32.xlu0 %v2391
    %v2393 = vpop.xlane.xlu0 %2392
    %v2394 = vsel %vm811, %v2373, 0.0
    %2395 = vadd.xlane.f32.xlu0 %v2394
    %v2396 = vpop.xlane.xlu0 %2395
    %v2397 = vsel %vm811, %v2375, 0.0
    %2398 = vadd.xlane.f32.xlu0 %v2397
    %v2399 = vpop.xlane.xlu0 %2398
    %v2400 = vpack.c.bf16 %v2363, %v2361
    %v2401 = vpack.c.bf16 %v2367, %v2365
    %v2402 = vpack.c.bf16 %v2371, %v2369
    %v2403 = vpack.c.bf16 %v2375, %v2373
    %2404 = vrot.lane.b32.xlu0 %v1933, 56
    %v2405 = vpop.permute.xlu0 %2404
    %2406 = vrot.lane.b32.xlu0 %v1934, 56
    %v2407 = vpop.permute.xlu0 %2406
    %2408 = vrot.lane.b32.xlu0 %v1935, 56
    %v2409 = vpop.permute.xlu0 %2408
    %2410 = vrot.lane.b32.xlu0 %v1936, 56
    %v2411 = vpop.permute.xlu0 %2410
    %v2417 = vsel %vm811, %v2400, 0
    %v2420 = vsel %vm811, %v2401, 0
    %v2423 = vsel %vm811, %v2402, 0
    %v2426 = vsel %vm811, %v2403, 0
    %2428 = vmatprep.subr.bf16.mxu0 0
    %2429 = vmatpush1.bf16.msra.mxu0 %v2405
    %2430 = vmatprep.subr.bf16.mxu0 0
    %2431 = vmatpush1.bf16.msra.mxu0 %v2407
    %2432 = vmatprep.subr.bf16.mxu0 0
    %2433 = vmatpush1.bf16.msra.mxu0 %v2409
    %2434 = vmatprep.subr.bf16.mxu0 0
    %2435 = vmatpush1.bf16.msra.mxu0 %v2411
    %2436 = vmatprep.subr.bf16.mxu0 0
    %2437 = vmatpush1.bf16.msra.mxu0 0
    %2438 = vmatprep.subr.bf16.mxu0 0
    %2439 = vmatpush1.bf16.msra.mxu0 0
    %2440 = vmatprep.subr.bf16.mxu0 0
    %2441 = vmatpush1.bf16.msra.mxu0 0
    %2442 = vmatprep.subr.bf16.mxu0 0
    %2443 = vmatpush1.bf16.msra.mxu0 0
    %2444 = vmatprep.subr.bf16.mxu0 0
    %2445 = vmatpush1.bf16.msra.mxu0 0
    %2446 = vmatprep.subr.bf16.mxu0 0
    %2447 = vmatpush1.bf16.msra.mxu0 0
    %2448 = vmatprep.subr.bf16.mxu0 0
    %2449 = vmatpush1.bf16.msra.mxu0 0
    %2450 = vmatprep.subr.bf16.mxu0 0
    %2451 = vmatpush1.bf16.msra.mxu0 0
    %2452 = vmatprep.subr.bf16.mxu0 0
    %2453 = vmatpush1.bf16.msra.mxu0 0
    %2454 = vmatprep.subr.bf16.mxu0 0
    %2455 = vmatpush1.bf16.msra.mxu0 0
    %2456 = vmatprep.subr.bf16.mxu0 0
    %2457 = vmatpush1.bf16.msra.mxu0 0
    %2458 = vmatprep.subr.bf16.mxu0 0
    %2459 = vmatpush1.bf16.msra.mxu0 0
    %2460 = vmatprep.mubr.bf16.mxu0 0
    %2461 = vmatmul.mubr.bf16.gmra.mrb[0].mxu0 %v2417
    %v2462 = vpop.f32.mrb[0].mxu0
    %v2463 = vadd.f32 0.0, %v2462
    %v2464 = vpop.f32.mrb[0].mxu0
    %v2465 = vpop.f32.mrb[0].mxu0
    %v2466 = vadd.f32 0.0, %v2465
    %v2467 = vpop.f32.mrb[0].mxu0
    %2468 = vmatprep.mubr.bf16.mxu0 0
    %2469 = vmatmul.mubr.bf16.gmra.mrb[0].mxu0 %v2420
    %v2470 = vpop.f32.mrb[0].mxu0
    %v2471 = vadd.f32 0.0, %v2470
    %v2472 = vpop.f32.mrb[0].mxu0
    %v2473 = vpop.f32.mrb[0].mxu0
    %v2474 = vadd.f32 0.0, %v2473
    %v2475 = vpop.f32.mrb[0].mxu0
    %2476 = vmatprep.mubr.bf16.mxu0 0
    %2477 = vmatmul.mubr.bf16.gmra.mrb[0].mxu0 %v2423
    %v2478 = vpop.f32.mrb[0].mxu0
    %v2479 = vadd.f32 0.0, %v2478
    %v2480 = vpop.f32.mrb[0].mxu0
    %v2481 = vpop.f32.mrb[0].mxu0
    %v2482 = vadd.f32 0.0, %v2481
    %v2483 = vpop.f32.mrb[0].mxu0
    %2484 = vmatprep.mubr.bf16.mxu0 0
    %2485 = vmatmul.mubr.bf16.gmra.mrb[0].mxu0 %v2426
    %v2486 = vpop.f32.mrb[0].mxu0
    %v2487 = vadd.f32 0.0, %v2486
    %v2488 = vpop.f32.mrb[0].mxu0
    %v2489 = vpop.f32.mrb[0].mxu0
    %v2490 = vadd.f32 0.0, %v2489
    %v2491 = vpop.f32.mrb[0].mxu0
    %2492 = vdwg.mxu0
    %v2493 = vrcp.pop %v2378
    %v2494 = vrcp.pop %v2381
    %v2495 = vrcp.pop %v2384
    %v2496 = vrcp.pop %v2387
    %v2497 = vrcp.pop %v2390
    %v2498 = vrcp.pop %v2393
    %v2499 = vrcp.pop %v2396
    %v2500 = vrcp.pop %v2399
    %v2501 = vmul.f32 %v2463, %v2493
    %v2502 = vmul.f32 %v2466, %v2494
    %v2503 = vmul.f32 %v2471, %v2495
    %v2504 = vmul.f32 %v2474, %v2496
    %v2505 = vmul.f32 %v2479, %v2497
    %v2506 = vmul.f32 %v2482, %v2498
    %v2507 = vmul.f32 %v2487, %v2499
    %v2508 = vmul.f32 %v2490, %v2500
    %v2509 = vpack.c.bf16 %v2502, %v2501
    %v2510 = vpack.c.bf16 %v2504, %v2503
    %v2511 = vpack.c.bf16 %v2506, %v2505
    %v2512 = vpack.c.bf16 %v2508, %v2507
    %2513 = vrot.lane.b32.xlu0 %v1933, 112
    %v2514 = vpop.permute.xlu0 %2513
    %2515 = vrot.lane.b32.xlu0 %v1934, 112
    %v2516 = vpop.permute.xlu0 %2515
    %2517 = vrot.lane.b32.xlu0 %v1935, 112
    %v2518 = vpop.permute.xlu0 %2517
    %2519 = vrot.lane.b32.xlu0 %v1936, 112
    %v2520 = vpop.permute.xlu0 %2519
    %2521 = vrot.lane.b32.xlu0 %v1933, 80
    %v2522 = vpop.permute.xlu0 %2521
    %2523 = vrot.lane.b32.xlu0 %v1934, 80
    %v2524 = vpop.permute.xlu0 %2523
    %2525 = vrot.lane.b32.xlu0 %v1935, 80
    %v2526 = vpop.permute.xlu0 %2525
    %2527 = vrot.lane.b32.xlu0 %v1936, 80
    %v2528 = vpop.permute.xlu0 %2527
    %v2530 = vsel %vm721, %v2514, 0
    %v2533 = vsel %vm721, %v2516, 0
    %v2536 = vsel %vm721, %v2518, 0
    %v2539 = vsel %vm721, %v2520, 0
    %v2542 = vsel %vm721, %v2522, 0
    %v2545 = vsel %vm721, %v2524, 0
    %v2548 = vsel %vm721, %v2526, 0
    %v2551 = vsel %vm721, %v2528, 0
    %2553 = vmatprep.subr.bf16.mxu0 0
    %2554 = vmatpush1.bf16.xpose.msra.mxu0 %v2542
    %2555 = vmatprep.subr.bf16.mxu0 0
    %2556 = vmatpush1.bf16.xpose.msra.mxu0 %v2545
    %2557 = vmatprep.subr.bf16.mxu0 0
    %2558 = vmatpush1.bf16.xpose.msra.mxu0 %v2548
    %2559 = vmatprep.subr.bf16.mxu0 0
    %2560 = vmatpush1.bf16.xpose.msra.mxu0 %v2551
    %2561 = vmatprep.subr.bf16.mxu0 0
    %2562 = vmatpush1.bf16.xpose.msra.mxu0 0
    %2563 = vmatprep.subr.bf16.mxu0 0
    %2564 = vmatpush1.bf16.xpose.msra.mxu0 0
    %2565 = vmatprep.subr.bf16.mxu0 0
    %2566 = vmatpush1.bf16.xpose.msra.mxu0 0
    %2567 = vmatprep.subr.bf16.mxu0 0
    %2568 = vmatpush1.bf16.xpose.msra.mxu0 0
    %2569 = vmatprep.subr.bf16.mxu0 0
    %2570 = vmatpush1.bf16.xpose.msra.mxu0 0
    %2571 = vmatprep.subr.bf16.mxu0 0
    %2572 = vmatpush1.bf16.xpose.msra.mxu0 0
    %2573 = vmatprep.subr.bf16.mxu0 0
    %2574 = vmatpush1.bf16.xpose.msra.mxu0 0
    %2575 = vmatprep.subr.bf16.mxu0 0
    %2576 = vmatpush1.bf16.xpose.msra.mxu0 0
    %2577 = vmatprep.subr.bf16.mxu0 0
    %2578 = vmatpush1.bf16.xpose.msra.mxu0 0
    %2579 = vmatprep.subr.bf16.mxu0 0
    %2580 = vmatpush1.bf16.xpose.msra.mxu0 0
    %2581 = vmatprep.subr.bf16.mxu0 0
    %2582 = vmatpush1.bf16.xpose.msra.mxu0 0
    %2583 = vmatprep.subr.bf16.mxu0 0
    %2584 = vmatpush1.bf16.xpose.msra.mxu0 0
    %2585 = vmatprep.mubr.bf16.mxu0 0
    %2586 = vmatmul.mubr.bf16.gmra.mrb[0].mxu0 %v2530
    %v2587 = vpop.f32.mrb[0].mxu0
    %v2588 = vadd.f32 %v302, %v2587
    %v2589 = vpop.f32.mrb[0].mxu0
    %v2590 = vpop.f32.mrb[0].mxu0
    %v2591 = vadd.f32 %v302, %v2590
    %v2592 = vpop.f32.mrb[0].mxu0
    %2593 = vmatprep.mubr.bf16.mxu0 0
    %2594 = vmatmul.mubr.bf16.gmra.mrb[0].mxu0 %v2533
    %v2595 = vpop.f32.mrb[0].mxu0
    %v2596 = vadd.f32 %v302, %v2595
    %v2597 = vpop.f32.mrb[0].mxu0
    %v2598 = vpop.f32.mrb[0].mxu0
    %v2599 = vadd.f32 %v302, %v2598
    %v2600 = vpop.f32.mrb[0].mxu0
    %2601 = vmatprep.mubr.bf16.mxu0 0
    %2602 = vmatmul.mubr.bf16.gmra.mrb[0].mxu0 %v2536
    %v2603 = vpop.f32.mrb[0].mxu0
    %v2604 = vadd.f32 %v302, %v2603
    %v2605 = vpop.f32.mrb[0].mxu0
    %v2606 = vpop.f32.mrb[0].mxu0
    %v2607 = vadd.f32 %v302, %v2606
    %v2608 = vpop.f32.mrb[0].mxu0
    %2609 = vmatprep.mubr.bf16.mxu0 0
    %2610 = vmatmul.mubr.bf16.gmra.mrb[0].mxu0 %v2539
    %v2611 = vpop.f32.mrb[0].mxu0
    %v2612 = vadd.f32 %v302, %v2611
    %v2613 = vpop.f32.mrb[0].mxu0
    %v2614 = vpop.f32.mrb[0].mxu0
    %v2615 = vadd.f32 %v302, %v2614
    %v2616 = vpop.f32.mrb[0].mxu0
    %2617 = vdwg.mxu0
    %v2618 = vsel %vm811, %v2588, -inf
    %2619 = vmax.xlane.f32.xlu0 %v2618
    %v2620 = vpop.xlane.xlu0 %2619
    %v2621 = vsel %vm811, %v2591, -inf
    %2622 = vmax.xlane.f32.xlu0 %v2621
    %v2623 = vpop.xlane.xlu0 %2622
    %v2624 = vsel %vm811, %v2596, -inf
    %2625 = vmax.xlane.f32.xlu0 %v2624
    %v2626 = vpop.xlane.xlu0 %2625
    %v2627 = vsel %vm811, %v2599, -inf
    %2628 = vmax.xlane.f32.xlu0 %v2627
    %v2629 = vpop.xlane.xlu0 %2628
    %v2630 = vsel %vm811, %v2604, -inf
    %2631 = vmax.xlane.f32.xlu0 %v2630
    %v2632 = vpop.xlane.xlu0 %2631
    %v2633 = vsel %vm811, %v2607, -inf
    %2634 = vmax.xlane.f32.xlu0 %v2633
    %v2635 = vpop.xlane.xlu0 %2634
    %v2636 = vsel %vm811, %v2612, -inf
    %2637 = vmax.xlane.f32.xlu0 %v2636
    %v2638 = vpop.xlane.xlu0 %2637
    %v2639 = vsel %vm811, %v2615, -inf
    %2640 = vmax.xlane.f32.xlu0 %v2639
    %v2641 = vpop.xlane.xlu0 %2640
    %v2642 = vsub.f32 %v2588, %v2620
    %v2643 = vsub.f32 %v2591, %v2623
    %v2644 = vsub.f32 %v2596, %v2626
    %v2645 = vsub.f32 %v2599, %v2629
    %v2646 = vsub.f32 %v2604, %v2632
    %v2647 = vsub.f32 %v2607, %v2635
    %v2648 = vsub.f32 %v2612, %v2638
    %v2649 = vsub.f32 %v2615, %v2641
    %v2650 = vmul.f32 %v2642, 1.442695
    %v2651 = vpow.pop %v2650
    %v2652 = vmul.f32 %v2643, 1.442695
    %v2653 = vpow.pop %v2652
    %v2654 = vmul.f32 %v2644, 1.442695
    %v2655 = vpow.pop %v2654
    %v2656 = vmul.f32 %v2645, 1.442695
    %v2657 = vpow.pop %v2656
    %v2658 = vmul.f32 %v2646, 1.442695
    %v2659 = vpow.pop %v2658
    %v2660 = vmul.f32 %v2647, 1.442695
    %v2661 = vpow.pop %v2660
    %v2662 = vmul.f32 %v2648, 1.442695
    %v2663 = vpow.pop %v2662
    %v2664 = vmul.f32 %v2649, 1.442695
    %v2665 = vpow.pop %v2664
    %v2666 = vsel %vm811, %v2651, 0.0
    %2667 = vadd.xlane.f32.xlu0 %v2666
    %v2668 = vpop.xlane.xlu0 %2667
    %v2669 = vsel %vm811, %v2653, 0.0
    %2670 = vadd.xlane.f32.xlu0 %v2669
    %v2671 = vpop.xlane.xlu0 %2670
    %v2672 = vsel %vm811, %v2655, 0.0
    %2673 = vadd.xlane.f32.xlu0 %v2672
    %v2674 = vpop.xlane.xlu0 %2673
    %v2675 = vsel %vm811, %v2657, 0.0
    %2676 = vadd.xlane.f32.xlu0 %v2675
    %v2677 = vpop.xlane.xlu0 %2676
    %v2678 = vsel %vm811, %v2659, 0.0
    %2679 = vadd.xlane.f32.xlu0 %v2678
    %v2680 = vpop.xlane.xlu0 %2679
    %v2681 = vsel %vm811, %v2661, 0.0
    %2682 = vadd.xlane.f32.xlu0 %v2681
    %v2683 = vpop.xlane.xlu0 %2682
    %v2684 = vsel %vm811, %v2663, 0.0
    %2685 = vadd.xlane.f32.xlu0 %v2684
    %v2686 = vpop.xlane.xlu0 %2685
    %v2687 = vsel %vm811, %v2665, 0.0
    %2688 = vadd.xlane.f32.xlu0 %v2687
    %v2689 = vpop.xlane.xlu0 %2688
    %v2690 = vpack.c.bf16 %v2653, %v2651
    %v2691 = vpack.c.bf16 %v2657, %v2655
    %v2692 = vpack.c.bf16 %v2661, %v2659
    %v2693 = vpack.c.bf16 %v2665, %v2663
    %2694 = vrot.lane.b32.xlu0 %v1933, 48
    %v2695 = vpop.permute.xlu0 %2694
    %2696 = vrot.lane.b32.xlu0 %v1934, 48
    %v2697 = vpop.permute.xlu0 %2696
    %2698 = vrot.lane.b32.xlu0 %v1935, 48
    %v2699 = vpop.permute.xlu0 %2698
    %2700 = vrot.lane.b32.xlu0 %v1936, 48
    %v2701 = vpop.permute.xlu0 %2700
    %v2707 = vsel %vm811, %v2690, 0
    %v2710 = vsel %vm811, %v2691, 0
    %v2713 = vsel %vm811, %v2692, 0
    %v2716 = vsel %vm811, %v2693, 0
    %2718 = vmatprep.subr.bf16.mxu0 0
    %2719 = vmatpush1.bf16.msra.mxu0 %v2695
    %2720 = vmatprep.subr.bf16.mxu0 0
    %2721 = vmatpush1.bf16.msra.mxu0 %v2697
    %2722 = vmatprep.subr.bf16.mxu0 0
    %2723 = vmatpush1.bf16.msra.mxu0 %v2699
    %2724 = vmatprep.subr.bf16.mxu0 0
    %2725 = vmatpush1.bf16.msra.mxu0 %v2701
    %2726 = vmatprep.subr.bf16.mxu0 0
    %2727 = vmatpush1.bf16.msra.mxu0 0
    %2728 = vmatprep.subr.bf16.mxu0 0
    %2729 = vmatpush1.bf16.msra.mxu0 0
    %2730 = vmatprep.subr.bf16.mxu0 0
    %2731 = vmatpush1.bf16.msra.mxu0 0
    %2732 = vmatprep.subr.bf16.mxu0 0
    %2733 = vmatpush1.bf16.msra.mxu0 0
    %2734 = vmatprep.subr.bf16.mxu0 0
    %2735 = vmatpush1.bf16.msra.mxu0 0
    %2736 = vmatprep.subr.bf16.mxu0 0
    %2737 = vmatpush1.bf16.msra.mxu0 0
    %2738 = vmatprep.subr.bf16.mxu0 0
    %2739 = vmatpush1.bf16.msra.mxu0 0
    %2740 = vmatprep.subr.bf16.mxu0 0
    %2741 = vmatpush1.bf16.msra.mxu0 0
    %2742 = vmatprep.subr.bf16.mxu0 0
    %2743 = vmatpush1.bf16.msra.mxu0 0
    %2744 = vmatprep.subr.bf16.mxu0 0
    %2745 = vmatpush1.bf16.msra.mxu0 0
    %2746 = vmatprep.subr.bf16.mxu0 0
    %2747 = vmatpush1.bf16.msra.mxu0 0
    %2748 = vmatprep.subr.bf16.mxu0 0
    %2749 = vmatpush1.bf16.msra.mxu0 0
    %2750 = vmatprep.mubr.bf16.mxu0 0
    %2751 = vmatmul.mubr.bf16.gmra.mrb[0].mxu0 %v2707
    %v2752 = vpop.f32.mrb[0].mxu0
    %v2753 = vadd.f32 0.0, %v2752
    %v2754 = vpop.f32.mrb[0].mxu0
    %v2755 = vpop.f32.mrb[0].mxu0
    %v2756 = vadd.f32 0.0, %v2755
    %v2757 = vpop.f32.mrb[0].mxu0
    %2758 = vmatprep.mubr.bf16.mxu0 0
    %2759 = vmatmul.mubr.bf16.gmra.mrb[0].mxu0 %v2710
    %v2760 = vpop.f32.mrb[0].mxu0
    %v2761 = vadd.f32 0.0, %v2760
    %v2762 = vpop.f32.mrb[0].mxu0
    %v2763 = vpop.f32.mrb[0].mxu0
    %v2764 = vadd.f32 0.0, %v2763
    %v2765 = vpop.f32.mrb[0].mxu0
    %2766 = vmatprep.mubr.bf16.mxu0 0
    %2767 = vmatmul.mubr.bf16.gmra.mrb[0].mxu0 %v2713
    %v2768 = vpop.f32.mrb[0].mxu0
    %v2769 = vadd.f32 0.0, %v2768
    %v2770 = vpop.f32.mrb[0].mxu0
    %v2771 = vpop.f32.mrb[0].mxu0
    %v2772 = vadd.f32 0.0, %v2771
    %v2773 = vpop.f32.mrb[0].mxu0
    %2774 = vmatprep.mubr.bf16.mxu0 0
    %2775 = vmatmul.mubr.bf16.gmra.mrb[0].mxu0 %v2716
    %v2776 = vpop.f32.mrb[0].mxu0
    %v2777 = vadd.f32 0.0, %v2776
    %v2778 = vpop.f32.mrb[0].mxu0
    %v2779 = vpop.f32.mrb[0].mxu0
    %v2780 = vadd.f32 0.0, %v2779
    %v2781 = vpop.f32.mrb[0].mxu0
    %2782 = vdwg.mxu0
    %v2783 = vrcp.pop %v2668
    %v2784 = vrcp.pop %v2671
    %v2785 = vrcp.pop %v2674
    %v2786 = vrcp.pop %v2677
    %v2787 = vrcp.pop %v2680
    %v2788 = vrcp.pop %v2683
    %v2789 = vrcp.pop %v2686
    %v2790 = vrcp.pop %v2689
    %v2791 = vmul.f32 %v2753, %v2783
    %v2792 = vmul.f32 %v2756, %v2784
    %v2793 = vmul.f32 %v2761, %v2785
    %v2794 = vmul.f32 %v2764, %v2786
    %v2795 = vmul.f32 %v2769, %v2787
    %v2796 = vmul.f32 %v2772, %v2788
    %v2797 = vmul.f32 %v2777, %v2789
    %v2798 = vmul.f32 %v2780, %v2790
    %v2799 = vpack.c.bf16 %v2792, %v2791
    %v2800 = vpack.c.bf16 %v2794, %v2793
    %v2801 = vpack.c.bf16 %v2796, %v2795
    %v2802 = vpack.c.bf16 %v2798, %v2797
    %2803 = vrot.lane.b32.xlu0 %v1933, 104
    %v2804 = vpop.permute.xlu0 %2803
    %2805 = vrot.lane.b32.xlu0 %v1934, 104
    %v2806 = vpop.permute.xlu0 %2805
    %2807 = vrot.lane.b32.xlu0 %v1935, 104
    %v2808 = vpop.permute.xlu0 %2807
    %2809 = vrot.lane.b32.xlu0 %v1936, 104
    %v2810 = vpop.permute.xlu0 %2809
    %2811 = vrot.lane.b32.xlu0 %v1933, 72
    %v2812 = vpop.permute.xlu0 %2811
    %2813 = vrot.lane.b32.xlu0 %v1934, 72
    %v2814 = vpop.permute.xlu0 %2813
    %2815 = vrot.lane.b32.xlu0 %v1935, 72
    %v2816 = vpop.permute.xlu0 %2815
    %2817 = vrot.lane.b32.xlu0 %v1936, 72
    %v2818 = vpop.permute.xlu0 %2817
    %v2820 = vsel %vm721, %v2804, 0
    %v2823 = vsel %vm721, %v2806, 0
    %v2826 = vsel %vm721, %v2808, 0
    %v2829 = vsel %vm721, %v2810, 0
    %v2832 = vsel %vm721, %v2812, 0
    %v2835 = vsel %vm721, %v2814, 0
    %v2838 = vsel %vm721, %v2816, 0
    %v2841 = vsel %vm721, %v2818, 0
    %2843 = vmatprep.subr.bf16.mxu0 0
    %2844 = vmatpush1.bf16.xpose.msra.mxu0 %v2832
    %2845 = vmatprep.subr.bf16.mxu0 0
    %2846 = vmatpush1.bf16.xpose.msra.mxu0 %v2835
    %2847 = vmatprep.subr.bf16.mxu0 0
    %2848 = vmatpush1.bf16.xpose.msra.mxu0 %v2838
    %2849 = vmatprep.subr.bf16.mxu0 0
    %2850 = vmatpush1.bf16.xpose.msra.mxu0 %v2841
    %2851 = vmatprep.subr.bf16.mxu0 0
    %2852 = vmatpush1.bf16.xpose.msra.mxu0 0
    %2853 = vmatprep.subr.bf16.mxu0 0
    %2854 = vmatpush1.bf16.xpose.msra.mxu0 0
    %2855 = vmatprep.subr.bf16.mxu0 0
    %2856 = vmatpush1.bf16.xpose.msra.mxu0 0
    %2857 = vmatprep.subr.bf16.mxu0 0
    %2858 = vmatpush1.bf16.xpose.msra.mxu0 0
    %2859 = vmatprep.subr.bf16.mxu0 0
    %2860 = vmatpush1.bf16.xpose.msra.mxu0 0
    %2861 = vmatprep.subr.bf16.mxu0 0
    %2862 = vmatpush1.bf16.xpose.msra.mxu0 0
    %2863 = vmatprep.subr.bf16.mxu0 0
    %2864 = vmatpush1.bf16.xpose.msra.mxu0 0
    %2865 = vmatprep.subr.bf16.mxu0 0
    %2866 = vmatpush1.bf16.xpose.msra.mxu0 0
    %2867 = vmatprep.subr.bf16.mxu0 0
    %2868 = vmatpush1.bf16.xpose.msra.mxu0 0
    %2869 = vmatprep.subr.bf16.mxu0 0
    %2870 = vmatpush1.bf16.xpose.msra.mxu0 0
    %2871 = vmatprep.subr.bf16.mxu0 0
    %2872 = vmatpush1.bf16.xpose.msra.mxu0 0
    %2873 = vmatprep.subr.bf16.mxu0 0
    %2874 = vmatpush1.bf16.xpose.msra.mxu0 0
    %2875 = vmatprep.mubr.bf16.mxu0 0
    %2876 = vmatmul.mubr.bf16.gmra.mrb[0].mxu0 %v2820
    %v2877 = vpop.f32.mrb[0].mxu0
    %v2878 = vadd.f32 %v302, %v2877
    %v2879 = vpop.f32.mrb[0].mxu0
    %v2880 = vpop.f32.mrb[0].mxu0
    %v2881 = vadd.f32 %v302, %v2880
    %v2882 = vpop.f32.mrb[0].mxu0
    %2883 = vmatprep.mubr.bf16.mxu0 0
    %2884 = vmatmul.mubr.bf16.gmra.mrb[0].mxu0 %v2823
    %v2885 = vpop.f32.mrb[0].mxu0
    %v2886 = vadd.f32 %v302, %v2885
    %v2887 = vpop.f32.mrb[0].mxu0
    %v2888 = vpop.f32.mrb[0].mxu0
    %v2889 = vadd.f32 %v302, %v2888
    %v2890 = vpop.f32.mrb[0].mxu0
    %2891 = vmatprep.mubr.bf16.mxu0 0
    %2892 = vmatmul.mubr.bf16.gmra.mrb[0].mxu0 %v2826
    %v2893 = vpop.f32.mrb[0].mxu0
    %v2894 = vadd.f32 %v302, %v2893
    %v2895 = vpop.f32.mrb[0].mxu0
    %v2896 = vpop.f32.mrb[0].mxu0
    %v2897 = vadd.f32 %v302, %v2896
    %v2898 = vpop.f32.mrb[0].mxu0
    %2899 = vmatprep.mubr.bf16.mxu0 0
    %2900 = vmatmul.mubr.bf16.gmra.mrb[0].mxu0 %v2829
    %v2901 = vpop.f32.mrb[0].mxu0
    %v2902 = vadd.f32 %v302, %v2901
    %v2903 = vpop.f32.mrb[0].mxu0
    %v2904 = vpop.f32.mrb[0].mxu0
    %v2905 = vadd.f32 %v302, %v2904
    %v2906 = vpop.f32.mrb[0].mxu0
    %2907 = vdwg.mxu0
    %v2908 = vsel %vm811, %v2878, -inf
    %2909 = vmax.xlane.f32.xlu0 %v2908
    %v2910 = vpop.xlane.xlu0 %2909
    %v2911 = vsel %vm811, %v2881, -inf
    %2912 = vmax.xlane.f32.xlu0 %v2911
    %v2913 = vpop.xlane.xlu0 %2912
    %v2914 = vsel %vm811, %v2886, -inf
    %2915 = vmax.xlane.f32.xlu0 %v2914
    %v2916 = vpop.xlane.xlu0 %2915
    %v2917 = vsel %vm811, %v2889, -inf
    %2918 = vmax.xlane.f32.xlu0 %v2917
    %v2919 = vpop.xlane.xlu0 %2918
    %v2920 = vsel %vm811, %v2894, -inf
    %2921 = vmax.xlane.f32.xlu0 %v2920
    %v2922 = vpop.xlane.xlu0 %2921
    %v2923 = vsel %vm811, %v2897, -inf
    %2924 = vmax.xlane.f32.xlu0 %v2923
    %v2925 = vpop.xlane.xlu0 %2924
    %v2926 = vsel %vm811, %v2902, -inf
    %2927 = vmax.xlane.f32.xlu0 %v2926
    %v2928 = vpop.xlane.xlu0 %2927
    %v2929 = vsel %vm811, %v2905, -inf
    %2930 = vmax.xlane.f32.xlu0 %v2929
    %v2931 = vpop.xlane.xlu0 %2930
    %v2932 = vsub.f32 %v2878, %v2910
    %v2933 = vsub.f32 %v2881, %v2913
    %v2934 = vsub.f32 %v2886, %v2916
    %v2935 = vsub.f32 %v2889, %v2919
    %v2936 = vsub.f32 %v2894, %v2922
    %v2937 = vsub.f32 %v2897, %v2925
    %v2938 = vsub.f32 %v2902, %v2928
    %v2939 = vsub.f32 %v2905, %v2931
    %v2940 = vmul.f32 %v2932, 1.442695
    %v2941 = vpow.pop %v2940
    %v2942 = vmul.f32 %v2933, 1.442695
    %v2943 = vpow.pop %v2942
    %v2944 = vmul.f32 %v2934, 1.442695
    %v2945 = vpow.pop %v2944
    %v2946 = vmul.f32 %v2935, 1.442695
    %v2947 = vpow.pop %v2946
    %v2948 = vmul.f32 %v2936, 1.442695
    %v2949 = vpow.pop %v2948
    %v2950 = vmul.f32 %v2937, 1.442695
    %v2951 = vpow.pop %v2950
    %v2952 = vmul.f32 %v2938, 1.442695
    %v2953 = vpow.pop %v2952
    %v2954 = vmul.f32 %v2939, 1.442695
    %v2955 = vpow.pop %v2954
    %v2956 = vsel %vm811, %v2941, 0.0
    %2957 = vadd.xlane.f32.xlu0 %v2956
    %v2958 = vpop.xlane.xlu0 %2957
    %v2959 = vsel %vm811, %v2943, 0.0
    %2960 = vadd.xlane.f32.xlu0 %v2959
    %v2961 = vpop.xlane.xlu0 %2960
    %v2962 = vsel %vm811, %v2945, 0.0
    %2963 = vadd.xlane.f32.xlu0 %v2962
    %v2964 = vpop.xlane.xlu0 %2963
    %v2965 = vsel %vm811, %v2947, 0.0
    %2966 = vadd.xlane.f32.xlu0 %v2965
    %v2967 = vpop.xlane.xlu0 %2966
    %v2968 = vsel %vm811, %v2949, 0.0
    %2969 = vadd.xlane.f32.xlu0 %v2968
    %v2970 = vpop.xlane.xlu0 %2969
    %v2971 = vsel %vm811, %v2951, 0.0
    %2972 = vadd.xlane.f32.xlu0 %v2971
    %v2973 = vpop.xlane.xlu0 %2972
    %v2974 = vsel %vm811, %v2953, 0.0
    %2975 = vadd.xlane.f32.xlu0 %v2974
    %v2976 = vpop.xlane.xlu0 %2975
    %v2977 = vsel %vm811, %v2955, 0.0
    %2978 = vadd.xlane.f32.xlu0 %v2977
    %v2979 = vpop.xlane.xlu0 %2978
    %v2980 = vpack.c.bf16 %v2943, %v2941
    %v2981 = vpack.c.bf16 %v2947, %v2945
    %v2982 = vpack.c.bf16 %v2951, %v2949
    %v2983 = vpack.c.bf16 %v2955, %v2953
    %2984 = vrot.lane.b32.xlu0 %v1933, 40
    %v2985 = vpop.permute.xlu0 %2984
    %2986 = vrot.lane.b32.xlu0 %v1934, 40
    %v2987 = vpop.permute.xlu0 %2986
    %2988 = vrot.lane.b32.xlu0 %v1935, 40
    %v2989 = vpop.permute.xlu0 %2988
    %2990 = vrot.lane.b32.xlu0 %v1936, 40
    %v2991 = vpop.permute.xlu0 %2990
    %v2997 = vsel %vm811, %v2980, 0
    %v3000 = vsel %vm811, %v2981, 0
    %v3003 = vsel %vm811, %v2982, 0
    %v3006 = vsel %vm811, %v2983, 0
    %3008 = vmatprep.subr.bf16.mxu0 0
    %3009 = vmatpush1.bf16.msra.mxu0 %v2985
    %3010 = vmatprep.subr.bf16.mxu0 0
    %3011 = vmatpush1.bf16.msra.mxu0 %v2987
    %3012 = vmatprep.subr.bf16.mxu0 0
    %3013 = vmatpush1.bf16.msra.mxu0 %v2989
    %3014 = vmatprep.subr.bf16.mxu0 0
    %3015 = vmatpush1.bf16.msra.mxu0 %v2991
    %3016 = vmatprep.subr.bf16.mxu0 0
    %3017 = vmatpush1.bf16.msra.mxu0 0
    %3018 = vmatprep.subr.bf16.mxu0 0
    %3019 = vmatpush1.bf16.msra.mxu0 0
    %3020 = vmatprep.subr.bf16.mxu0 0
    %3021 = vmatpush1.bf16.msra.mxu0 0
    %3022 = vmatprep.subr.bf16.mxu0 0
    %3023 = vmatpush1.bf16.msra.mxu0 0
    %3024 = vmatprep.subr.bf16.mxu0 0
    %3025 = vmatpush1.bf16.msra.mxu0 0
    %3026 = vmatprep.subr.bf16.mxu0 0
    %3027 = vmatpush1.bf16.msra.mxu0 0
    %3028 = vmatprep.subr.bf16.mxu0 0
    %3029 = vmatpush1.bf16.msra.mxu0 0
    %3030 = vmatprep.subr.bf16.mxu0 0
    %3031 = vmatpush1.bf16.msra.mxu0 0
    %3032 = vmatprep.subr.bf16.mxu0 0
    %3033 = vmatpush1.bf16.msra.mxu0 0
    %3034 = vmatprep.subr.bf16.mxu0 0
    %3035 = vmatpush1.bf16.msra.mxu0 0
    %3036 = vmatprep.subr.bf16.mxu0 0
    %3037 = vmatpush1.bf16.msra.mxu0 0
    %3038 = vmatprep.subr.bf16.mxu0 0
    %3039 = vmatpush1.bf16.msra.mxu0 0
    %3040 = vmatprep.mubr.bf16.mxu0 0
    %3041 = vmatmul.mubr.bf16.gmra.mrb[0].mxu0 %v2997
    %v3042 = vpop.f32.mrb[0].mxu0
    %v3043 = vadd.f32 0.0, %v3042
    %v3044 = vpop.f32.mrb[0].mxu0
    %v3045 = vpop.f32.mrb[0].mxu0
    %v3046 = vadd.f32 0.0, %v3045
    %v3047 = vpop.f32.mrb[0].mxu0
    %3048 = vmatprep.mubr.bf16.mxu0 0
    %3049 = vmatmul.mubr.bf16.gmra.mrb[0].mxu0 %v3000
    %v3050 = vpop.f32.mrb[0].mxu0
    %v3051 = vadd.f32 0.0, %v3050
    %v3052 = vpop.f32.mrb[0].mxu0
    %v3053 = vpop.f32.mrb[0].mxu0
    %v3054 = vadd.f32 0.0, %v3053
    %v3055 = vpop.f32.mrb[0].mxu0
    %3056 = vmatprep.mubr.bf16.mxu0 0
    %3057 = vmatmul.mubr.bf16.gmra.mrb[0].mxu0 %v3003
    %v3058 = vpop.f32.mrb[0].mxu0
    %v3059 = vadd.f32 0.0, %v3058
    %v3060 = vpop.f32.mrb[0].mxu0
    %v3061 = vpop.f32.mrb[0].mxu0
    %v3062 = vadd.f32 0.0, %v3061
    %v3063 = vpop.f32.mrb[0].mxu0
    %3064 = vmatprep.mubr.bf16.mxu0 0
    %3065 = vmatmul.mubr.bf16.gmra.mrb[0].mxu0 %v3006
    %v3066 = vpop.f32.mrb[0].mxu0
    %v3067 = vadd.f32 0.0, %v3066
    %v3068 = vpop.f32.mrb[0].mxu0
    %v3069 = vpop.f32.mrb[0].mxu0
    %v3070 = vadd.f32 0.0, %v3069
    %v3071 = vpop.f32.mrb[0].mxu0
    %3072 = vdwg.mxu0
    %v3073 = vrcp.pop %v2958
    %v3074 = vrcp.pop %v2961
    %v3075 = vrcp.pop %v2964
    %v3076 = vrcp.pop %v2967
    %v3077 = vrcp.pop %v2970
    %v3078 = vrcp.pop %v2973
    %v3079 = vrcp.pop %v2976
    %v3080 = vrcp.pop %v2979
    %v3081 = vmul.f32 %v3043, %v3073
    %v3082 = vmul.f32 %v3046, %v3074
    %v3083 = vmul.f32 %v3051, %v3075
    %v3084 = vmul.f32 %v3054, %v3076
    %v3085 = vmul.f32 %v3059, %v3077
    %v3086 = vmul.f32 %v3062, %v3078
    %v3087 = vmul.f32 %v3067, %v3079
    %v3088 = vmul.f32 %v3070, %v3080
    %v3089 = vpack.c.bf16 %v3082, %v3081
    %v3090 = vpack.c.bf16 %v3084, %v3083
    %v3091 = vpack.c.bf16 %v3086, %v3085
    %v3092 = vpack.c.bf16 %v3088, %v3087
    %3097 = vrot.lane.b32.xlu0 %v2509, 8
    %v3098 = vpop.permute.xlu0 %3097
    %3099 = vrot.lane.b32.xlu0 %v2510, 8
    %v3100 = vpop.permute.xlu0 %3099
    %3101 = vrot.lane.b32.xlu0 %v2511, 8
    %v3102 = vpop.permute.xlu0 %3101
    %3103 = vrot.lane.b32.xlu0 %v2512, 8
    %v3104 = vpop.permute.xlu0 %3103
    %3109 = vrot.lane.b32.xlu0 %v2799, 16
    %v3110 = vpop.permute.xlu0 %3109
    %3111 = vrot.lane.b32.xlu0 %v2800, 16
    %v3112 = vpop.permute.xlu0 %3111
    %3113 = vrot.lane.b32.xlu0 %v2801, 16
    %v3114 = vpop.permute.xlu0 %3113
    %3115 = vrot.lane.b32.xlu0 %v2802, 16
    %v3116 = vpop.permute.xlu0 %3115
    %3121 = vrot.lane.b32.xlu0 %v3089, 24
    %v3122 = vpop.permute.xlu0 %3121
    %3123 = vrot.lane.b32.xlu0 %v3090, 24
    %v3124 = vpop.permute.xlu0 %3123
    %3125 = vrot.lane.b32.xlu0 %v3091, 24
    %v3126 = vpop.permute.xlu0 %3125
    %3127 = vrot.lane.b32.xlu0 %v3092, 24
    %v3128 = vpop.permute.xlu0 %3127
    %v3131 = vsel %vm721, %v2219, %v3098
    %v3134 = vsel %vm721, %v2220, %v3100
    %v3137 = vsel %vm721, %v2221, %v3102
    %v3140 = vsel %vm721, %v2222, %v3104
    %v3142 = vsel %vm1915, %v3131, %v3110
    %v3144 = vsel %vm1915, %v3134, %v3112
    %v3146 = vsel %vm1915, %v3137, %v3114
    %v3148 = vsel %vm1915, %v3140, %v3116
    %v3150 = vsel %vm1924, %v3142, %v3122
    %v3152 = vsel %vm1924, %v3144, %v3124
    %v3154 = vsel %vm1924, %v3146, %v3126
    %v3156 = vsel %vm1924, %v3148, %v3128
    %v3157 = vld [vmem:[%s7] sm:$0xf]
    %v3158 = vld [vmem:[%s7 + $0x4] sm:$0xf]
    %v3159 = vld [vmem:[%s7 + $0x8] sm:$0xf]
    %v3160 = vld [vmem:[%s7 + $0xc] sm:$0xf]
    %v3161 = vld [vmem:[%s8] sm:$0x1]
    %v3162 = vlaneseq
    %v3163 = vshrl.u32 %v3162, 7
    %v3164 = vsub.s32 0, %v3163
    %v3165 = vrot.slane %v3161, %v3164
    %v3170 = vunpack.c.l.b16 %v3157
    %v3171 = vunpack.c.l.b16 %v3158
    %v3172 = vunpack.c.l.b16 %v3159
    %v3173 = vunpack.c.l.b16 %v3160
    %v3174 = vpack.c.b16 %v3171, %v3170
    %v3175 = vpack.c.b16 %v3173, %v3172
    %v3178 = vsel %vm305, %v1926, 0
    %v3180 = vsel %vm305, %v1928, 0
    %v3182 = vsel %vm305, %v1930, 0
    %v3184 = vsel %vm305, %v1932, 0
    %v3186 = vsel %vm305, %v3150, 0
    %v3188 = vsel %vm305, %v3152, 0
    %v3190 = vsel %vm305, %v3154, 0
    %v3192 = vsel %vm305, %v3156, 0
    %3194 = vmatprep.subr.bf16.mxu0 0
    %3195 = vmatpush1.bf16.msra.mxu0 %v3174
    %3196 = vmatprep.subr.bf16.mxu0 0
    %3197 = vmatpush1.bf16.msra.mxu0 %v3175
    %3198 = vmatprep.subr.bf16.mxu0 0
    %3199 = vmatpush1.bf16.msra.mxu0 0
    %3200 = vmatprep.subr.bf16.mxu0 0
    %3201 = vmatpush1.bf16.msra.mxu0 0
    %3202 = vmatprep.subr.bf16.mxu0 0
    %3203 = vmatpush1.bf16.msra.mxu0 0
    %3204 = vmatprep.subr.bf16.mxu0 0
    %3205 = vmatpush1.bf16.msra.mxu0 0
    %3206 = vmatprep.subr.bf16.mxu0 0
    %3207 = vmatpush1.bf16.msra.mxu0 0
    %3208 = vmatprep.subr.bf16.mxu0 0
    %3209 = vmatpush1.bf16.msra.mxu0 0
    %3210 = vmatprep.subr.bf16.mxu0 0
    %3211 = vmatpush1.bf16.msra.mxu0 0
    %3212 = vmatprep.subr.bf16.mxu0 0
    %3213 = vmatpush1.bf16.msra.mxu0 0
    %3214 = vmatprep.subr.bf16.mxu0 0
    %3215 = vmatpush1.bf16.msra.mxu0 0
    %3216 = vmatprep.subr.bf16.mxu0 0
    %3217 = vmatpush1.bf16.msra.mxu0 0
    %3218 = vmatprep.subr.bf16.mxu0 0
    %3219 = vmatpush1.bf16.msra.mxu0 0
    %3220 = vmatprep.subr.bf16.mxu0 0
    %3221 = vmatpush1.bf16.msra.mxu0 0
    %3222 = vmatprep.subr.bf16.mxu0 0
    %3223 = vmatpush1.bf16.msra.mxu0 0
    %3224 = vmatprep.subr.bf16.mxu0 0
    %3225 = vmatpush1.bf16.msra.mxu0 0
    %3226 = vmatprep.mubr.bf16.mxu0 0
    %3227 = vmatmul.mubr.bf16.gmra.mrb[0].mxu0 %v3178
    %v3228 = vpop.f32.mrb[0].mxu0
    %v3229 = vadd.f32 %v3165, %v3228
    %v3230 = vpop.f32.mrb[0].mxu0
    %v3231 = vpop.f32.mrb[0].mxu0
    %v3232 = vadd.f32 %v3165, %v3231
    %v3233 = vpop.f32.mrb[0].mxu0
    %3234 = vmatprep.mubr.bf16.mxu0 0
    %3235 = vmatmul.mubr.bf16.gmra.mrb[0].mxu0 %v3180
    %v3236 = vpop.f32.mrb[0].mxu0
    %v3237 = vadd.f32 %v3165, %v3236
    %v3238 = vpop.f32.mrb[0].mxu0
    %v3239 = vpop.f32.mrb[0].mxu0
    %v3240 = vadd.f32 %v3165, %v3239
    %v3241 = vpop.f32.mrb[0].mxu0
    %3242 = vmatprep.mubr.bf16.mxu0 0
    %3243 = vmatmul.mubr.bf16.gmra.mrb[0].mxu0 %v3182
    %v3244 = vpop.f32.mrb[0].mxu0
    %v3245 = vadd.f32 %v3165, %v3244
    %v3246 = vpop.f32.mrb[0].mxu0
    %v3247 = vpop.f32.mrb[0].mxu0
    %v3248 = vadd.f32 %v3165, %v3247
    %v3249 = vpop.f32.mrb[0].mxu0
    %3250 = vmatprep.mubr.bf16.mxu0 0
    %3251 = vmatmul.mubr.bf16.gmra.mrb[0].mxu0 %v3184
    %v3252 = vpop.f32.mrb[0].mxu0
    %v3253 = vadd.f32 %v3165, %v3252
    %v3254 = vpop.f32.mrb[0].mxu0
    %v3255 = vpop.f32.mrb[0].mxu0
    %v3256 = vadd.f32 %v3165, %v3255
    %v3257 = vpop.f32.mrb[0].mxu0
    %3258 = vmatprep.mubr.bf16.mxu0 0
    %3259 = vmatmul.mubr.bf16.gmra.mrb[0].mxu0 %v3186
    %v3260 = vpop.f32.mrb[0].mxu0
    %v3261 = vadd.f32 %v3165, %v3260
    %v3262 = vpop.f32.mrb[0].mxu0
    %v3263 = vpop.f32.mrb[0].mxu0
    %v3264 = vadd.f32 %v3165, %v3263
    %v3265 = vpop.f32.mrb[0].mxu0
    %3266 = vmatprep.mubr.bf16.mxu0 0
    %3267 = vmatmul.mubr.bf16.gmra.mrb[0].mxu0 %v3188
    %v3268 = vpop.f32.mrb[0].mxu0
    %v3269 = vadd.f32 %v3165, %v3268
    %v3270 = vpop.f32.mrb[0].mxu0
    %v3271 = vpop.f32.mrb[0].mxu0
    %v3272 = vadd.f32 %v3165, %v3271
    %v3273 = vpop.f32.mrb[0].mxu0
    %3274 = vmatprep.mubr.bf16.mxu0 0
    %3275 = vmatmul.mubr.bf16.gmra.mrb[0].mxu0 %v3190
    %v3276 = vpop.f32.mrb[0].mxu0
    %v3277 = vadd.f32 %v3165, %v3276
    %v3278 = vpop.f32.mrb[0].mxu0
    %v3279 = vpop.f32.mrb[0].mxu0
    %v3280 = vadd.f32 %v3165, %v3279
    %v3281 = vpop.f32.mrb[0].mxu0
    %3282 = vmatprep.mubr.bf16.mxu0 0
    %3283 = vmatmul.mubr.bf16.gmra.mrb[0].mxu0 %v3192
    %v3284 = vpop.f32.mrb[0].mxu0
    %v3285 = vadd.f32 %v3165, %v3284
    %v3286 = vpop.f32.mrb[0].mxu0
    %v3287 = vpop.f32.mrb[0].mxu0
    %v3288 = vadd.f32 %v3165, %v3287
    %v3289 = vpop.f32.mrb[0].mxu0
    %3290 = vdwg.mxu0
    %v3291 = vadd.f32 %v237, %v3229
    %v3292 = vadd.f32 %v240, %v3232
    %v3293 = vadd.f32 %v245, %v3237
    %v3294 = vadd.f32 %v248, %v3240
    %v3295 = vadd.f32 %v253, %v3245
    %v3296 = vadd.f32 %v256, %v3248
    %v3297 = vadd.f32 %v261, %v3253
    %v3298 = vadd.f32 %v264, %v3256
    %v3299 = vadd.f32 %v269, %v3261
    %v3300 = vadd.f32 %v272, %v3264
    %v3301 = vadd.f32 %v277, %v3269
    %v3302 = vadd.f32 %v280, %v3272
    %v3303 = vadd.f32 %v285, %v3277
    %v3304 = vadd.f32 %v288, %v3280
    %v3305 = vadd.f32 %v293, %v3285
    %v3306 = vadd.f32 %v296, %v3288
    %v3307 = vld [vmem:[%s9] sm:$0x1]
    %v3308 = vld [vmem:[%s10] sm:$0x1]
    %v3309 = vsel %vm305, %v3291, 0.0
    %3310 = vadd.xlane.f32.xlu0 %v3309
    %v3311 = vpop.xlane.xlu0 %3310
    %v3312 = vsel %vm305, %v3292, 0.0
    %3313 = vadd.xlane.f32.xlu0 %v3312
    %v3314 = vpop.xlane.xlu0 %3313
    %v3315 = vsel %vm305, %v3293, 0.0
    %3316 = vadd.xlane.f32.xlu0 %v3315
    %v3317 = vpop.xlane.xlu0 %3316
    %v3318 = vsel %vm305, %v3294, 0.0
    %3319 = vadd.xlane.f32.xlu0 %v3318
    %v3320 = vpop.xlane.xlu0 %3319
    %v3321 = vsel %vm305, %v3295, 0.0
    %3322 = vadd.xlane.f32.xlu0 %v3321
    %v3323 = vpop.xlane.xlu0 %3322
    %v3324 = vsel %vm305, %v3296, 0.0
    %3325 = vadd.xlane.f32.xlu0 %v3324
    %v3326 = vpop.xlane.xlu0 %3325
    %v3327 = vsel %vm305, %v3297, 0.0
    %3328 = vadd.xlane.f32.xlu0 %v3327
    %v3329 = vpop.xlane.xlu0 %3328
    %v3330 = vsel %vm305, %v3298, 0.0
    %3331 = vadd.xlane.f32.xlu0 %v3330
    %v3332 = vpop.xlane.xlu0 %3331
    %v3333 = vsel %vm305, %v3299, 0.0
    %3334 = vadd.xlane.f32.xlu0 %v3333
    %v3335 = vpop.xlane.xlu0 %3334
    %v3336 = vsel %vm305, %v3300, 0.0
    %3337 = vadd.xlane.f32.xlu0 %v3336
    %v3338 = vpop.xlane.xlu0 %3337
    %v3339 = vsel %vm305, %v3301, 0.0
    %3340 = vadd.xlane.f32.xlu0 %v3339
    %v3341 = vpop.xlane.xlu0 %3340
    %v3342 = vsel %vm305, %v3302, 0.0
    %3343 = vadd.xlane.f32.xlu0 %v3342
    %v3344 = vpop.xlane.xlu0 %3343
    %v3345 = vsel %vm305, %v3303, 0.0
    %3346 = vadd.xlane.f32.xlu0 %v3345
    %v3347 = vpop.xlane.xlu0 %3346
    %v3348 = vsel %vm305, %v3304, 0.0
    %3349 = vadd.xlane.f32.xlu0 %v3348
    %v3350 = vpop.xlane.xlu0 %3349
    %v3351 = vsel %vm305, %v3305, 0.0
    %3352 = vadd.xlane.f32.xlu0 %v3351
    %v3353 = vpop.xlane.xlu0 %3352
    %v3354 = vsel %vm305, %v3306, 0.0
    %3355 = vadd.xlane.f32.xlu0 %v3354
    %v3356 = vpop.xlane.xlu0 %3355
    %v3357 = vmul.f32 %v3311, %v354
    %v3358 = vmul.f32 %v3314, %v354
    %v3359 = vmul.f32 %v3317, %v354
    %v3360 = vmul.f32 %v3320, %v354
    %v3361 = vmul.f32 %v3323, %v354
    %v3362 = vmul.f32 %v3326, %v354
    %v3363 = vmul.f32 %v3329, %v354
    %v3364 = vmul.f32 %v3332, %v354
    %v3365 = vmul.f32 %v3335, %v354
    %v3366 = vmul.f32 %v3338, %v354
    %v3367 = vmul.f32 %v3341, %v354
    %v3368 = vmul.f32 %v3344, %v354
    %v3369 = vmul.f32 %v3347, %v354
    %v3370 = vmul.f32 %v3350, %v354
    %v3371 = vmul.f32 %v3353, %v354
    %v3372 = vmul.f32 %v3356, %v354
    %v3373 = vsub.f32 %v3291, %v3357
    %v3374 = vsub.f32 %v3292, %v3358
    %v3375 = vsub.f32 %v3293, %v3359
    %v3376 = vsub.f32 %v3294, %v3360
    %v3377 = vsub.f32 %v3295, %v3361
    %v3378 = vsub.f32 %v3296, %v3362
    %v3379 = vsub.f32 %v3297, %v3363
    %v3380 = vsub.f32 %v3298, %v3364
    %v3381 = vsub.f32 %v3299, %v3365
    %v3382 = vsub.f32 %v3300, %v3366
    %v3383 = vsub.f32 %v3301, %v3367
    %v3384 = vsub.f32 %v3302, %v3368
    %v3385 = vsub.f32 %v3303, %v3369
    %v3386 = vsub.f32 %v3304, %v3370
    %v3387 = vsub.f32 %v3305, %v3371
    %v3388 = vsub.f32 %v3306, %v3372
    %v3389 = vmul.f32 %v3373, %v3373
    %v3390 = vmul.f32 %v3374, %v3374
    %v3391 = vmul.f32 %v3375, %v3375
    %v3392 = vmul.f32 %v3376, %v3376
    %v3393 = vmul.f32 %v3377, %v3377
    %v3394 = vmul.f32 %v3378, %v3378
    %v3395 = vmul.f32 %v3379, %v3379
    %v3396 = vmul.f32 %v3380, %v3380
    %v3397 = vmul.f32 %v3381, %v3381
    %v3398 = vmul.f32 %v3382, %v3382
    %v3399 = vmul.f32 %v3383, %v3383
    %v3400 = vmul.f32 %v3384, %v3384
    %v3401 = vmul.f32 %v3385, %v3385
    %v3402 = vmul.f32 %v3386, %v3386
    %v3403 = vmul.f32 %v3387, %v3387
    %v3404 = vmul.f32 %v3388, %v3388
    %v3405 = vsel %vm305, %v3389, 0.0
    %3406 = vadd.xlane.f32.xlu0 %v3405
    %v3407 = vpop.xlane.xlu0 %3406
    %v3408 = vsel %vm305, %v3390, 0.0
    %3409 = vadd.xlane.f32.xlu0 %v3408
    %v3410 = vpop.xlane.xlu0 %3409
    %v3411 = vsel %vm305, %v3391, 0.0
    %3412 = vadd.xlane.f32.xlu0 %v3411
    %v3413 = vpop.xlane.xlu0 %3412
    %v3414 = vsel %vm305, %v3392, 0.0
    %3415 = vadd.xlane.f32.xlu0 %v3414
    %v3416 = vpop.xlane.xlu0 %3415
    %v3417 = vsel %vm305, %v3393, 0.0
    %3418 = vadd.xlane.f32.xlu0 %v3417
    %v3419 = vpop.xlane.xlu0 %3418
    %v3420 = vsel %vm305, %v3394, 0.0
    %3421 = vadd.xlane.f32.xlu0 %v3420
    %v3422 = vpop.xlane.xlu0 %3421
    %v3423 = vsel %vm305, %v3395, 0.0
    %3424 = vadd.xlane.f32.xlu0 %v3423
    %v3425 = vpop.xlane.xlu0 %3424
    %v3426 = vsel %vm305, %v3396, 0.0
    %3427 = vadd.xlane.f32.xlu0 %v3426
    %v3428 = vpop.xlane.xlu0 %3427
    %v3429 = vsel %vm305, %v3397, 0.0
    %3430 = vadd.xlane.f32.xlu0 %v3429
    %v3431 = vpop.xlane.xlu0 %3430
    %v3432 = vsel %vm305, %v3398, 0.0
    %3433 = vadd.xlane.f32.xlu0 %v3432
    %v3434 = vpop.xlane.xlu0 %3433
    %v3435 = vsel %vm305, %v3399, 0.0
    %3436 = vadd.xlane.f32.xlu0 %v3435
    %v3437 = vpop.xlane.xlu0 %3436
    %v3438 = vsel %vm305, %v3400, 0.0
    %3439 = vadd.xlane.f32.xlu0 %v3438
    %v3440 = vpop.xlane.xlu0 %3439
    %v3441 = vsel %vm305, %v3401, 0.0
    %3442 = vadd.xlane.f32.xlu0 %v3441
    %v3443 = vpop.xlane.xlu0 %3442
    %v3444 = vsel %vm305, %v3402, 0.0
    %3445 = vadd.xlane.f32.xlu0 %v3444
    %v3446 = vpop.xlane.xlu0 %3445
    %v3447 = vsel %vm305, %v3403, 0.0
    %3448 = vadd.xlane.f32.xlu0 %v3447
    %v3449 = vpop.xlane.xlu0 %3448
    %v3450 = vsel %vm305, %v3404, 0.0
    %3451 = vadd.xlane.f32.xlu0 %v3450
    %v3452 = vpop.xlane.xlu0 %3451
    %v3453 = vmul.f32 %v3407, %v354
    %v3454 = vmul.f32 %v3410, %v354
    %v3455 = vmul.f32 %v3413, %v354
    %v3456 = vmul.f32 %v3416, %v354
    %v3457 = vmul.f32 %v3419, %v354
    %v3458 = vmul.f32 %v3422, %v354
    %v3459 = vmul.f32 %v3425, %v354
    %v3460 = vmul.f32 %v3428, %v354
    %v3461 = vmul.f32 %v3431, %v354
    %v3462 = vmul.f32 %v3434, %v354
    %v3463 = vmul.f32 %v3437, %v354
    %v3464 = vmul.f32 %v3440, %v354
    %v3465 = vmul.f32 %v3443, %v354
    %v3466 = vmul.f32 %v3446, %v354
    %v3467 = vmul.f32 %v3449, %v354
    %v3468 = vmul.f32 %v3452, %v354
    %v3469 = vadd.f32 %v3453, 1e-06
    %v3470 = vadd.f32 %v3454, 1e-06
    %v3471 = vadd.f32 %v3455, 1e-06
    %v3472 = vadd.f32 %v3456, 1e-06
    %v3473 = vadd.f32 %v3457, 1e-06
    %v3474 = vadd.f32 %v3458, 1e-06
    %v3475 = vadd.f32 %v3459, 1e-06
    %v3476 = vadd.f32 %v3460, 1e-06
    %v3477 = vadd.f32 %v3461, 1e-06
    %v3478 = vadd.f32 %v3462, 1e-06
    %v3479 = vadd.f32 %v3463, 1e-06
    %v3480 = vadd.f32 %v3464, 1e-06
    %v3481 = vadd.f32 %v3465, 1e-06
    %v3482 = vadd.f32 %v3466, 1e-06
    %v3483 = vadd.f32 %v3467, 1e-06
    %v3484 = vadd.f32 %v3468, 1e-06
    %v3485 = vrsqrt.pop %v3469
    %v3486 = vrsqrt.pop %v3470
    %v3487 = vrsqrt.pop %v3471
    %v3488 = vrsqrt.pop %v3472
    %v3489 = vrsqrt.pop %v3473
    %v3490 = vrsqrt.pop %v3474
    %v3491 = vrsqrt.pop %v3475
    %v3492 = vrsqrt.pop %v3476
    %v3493 = vrsqrt.pop %v3477
    %v3494 = vrsqrt.pop %v3478
    %v3495 = vrsqrt.pop %v3479
    %v3496 = vrsqrt.pop %v3480
    %v3497 = vrsqrt.pop %v3481
    %v3498 = vrsqrt.pop %v3482
    %v3499 = vrsqrt.pop %v3483
    %v3500 = vrsqrt.pop %v3484
    %v3501 = vmul.f32 %v3373, %v3485
    %v3502 = vmul.f32 %v3374, %v3486
    %v3503 = vmul.f32 %v3375, %v3487
    %v3504 = vmul.f32 %v3376, %v3488
    %v3505 = vmul.f32 %v3377, %v3489
    %v3506 = vmul.f32 %v3378, %v3490
    %v3507 = vmul.f32 %v3379, %v3491
    %v3508 = vmul.f32 %v3380, %v3492
    %v3509 = vmul.f32 %v3381, %v3493
    %v3510 = vmul.f32 %v3382, %v3494
    %v3511 = vmul.f32 %v3383, %v3495
    %v3512 = vmul.f32 %v3384, %v3496
    %v3513 = vmul.f32 %v3385, %v3497
    %v3514 = vmul.f32 %v3386, %v3498
    %v3515 = vmul.f32 %v3387, %v3499
    %v3516 = vmul.f32 %v3388, %v3500
    %v3517 = vlaneseq
    %v3518 = vshrl.u32 %v3517, 7
    %v3519 = vsub.s32 0, %v3518
    %v3520 = vrot.slane %v3307, %v3519
    %v3521 = vmul.f32 %v3501, %v3520
    %v3522 = vmul.f32 %v3502, %v3520
    %v3523 = vmul.f32 %v3503, %v3520
    %v3524 = vmul.f32 %v3504, %v3520
    %v3525 = vmul.f32 %v3505, %v3520
    %v3526 = vmul.f32 %v3506, %v3520
    %v3527 = vmul.f32 %v3507, %v3520
    %v3528 = vmul.f32 %v3508, %v3520
    %v3529 = vmul.f32 %v3509, %v3520
    %v3530 = vmul.f32 %v3510, %v3520
    %v3531 = vmul.f32 %v3511, %v3520
    %v3532 = vmul.f32 %v3512, %v3520
    %v3533 = vmul.f32 %v3513, %v3520
    %v3534 = vmul.f32 %v3514, %v3520
    %v3535 = vmul.f32 %v3515, %v3520
    %v3536 = vmul.f32 %v3516, %v3520
    %v3537 = vlaneseq
    %v3538 = vshrl.u32 %v3537, 7
    %v3539 = vsub.s32 0, %v3538
    %v3540 = vrot.slane %v3308, %v3539
    %v3541 = vadd.f32 %v3521, %v3540
    %v3542 = vadd.f32 %v3522, %v3540
    %v3543 = vadd.f32 %v3523, %v3540
    %v3544 = vadd.f32 %v3524, %v3540
    %v3545 = vadd.f32 %v3525, %v3540
    %v3546 = vadd.f32 %v3526, %v3540
    %v3547 = vadd.f32 %v3527, %v3540
    %v3548 = vadd.f32 %v3528, %v3540
    %v3549 = vadd.f32 %v3529, %v3540
    %v3550 = vadd.f32 %v3530, %v3540
    %v3551 = vadd.f32 %v3531, %v3540
    %v3552 = vadd.f32 %v3532, %v3540
    %v3553 = vadd.f32 %v3533, %v3540
    %v3554 = vadd.f32 %v3534, %v3540
    %v3555 = vadd.f32 %v3535, %v3540
    %v3556 = vadd.f32 %v3536, %v3540
    %v3557 = vpack.c.bf16 %v3542, %v3541
    %v3558 = vpack.c.bf16 %v3544, %v3543
    %v3559 = vpack.c.bf16 %v3546, %v3545
    %v3560 = vpack.c.bf16 %v3548, %v3547
    %v3561 = vpack.c.bf16 %v3550, %v3549
    %v3562 = vpack.c.bf16 %v3552, %v3551
    %v3563 = vpack.c.bf16 %v3554, %v3553
    %v3564 = vpack.c.bf16 %v3556, %v3555
    %v3565 = vld [vmem:[%s11] sm:$0xf]
    %v3566 = vld [vmem:[%s11 + $0x4] sm:$0xf]
    %v3567 = vld [vmem:[%s11 + $0x8] sm:$0xf]
    %v3568 = vld [vmem:[%s11 + $0xc] sm:$0xf]
    %v3569 = vld [vmem:[%s12] sm:$0x1]
    %v3570 = vlaneseq
    %v3571 = vshrl.u32 %v3570, 7
    %v3572 = vsub.s32 0, %v3571
    %v3573 = vrot.slane %v3569, %v3572
    %v3578 = vunpack.c.l.b16 %v3565
    %v3579 = vunpack.c.l.b16 %v3566
    %v3580 = vunpack.c.l.b16 %v3567
    %v3581 = vunpack.c.l.b16 %v3568
    %v3582 = vpack.c.b16 %v3579, %v3578
    %v3583 = vpack.c.b16 %v3581, %v3580
    %v3587 = vsel %vm305, %v3557, 0
    %v3590 = vsel %vm305, %v3558, 0
    %v3593 = vsel %vm305, %v3559, 0
    %v3596 = vsel %vm305, %v3560, 0
    %v3599 = vsel %vm305, %v3561, 0
    %v3602 = vsel %vm305, %v3562, 0
    %v3605 = vsel %vm305, %v3563, 0
    %v3608 = vsel %vm305, %v3564, 0
    %3610 = vmatprep.subr.bf16.mxu0 0
    %3611 = vmatpush1.bf16.msra.mxu0 %v3582
    %3612 = vmatprep.subr.bf16.mxu0 0
    %3613 = vmatpush1.bf16.msra.mxu0 %v3583
    %3614 = vmatprep.subr.bf16.mxu0 0
    %3615 = vmatpush1.bf16.msra.mxu0 0
    %3616 = vmatprep.subr.bf16.mxu0 0
    %3617 = vmatpush1.bf16.msra.mxu0 0
    %3618 = vmatprep.subr.bf16.mxu0 0
    %3619 = vmatpush1.bf16.msra.mxu0 0
    %3620 = vmatprep.subr.bf16.mxu0 0
    %3621 = vmatpush1.bf16.msra.mxu0 0
    %3622 = vmatprep.subr.bf16.mxu0 0
    %3623 = vmatpush1.bf16.msra.mxu0 0
    %3624 = vmatprep.subr.bf16.mxu0 0
    %3625 = vmatpush1.bf16.msra.mxu0 0
    %3626 = vmatprep.subr.bf16.mxu0 0
    %3627 = vmatpush1.bf16.msra.mxu0 0
    %3628 = vmatprep.subr.bf16.mxu0 0
    %3629 = vmatpush1.bf16.msra.mxu0 0
    %3630 = vmatprep.subr.bf16.mxu0 0
    %3631 = vmatpush1.bf16.msra.mxu0 0
    %3632 = vmatprep.subr.bf16.mxu0 0
    %3633 = vmatpush1.bf16.msra.mxu0 0
    %3634 = vmatprep.subr.bf16.mxu0 0
    %3635 = vmatpush1.bf16.msra.mxu0 0
    %3636 = vmatprep.subr.bf16.mxu0 0
    %3637 = vmatpush1.bf16.msra.mxu0 0
    %3638 = vmatprep.subr.bf16.mxu0 0
    %3639 = vmatpush1.bf16.msra.mxu0 0
    %3640 = vmatprep.subr.bf16.mxu0 0
    %3641 = vmatpush1.bf16.msra.mxu0 0
    %3642 = vmatprep.mubr.bf16.mxu0 0
    %3643 = vmatmul.mubr.bf16.gmra.mrb[0].mxu0 %v3587
    %v3644 = vpop.f32.mrb[0].mxu0
    %v3645 = vadd.f32 %v3573, %v3644
    %v3646 = vpop.f32.mrb[0].mxu0
    %v3647 = vpop.f32.mrb[0].mxu0
    %v3648 = vadd.f32 %v3573, %v3647
    %v3649 = vpop.f32.mrb[0].mxu0
    %3650 = vmatprep.mubr.bf16.mxu0 0
    %3651 = vmatmul.mubr.bf16.gmra.mrb[0].mxu0 %v3590
    %v3652 = vpop.f32.mrb[0].mxu0
    %v3653 = vadd.f32 %v3573, %v3652
    %v3654 = vpop.f32.mrb[0].mxu0
    %v3655 = vpop.f32.mrb[0].mxu0
    %v3656 = vadd.f32 %v3573, %v3655
    %v3657 = vpop.f32.mrb[0].mxu0
    %3658 = vmatprep.mubr.bf16.mxu0 0
    %3659 = vmatmul.mubr.bf16.gmra.mrb[0].mxu0 %v3593
    %v3660 = vpop.f32.mrb[0].mxu0
    %v3661 = vadd.f32 %v3573, %v3660
    %v3662 = vpop.f32.mrb[0].mxu0
    %v3663 = vpop.f32.mrb[0].mxu0
    %v3664 = vadd.f32 %v3573, %v3663
    %v3665 = vpop.f32.mrb[0].mxu0
    %3666 = vmatprep.mubr.bf16.mxu0 0
    %3667 = vmatmul.mubr.bf16.gmra.mrb[0].mxu0 %v3596
    %v3668 = vpop.f32.mrb[0].mxu0
    %v3669 = vadd.f32 %v3573, %v3668
    %v3670 = vpop.f32.mrb[0].mxu0
    %v3671 = vpop.f32.mrb[0].mxu0
    %v3672 = vadd.f32 %v3573, %v3671
    %v3673 = vpop.f32.mrb[0].mxu0
    %3674 = vmatprep.mubr.bf16.mxu0 0
    %3675 = vmatmul.mubr.bf16.gmra.mrb[0].mxu0 %v3599
    %v3676 = vpop.f32.mrb[0].mxu0
    %v3677 = vadd.f32 %v3573, %v3676
    %v3678 = vpop.f32.mrb[0].mxu0
    %v3679 = vpop.f32.mrb[0].mxu0
    %v3680 = vadd.f32 %v3573, %v3679
    %v3681 = vpop.f32.mrb[0].mxu0
    %3682 = vmatprep.mubr.bf16.mxu0 0
    %3683 = vmatmul.mubr.bf16.gmra.mrb[0].mxu0 %v3602
    %v3684 = vpop.f32.mrb[0].mxu0
    %v3685 = vadd.f32 %v3573, %v3684
    %v3686 = vpop.f32.mrb[0].mxu0
    %v3687 = vpop.f32.mrb[0].mxu0
    %v3688 = vadd.f32 %v3573, %v3687
    %v3689 = vpop.f32.mrb[0].mxu0
    %3690 = vmatprep.mubr.bf16.mxu0 0
    %3691 = vmatmul.mubr.bf16.gmra.mrb[0].mxu0 %v3605
    %v3692 = vpop.f32.mrb[0].mxu0
    %v3693 = vadd.f32 %v3573, %v3692
    %v3694 = vpop.f32.mrb[0].mxu0
    %v3695 = vpop.f32.mrb[0].mxu0
    %v3696 = vadd.f32 %v3573, %v3695
    %v3697 = vpop.f32.mrb[0].mxu0
    %3698 = vmatprep.mubr.bf16.mxu0 0
    %3699 = vmatmul.mubr.bf16.gmra.mrb[0].mxu0 %v3608
    %v3700 = vpop.f32.mrb[0].mxu0
    %v3701 = vadd.f32 %v3573, %v3700
    %v3702 = vpop.f32.mrb[0].mxu0
    %v3703 = vpop.f32.mrb[0].mxu0
    %v3704 = vadd.f32 %v3573, %v3703
    %v3705 = vpop.f32.mrb[0].mxu0
    %3706 = vdwg.mxu0
    %v3707 = vmul.f32 %v3645, 0.5
    %v3708 = vmul.f32 %v3648, 0.5
    %v3709 = vmul.f32 %v3653, 0.5
    %v3710 = vmul.f32 %v3656, 0.5
    %v3711 = vmul.f32 %v3661, 0.5
    %v3712 = vmul.f32 %v3664, 0.5
    %v3713 = vmul.f32 %v3669, 0.5
    %v3714 = vmul.f32 %v3672, 0.5
    %v3715 = vmul.f32 %v3677, 0.5
    %v3716 = vmul.f32 %v3680, 0.5
    %v3717 = vmul.f32 %v3685, 0.5
    %v3718 = vmul.f32 %v3688, 0.5
    %v3719 = vmul.f32 %v3693, 0.5
    %v3720 = vmul.f32 %v3696, 0.5
    %v3721 = vmul.f32 %v3701, 0.5
    %v3722 = vmul.f32 %v3704, 0.5
    %v3723 = vmul.f32 %v3645, 0.70710677
    %v3724 = vmul.f32 %v3648, 0.70710677
    %v3725 = vmul.f32 %v3653, 0.70710677
    %v3726 = vmul.f32 %v3656, 0.70710677
    %v3727 = vmul.f32 %v3661, 0.70710677
    %v3728 = vmul.f32 %v3664, 0.70710677
    %v3729 = vmul.f32 %v3669, 0.70710677
    %v3730 = vmul.f32 %v3672, 0.70710677
    %v3731 = vmul.f32 %v3677, 0.70710677
    %v3732 = vmul.f32 %v3680, 0.70710677
    %v3733 = vmul.f32 %v3685, 0.70710677
    %v3734 = vmul.f32 %v3688, 0.70710677
    %v3735 = vmul.f32 %v3693, 0.70710677
    %v3736 = vmul.f32 %v3696, 0.70710677
    %v3737 = vmul.f32 %v3701, 0.70710677
    %v3738 = vmul.f32 %v3704, 0.70710677
    %v3739 = verf.f32.pop %v3723
    %v3740 = verf.f32.pop %v3724
    %v3741 = verf.f32.pop %v3725
    %v3742 = verf.f32.pop %v3726
    %v3743 = verf.f32.pop %v3727
    %v3744 = verf.f32.pop %v3728
    %v3745 = verf.f32.pop %v3729
    %v3746 = verf.f32.pop %v3730
    %v3747 = verf.f32.pop %v3731
    %v3748 = verf.f32.pop %v3732
    %v3749 = verf.f32.pop %v3733
    %v3750 = verf.f32.pop %v3734
    %v3751 = verf.f32.pop %v3735
    %v3752 = verf.f32.pop %v3736
    %v3753 = verf.f32.pop %v3737
    %v3754 = verf.f32.pop %v3738
    %v3755 = vadd.f32 %v3739, 1.0
    %v3756 = vadd.f32 %v3740, 1.0
    %v3757 = vadd.f32 %v3741, 1.0
    %v3758 = vadd.f32 %v3742, 1.0
    %v3759 = vadd.f32 %v3743, 1.0
    %v3760 = vadd.f32 %v3744, 1.0
    %v3761 = vadd.f32 %v3745, 1.0
    %v3762 = vadd.f32 %v3746, 1.0
    %v3763 = vadd.f32 %v3747, 1.0
    %v3764 = vadd.f32 %v3748, 1.0
    %v3765 = vadd.f32 %v3749, 1.0
    %v3766 = vadd.f32 %v3750, 1.0
    %v3767 = vadd.f32 %v3751, 1.0
    %v3768 = vadd.f32 %v3752, 1.0
    %v3769 = vadd.f32 %v3753, 1.0
    %v3770 = vadd.f32 %v3754, 1.0
    %v3771 = vmul.f32 %v3707, %v3755
    %v3772 = vmul.f32 %v3708, %v3756
    %v3773 = vmul.f32 %v3709, %v3757
    %v3774 = vmul.f32 %v3710, %v3758
    %v3775 = vmul.f32 %v3711, %v3759
    %v3776 = vmul.f32 %v3712, %v3760
    %v3777 = vmul.f32 %v3713, %v3761
    %v3778 = vmul.f32 %v3714, %v3762
    %v3779 = vmul.f32 %v3715, %v3763
    %v3780 = vmul.f32 %v3716, %v3764
    %v3781 = vmul.f32 %v3717, %v3765
    %v3782 = vmul.f32 %v3718, %v3766
    %v3783 = vmul.f32 %v3719, %v3767
    %v3784 = vmul.f32 %v3720, %v3768
    %v3785 = vmul.f32 %v3721, %v3769
    %v3786 = vmul.f32 %v3722, %v3770
    %v3787 = vpack.c.bf16 %v3772, %v3771
    %v3788 = vpack.c.bf16 %v3774, %v3773
    %v3789 = vpack.c.bf16 %v3776, %v3775
    %v3790 = vpack.c.bf16 %v3778, %v3777
    %v3791 = vpack.c.bf16 %v3780, %v3779
    %v3792 = vpack.c.bf16 %v3782, %v3781
    %v3793 = vpack.c.bf16 %v3784, %v3783
    %v3794 = vpack.c.bf16 %v3786, %v3785
    %v3795 = vld [vmem:[%s13] sm:$0xf]
    %v3796 = vld [vmem:[%s13 + $0x4] sm:$0xf]
    %v3797 = vld [vmem:[%s13 + $0x8] sm:$0xf]
    %v3798 = vld [vmem:[%s13 + $0xc] sm:$0xf]
    %v3799 = vld [vmem:[%s13 + $0x10] sm:$0xf]
    %v3800 = vld [vmem:[%s13 + $0x14] sm:$0xf]
    %v3801 = vld [vmem:[%s13 + $0x18] sm:$0xf]
    %v3802 = vld [vmem:[%s13 + $0x1c] sm:$0xf]
    %v3803 = vld [vmem:[%s13 + $0x20] sm:$0xf]
    %v3804 = vld [vmem:[%s13 + $0x24] sm:$0xf]
    %v3805 = vld [vmem:[%s13 + $0x28] sm:$0xf]
    %v3806 = vld [vmem:[%s13 + $0x2c] sm:$0xf]
    %v3807 = vld [vmem:[%s13 + $0x30] sm:$0xf]
    %v3808 = vld [vmem:[%s13 + $0x34] sm:$0xf]
    %v3809 = vld [vmem:[%s13 + $0x38] sm:$0xf]
    %v3810 = vld [vmem:[%s13 + $0x3c] sm:$0xf]
    %v3811 = vld [vmem:[%s14] sm:$0x1]
    %v3812 = vlaneseq
    %v3813 = vshrl.u32 %v3812, 7
    %v3814 = vsub.s32 0, %v3813
    %v3815 = vrot.slane %v3811, %v3814
    %v3832 = vunpack.c.l.b16 %v3795
    %v3833 = vunpack.c.l.b16 %v3796
    %v3834 = vunpack.c.l.b16 %v3797
    %v3835 = vunpack.c.l.b16 %v3798
    %v3836 = vunpack.c.l.b16 %v3799
    %v3837 = vunpack.c.l.b16 %v3800
    %v3838 = vunpack.c.l.b16 %v3801
    %v3839 = vunpack.c.l.b16 %v3802
    %v3840 = vunpack.c.l.b16 %v3803
    %v3841 = vunpack.c.l.b16 %v3804
    %v3842 = vunpack.c.l.b16 %v3805
    %v3843 = vunpack.c.l.b16 %v3806
    %v3844 = vunpack.c.l.b16 %v3807
    %v3845 = vunpack.c.l.b16 %v3808
    %v3846 = vunpack.c.l.b16 %v3809
    %v3847 = vunpack.c.l.b16 %v3810
    %v3848 = vpack.c.b16 %v3833, %v3832
    %v3849 = vpack.c.b16 %v3835, %v3834
    %v3850 = vpack.c.b16 %v3837, %v3836
    %v3851 = vpack.c.b16 %v3839, %v3838
    %v3852 = vpack.c.b16 %v3841, %v3840
    %v3853 = vpack.c.b16 %v3843, %v3842
    %v3854 = vpack.c.b16 %v3845, %v3844
    %v3855 = vpack.c.b16 %v3847, %v3846
    %3864 = vmatprep.subr.bf16.mxu0 0
    %3865 = vmatpush1.bf16.msra.mxu0 %v3848
    %3866 = vmatprep.subr.bf16.mxu0 0
    %3867 = vmatpush1.bf16.msra.mxu0 %v3849
    %3868 = vmatprep.subr.bf16.mxu0 0
    %3869 = vmatpush1.bf16.msra.mxu0 %v3850
    %3870 = vmatprep.subr.bf16.mxu0 0
    %3871 = vmatpush1.bf16.msra.mxu0 %v3851
    %3872 = vmatprep.subr.bf16.mxu0 0
    %3873 = vmatpush1.bf16.msra.mxu0 %v3852
    %3874 = vmatprep.subr.bf16.mxu0 0
    %3875 = vmatpush1.bf16.msra.mxu0 %v3853
    %3876 = vmatprep.subr.bf16.mxu0 0
    %3877 = vmatpush1.bf16.msra.mxu0 %v3854
    %3878 = vmatprep.subr.bf16.mxu0 0
    %3879 = vmatpush1.bf16.msra.mxu0 %v3855
    %3880 = vmatprep.subr.bf16.mxu0 0
    %3881 = vmatpush1.bf16.msra.mxu0 0
    %3882 = vmatprep.subr.bf16.mxu0 0
    %3883 = vmatpush1.bf16.msra.mxu0 0
    %3884 = vmatprep.subr.bf16.mxu0 0
    %3885 = vmatpush1.bf16.msra.mxu0 0
    %3886 = vmatprep.subr.bf16.mxu0 0
    %3887 = vmatpush1.bf16.msra.mxu0 0
    %3888 = vmatprep.subr.bf16.mxu0 0
    %3889 = vmatpush1.bf16.msra.mxu0 0
    %3890 = vmatprep.subr.bf16.mxu0 0
    %3891 = vmatpush1.bf16.msra.mxu0 0
    %3892 = vmatprep.subr.bf16.mxu0 0
    %3893 = vmatpush1.bf16.msra.mxu0 0
    %3894 = vmatprep.subr.bf16.mxu0 0
    %3895 = vmatpush1.bf16.msra.mxu0 0
    %3896 = vmatprep.mubr.bf16.mxu0 0
    %3897 = vmatmul.mubr.bf16.gmra.mrb[0].mxu0 %v3787
    %v3898 = vpop.f32.mrb[0].mxu0
    %v3899 = vadd.f32 %v3815, %v3898
    %v3900 = vpop.f32.mrb[0].mxu0
    %v3901 = vpop.f32.mrb[0].mxu0
    %v3902 = vadd.f32 %v3815, %v3901
    %v3903 = vpop.f32.mrb[0].mxu0
    %3904 = vmatprep.mubr.bf16.mxu0 0
    %3905 = vmatmul.mubr.bf16.gmra.mrb[0].mxu0 %v3788
    %v3906 = vpop.f32.mrb[0].mxu0
    %v3907 = vadd.f32 %v3815, %v3906
    %v3908 = vpop.f32.mrb[0].mxu0
    %v3909 = vpop.f32.mrb[0].mxu0
    %v3910 = vadd.f32 %v3815, %v3909
    %v3911 = vpop.f32.mrb[0].mxu0
    %3912 = vmatprep.mubr.bf16.mxu0 0
    %3913 = vmatmul.mubr.bf16.gmra.mrb[0].mxu0 %v3789
    %v3914 = vpop.f32.mrb[0].mxu0
    %v3915 = vadd.f32 %v3815, %v3914
    %v3916 = vpop.f32.mrb[0].mxu0
    %v3917 = vpop.f32.mrb[0].mxu0
    %v3918 = vadd.f32 %v3815, %v3917
    %v3919 = vpop.f32.mrb[0].mxu0
    %3920 = vmatprep.mubr.bf16.mxu0 0
    %3921 = vmatmul.mubr.bf16.gmra.mrb[0].mxu0 %v3790
    %v3922 = vpop.f32.mrb[0].mxu0
    %v3923 = vadd.f32 %v3815, %v3922
    %v3924 = vpop.f32.mrb[0].mxu0
    %v3925 = vpop.f32.mrb[0].mxu0
    %v3926 = vadd.f32 %v3815, %v3925
    %v3927 = vpop.f32.mrb[0].mxu0
    %3928 = vmatprep.mubr.bf16.mxu0 0
    %3929 = vmatmul.mubr.bf16.gmra.mrb[0].mxu0 %v3791
    %v3930 = vpop.f32.mrb[0].mxu0
    %v3931 = vadd.f32 %v3815, %v3930
    %v3932 = vpop.f32.mrb[0].mxu0
    %v3933 = vpop.f32.mrb[0].mxu0
    %v3934 = vadd.f32 %v3815, %v3933
    %v3935 = vpop.f32.mrb[0].mxu0
    %3936 = vmatprep.mubr.bf16.mxu0 0
    %3937 = vmatmul.mubr.bf16.gmra.mrb[0].mxu0 %v3792
    %v3938 = vpop.f32.mrb[0].mxu0
    %v3939 = vadd.f32 %v3815, %v3938
    %v3940 = vpop.f32.mrb[0].mxu0
    %v3941 = vpop.f32.mrb[0].mxu0
    %v3942 = vadd.f32 %v3815, %v3941
    %v3943 = vpop.f32.mrb[0].mxu0
    %3944 = vmatprep.mubr.bf16.mxu0 0
    %3945 = vmatmul.mubr.bf16.gmra.mrb[0].mxu0 %v3793
    %v3946 = vpop.f32.mrb[0].mxu0
    %v3947 = vadd.f32 %v3815, %v3946
    %v3948 = vpop.f32.mrb[0].mxu0
    %v3949 = vpop.f32.mrb[0].mxu0
    %v3950 = vadd.f32 %v3815, %v3949
    %v3951 = vpop.f32.mrb[0].mxu0
    %3952 = vmatprep.mubr.bf16.mxu0 0
    %3953 = vmatmul.mubr.bf16.gmra.mrb[0].mxu0 %v3794
    %v3954 = vpop.f32.mrb[0].mxu0
    %v3955 = vadd.f32 %v3815, %v3954
    %v3956 = vpop.f32.mrb[0].mxu0
    %v3957 = vpop.f32.mrb[0].mxu0
    %v3958 = vadd.f32 %v3815, %v3957
    %v3959 = vpop.f32.mrb[0].mxu0
    %3960 = vdwg.mxu0
    %v3961 = vadd.f32 %v3291, %v3899
    %v3962 = vadd.f32 %v3292, %v3902
    %v3963 = vadd.f32 %v3293, %v3907
    %v3964 = vadd.f32 %v3294, %v3910
    %v3965 = vadd.f32 %v3295, %v3915
    %v3966 = vadd.f32 %v3296, %v3918
    %v3967 = vadd.f32 %v3297, %v3923
    %v3968 = vadd.f32 %v3298, %v3926
    %v3969 = vadd.f32 %v3299, %v3931
    %v3970 = vadd.f32 %v3300, %v3934
    %v3971 = vadd.f32 %v3301, %v3939
    %v3972 = vadd.f32 %v3302, %v3942
    %v3973 = vadd.f32 %v3303, %v3947
    %v3974 = vadd.f32 %v3304, %v3950
    %v3975 = vadd.f32 %v3305, %v3955
    %v3976 = vadd.f32 %v3306, %v3958
    %v3977 = vld [vmem:[%s3 + $0x1] sm:$0x1]
    %v3978 = vld [vmem:[%s4 + $0x1] sm:$0x1]
    %v3979 = vsel %vm305, %v3961, 0.0
    %3980 = vadd.xlane.f32.xlu0 %v3979
    %v3981 = vpop.xlane.xlu0 %3980
    %v3982 = vsel %vm305, %v3962, 0.0
    %3983 = vadd.xlane.f32.xlu0 %v3982
    %v3984 = vpop.xlane.xlu0 %3983
    %v3985 = vsel %vm305, %v3963, 0.0
    %3986 = vadd.xlane.f32.xlu0 %v3985
    %v3987 = vpop.xlane.xlu0 %3986
    %v3988 = vsel %vm305, %v3964, 0.0
    %3989 = vadd.xlane.f32.xlu0 %v3988
    %v3990 = vpop.xlane.xlu0 %3989
    %v3991 = vsel %vm305, %v3965, 0.0
    %3992 = vadd.xlane.f32.xlu0 %v3991
    %v3993 = vpop.xlane.xlu0 %3992
    %v3994 = vsel %vm305, %v3966, 0.0
    %3995 = vadd.xlane.f32.xlu0 %v3994
    %v3996 = vpop.xlane.xlu0 %3995
    %v3997 = vsel %vm305, %v3967, 0.0
    %3998 = vadd.xlane.f32.xlu0 %v3997
    %v3999 = vpop.xlane.xlu0 %3998
    %v4000 = vsel %vm305, %v3968, 0.0
    %4001 = vadd.xlane.f32.xlu0 %v4000
    %v4002 = vpop.xlane.xlu0 %4001
    %v4003 = vsel %vm305, %v3969, 0.0
    %4004 = vadd.xlane.f32.xlu0 %v4003
    %v4005 = vpop.xlane.xlu0 %4004
    %v4006 = vsel %vm305, %v3970, 0.0
    %4007 = vadd.xlane.f32.xlu0 %v4006
    %v4008 = vpop.xlane.xlu0 %4007
    %v4009 = vsel %vm305, %v3971, 0.0
    %4010 = vadd.xlane.f32.xlu0 %v4009
    %v4011 = vpop.xlane.xlu0 %4010
    %v4012 = vsel %vm305, %v3972, 0.0
    %4013 = vadd.xlane.f32.xlu0 %v4012
    %v4014 = vpop.xlane.xlu0 %4013
    %v4015 = vsel %vm305, %v3973, 0.0
    %4016 = vadd.xlane.f32.xlu0 %v4015
    %v4017 = vpop.xlane.xlu0 %4016
    %v4018 = vsel %vm305, %v3974, 0.0
    %4019 = vadd.xlane.f32.xlu0 %v4018
    %v4020 = vpop.xlane.xlu0 %4019
    %v4021 = vsel %vm305, %v3975, 0.0
    %4022 = vadd.xlane.f32.xlu0 %v4021
    %v4023 = vpop.xlane.xlu0 %4022
    %v4024 = vsel %vm305, %v3976, 0.0
    %4025 = vadd.xlane.f32.xlu0 %v4024
    %v4026 = vpop.xlane.xlu0 %4025
    %v4027 = vmul.f32 %v3981, %v354
    %v4028 = vmul.f32 %v3984, %v354
    %v4029 = vmul.f32 %v3987, %v354
    %v4030 = vmul.f32 %v3990, %v354
    %v4031 = vmul.f32 %v3993, %v354
    %v4032 = vmul.f32 %v3996, %v354
    %v4033 = vmul.f32 %v3999, %v354
    %v4034 = vmul.f32 %v4002, %v354
    %v4035 = vmul.f32 %v4005, %v354
    %v4036 = vmul.f32 %v4008, %v354
    %v4037 = vmul.f32 %v4011, %v354
    %v4038 = vmul.f32 %v4014, %v354
    %v4039 = vmul.f32 %v4017, %v354
    %v4040 = vmul.f32 %v4020, %v354
    %v4041 = vmul.f32 %v4023, %v354
    %v4042 = vmul.f32 %v4026, %v354
    %v4043 = vsub.f32 %v3961, %v4027
    %v4044 = vsub.f32 %v3962, %v4028
    %v4045 = vsub.f32 %v3963, %v4029
    %v4046 = vsub.f32 %v3964, %v4030
    %v4047 = vsub.f32 %v3965, %v4031
    %v4048 = vsub.f32 %v3966, %v4032
    %v4049 = vsub.f32 %v3967, %v4033
    %v4050 = vsub.f32 %v3968, %v4034
    %v4051 = vsub.f32 %v3969, %v4035
    %v4052 = vsub.f32 %v3970, %v4036
    %v4053 = vsub.f32 %v3971, %v4037
    %v4054 = vsub.f32 %v3972, %v4038
    %v4055 = vsub.f32 %v3973, %v4039
    %v4056 = vsub.f32 %v3974, %v4040
    %v4057 = vsub.f32 %v3975, %v4041
    %v4058 = vsub.f32 %v3976, %v4042
    %v4059 = vmul.f32 %v4043, %v4043
    %v4060 = vmul.f32 %v4044, %v4044
    %v4061 = vmul.f32 %v4045, %v4045
    %v4062 = vmul.f32 %v4046, %v4046
    %v4063 = vmul.f32 %v4047, %v4047
    %v4064 = vmul.f32 %v4048, %v4048
    %v4065 = vmul.f32 %v4049, %v4049
    %v4066 = vmul.f32 %v4050, %v4050
    %v4067 = vmul.f32 %v4051, %v4051
    %v4068 = vmul.f32 %v4052, %v4052
    %v4069 = vmul.f32 %v4053, %v4053
    %v4070 = vmul.f32 %v4054, %v4054
    %v4071 = vmul.f32 %v4055, %v4055
    %v4072 = vmul.f32 %v4056, %v4056
    %v4073 = vmul.f32 %v4057, %v4057
    %v4074 = vmul.f32 %v4058, %v4058
    %v4075 = vsel %vm305, %v4059, 0.0
    %4076 = vadd.xlane.f32.xlu0 %v4075
    %v4077 = vpop.xlane.xlu0 %4076
    %v4078 = vsel %vm305, %v4060, 0.0
    %4079 = vadd.xlane.f32.xlu0 %v4078
    %v4080 = vpop.xlane.xlu0 %4079
    %v4081 = vsel %vm305, %v4061, 0.0
    %4082 = vadd.xlane.f32.xlu0 %v4081
    %v4083 = vpop.xlane.xlu0 %4082
    %v4084 = vsel %vm305, %v4062, 0.0
    %4085 = vadd.xlane.f32.xlu0 %v4084
    %v4086 = vpop.xlane.xlu0 %4085
    %v4087 = vsel %vm305, %v4063, 0.0
    %4088 = vadd.xlane.f32.xlu0 %v4087
    %v4089 = vpop.xlane.xlu0 %4088
    %v4090 = vsel %vm305, %v4064, 0.0
    %4091 = vadd.xlane.f32.xlu0 %v4090
    %v4092 = vpop.xlane.xlu0 %4091
    %v4093 = vsel %vm305, %v4065, 0.0
    %4094 = vadd.xlane.f32.xlu0 %v4093
    %v4095 = vpop.xlane.xlu0 %4094
    %v4096 = vsel %vm305, %v4066, 0.0
    %4097 = vadd.xlane.f32.xlu0 %v4096
    %v4098 = vpop.xlane.xlu0 %4097
    %v4099 = vsel %vm305, %v4067, 0.0
    %4100 = vadd.xlane.f32.xlu0 %v4099
    %v4101 = vpop.xlane.xlu0 %4100
    %v4102 = vsel %vm305, %v4068, 0.0
    %4103 = vadd.xlane.f32.xlu0 %v4102
    %v4104 = vpop.xlane.xlu0 %4103
    %v4105 = vsel %vm305, %v4069, 0.0
    %4106 = vadd.xlane.f32.xlu0 %v4105
    %v4107 = vpop.xlane.xlu0 %4106
    %v4108 = vsel %vm305, %v4070, 0.0
    %4109 = vadd.xlane.f32.xlu0 %v4108
    %v4110 = vpop.xlane.xlu0 %4109
    %v4111 = vsel %vm305, %v4071, 0.0
    %4112 = vadd.xlane.f32.xlu0 %v4111
    %v4113 = vpop.xlane.xlu0 %4112
    %v4114 = vsel %vm305, %v4072, 0.0
    %4115 = vadd.xlane.f32.xlu0 %v4114
    %v4116 = vpop.xlane.xlu0 %4115
    %v4117 = vsel %vm305, %v4073, 0.0
    %4118 = vadd.xlane.f32.xlu0 %v4117
    %v4119 = vpop.xlane.xlu0 %4118
    %v4120 = vsel %vm305, %v4074, 0.0
    %4121 = vadd.xlane.f32.xlu0 %v4120
    %v4122 = vpop.xlane.xlu0 %4121
    %v4123 = vmul.f32 %v4077, %v354
    %v4124 = vmul.f32 %v4080, %v354
    %v4125 = vmul.f32 %v4083, %v354
    %v4126 = vmul.f32 %v4086, %v354
    %v4127 = vmul.f32 %v4089, %v354
    %v4128 = vmul.f32 %v4092, %v354
    %v4129 = vmul.f32 %v4095, %v354
    %v4130 = vmul.f32 %v4098, %v354
    %v4131 = vmul.f32 %v4101, %v354
    %v4132 = vmul.f32 %v4104, %v354
    %v4133 = vmul.f32 %v4107, %v354
    %v4134 = vmul.f32 %v4110, %v354
    %v4135 = vmul.f32 %v4113, %v354
    %v4136 = vmul.f32 %v4116, %v354
    %v4137 = vmul.f32 %v4119, %v354
    %v4138 = vmul.f32 %v4122, %v354
    %v4139 = vadd.f32 %v4123, 1e-06
    %v4140 = vadd.f32 %v4124, 1e-06
    %v4141 = vadd.f32 %v4125, 1e-06
    %v4142 = vadd.f32 %v4126, 1e-06
    %v4143 = vadd.f32 %v4127, 1e-06
    %v4144 = vadd.f32 %v4128, 1e-06
    %v4145 = vadd.f32 %v4129, 1e-06
    %v4146 = vadd.f32 %v4130, 1e-06
    %v4147 = vadd.f32 %v4131, 1e-06
    %v4148 = vadd.f32 %v4132, 1e-06
    %v4149 = vadd.f32 %v4133, 1e-06
    %v4150 = vadd.f32 %v4134, 1e-06
    %v4151 = vadd.f32 %v4135, 1e-06
    %v4152 = vadd.f32 %v4136, 1e-06
    %v4153 = vadd.f32 %v4137, 1e-06
    %v4154 = vadd.f32 %v4138, 1e-06
    %v4155 = vrsqrt.pop %v4139
    %v4156 = vrsqrt.pop %v4140
    %v4157 = vrsqrt.pop %v4141
    %v4158 = vrsqrt.pop %v4142
    %v4159 = vrsqrt.pop %v4143
    %v4160 = vrsqrt.pop %v4144
    %v4161 = vrsqrt.pop %v4145
    %v4162 = vrsqrt.pop %v4146
    %v4163 = vrsqrt.pop %v4147
    %v4164 = vrsqrt.pop %v4148
    %v4165 = vrsqrt.pop %v4149
    %v4166 = vrsqrt.pop %v4150
    %v4167 = vrsqrt.pop %v4151
    %v4168 = vrsqrt.pop %v4152
    %v4169 = vrsqrt.pop %v4153
    %v4170 = vrsqrt.pop %v4154
    %v4171 = vmul.f32 %v4043, %v4155
    %v4172 = vmul.f32 %v4044, %v4156
    %v4173 = vmul.f32 %v4045, %v4157
    %v4174 = vmul.f32 %v4046, %v4158
    %v4175 = vmul.f32 %v4047, %v4159
    %v4176 = vmul.f32 %v4048, %v4160
    %v4177 = vmul.f32 %v4049, %v4161
    %v4178 = vmul.f32 %v4050, %v4162
    %v4179 = vmul.f32 %v4051, %v4163
    %v4180 = vmul.f32 %v4052, %v4164
    %v4181 = vmul.f32 %v4053, %v4165
    %v4182 = vmul.f32 %v4054, %v4166
    %v4183 = vmul.f32 %v4055, %v4167
    %v4184 = vmul.f32 %v4056, %v4168
    %v4185 = vmul.f32 %v4057, %v4169
    %v4186 = vmul.f32 %v4058, %v4170
    %v4187 = vlaneseq
    %v4188 = vshrl.u32 %v4187, 7
    %v4189 = vsub.s32 0, %v4188
    %v4190 = vrot.slane %v3977, %v4189
    %v4191 = vmul.f32 %v4171, %v4190
    %v4192 = vmul.f32 %v4172, %v4190
    %v4193 = vmul.f32 %v4173, %v4190
    %v4194 = vmul.f32 %v4174, %v4190
    %v4195 = vmul.f32 %v4175, %v4190
    %v4196 = vmul.f32 %v4176, %v4190
    %v4197 = vmul.f32 %v4177, %v4190
    %v4198 = vmul.f32 %v4178, %v4190
    %v4199 = vmul.f32 %v4179, %v4190
    %v4200 = vmul.f32 %v4180, %v4190
    %v4201 = vmul.f32 %v4181, %v4190
    %v4202 = vmul.f32 %v4182, %v4190
    %v4203 = vmul.f32 %v4183, %v4190
    %v4204 = vmul.f32 %v4184, %v4190
    %v4205 = vmul.f32 %v4185, %v4190
    %v4206 = vmul.f32 %v4186, %v4190
    %v4207 = vlaneseq
    %v4208 = vshrl.u32 %v4207, 7
    %v4209 = vsub.s32 0, %v4208
    %v4210 = vrot.slane %v3978, %v4209
    %v4211 = vadd.f32 %v4191, %v4210
    %v4212 = vadd.f32 %v4192, %v4210
    %v4213 = vadd.f32 %v4193, %v4210
    %v4214 = vadd.f32 %v4194, %v4210
    %v4215 = vadd.f32 %v4195, %v4210
    %v4216 = vadd.f32 %v4196, %v4210
    %v4217 = vadd.f32 %v4197, %v4210
    %v4218 = vadd.f32 %v4198, %v4210
    %v4219 = vadd.f32 %v4199, %v4210
    %v4220 = vadd.f32 %v4200, %v4210
    %v4221 = vadd.f32 %v4201, %v4210
    %v4222 = vadd.f32 %v4202, %v4210
    %v4223 = vadd.f32 %v4203, %v4210
    %v4224 = vadd.f32 %v4204, %v4210
    %v4225 = vadd.f32 %v4205, %v4210
    %v4226 = vadd.f32 %v4206, %v4210
    %v4227 = vpack.c.bf16 %v4212, %v4211
    %v4228 = vpack.c.bf16 %v4214, %v4213
    %v4229 = vpack.c.bf16 %v4216, %v4215
    %v4230 = vpack.c.bf16 %v4218, %v4217
    %v4231 = vpack.c.bf16 %v4220, %v4219
    %v4232 = vpack.c.bf16 %v4222, %v4221
    %v4233 = vpack.c.bf16 %v4224, %v4223
    %v4234 = vpack.c.bf16 %v4226, %v4225
    %s4235 = scalar_lea.vmem %s5, 16
    %v4236 = vld [vmem:[%s4235] sm:$0xf]
    %v4237 = vld [vmem:[%s4235 + $0x4] sm:$0xf]
    %v4238 = vld [vmem:[%s4235 + $0x8] sm:$0xf]
    %v4239 = vld [vmem:[%s4235 + $0xc] sm:$0xf]
    %v4240 = vld [vmem:[%s6 + $0x1] sm:$0x1]
    %v4241 = vlaneseq
    %v4242 = vshrl.u32 %v4241, 7
    %v4243 = vsub.s32 0, %v4242
    %v4244 = vrot.slane %v4240, %v4243
    %v4249 = vunpack.c.l.b16 %v4236
    %v4250 = vunpack.c.l.b16 %v4237
    %v4251 = vunpack.c.l.b16 %v4238
    %v4252 = vunpack.c.l.b16 %v4239
    %v4253 = vpack.c.b16 %v4250, %v4249
    %v4254 = vpack.c.b16 %v4252, %v4251
    %v4258 = vsel %vm305, %v4227, 0
    %v4261 = vsel %vm305, %v4228, 0
    %v4264 = vsel %vm305, %v4229, 0
    %v4267 = vsel %vm305, %v4230, 0
    %v4270 = vsel %vm305, %v4231, 0
    %v4273 = vsel %vm305, %v4232, 0
    %v4276 = vsel %vm305, %v4233, 0
    %v4279 = vsel %vm305, %v4234, 0
    %4281 = vmatprep.subr.bf16.mxu0 0
    %4282 = vmatpush1.bf16.msra.mxu0 %v4253
    %4283 = vmatprep.subr.bf16.mxu0 0
    %4284 = vmatpush1.bf16.msra.mxu0 %v4254
    %4285 = vmatprep.subr.bf16.mxu0 0
    %4286 = vmatpush1.bf16.msra.mxu0 0
    %4287 = vmatprep.subr.bf16.mxu0 0
    %4288 = vmatpush1.bf16.msra.mxu0 0
    %4289 = vmatprep.subr.bf16.mxu0 0
    %4290 = vmatpush1.bf16.msra.mxu0 0
    %4291 = vmatprep.subr.bf16.mxu0 0
    %4292 = vmatpush1.bf16.msra.mxu0 0
    %4293 = vmatprep.subr.bf16.mxu0 0
    %4294 = vmatpush1.bf16.msra.mxu0 0
    %4295 = vmatprep.subr.bf16.mxu0 0
    %4296 = vmatpush1.bf16.msra.mxu0 0
    %4297 = vmatprep.subr.bf16.mxu0 0
    %4298 = vmatpush1.bf16.msra.mxu0 0
    %4299 = vmatprep.subr.bf16.mxu0 0
    %4300 = vmatpush1.bf16.msra.mxu0 0
    %4301 = vmatprep.subr.bf16.mxu0 0
    %4302 = vmatpush1.bf16.msra.mxu0 0
    %4303 = vmatprep.subr.bf16.mxu0 0
    %4304 = vmatpush1.bf16.msra.mxu0 0
    %4305 = vmatprep.subr.bf16.mxu0 0
    %4306 = vmatpush1.bf16.msra.mxu0 0
    %4307 = vmatprep.subr.bf16.mxu0 0
    %4308 = vmatpush1.bf16.msra.mxu0 0
    %4309 = vmatprep.subr.bf16.mxu0 0
    %4310 = vmatpush1.bf16.msra.mxu0 0
    %4311 = vmatprep.subr.bf16.mxu0 0
    %4312 = vmatpush1.bf16.msra.mxu0 0
    %4313 = vmatprep.mubr.bf16.mxu0 0
    %4314 = vmatmul.mubr.bf16.gmra.mrb[0].mxu0 %v4258
    %v4315 = vpop.f32.mrb[0].mxu0
    %v4316 = vadd.f32 %v4244, %v4315
    %v4317 = vpop.f32.mrb[0].mxu0
    %v4318 = vpop.f32.mrb[0].mxu0
    %v4319 = vadd.f32 %v4244, %v4318
    %v4320 = vpop.f32.mrb[0].mxu0
    %4321 = vmatprep.mubr.bf16.mxu0 0
    %4322 = vmatmul.mubr.bf16.gmra.mrb[0].mxu0 %v4261
    %v4323 = vpop.f32.mrb[0].mxu0
    %v4324 = vadd.f32 %v4244, %v4323
    %v4325 = vpop.f32.mrb[0].mxu0
    %v4326 = vpop.f32.mrb[0].mxu0
    %v4327 = vadd.f32 %v4244, %v4326
    %v4328 = vpop.f32.mrb[0].mxu0
    %4329 = vmatprep.mubr.bf16.mxu0 0
    %4330 = vmatmul.mubr.bf16.gmra.mrb[0].mxu0 %v4264
    %v4331 = vpop.f32.mrb[0].mxu0
    %v4332 = vadd.f32 %v4244, %v4331
    %v4333 = vpop.f32.mrb[0].mxu0
    %v4334 = vpop.f32.mrb[0].mxu0
    %v4335 = vadd.f32 %v4244, %v4334
    %v4336 = vpop.f32.mrb[0].mxu0
    %4337 = vmatprep.mubr.bf16.mxu0 0
    %4338 = vmatmul.mubr.bf16.gmra.mrb[0].mxu0 %v4267
    %v4339 = vpop.f32.mrb[0].mxu0
    %v4340 = vadd.f32 %v4244, %v4339
    %v4341 = vpop.f32.mrb[0].mxu0
    %v4342 = vpop.f32.mrb[0].mxu0
    %v4343 = vadd.f32 %v4244, %v4342
    %v4344 = vpop.f32.mrb[0].mxu0
    %4345 = vmatprep.mubr.bf16.mxu0 0
    %4346 = vmatmul.mubr.bf16.gmra.mrb[0].mxu0 %v4270
    %v4347 = vpop.f32.mrb[0].mxu0
    %v4348 = vadd.f32 %v4244, %v4347
    %v4349 = vpop.f32.mrb[0].mxu0
    %v4350 = vpop.f32.mrb[0].mxu0
    %v4351 = vadd.f32 %v4244, %v4350
    %v4352 = vpop.f32.mrb[0].mxu0
    %4353 = vmatprep.mubr.bf16.mxu0 0
    %4354 = vmatmul.mubr.bf16.gmra.mrb[0].mxu0 %v4273
    %v4355 = vpop.f32.mrb[0].mxu0
    %v4356 = vadd.f32 %v4244, %v4355
    %v4357 = vpop.f32.mrb[0].mxu0
    %v4358 = vpop.f32.mrb[0].mxu0
    %v4359 = vadd.f32 %v4244, %v4358
    %v4360 = vpop.f32.mrb[0].mxu0
    %4361 = vmatprep.mubr.bf16.mxu0 0
    %4362 = vmatmul.mubr.bf16.gmra.mrb[0].mxu0 %v4276
    %v4363 = vpop.f32.mrb[0].mxu0
    %v4364 = vadd.f32 %v4244, %v4363
    %v4365 = vpop.f32.mrb[0].mxu0
    %v4366 = vpop.f32.mrb[0].mxu0
    %v4367 = vadd.f32 %v4244, %v4366
    %v4368 = vpop.f32.mrb[0].mxu0
    %4369 = vmatprep.mubr.bf16.mxu0 0
    %4370 = vmatmul.mubr.bf16.gmra.mrb[0].mxu0 %v4279
    %v4371 = vpop.f32.mrb[0].mxu0
    %v4372 = vadd.f32 %v4244, %v4371
    %v4373 = vpop.f32.mrb[0].mxu0
    %v4374 = vpop.f32.mrb[0].mxu0
    %v4375 = vadd.f32 %v4244, %v4374
    %v4376 = vpop.f32.mrb[0].mxu0
    %4377 = vdwg.mxu0
    %v4378 = vpack.c.bf16 %v4319, %v4316
    %v4379 = vpack.c.bf16 %v4327, %v4324
    %v4380 = vpack.c.bf16 %v4335, %v4332
    %v4381 = vpack.c.bf16 %v4343, %v4340
    %4386 = vrot.lane.b32.xlu0 %v4378, 96
    %v4387 = vpop.permute.xlu0 %4386
    %4388 = vrot.lane.b32.xlu0 %v4379, 96
    %v4389 = vpop.permute.xlu0 %4388
    %4390 = vrot.lane.b32.xlu0 %v4380, 96
    %v4391 = vpop.permute.xlu0 %4390
    %4392 = vrot.lane.b32.xlu0 %v4381, 96
    %v4393 = vpop.permute.xlu0 %4392
    %v4395 = vsel %vm721, %v4378, 0
    %v4398 = vsel %vm721, %v4379, 0
    %v4401 = vsel %vm721, %v4380, 0
    %v4404 = vsel %vm721, %v4381, 0
    %v4407 = vsel %vm721, %v4387, 0
    %v4410 = vsel %vm721, %v4389, 0
    %v4413 = vsel %vm721, %v4391, 0
    %v4416 = vsel %vm721, %v4393, 0
    %4418 = vmatprep.subr.bf16.mxu0 0
    %4419 = vmatpush1.bf16.xpose.msra.mxu0 %v4407
    %4420 = vmatprep.subr.bf16.mxu0 0
    %4421 = vmatpush1.bf16.xpose.msra.mxu0 %v4410
    %4422 = vmatprep.subr.bf16.mxu0 0
    %4423 = vmatpush1.bf16.xpose.msra.mxu0 %v4413
    %4424 = vmatprep.subr.bf16.mxu0 0
    %4425 = vmatpush1.bf16.xpose.msra.mxu0 %v4416
    %4426 = vmatprep.subr.bf16.mxu0 0
    %4427 = vmatpush1.bf16.xpose.msra.mxu0 0
    %4428 = vmatprep.subr.bf16.mxu0 0
    %4429 = vmatpush1.bf16.xpose.msra.mxu0 0
    %4430 = vmatprep.subr.bf16.mxu0 0
    %4431 = vmatpush1.bf16.xpose.msra.mxu0 0
    %4432 = vmatprep.subr.bf16.mxu0 0
    %4433 = vmatpush1.bf16.xpose.msra.mxu0 0
    %4434 = vmatprep.subr.bf16.mxu0 0
    %4435 = vmatpush1.bf16.xpose.msra.mxu0 0
    %4436 = vmatprep.subr.bf16.mxu0 0
    %4437 = vmatpush1.bf16.xpose.msra.mxu0 0
    %4438 = vmatprep.subr.bf16.mxu0 0
    %4439 = vmatpush1.bf16.xpose.msra.mxu0 0
    %4440 = vmatprep.subr.bf16.mxu0 0
    %4441 = vmatpush1.bf16.xpose.msra.mxu0 0
    %4442 = vmatprep.subr.bf16.mxu0 0
    %4443 = vmatpush1.bf16.xpose.msra.mxu0 0
    %4444 = vmatprep.subr.bf16.mxu0 0
    %4445 = vmatpush1.bf16.xpose.msra.mxu0 0
    %4446 = vmatprep.subr.bf16.mxu0 0
    %4447 = vmatpush1.bf16.xpose.msra.mxu0 0
    %4448 = vmatprep.subr.bf16.mxu0 0
    %4449 = vmatpush1.bf16.xpose.msra.mxu0 0
    %4450 = vmatprep.mubr.bf16.mxu0 0
    %4451 = vmatmul.mubr.bf16.gmra.mrb[0].mxu0 %v4395
    %v4452 = vpop.f32.mrb[0].mxu0
    %v4453 = vadd.f32 %v302, %v4452
    %v4454 = vpop.f32.mrb[0].mxu0
    %v4455 = vpop.f32.mrb[0].mxu0
    %v4456 = vadd.f32 %v302, %v4455
    %v4457 = vpop.f32.mrb[0].mxu0
    %4458 = vmatprep.mubr.bf16.mxu0 0
    %4459 = vmatmul.mubr.bf16.gmra.mrb[0].mxu0 %v4398
    %v4460 = vpop.f32.mrb[0].mxu0
    %v4461 = vadd.f32 %v302, %v4460
    %v4462 = vpop.f32.mrb[0].mxu0
    %v4463 = vpop.f32.mrb[0].mxu0
    %v4464 = vadd.f32 %v302, %v4463
    %v4465 = vpop.f32.mrb[0].mxu0
    %4466 = vmatprep.mubr.bf16.mxu0 0
    %4467 = vmatmul.mubr.bf16.gmra.mrb[0].mxu0 %v4401
    %v4468 = vpop.f32.mrb[0].mxu0
    %v4469 = vadd.f32 %v302, %v4468
    %v4470 = vpop.f32.mrb[0].mxu0
    %v4471 = vpop.f32.mrb[0].mxu0
    %v4472 = vadd.f32 %v302, %v4471
    %v4473 = vpop.f32.mrb[0].mxu0
    %4474 = vmatprep.mubr.bf16.mxu0 0
    %4475 = vmatmul.mubr.bf16.gmra.mrb[0].mxu0 %v4404
    %v4476 = vpop.f32.mrb[0].mxu0
    %v4477 = vadd.f32 %v302, %v4476
    %v4478 = vpop.f32.mrb[0].mxu0
    %v4479 = vpop.f32.mrb[0].mxu0
    %v4480 = vadd.f32 %v302, %v4479
    %v4481 = vpop.f32.mrb[0].mxu0
    %4482 = vdwg.mxu0
    %v4483 = vsel %vm811, %v4453, -inf
    %4484 = vmax.xlane.f32.xlu0 %v4483
    %v4485 = vpop.xlane.xlu0 %4484
    %v4486 = vsel %vm811, %v4456, -inf
    %4487 = vmax.xlane.f32.xlu0 %v4486
    %v4488 = vpop.xlane.xlu0 %4487
    %v4489 = vsel %vm811, %v4461, -inf
    %4490 = vmax.xlane.f32.xlu0 %v4489
    %v4491 = vpop.xlane.xlu0 %4490
    %v4492 = vsel %vm811, %v4464, -inf
    %4493 = vmax.xlane.f32.xlu0 %v4492
    %v4494 = vpop.xlane.xlu0 %4493
    %v4495 = vsel %vm811, %v4469, -inf
    %4496 = vmax.xlane.f32.xlu0 %v4495
    %v4497 = vpop.xlane.xlu0 %4496
    %v4498 = vsel %vm811, %v4472, -inf
    %4499 = vmax.xlane.f32.xlu0 %v4498
    %v4500 = vpop.xlane.xlu0 %4499
    %v4501 = vsel %vm811, %v4477, -inf
    %4502 = vmax.xlane.f32.xlu0 %v4501
    %v4503 = vpop.xlane.xlu0 %4502
    %v4504 = vsel %vm811, %v4480, -inf
    %4505 = vmax.xlane.f32.xlu0 %v4504
    %v4506 = vpop.xlane.xlu0 %4505
    %v4507 = vsub.f32 %v4453, %v4485
    %v4508 = vsub.f32 %v4456, %v4488
    %v4509 = vsub.f32 %v4461, %v4491
    %v4510 = vsub.f32 %v4464, %v4494
    %v4511 = vsub.f32 %v4469, %v4497
    %v4512 = vsub.f32 %v4472, %v4500
    %v4513 = vsub.f32 %v4477, %v4503
    %v4514 = vsub.f32 %v4480, %v4506
    %v4515 = vmul.f32 %v4507, 1.442695
    %v4516 = vpow.pop %v4515
    %v4517 = vmul.f32 %v4508, 1.442695
    %v4518 = vpow.pop %v4517
    %v4519 = vmul.f32 %v4509, 1.442695
    %v4520 = vpow.pop %v4519
    %v4521 = vmul.f32 %v4510, 1.442695
    %v4522 = vpow.pop %v4521
    %v4523 = vmul.f32 %v4511, 1.442695
    %v4524 = vpow.pop %v4523
    %v4525 = vmul.f32 %v4512, 1.442695
    %v4526 = vpow.pop %v4525
    %v4527 = vmul.f32 %v4513, 1.442695
    %v4528 = vpow.pop %v4527
    %v4529 = vmul.f32 %v4514, 1.442695
    %v4530 = vpow.pop %v4529
    %v4531 = vsel %vm811, %v4516, 0.0
    %4532 = vadd.xlane.f32.xlu0 %v4531
    %v4533 = vpop.xlane.xlu0 %4532
    %v4534 = vsel %vm811, %v4518, 0.0
    %4535 = vadd.xlane.f32.xlu0 %v4534
    %v4536 = vpop.xlane.xlu0 %4535
    %v4537 = vsel %vm811, %v4520, 0.0
    %4538 = vadd.xlane.f32.xlu0 %v4537
    %v4539 = vpop.xlane.xlu0 %4538
    %v4540 = vsel %vm811, %v4522, 0.0
    %4541 = vadd.xlane.f32.xlu0 %v4540
    %v4542 = vpop.xlane.xlu0 %4541
    %v4543 = vsel %vm811, %v4524, 0.0
    %4544 = vadd.xlane.f32.xlu0 %v4543
    %v4545 = vpop.xlane.xlu0 %4544
    %v4546 = vsel %vm811, %v4526, 0.0
    %4547 = vadd.xlane.f32.xlu0 %v4546
    %v4548 = vpop.xlane.xlu0 %4547
    %v4549 = vsel %vm811, %v4528, 0.0
    %4550 = vadd.xlane.f32.xlu0 %v4549
    %v4551 = vpop.xlane.xlu0 %4550
    %v4552 = vsel %vm811, %v4530, 0.0
    %4553 = vadd.xlane.f32.xlu0 %v4552
    %v4554 = vpop.xlane.xlu0 %4553
    %v4555 = vpack.c.bf16 %v4518, %v4516
    %v4556 = vpack.c.bf16 %v4522, %v4520
    %v4557 = vpack.c.bf16 %v4526, %v4524
    %v4558 = vpack.c.bf16 %v4530, %v4528
    %4559 = vrot.lane.b32.xlu0 %v4378, 64
    %v4560 = vpop.permute.xlu0 %4559
    %4561 = vrot.lane.b32.xlu0 %v4379, 64
    %v4562 = vpop.permute.xlu0 %4561
    %4563 = vrot.lane.b32.xlu0 %v4380, 64
    %v4564 = vpop.permute.xlu0 %4563
    %4565 = vrot.lane.b32.xlu0 %v4381, 64
    %v4566 = vpop.permute.xlu0 %4565
    %v4572 = vsel %vm811, %v4555, 0
    %v4575 = vsel %vm811, %v4556, 0
    %v4578 = vsel %vm811, %v4557, 0
    %v4581 = vsel %vm811, %v4558, 0
    %4583 = vmatprep.subr.bf16.mxu0 0
    %4584 = vmatpush1.bf16.msra.mxu0 %v4560
    %4585 = vmatprep.subr.bf16.mxu0 0
    %4586 = vmatpush1.bf16.msra.mxu0 %v4562
    %4587 = vmatprep.subr.bf16.mxu0 0
    %4588 = vmatpush1.bf16.msra.mxu0 %v4564
    %4589 = vmatprep.subr.bf16.mxu0 0
    %4590 = vmatpush1.bf16.msra.mxu0 %v4566
    %4591 = vmatprep.subr.bf16.mxu0 0
    %4592 = vmatpush1.bf16.msra.mxu0 0
    %4593 = vmatprep.subr.bf16.mxu0 0
    %4594 = vmatpush1.bf16.msra.mxu0 0
    %4595 = vmatprep.subr.bf16.mxu0 0
    %4596 = vmatpush1.bf16.msra.mxu0 0
    %4597 = vmatprep.subr.bf16.mxu0 0
    %4598 = vmatpush1.bf16.msra.mxu0 0
    %4599 = vmatprep.subr.bf16.mxu0 0
    %4600 = vmatpush1.bf16.msra.mxu0 0
    %4601 = vmatprep.subr.bf16.mxu0 0
    %4602 = vmatpush1.bf16.msra.mxu0 0
    %4603 = vmatprep.subr.bf16.mxu0 0
    %4604 = vmatpush1.bf16.msra.mxu0 0
    %4605 = vmatprep.subr.bf16.mxu0 0
    %4606 = vmatpush1.bf16.msra.mxu0 0
    %4607 = vmatprep.subr.bf16.mxu0 0
    %4608 = vmatpush1.bf16.msra.mxu0 0
    %4609 = vmatprep.subr.bf16.mxu0 0
    %4610 = vmatpush1.bf16.msra.mxu0 0
    %4611 = vmatprep.subr.bf16.mxu0 0
    %4612 = vmatpush1.bf16.msra.mxu0 0
    %4613 = vmatprep.subr.bf16.mxu0 0
    %4614 = vmatpush1.bf16.msra.mxu0 0
    %4615 = vmatprep.mubr.bf16.mxu0 0
    %4616 = vmatmul.mubr.bf16.gmra.mrb[0].mxu0 %v4572
    %v4617 = vpop.f32.mrb[0].mxu0
    %v4618 = vadd.f32 0.0, %v4617
    %v4619 = vpop.f32.mrb[0].mxu0
    %v4620 = vpop.f32.mrb[0].mxu0
    %v4621 = vadd.f32 0.0, %v4620
    %v4622 = vpop.f32.mrb[0].mxu0
    %4623 = vmatprep.mubr.bf16.mxu0 0
    %4624 = vmatmul.mubr.bf16.gmra.mrb[0].mxu0 %v4575
    %v4625 = vpop.f32.mrb[0].mxu0
    %v4626 = vadd.f32 0.0, %v4625
    %v4627 = vpop.f32.mrb[0].mxu0
    %v4628 = vpop.f32.mrb[0].mxu0
    %v4629 = vadd.f32 0.0, %v4628
    %v4630 = vpop.f32.mrb[0].mxu0
    %4631 = vmatprep.mubr.bf16.mxu0 0
    %4632 = vmatmul.mubr.bf16.gmra.mrb[0].mxu0 %v4578
    %v4633 = vpop.f32.mrb[0].mxu0
    %v4634 = vadd.f32 0.0, %v4633
    %v4635 = vpop.f32.mrb[0].mxu0
    %v4636 = vpop.f32.mrb[0].mxu0
    %v4637 = vadd.f32 0.0, %v4636
    %v4638 = vpop.f32.mrb[0].mxu0
    %4639 = vmatprep.mubr.bf16.mxu0 0
    %4640 = vmatmul.mubr.bf16.gmra.mrb[0].mxu0 %v4581
    %v4641 = vpop.f32.mrb[0].mxu0
    %v4642 = vadd.f32 0.0, %v4641
    %v4643 = vpop.f32.mrb[0].mxu0
    %v4644 = vpop.f32.mrb[0].mxu0
    %v4645 = vadd.f32 0.0, %v4644
    %v4646 = vpop.f32.mrb[0].mxu0
    %4647 = vdwg.mxu0
    %v4648 = vrcp.pop %v4533
    %v4649 = vrcp.pop %v4536
    %v4650 = vrcp.pop %v4539
    %v4651 = vrcp.pop %v4542
    %v4652 = vrcp.pop %v4545
    %v4653 = vrcp.pop %v4548
    %v4654 = vrcp.pop %v4551
    %v4655 = vrcp.pop %v4554
    %v4656 = vmul.f32 %v4618, %v4648
    %v4657 = vmul.f32 %v4621, %v4649
    %v4658 = vmul.f32 %v4626, %v4650
    %v4659 = vmul.f32 %v4629, %v4651
    %v4660 = vmul.f32 %v4634, %v4652
    %v4661 = vmul.f32 %v4637, %v4653
    %v4662 = vmul.f32 %v4642, %v4654
    %v4663 = vmul.f32 %v4645, %v4655
    %v4664 = vpack.c.bf16 %v4657, %v4656
    %v4665 = vpack.c.bf16 %v4659, %v4658
    %v4666 = vpack.c.bf16 %v4661, %v4660
    %v4667 = vpack.c.bf16 %v4663, %v4662
    %4668 = vrot.lane.b32.xlu0 %v4378, 120
    %v4669 = vpop.permute.xlu0 %4668
    %4670 = vrot.lane.b32.xlu0 %v4379, 120
    %v4671 = vpop.permute.xlu0 %4670
    %4672 = vrot.lane.b32.xlu0 %v4380, 120
    %v4673 = vpop.permute.xlu0 %4672
    %4674 = vrot.lane.b32.xlu0 %v4381, 120
    %v4675 = vpop.permute.xlu0 %4674
    %4676 = vrot.lane.b32.xlu0 %v4378, 88
    %v4677 = vpop.permute.xlu0 %4676
    %4678 = vrot.lane.b32.xlu0 %v4379, 88
    %v4679 = vpop.permute.xlu0 %4678
    %4680 = vrot.lane.b32.xlu0 %v4380, 88
    %v4681 = vpop.permute.xlu0 %4680
    %4682 = vrot.lane.b32.xlu0 %v4381, 88
    %v4683 = vpop.permute.xlu0 %4682
    %v4685 = vsel %vm721, %v4669, 0
    %v4688 = vsel %vm721, %v4671, 0
    %v4691 = vsel %vm721, %v4673, 0
    %v4694 = vsel %vm721, %v4675, 0
    %v4697 = vsel %vm721, %v4677, 0
    %v4700 = vsel %vm721, %v4679, 0
    %v4703 = vsel %vm721, %v4681, 0
    %v4706 = vsel %vm721, %v4683, 0
    %4708 = vmatprep.subr.bf16.mxu0 0
    %4709 = vmatpush1.bf16.xpose.msra.mxu0 %v4697
    %4710 = vmatprep.subr.bf16.mxu0 0
    %4711 = vmatpush1.bf16.xpose.msra.mxu0 %v4700
    %4712 = vmatprep.subr.bf16.mxu0 0
    %4713 = vmatpush1.bf16.xpose.msra.mxu0 %v4703
    %4714 = vmatprep.subr.bf16.mxu0 0
    %4715 = vmatpush1.bf16.xpose.msra.mxu0 %v4706
    %4716 = vmatprep.subr.bf16.mxu0 0
    %4717 = vmatpush1.bf16.xpose.msra.mxu0 0
    %4718 = vmatprep.subr.bf16.mxu0 0
    %4719 = vmatpush1.bf16.xpose.msra.mxu0 0
    %4720 = vmatprep.subr.bf16.mxu0 0
    %4721 = vmatpush1.bf16.xpose.msra.mxu0 0
    %4722 = vmatprep.subr.bf16.mxu0 0
    %4723 = vmatpush1.bf16.xpose.msra.mxu0 0
    %4724 = vmatprep.subr.bf16.mxu0 0
    %4725 = vmatpush1.bf16.xpose.msra.mxu0 0
    %4726 = vmatprep.subr.bf16.mxu0 0
    %4727 = vmatpush1.bf16.xpose.msra.mxu0 0
    %4728 = vmatprep.subr.bf16.mxu0 0
    %4729 = vmatpush1.bf16.xpose.msra.mxu0 0
    %4730 = vmatprep.subr.bf16.mxu0 0
    %4731 = vmatpush1.bf16.xpose.msra.mxu0 0
    %4732 = vmatprep.subr.bf16.mxu0 0
    %4733 = vmatpush1.bf16.xpose.msra.mxu0 0
    %4734 = vmatprep.subr.bf16.mxu0 0
    %4735 = vmatpush1.bf16.xpose.msra.mxu0 0
    %4736 = vmatprep.subr.bf16.mxu0 0
    %4737 = vmatpush1.bf16.xpose.msra.mxu0 0
    %4738 = vmatprep.subr.bf16.mxu0 0
    %4739 = vmatpush1.bf16.xpose.msra.mxu0 0
    %4740 = vmatprep.mubr.bf16.mxu0 0
    %4741 = vmatmul.mubr.bf16.gmra.mrb[0].mxu0 %v4685
    %v4742 = vpop.f32.mrb[0].mxu0
    %v4743 = vadd.f32 %v302, %v4742
    %v4744 = vpop.f32.mrb[0].mxu0
    %v4745 = vpop.f32.mrb[0].mxu0
    %v4746 = vadd.f32 %v302, %v4745
    %v4747 = vpop.f32.mrb[0].mxu0
    %4748 = vmatprep.mubr.bf16.mxu0 0
    %4749 = vmatmul.mubr.bf16.gmra.mrb[0].mxu0 %v4688
    %v4750 = vpop.f32.mrb[0].mxu0
    %v4751 = vadd.f32 %v302, %v4750
    %v4752 = vpop.f32.mrb[0].mxu0
    %v4753 = vpop.f32.mrb[0].mxu0
    %v4754 = vadd.f32 %v302, %v4753
    %v4755 = vpop.f32.mrb[0].mxu0
    %4756 = vmatprep.mubr.bf16.mxu0 0
    %4757 = vmatmul.mubr.bf16.gmra.mrb[0].mxu0 %v4691
    %v4758 = vpop.f32.mrb[0].mxu0
    %v4759 = vadd.f32 %v302, %v4758
    %v4760 = vpop.f32.mrb[0].mxu0
    %v4761 = vpop.f32.mrb[0].mxu0
    %v4762 = vadd.f32 %v302, %v4761
    %v4763 = vpop.f32.mrb[0].mxu0
    %4764 = vmatprep.mubr.bf16.mxu0 0
    %4765 = vmatmul.mubr.bf16.gmra.mrb[0].mxu0 %v4694
    %v4766 = vpop.f32.mrb[0].mxu0
    %v4767 = vadd.f32 %v302, %v4766
    %v4768 = vpop.f32.mrb[0].mxu0
    %v4769 = vpop.f32.mrb[0].mxu0
    %v4770 = vadd.f32 %v302, %v4769
    %v4771 = vpop.f32.mrb[0].mxu0
    %4772 = vdwg.mxu0
    %v4773 = vsel %vm811, %v4743, -inf
    %4774 = vmax.xlane.f32.xlu0 %v4773
    %v4775 = vpop.xlane.xlu0 %4774
    %v4776 = vsel %vm811, %v4746, -inf
    %4777 = vmax.xlane.f32.xlu0 %v4776
    %v4778 = vpop.xlane.xlu0 %4777
    %v4779 = vsel %vm811, %v4751, -inf
    %4780 = vmax.xlane.f32.xlu0 %v4779
    %v4781 = vpop.xlane.xlu0 %4780
    %v4782 = vsel %vm811, %v4754, -inf
    %4783 = vmax.xlane.f32.xlu0 %v4782
    %v4784 = vpop.xlane.xlu0 %4783
    %v4785 = vsel %vm811, %v4759, -inf
    %4786 = vmax.xlane.f32.xlu0 %v4785
    %v4787 = vpop.xlane.xlu0 %4786
    %v4788 = vsel %vm811, %v4762, -inf
    %4789 = vmax.xlane.f32.xlu0 %v4788
    %v4790 = vpop.xlane.xlu0 %4789
    %v4791 = vsel %vm811, %v4767, -inf
    %4792 = vmax.xlane.f32.xlu0 %v4791
    %v4793 = vpop.xlane.xlu0 %4792
    %v4794 = vsel %vm811, %v4770, -inf
    %4795 = vmax.xlane.f32.xlu0 %v4794
    %v4796 = vpop.xlane.xlu0 %4795
    %v4797 = vsub.f32 %v4743, %v4775
    %v4798 = vsub.f32 %v4746, %v4778
    %v4799 = vsub.f32 %v4751, %v4781
    %v4800 = vsub.f32 %v4754, %v4784
    %v4801 = vsub.f32 %v4759, %v4787
    %v4802 = vsub.f32 %v4762, %v4790
    %v4803 = vsub.f32 %v4767, %v4793
    %v4804 = vsub.f32 %v4770, %v4796
    %v4805 = vmul.f32 %v4797, 1.442695
    %v4806 = vpow.pop %v4805
    %v4807 = vmul.f32 %v4798, 1.442695
    %v4808 = vpow.pop %v4807
    %v4809 = vmul.f32 %v4799, 1.442695
    %v4810 = vpow.pop %v4809
    %v4811 = vmul.f32 %v4800, 1.442695
    %v4812 = vpow.pop %v4811
    %v4813 = vmul.f32 %v4801, 1.442695
    %v4814 = vpow.pop %v4813
    %v4815 = vmul.f32 %v4802, 1.442695
    %v4816 = vpow.pop %v4815
    %v4817 = vmul.f32 %v4803, 1.442695
    %v4818 = vpow.pop %v4817
    %v4819 = vmul.f32 %v4804, 1.442695
    %v4820 = vpow.pop %v4819
    %v4821 = vsel %vm811, %v4806, 0.0
    %4822 = vadd.xlane.f32.xlu0 %v4821
    %v4823 = vpop.xlane.xlu0 %4822
    %v4824 = vsel %vm811, %v4808, 0.0
    %4825 = vadd.xlane.f32.xlu0 %v4824
    %v4826 = vpop.xlane.xlu0 %4825
    %v4827 = vsel %vm811, %v4810, 0.0
    %4828 = vadd.xlane.f32.xlu0 %v4827
    %v4829 = vpop.xlane.xlu0 %4828
    %v4830 = vsel %vm811, %v4812, 0.0
    %4831 = vadd.xlane.f32.xlu0 %v4830
    %v4832 = vpop.xlane.xlu0 %4831
    %v4833 = vsel %vm811, %v4814, 0.0
    %4834 = vadd.xlane.f32.xlu0 %v4833
    %v4835 = vpop.xlane.xlu0 %4834
    %v4836 = vsel %vm811, %v4816, 0.0
    %4837 = vadd.xlane.f32.xlu0 %v4836
    %v4838 = vpop.xlane.xlu0 %4837
    %v4839 = vsel %vm811, %v4818, 0.0
    %4840 = vadd.xlane.f32.xlu0 %v4839
    %v4841 = vpop.xlane.xlu0 %4840
    %v4842 = vsel %vm811, %v4820, 0.0
    %4843 = vadd.xlane.f32.xlu0 %v4842
    %v4844 = vpop.xlane.xlu0 %4843
    %v4845 = vpack.c.bf16 %v4808, %v4806
    %v4846 = vpack.c.bf16 %v4812, %v4810
    %v4847 = vpack.c.bf16 %v4816, %v4814
    %v4848 = vpack.c.bf16 %v4820, %v4818
    %4849 = vrot.lane.b32.xlu0 %v4378, 56
    %v4850 = vpop.permute.xlu0 %4849
    %4851 = vrot.lane.b32.xlu0 %v4379, 56
    %v4852 = vpop.permute.xlu0 %4851
    %4853 = vrot.lane.b32.xlu0 %v4380, 56
    %v4854 = vpop.permute.xlu0 %4853
    %4855 = vrot.lane.b32.xlu0 %v4381, 56
    %v4856 = vpop.permute.xlu0 %4855
    %v4862 = vsel %vm811, %v4845, 0
    %v4865 = vsel %vm811, %v4846, 0
    %v4868 = vsel %vm811, %v4847, 0
    %v4871 = vsel %vm811, %v4848, 0
    %4873 = vmatprep.subr.bf16.mxu0 0
    %4874 = vmatpush1.bf16.msra.mxu0 %v4850
    %4875 = vmatprep.subr.bf16.mxu0 0
    %4876 = vmatpush1.bf16.msra.mxu0 %v4852
    %4877 = vmatprep.subr.bf16.mxu0 0
    %4878 = vmatpush1.bf16.msra.mxu0 %v4854
    %4879 = vmatprep.subr.bf16.mxu0 0
    %4880 = vmatpush1.bf16.msra.mxu0 %v4856
    %4881 = vmatprep.subr.bf16.mxu0 0
    %4882 = vmatpush1.bf16.msra.mxu0 0
    %4883 = vmatprep.subr.bf16.mxu0 0
    %4884 = vmatpush1.bf16.msra.mxu0 0
    %4885 = vmatprep.subr.bf16.mxu0 0
    %4886 = vmatpush1.bf16.msra.mxu0 0
    %4887 = vmatprep.subr.bf16.mxu0 0
    %4888 = vmatpush1.bf16.msra.mxu0 0
    %4889 = vmatprep.subr.bf16.mxu0 0
    %4890 = vmatpush1.bf16.msra.mxu0 0
    %4891 = vmatprep.subr.bf16.mxu0 0
    %4892 = vmatpush1.bf16.msra.mxu0 0
    %4893 = vmatprep.subr.bf16.mxu0 0
    %4894 = vmatpush1.bf16.msra.mxu0 0
    %4895 = vmatprep.subr.bf16.mxu0 0
    %4896 = vmatpush1.bf16.msra.mxu0 0
    %4897 = vmatprep.subr.bf16.mxu0 0
    %4898 = vmatpush1.bf16.msra.mxu0 0
    %4899 = vmatprep.subr.bf16.mxu0 0
    %4900 = vmatpush1.bf16.msra.mxu0 0
    %4901 = vmatprep.subr.bf16.mxu0 0
    %4902 = vmatpush1.bf16.msra.mxu0 0
    %4903 = vmatprep.subr.bf16.mxu0 0
    %4904 = vmatpush1.bf16.msra.mxu0 0
    %4905 = vmatprep.mubr.bf16.mxu0 0
    %4906 = vmatmul.mubr.bf16.gmra.mrb[0].mxu0 %v4862
    %v4907 = vpop.f32.mrb[0].mxu0
    %v4908 = vadd.f32 0.0, %v4907
    %v4909 = vpop.f32.mrb[0].mxu0
    %v4910 = vpop.f32.mrb[0].mxu0
    %v4911 = vadd.f32 0.0, %v4910
    %v4912 = vpop.f32.mrb[0].mxu0
    %4913 = vmatprep.mubr.bf16.mxu0 0
    %4914 = vmatmul.mubr.bf16.gmra.mrb[0].mxu0 %v4865
    %v4915 = vpop.f32.mrb[0].mxu0
    %v4916 = vadd.f32 0.0, %v4915
    %v4917 = vpop.f32.mrb[0].mxu0
    %v4918 = vpop.f32.mrb[0].mxu0
    %v4919 = vadd.f32 0.0, %v4918
    %v4920 = vpop.f32.mrb[0].mxu0
    %4921 = vmatprep.mubr.bf16.mxu0 0
    %4922 = vmatmul.mubr.bf16.gmra.mrb[0].mxu0 %v4868
    %v4923 = vpop.f32.mrb[0].mxu0
    %v4924 = vadd.f32 0.0, %v4923
    %v4925 = vpop.f32.mrb[0].mxu0
    %v4926 = vpop.f32.mrb[0].mxu0
    %v4927 = vadd.f32 0.0, %v4926
    %v4928 = vpop.f32.mrb[0].mxu0
    %4929 = vmatprep.mubr.bf16.mxu0 0
    %4930 = vmatmul.mubr.bf16.gmra.mrb[0].mxu0 %v4871
    %v4931 = vpop.f32.mrb[0].mxu0
    %v4932 = vadd.f32 0.0, %v4931
    %v4933 = vpop.f32.mrb[0].mxu0
    %v4934 = vpop.f32.mrb[0].mxu0
    %v4935 = vadd.f32 0.0, %v4934
    %v4936 = vpop.f32.mrb[0].mxu0
    %4937 = vdwg.mxu0
    %v4938 = vrcp.pop %v4823
    %v4939 = vrcp.pop %v4826
    %v4940 = vrcp.pop %v4829
    %v4941 = vrcp.pop %v4832
    %v4942 = vrcp.pop %v4835
    %v4943 = vrcp.pop %v4838
    %v4944 = vrcp.pop %v4841
    %v4945 = vrcp.pop %v4844
    %v4946 = vmul.f32 %v4908, %v4938
    %v4947 = vmul.f32 %v4911, %v4939
    %v4948 = vmul.f32 %v4916, %v4940
    %v4949 = vmul.f32 %v4919, %v4941
    %v4950 = vmul.f32 %v4924, %v4942
    %v4951 = vmul.f32 %v4927, %v4943
    %v4952 = vmul.f32 %v4932, %v4944
    %v4953 = vmul.f32 %v4935, %v4945
    %v4954 = vpack.c.bf16 %v4947, %v4946
    %v4955 = vpack.c.bf16 %v4949, %v4948
    %v4956 = vpack.c.bf16 %v4951, %v4950
    %v4957 = vpack.c.bf16 %v4953, %v4952
    %4958 = vrot.lane.b32.xlu0 %v4378, 112
    %v4959 = vpop.permute.xlu0 %4958
    %4960 = vrot.lane.b32.xlu0 %v4379, 112
    %v4961 = vpop.permute.xlu0 %4960
    %4962 = vrot.lane.b32.xlu0 %v4380, 112
    %v4963 = vpop.permute.xlu0 %4962
    %4964 = vrot.lane.b32.xlu0 %v4381, 112
    %v4965 = vpop.permute.xlu0 %4964
    %4966 = vrot.lane.b32.xlu0 %v4378, 80
    %v4967 = vpop.permute.xlu0 %4966
    %4968 = vrot.lane.b32.xlu0 %v4379, 80
    %v4969 = vpop.permute.xlu0 %4968
    %4970 = vrot.lane.b32.xlu0 %v4380, 80
    %v4971 = vpop.permute.xlu0 %4970
    %4972 = vrot.lane.b32.xlu0 %v4381, 80
    %v4973 = vpop.permute.xlu0 %4972
    %v4975 = vsel %vm721, %v4959, 0
    %v4978 = vsel %vm721, %v4961, 0
    %v4981 = vsel %vm721, %v4963, 0
    %v4984 = vsel %vm721, %v4965, 0
    %v4987 = vsel %vm721, %v4967, 0
    %v4990 = vsel %vm721, %v4969, 0
    %v4993 = vsel %vm721, %v4971, 0
    %v4996 = vsel %vm721, %v4973, 0
    %4998 = vmatprep.subr.bf16.mxu0 0
    %4999 = vmatpush1.bf16.xpose.msra.mxu0 %v4987
    %5000 = vmatprep.subr.bf16.mxu0 0
    %5001 = vmatpush1.bf16.xpose.msra.mxu0 %v4990
    %5002 = vmatprep.subr.bf16.mxu0 0
    %5003 = vmatpush1.bf16.xpose.msra.mxu0 %v4993
    %5004 = vmatprep.subr.bf16.mxu0 0
    %5005 = vmatpush1.bf16.xpose.msra.mxu0 %v4996
    %5006 = vmatprep.subr.bf16.mxu0 0
    %5007 = vmatpush1.bf16.xpose.msra.mxu0 0
    %5008 = vmatprep.subr.bf16.mxu0 0
    %5009 = vmatpush1.bf16.xpose.msra.mxu0 0
    %5010 = vmatprep.subr.bf16.mxu0 0
    %5011 = vmatpush1.bf16.xpose.msra.mxu0 0
    %5012 = vmatprep.subr.bf16.mxu0 0
    %5013 = vmatpush1.bf16.xpose.msra.mxu0 0
    %5014 = vmatprep.subr.bf16.mxu0 0
    %5015 = vmatpush1.bf16.xpose.msra.mxu0 0
    %5016 = vmatprep.subr.bf16.mxu0 0
    %5017 = vmatpush1.bf16.xpose.msra.mxu0 0
    %5018 = vmatprep.subr.bf16.mxu0 0
    %5019 = vmatpush1.bf16.xpose.msra.mxu0 0
    %5020 = vmatprep.subr.bf16.mxu0 0
    %5021 = vmatpush1.bf16.xpose.msra.mxu0 0
    %5022 = vmatprep.subr.bf16.mxu0 0
    %5023 = vmatpush1.bf16.xpose.msra.mxu0 0
    %5024 = vmatprep.subr.bf16.mxu0 0
    %5025 = vmatpush1.bf16.xpose.msra.mxu0 0
    %5026 = vmatprep.subr.bf16.mxu0 0
    %5027 = vmatpush1.bf16.xpose.msra.mxu0 0
    %5028 = vmatprep.subr.bf16.mxu0 0
    %5029 = vmatpush1.bf16.xpose.msra.mxu0 0
    %5030 = vmatprep.mubr.bf16.mxu0 0
    %5031 = vmatmul.mubr.bf16.gmra.mrb[0].mxu0 %v4975
    %v5032 = vpop.f32.mrb[0].mxu0
    %v5033 = vadd.f32 %v302, %v5032
    %v5034 = vpop.f32.mrb[0].mxu0
    %v5035 = vpop.f32.mrb[0].mxu0
    %v5036 = vadd.f32 %v302, %v5035
    %v5037 = vpop.f32.mrb[0].mxu0
    %5038 = vmatprep.mubr.bf16.mxu0 0
    %5039 = vmatmul.mubr.bf16.gmra.mrb[0].mxu0 %v4978
    %v5040 = vpop.f32.mrb[0].mxu0
    %v5041 = vadd.f32 %v302, %v5040
    %v5042 = vpop.f32.mrb[0].mxu0
    %v5043 = vpop.f32.mrb[0].mxu0
    %v5044 = vadd.f32 %v302, %v5043
    %v5045 = vpop.f32.mrb[0].mxu0
    %5046 = vmatprep.mubr.bf16.mxu0 0
    %5047 = vmatmul.mubr.bf16.gmra.mrb[0].mxu0 %v4981
    %v5048 = vpop.f32.mrb[0].mxu0
    %v5049 = vadd.f32 %v302, %v5048
    %v5050 = vpop.f32.mrb[0].mxu0
    %v5051 = vpop.f32.mrb[0].mxu0
    %v5052 = vadd.f32 %v302, %v5051
    %v5053 = vpop.f32.mrb[0].mxu0
    %5054 = vmatprep.mubr.bf16.mxu0 0
    %5055 = vmatmul.mubr.bf16.gmra.mrb[0].mxu0 %v4984
    %v5056 = vpop.f32.mrb[0].mxu0
    %v5057 = vadd.f32 %v302, %v5056
    %v5058 = vpop.f32.mrb[0].mxu0
    %v5059 = vpop.f32.mrb[0].mxu0
    %v5060 = vadd.f32 %v302, %v5059
    %v5061 = vpop.f32.mrb[0].mxu0
    %5062 = vdwg.mxu0
    %v5063 = vsel %vm811, %v5033, -inf
    %5064 = vmax.xlane.f32.xlu0 %v5063
    %v5065 = vpop.xlane.xlu0 %5064
    %v5066 = vsel %vm811, %v5036, -inf
    %5067 = vmax.xlane.f32.xlu0 %v5066
    %v5068 = vpop.xlane.xlu0 %5067
    %v5069 = vsel %vm811, %v5041, -inf
    %5070 = vmax.xlane.f32.xlu0 %v5069
    %v5071 = vpop.xlane.xlu0 %5070
    %v5072 = vsel %vm811, %v5044, -inf
    %5073 = vmax.xlane.f32.xlu0 %v5072
    %v5074 = vpop.xlane.xlu0 %5073
    %v5075 = vsel %vm811, %v5049, -inf
    %5076 = vmax.xlane.f32.xlu0 %v5075
    %v5077 = vpop.xlane.xlu0 %5076
    %v5078 = vsel %vm811, %v5052, -inf
    %5079 = vmax.xlane.f32.xlu0 %v5078
    %v5080 = vpop.xlane.xlu0 %5079
    %v5081 = vsel %vm811, %v5057, -inf
    %5082 = vmax.xlane.f32.xlu0 %v5081
    %v5083 = vpop.xlane.xlu0 %5082
    %v5084 = vsel %vm811, %v5060, -inf
    %5085 = vmax.xlane.f32.xlu0 %v5084
    %v5086 = vpop.xlane.xlu0 %5085
    %v5087 = vsub.f32 %v5033, %v5065
    %v5088 = vsub.f32 %v5036, %v5068
    %v5089 = vsub.f32 %v5041, %v5071
    %v5090 = vsub.f32 %v5044, %v5074
    %v5091 = vsub.f32 %v5049, %v5077
    %v5092 = vsub.f32 %v5052, %v5080
    %v5093 = vsub.f32 %v5057, %v5083
    %v5094 = vsub.f32 %v5060, %v5086
    %v5095 = vmul.f32 %v5087, 1.442695
    %v5096 = vpow.pop %v5095
    %v5097 = vmul.f32 %v5088, 1.442695
    %v5098 = vpow.pop %v5097
    %v5099 = vmul.f32 %v5089, 1.442695
    %v5100 = vpow.pop %v5099
    %v5101 = vmul.f32 %v5090, 1.442695
    %v5102 = vpow.pop %v5101
    %v5103 = vmul.f32 %v5091, 1.442695
    %v5104 = vpow.pop %v5103
    %v5105 = vmul.f32 %v5092, 1.442695
    %v5106 = vpow.pop %v5105
    %v5107 = vmul.f32 %v5093, 1.442695
    %v5108 = vpow.pop %v5107
    %v5109 = vmul.f32 %v5094, 1.442695
    %v5110 = vpow.pop %v5109
    %v5111 = vsel %vm811, %v5096, 0.0
    %5112 = vadd.xlane.f32.xlu0 %v5111
    %v5113 = vpop.xlane.xlu0 %5112
    %v5114 = vsel %vm811, %v5098, 0.0
    %5115 = vadd.xlane.f32.xlu0 %v5114
    %v5116 = vpop.xlane.xlu0 %5115
    %v5117 = vsel %vm811, %v5100, 0.0
    %5118 = vadd.xlane.f32.xlu0 %v5117
    %v5119 = vpop.xlane.xlu0 %5118
    %v5120 = vsel %vm811, %v5102, 0.0
    %5121 = vadd.xlane.f32.xlu0 %v5120
    %v5122 = vpop.xlane.xlu0 %5121
    %v5123 = vsel %vm811, %v5104, 0.0
    %5124 = vadd.xlane.f32.xlu0 %v5123
    %v5125 = vpop.xlane.xlu0 %5124
    %v5126 = vsel %vm811, %v5106, 0.0
    %5127 = vadd.xlane.f32.xlu0 %v5126
    %v5128 = vpop.xlane.xlu0 %5127
    %v5129 = vsel %vm811, %v5108, 0.0
    %5130 = vadd.xlane.f32.xlu0 %v5129
    %v5131 = vpop.xlane.xlu0 %5130
    %v5132 = vsel %vm811, %v5110, 0.0
    %5133 = vadd.xlane.f32.xlu0 %v5132
    %v5134 = vpop.xlane.xlu0 %5133
    %v5135 = vpack.c.bf16 %v5098, %v5096
    %v5136 = vpack.c.bf16 %v5102, %v5100
    %v5137 = vpack.c.bf16 %v5106, %v5104
    %v5138 = vpack.c.bf16 %v5110, %v5108
    %5139 = vrot.lane.b32.xlu0 %v4378, 48
    %v5140 = vpop.permute.xlu0 %5139
    %5141 = vrot.lane.b32.xlu0 %v4379, 48
    %v5142 = vpop.permute.xlu0 %5141
    %5143 = vrot.lane.b32.xlu0 %v4380, 48
    %v5144 = vpop.permute.xlu0 %5143
    %5145 = vrot.lane.b32.xlu0 %v4381, 48
    %v5146 = vpop.permute.xlu0 %5145
    %v5152 = vsel %vm811, %v5135, 0
    %v5155 = vsel %vm811, %v5136, 0
    %v5158 = vsel %vm811, %v5137, 0
    %v5161 = vsel %vm811, %v5138, 0
    %5163 = vmatprep.subr.bf16.mxu0 0
    %5164 = vmatpush1.bf16.msra.mxu0 %v5140
    %5165 = vmatprep.subr.bf16.mxu0 0
    %5166 = vmatpush1.bf16.msra.mxu0 %v5142
    %5167 = vmatprep.subr.bf16.mxu0 0
    %5168 = vmatpush1.bf16.msra.mxu0 %v5144
    %5169 = vmatprep.subr.bf16.mxu0 0
    %5170 = vmatpush1.bf16.msra.mxu0 %v5146
    %5171 = vmatprep.subr.bf16.mxu0 0
    %5172 = vmatpush1.bf16.msra.mxu0 0
    %5173 = vmatprep.subr.bf16.mxu0 0
    %5174 = vmatpush1.bf16.msra.mxu0 0
    %5175 = vmatprep.subr.bf16.mxu0 0
    %5176 = vmatpush1.bf16.msra.mxu0 0
    %5177 = vmatprep.subr.bf16.mxu0 0
    %5178 = vmatpush1.bf16.msra.mxu0 0
    %5179 = vmatprep.subr.bf16.mxu0 0
    %5180 = vmatpush1.bf16.msra.mxu0 0
    %5181 = vmatprep.subr.bf16.mxu0 0
    %5182 = vmatpush1.bf16.msra.mxu0 0
    %5183 = vmatprep.subr.bf16.mxu0 0
    %5184 = vmatpush1.bf16.msra.mxu0 0
    %5185 = vmatprep.subr.bf16.mxu0 0
    %5186 = vmatpush1.bf16.msra.mxu0 0
    %5187 = vmatprep.subr.bf16.mxu0 0
    %5188 = vmatpush1.bf16.msra.mxu0 0
    %5189 = vmatprep.subr.bf16.mxu0 0
    %5190 = vmatpush1.bf16.msra.mxu0 0
    %5191 = vmatprep.subr.bf16.mxu0 0
    %5192 = vmatpush1.bf16.msra.mxu0 0
    %5193 = vmatprep.subr.bf16.mxu0 0
    %5194 = vmatpush1.bf16.msra.mxu0 0
    %5195 = vmatprep.mubr.bf16.mxu0 0
    %5196 = vmatmul.mubr.bf16.gmra.mrb[0].mxu0 %v5152
    %v5197 = vpop.f32.mrb[0].mxu0
    %v5198 = vadd.f32 0.0, %v5197
    %v5199 = vpop.f32.mrb[0].mxu0
    %v5200 = vpop.f32.mrb[0].mxu0
    %v5201 = vadd.f32 0.0, %v5200
    %v5202 = vpop.f32.mrb[0].mxu0
    %5203 = vmatprep.mubr.bf16.mxu0 0
    %5204 = vmatmul.mubr.bf16.gmra.mrb[0].mxu0 %v5155
    %v5205 = vpop.f32.mrb[0].mxu0
    %v5206 = vadd.f32 0.0, %v5205
    %v5207 = vpop.f32.mrb[0].mxu0
    %v5208 = vpop.f32.mrb[0].mxu0
    %v5209 = vadd.f32 0.0, %v5208
    %v5210 = vpop.f32.mrb[0].mxu0
    %5211 = vmatprep.mubr.bf16.mxu0 0
    %5212 = vmatmul.mubr.bf16.gmra.mrb[0].mxu0 %v5158
    %v5213 = vpop.f32.mrb[0].mxu0
    %v5214 = vadd.f32 0.0, %v5213
    %v5215 = vpop.f32.mrb[0].mxu0
    %v5216 = vpop.f32.mrb[0].mxu0
    %v5217 = vadd.f32 0.0, %v5216
    %v5218 = vpop.f32.mrb[0].mxu0
    %5219 = vmatprep.mubr.bf16.mxu0 0
    %5220 = vmatmul.mubr.bf16.gmra.mrb[0].mxu0 %v5161
    %v5221 = vpop.f32.mrb[0].mxu0
    %v5222 = vadd.f32 0.0, %v5221
    %v5223 = vpop.f32.mrb[0].mxu0
    %v5224 = vpop.f32.mrb[0].mxu0
    %v5225 = vadd.f32 0.0, %v5224
    %v5226 = vpop.f32.mrb[0].mxu0
    %5227 = vdwg.mxu0
    %v5228 = vrcp.pop %v5113
    %v5229 = vrcp.pop %v5116
    %v5230 = vrcp.pop %v5119
    %v5231 = vrcp.pop %v5122
    %v5232 = vrcp.pop %v5125
    %v5233 = vrcp.pop %v5128
    %v5234 = vrcp.pop %v5131
    %v5235 = vrcp.pop %v5134
    %v5236 = vmul.f32 %v5198, %v5228
    %v5237 = vmul.f32 %v5201, %v5229
    %v5238 = vmul.f32 %v5206, %v5230
    %v5239 = vmul.f32 %v5209, %v5231
    %v5240 = vmul.f32 %v5214, %v5232
    %v5241 = vmul.f32 %v5217, %v5233
    %v5242 = vmul.f32 %v5222, %v5234
    %v5243 = vmul.f32 %v5225, %v5235
    %v5244 = vpack.c.bf16 %v5237, %v5236
    %v5245 = vpack.c.bf16 %v5239, %v5238
    %v5246 = vpack.c.bf16 %v5241, %v5240
    %v5247 = vpack.c.bf16 %v5243, %v5242
    %5248 = vrot.lane.b32.xlu0 %v4378, 104
    %v5249 = vpop.permute.xlu0 %5248
    %5250 = vrot.lane.b32.xlu0 %v4379, 104
    %v5251 = vpop.permute.xlu0 %5250
    %5252 = vrot.lane.b32.xlu0 %v4380, 104
    %v5253 = vpop.permute.xlu0 %5252
    %5254 = vrot.lane.b32.xlu0 %v4381, 104
    %v5255 = vpop.permute.xlu0 %5254
    %5256 = vrot.lane.b32.xlu0 %v4378, 72
    %v5257 = vpop.permute.xlu0 %5256
    %5258 = vrot.lane.b32.xlu0 %v4379, 72
    %v5259 = vpop.permute.xlu0 %5258
    %5260 = vrot.lane.b32.xlu0 %v4380, 72
    %v5261 = vpop.permute.xlu0 %5260
    %5262 = vrot.lane.b32.xlu0 %v4381, 72
    %v5263 = vpop.permute.xlu0 %5262
    %v5265 = vsel %vm721, %v5249, 0
    %v5268 = vsel %vm721, %v5251, 0
    %v5271 = vsel %vm721, %v5253, 0
    %v5274 = vsel %vm721, %v5255, 0
    %v5277 = vsel %vm721, %v5257, 0
    %v5280 = vsel %vm721, %v5259, 0
    %v5283 = vsel %vm721, %v5261, 0
    %v5286 = vsel %vm721, %v5263, 0
    %5288 = vmatprep.subr.bf16.mxu0 0
    %5289 = vmatpush1.bf16.xpose.msra.mxu0 %v5277
    %5290 = vmatprep.subr.bf16.mxu0 0
    %5291 = vmatpush1.bf16.xpose.msra.mxu0 %v5280
    %5292 = vmatprep.subr.bf16.mxu0 0
    %5293 = vmatpush1.bf16.xpose.msra.mxu0 %v5283
    %5294 = vmatprep.subr.bf16.mxu0 0
    %5295 = vmatpush1.bf16.xpose.msra.mxu0 %v5286
    %5296 = vmatprep.subr.bf16.mxu0 0
    %5297 = vmatpush1.bf16.xpose.msra.mxu0 0
    %5298 = vmatprep.subr.bf16.mxu0 0
    %5299 = vmatpush1.bf16.xpose.msra.mxu0 0
    %5300 = vmatprep.subr.bf16.mxu0 0
    %5301 = vmatpush1.bf16.xpose.msra.mxu0 0
    %5302 = vmatprep.subr.bf16.mxu0 0
    %5303 = vmatpush1.bf16.xpose.msra.mxu0 0
    %5304 = vmatprep.subr.bf16.mxu0 0
    %5305 = vmatpush1.bf16.xpose.msra.mxu0 0
    %5306 = vmatprep.subr.bf16.mxu0 0
    %5307 = vmatpush1.bf16.xpose.msra.mxu0 0
    %5308 = vmatprep.subr.bf16.mxu0 0
    %5309 = vmatpush1.bf16.xpose.msra.mxu0 0
    %5310 = vmatprep.subr.bf16.mxu0 0
    %5311 = vmatpush1.bf16.xpose.msra.mxu0 0
    %5312 = vmatprep.subr.bf16.mxu0 0
    %5313 = vmatpush1.bf16.xpose.msra.mxu0 0
    %5314 = vmatprep.subr.bf16.mxu0 0
    %5315 = vmatpush1.bf16.xpose.msra.mxu0 0
    %5316 = vmatprep.subr.bf16.mxu0 0
    %5317 = vmatpush1.bf16.xpose.msra.mxu0 0
    %5318 = vmatprep.subr.bf16.mxu0 0
    %5319 = vmatpush1.bf16.xpose.msra.mxu0 0
    %5320 = vmatprep.mubr.bf16.mxu0 0
    %5321 = vmatmul.mubr.bf16.gmra.mrb[0].mxu0 %v5265
    %v5322 = vpop.f32.mrb[0].mxu0
    %v5323 = vadd.f32 %v302, %v5322
    %v5324 = vpop.f32.mrb[0].mxu0
    %v5325 = vpop.f32.mrb[0].mxu0
    %v5326 = vadd.f32 %v302, %v5325
    %v5327 = vpop.f32.mrb[0].mxu0
    %5328 = vmatprep.mubr.bf16.mxu0 0
    %5329 = vmatmul.mubr.bf16.gmra.mrb[0].mxu0 %v5268
    %v5330 = vpop.f32.mrb[0].mxu0
    %v5331 = vadd.f32 %v302, %v5330
    %v5332 = vpop.f32.mrb[0].mxu0
    %v5333 = vpop.f32.mrb[0].mxu0
    %v5334 = vadd.f32 %v302, %v5333
    %v5335 = vpop.f32.mrb[0].mxu0
    %5336 = vmatprep.mubr.bf16.mxu0 0
    %5337 = vmatmul.mubr.bf16.gmra.mrb[0].mxu0 %v5271
    %v5338 = vpop.f32.mrb[0].mxu0
    %v5339 = vadd.f32 %v302, %v5338
    %v5340 = vpop.f32.mrb[0].mxu0
    %v5341 = vpop.f32.mrb[0].mxu0
    %v5342 = vadd.f32 %v302, %v5341
    %v5343 = vpop.f32.mrb[0].mxu0
    %5344 = vmatprep.mubr.bf16.mxu0 0
    %5345 = vmatmul.mubr.bf16.gmra.mrb[0].mxu0 %v5274
    %v5346 = vpop.f32.mrb[0].mxu0
    %v5347 = vadd.f32 %v302, %v5346
    %v5348 = vpop.f32.mrb[0].mxu0
    %v5349 = vpop.f32.mrb[0].mxu0
    %v5350 = vadd.f32 %v302, %v5349
    %v5351 = vpop.f32.mrb[0].mxu0
    %5352 = vdwg.mxu0
    %v5353 = vsel %vm811, %v5323, -inf
    %5354 = vmax.xlane.f32.xlu0 %v5353
    %v5355 = vpop.xlane.xlu0 %5354
    %v5356 = vsel %vm811, %v5326, -inf
    %5357 = vmax.xlane.f32.xlu0 %v5356
    %v5358 = vpop.xlane.xlu0 %5357
    %v5359 = vsel %vm811, %v5331, -inf
    %5360 = vmax.xlane.f32.xlu0 %v5359
    %v5361 = vpop.xlane.xlu0 %5360
    %v5362 = vsel %vm811, %v5334, -inf
    %5363 = vmax.xlane.f32.xlu0 %v5362
    %v5364 = vpop.xlane.xlu0 %5363
    %v5365 = vsel %vm811, %v5339, -inf
    %5366 = vmax.xlane.f32.xlu0 %v5365
    %v5367 = vpop.xlane.xlu0 %5366
    %v5368 = vsel %vm811, %v5342, -inf
    %5369 = vmax.xlane.f32.xlu0 %v5368
    %v5370 = vpop.xlane.xlu0 %5369
    %v5371 = vsel %vm811, %v5347, -inf
    %5372 = vmax.xlane.f32.xlu0 %v5371
    %v5373 = vpop.xlane.xlu0 %5372
    %v5374 = vsel %vm811, %v5350, -inf
    %5375 = vmax.xlane.f32.xlu0 %v5374
    %v5376 = vpop.xlane.xlu0 %5375
    %v5377 = vsub.f32 %v5323, %v5355
    %v5378 = vsub.f32 %v5326, %v5358
    %v5379 = vsub.f32 %v5331, %v5361
    %v5380 = vsub.f32 %v5334, %v5364
    %v5381 = vsub.f32 %v5339, %v5367
    %v5382 = vsub.f32 %v5342, %v5370
    %v5383 = vsub.f32 %v5347, %v5373
    %v5384 = vsub.f32 %v5350, %v5376
    %v5385 = vmul.f32 %v5377, 1.442695
    %v5386 = vpow.pop %v5385
    %v5387 = vmul.f32 %v5378, 1.442695
    %v5388 = vpow.pop %v5387
    %v5389 = vmul.f32 %v5379, 1.442695
    %v5390 = vpow.pop %v5389
    %v5391 = vmul.f32 %v5380, 1.442695
    %v5392 = vpow.pop %v5391
    %v5393 = vmul.f32 %v5381, 1.442695
    %v5394 = vpow.pop %v5393
    %v5395 = vmul.f32 %v5382, 1.442695
    %v5396 = vpow.pop %v5395
    %v5397 = vmul.f32 %v5383, 1.442695
    %v5398 = vpow.pop %v5397
    %v5399 = vmul.f32 %v5384, 1.442695
    %v5400 = vpow.pop %v5399
    %v5401 = vsel %vm811, %v5386, 0.0
    %5402 = vadd.xlane.f32.xlu0 %v5401
    %v5403 = vpop.xlane.xlu0 %5402
    %v5404 = vsel %vm811, %v5388, 0.0
    %5405 = vadd.xlane.f32.xlu0 %v5404
    %v5406 = vpop.xlane.xlu0 %5405
    %v5407 = vsel %vm811, %v5390, 0.0
    %5408 = vadd.xlane.f32.xlu0 %v5407
    %v5409 = vpop.xlane.xlu0 %5408
    %v5410 = vsel %vm811, %v5392, 0.0
    %5411 = vadd.xlane.f32.xlu0 %v5410
    %v5412 = vpop.xlane.xlu0 %5411
    %v5413 = vsel %vm811, %v5394, 0.0
    %5414 = vadd.xlane.f32.xlu0 %v5413
    %v5415 = vpop.xlane.xlu0 %5414
    %v5416 = vsel %vm811, %v5396, 0.0
    %5417 = vadd.xlane.f32.xlu0 %v5416
    %v5418 = vpop.xlane.xlu0 %5417
    %v5419 = vsel %vm811, %v5398, 0.0
    %5420 = vadd.xlane.f32.xlu0 %v5419
    %v5421 = vpop.xlane.xlu0 %5420
    %v5422 = vsel %vm811, %v5400, 0.0
    %5423 = vadd.xlane.f32.xlu0 %v5422
    %v5424 = vpop.xlane.xlu0 %5423
    %v5425 = vpack.c.bf16 %v5388, %v5386
    %v5426 = vpack.c.bf16 %v5392, %v5390
    %v5427 = vpack.c.bf16 %v5396, %v5394
    %v5428 = vpack.c.bf16 %v5400, %v5398
    %5429 = vrot.lane.b32.xlu0 %v4378, 40
    %v5430 = vpop.permute.xlu0 %5429
    %5431 = vrot.lane.b32.xlu0 %v4379, 40
    %v5432 = vpop.permute.xlu0 %5431
    %5433 = vrot.lane.b32.xlu0 %v4380, 40
    %v5434 = vpop.permute.xlu0 %5433
    %5435 = vrot.lane.b32.xlu0 %v4381, 40
    %v5436 = vpop.permute.xlu0 %5435
    %v5442 = vsel %vm811, %v5425, 0
    %v5445 = vsel %vm811, %v5426, 0
    %v5448 = vsel %vm811, %v5427, 0
    %v5451 = vsel %vm811, %v5428, 0
    %5453 = vmatprep.subr.bf16.mxu0 0
    %5454 = vmatpush1.bf16.msra.mxu0 %v5430
    %5455 = vmatprep.subr.bf16.mxu0 0
    %5456 = vmatpush1.bf16.msra.mxu0 %v5432
    %5457 = vmatprep.subr.bf16.mxu0 0
    %5458 = vmatpush1.bf16.msra.mxu0 %v5434
    %5459 = vmatprep.subr.bf16.mxu0 0
    %5460 = vmatpush1.bf16.msra.mxu0 %v5436
    %5461 = vmatprep.subr.bf16.mxu0 0
    %5462 = vmatpush1.bf16.msra.mxu0 0
    %5463 = vmatprep.subr.bf16.mxu0 0
    %5464 = vmatpush1.bf16.msra.mxu0 0
    %5465 = vmatprep.subr.bf16.mxu0 0
    %5466 = vmatpush1.bf16.msra.mxu0 0
    %5467 = vmatprep.subr.bf16.mxu0 0
    %5468 = vmatpush1.bf16.msra.mxu0 0
    %5469 = vmatprep.subr.bf16.mxu0 0
    %5470 = vmatpush1.bf16.msra.mxu0 0
    %5471 = vmatprep.subr.bf16.mxu0 0
    %5472 = vmatpush1.bf16.msra.mxu0 0
    %5473 = vmatprep.subr.bf16.mxu0 0
    %5474 = vmatpush1.bf16.msra.mxu0 0
    %5475 = vmatprep.subr.bf16.mxu0 0
    %5476 = vmatpush1.bf16.msra.mxu0 0
    %5477 = vmatprep.subr.bf16.mxu0 0
    %5478 = vmatpush1.bf16.msra.mxu0 0
    %5479 = vmatprep.subr.bf16.mxu0 0
    %5480 = vmatpush1.bf16.msra.mxu0 0
    %5481 = vmatprep.subr.bf16.mxu0 0
    %5482 = vmatpush1.bf16.msra.mxu0 0
    %5483 = vmatprep.subr.bf16.mxu0 0
    %5484 = vmatpush1.bf16.msra.mxu0 0
    %5485 = vmatprep.mubr.bf16.mxu0 0
    %5486 = vmatmul.mubr.bf16.gmra.mrb[0].mxu0 %v5442
    %v5487 = vpop.f32.mrb[0].mxu0
    %v5488 = vadd.f32 0.0, %v5487
    %v5489 = vpop.f32.mrb[0].mxu0
    %v5490 = vpop.f32.mrb[0].mxu0
    %v5491 = vadd.f32 0.0, %v5490
    %v5492 = vpop.f32.mrb[0].mxu0
    %5493 = vmatprep.mubr.bf16.mxu0 0
    %5494 = vmatmul.mubr.bf16.gmra.mrb[0].mxu0 %v5445
    %v5495 = vpop.f32.mrb[0].mxu0
    %v5496 = vadd.f32 0.0, %v5495
    %v5497 = vpop.f32.mrb[0].mxu0
    %v5498 = vpop.f32.mrb[0].mxu0
    %v5499 = vadd.f32 0.0, %v5498
    %v5500 = vpop.f32.mrb[0].mxu0
    %5501 = vmatprep.mubr.bf16.mxu0 0
    %5502 = vmatmul.mubr.bf16.gmra.mrb[0].mxu0 %v5448
    %v5503 = vpop.f32.mrb[0].mxu0
    %v5504 = vadd.f32 0.0, %v5503
    %v5505 = vpop.f32.mrb[0].mxu0
    %v5506 = vpop.f32.mrb[0].mxu0
    %v5507 = vadd.f32 0.0, %v5506
    %v5508 = vpop.f32.mrb[0].mxu0
    %5509 = vmatprep.mubr.bf16.mxu0 0
    %5510 = vmatmul.mubr.bf16.gmra.mrb[0].mxu0 %v5451
    %v5511 = vpop.f32.mrb[0].mxu0
    %v5512 = vadd.f32 0.0, %v5511
    %v5513 = vpop.f32.mrb[0].mxu0
    %v5514 = vpop.f32.mrb[0].mxu0
    %v5515 = vadd.f32 0.0, %v5514
    %v5516 = vpop.f32.mrb[0].mxu0
    %5517 = vdwg.mxu0
    %v5518 = vrcp.pop %v5403
    %v5519 = vrcp.pop %v5406
    %v5520 = vrcp.pop %v5409
    %v5521 = vrcp.pop %v5412
    %v5522 = vrcp.pop %v5415
    %v5523 = vrcp.pop %v5418
    %v5524 = vrcp.pop %v5421
    %v5525 = vrcp.pop %v5424
    %v5526 = vmul.f32 %v5488, %v5518
    %v5527 = vmul.f32 %v5491, %v5519
    %v5528 = vmul.f32 %v5496, %v5520
    %v5529 = vmul.f32 %v5499, %v5521
    %v5530 = vmul.f32 %v5504, %v5522
    %v5531 = vmul.f32 %v5507, %v5523
    %v5532 = vmul.f32 %v5512, %v5524
    %v5533 = vmul.f32 %v5515, %v5525
    %v5534 = vpack.c.bf16 %v5527, %v5526
    %v5535 = vpack.c.bf16 %v5529, %v5528
    %v5536 = vpack.c.bf16 %v5531, %v5530
    %v5537 = vpack.c.bf16 %v5533, %v5532
    %5542 = vrot.lane.b32.xlu0 %v4954, 8
    %v5543 = vpop.permute.xlu0 %5542
    %5544 = vrot.lane.b32.xlu0 %v4955, 8
    %v5545 = vpop.permute.xlu0 %5544
    %5546 = vrot.lane.b32.xlu0 %v4956, 8
    %v5547 = vpop.permute.xlu0 %5546
    %5548 = vrot.lane.b32.xlu0 %v4957, 8
    %v5549 = vpop.permute.xlu0 %5548
    %5554 = vrot.lane.b32.xlu0 %v5244, 16
    %v5555 = vpop.permute.xlu0 %5554
    %5556 = vrot.lane.b32.xlu0 %v5245, 16
    %v5557 = vpop.permute.xlu0 %5556
    %5558 = vrot.lane.b32.xlu0 %v5246, 16
    %v5559 = vpop.permute.xlu0 %5558
    %5560 = vrot.lane.b32.xlu0 %v5247, 16
    %v5561 = vpop.permute.xlu0 %5560
    %5566 = vrot.lane.b32.xlu0 %v5534, 24
    %v5567 = vpop.permute.xlu0 %5566
    %5568 = vrot.lane.b32.xlu0 %v5535, 24
    %v5569 = vpop.permute.xlu0 %5568
    %5570 = vrot.lane.b32.xlu0 %v5536, 24
    %v5571 = vpop.permute.xlu0 %5570
    %5572 = vrot.lane.b32.xlu0 %v5537, 24
    %v5573 = vpop.permute.xlu0 %5572
    %v5576 = vsel %vm721, %v4664, %v5543
    %v5579 = vsel %vm721, %v4665, %v5545
    %v5582 = vsel %vm721, %v4666, %v5547
    %v5585 = vsel %vm721, %v4667, %v5549
    %v5587 = vsel %vm1915, %v5576, %v5555
    %v5589 = vsel %vm1915, %v5579, %v5557
    %v5591 = vsel %vm1915, %v5582, %v5559
    %v5593 = vsel %vm1915, %v5585, %v5561
    %v5595 = vsel %vm1924, %v5587, %v5567
    %v5597 = vsel %vm1924, %v5589, %v5569
    %v5599 = vsel %vm1924, %v5591, %v5571
    %v5601 = vsel %vm1924, %v5593, %v5573
    %v5602 = vpack.c.bf16 %v4351, %v4348
    %v5603 = vpack.c.bf16 %v4359, %v4356
    %v5604 = vpack.c.bf16 %v4367, %v4364
    %v5605 = vpack.c.bf16 %v4375, %v4372
    %5610 = vrot.lane.b32.xlu0 %v5602, 96
    %v5611 = vpop.permute.xlu0 %5610
    %5612 = vrot.lane.b32.xlu0 %v5603, 96
    %v5613 = vpop.permute.xlu0 %5612
    %5614 = vrot.lane.b32.xlu0 %v5604, 96
    %v5615 = vpop.permute.xlu0 %5614
    %5616 = vrot.lane.b32.xlu0 %v5605, 96
    %v5617 = vpop.permute.xlu0 %5616
    %v5619 = vsel %vm721, %v5602, 0
    %v5622 = vsel %vm721, %v5603, 0
    %v5625 = vsel %vm721, %v5604, 0
    %v5628 = vsel %vm721, %v5605, 0
    %v5631 = vsel %vm721, %v5611, 0
    %v5634 = vsel %vm721, %v5613, 0
    %v5637 = vsel %vm721, %v5615, 0
    %v5640 = vsel %vm721, %v5617, 0
    %5642 = vmatprep.subr.bf16.mxu0 0
    %5643 = vmatpush1.bf16.xpose.msra.mxu0 %v5631
    %5644 = vmatprep.subr.bf16.mxu0 0
    %5645 = vmatpush1.bf16.xpose.msra.mxu0 %v5634
    %5646 = vmatprep.subr.bf16.mxu0 0
    %5647 = vmatpush1.bf16.xpose.msra.mxu0 %v5637
    %5648 = vmatprep.subr.bf16.mxu0 0
    %5649 = vmatpush1.bf16.xpose.msra.mxu0 %v5640
    %5650 = vmatprep.subr.bf16.mxu0 0
    %5651 = vmatpush1.bf16.xpose.msra.mxu0 0
    %5652 = vmatprep.subr.bf16.mxu0 0
    %5653 = vmatpush1.bf16.xpose.msra.mxu0 0
    %5654 = vmatprep.subr.bf16.mxu0 0
    %5655 = vmatpush1.bf16.xpose.msra.mxu0 0
    %5656 = vmatprep.subr.bf16.mxu0 0
    %5657 = vmatpush1.bf16.xpose.msra.mxu0 0
    %5658 = vmatprep.subr.bf16.mxu0 0
    %5659 = vmatpush1.bf16.xpose.msra.mxu0 0
    %5660 = vmatprep.subr.bf16.mxu0 0
    %5661 = vmatpush1.bf16.xpose.msra.mxu0 0
    %5662 = vmatprep.subr.bf16.mxu0 0
    %5663 = vmatpush1.bf16.xpose.msra.mxu0 0
    %5664 = vmatprep.subr.bf16.mxu0 0
    %5665 = vmatpush1.bf16.xpose.msra.mxu0 0
    %5666 = vmatprep.subr.bf16.mxu0 0
    %5667 = vmatpush1.bf16.xpose.msra.mxu0 0
    %5668 = vmatprep.subr.bf16.mxu0 0
    %5669 = vmatpush1.bf16.xpose.msra.mxu0 0
    %5670 = vmatprep.subr.bf16.mxu0 0
    %5671 = vmatpush1.bf16.xpose.msra.mxu0 0
    %5672 = vmatprep.subr.bf16.mxu0 0
    %5673 = vmatpush1.bf16.xpose.msra.mxu0 0
    %5674 = vmatprep.mubr.bf16.mxu0 0
    %5675 = vmatmul.mubr.bf16.gmra.mrb[0].mxu0 %v5619
    %v5676 = vpop.f32.mrb[0].mxu0
    %v5677 = vadd.f32 %v302, %v5676
    %v5678 = vpop.f32.mrb[0].mxu0
    %v5679 = vpop.f32.mrb[0].mxu0
    %v5680 = vadd.f32 %v302, %v5679
    %v5681 = vpop.f32.mrb[0].mxu0
    %5682 = vmatprep.mubr.bf16.mxu0 0
    %5683 = vmatmul.mubr.bf16.gmra.mrb[0].mxu0 %v5622
    %v5684 = vpop.f32.mrb[0].mxu0
    %v5685 = vadd.f32 %v302, %v5684
    %v5686 = vpop.f32.mrb[0].mxu0
    %v5687 = vpop.f32.mrb[0].mxu0
    %v5688 = vadd.f32 %v302, %v5687
    %v5689 = vpop.f32.mrb[0].mxu0
    %5690 = vmatprep.mubr.bf16.mxu0 0
    %5691 = vmatmul.mubr.bf16.gmra.mrb[0].mxu0 %v5625
    %v5692 = vpop.f32.mrb[0].mxu0
    %v5693 = vadd.f32 %v302, %v5692
    %v5694 = vpop.f32.mrb[0].mxu0
    %v5695 = vpop.f32.mrb[0].mxu0
    %v5696 = vadd.f32 %v302, %v5695
    %v5697 = vpop.f32.mrb[0].mxu0
    %5698 = vmatprep.mubr.bf16.mxu0 0
    %5699 = vmatmul.mubr.bf16.gmra.mrb[0].mxu0 %v5628
    %v5700 = vpop.f32.mrb[0].mxu0
    %v5701 = vadd.f32 %v302, %v5700
    %v5702 = vpop.f32.mrb[0].mxu0
    %v5703 = vpop.f32.mrb[0].mxu0
    %v5704 = vadd.f32 %v302, %v5703
    %v5705 = vpop.f32.mrb[0].mxu0
    %5706 = vdwg.mxu0
    %v5707 = vsel %vm811, %v5677, -inf
    %5708 = vmax.xlane.f32.xlu0 %v5707
    %v5709 = vpop.xlane.xlu0 %5708
    %v5710 = vsel %vm811, %v5680, -inf
    %5711 = vmax.xlane.f32.xlu0 %v5710
    %v5712 = vpop.xlane.xlu0 %5711
    %v5713 = vsel %vm811, %v5685, -inf
    %5714 = vmax.xlane.f32.xlu0 %v5713
    %v5715 = vpop.xlane.xlu0 %5714
    %v5716 = vsel %vm811, %v5688, -inf
    %5717 = vmax.xlane.f32.xlu0 %v5716
    %v5718 = vpop.xlane.xlu0 %5717
    %v5719 = vsel %vm811, %v5693, -inf
    %5720 = vmax.xlane.f32.xlu0 %v5719
    %v5721 = vpop.xlane.xlu0 %5720
    %v5722 = vsel %vm811, %v5696, -inf
    %5723 = vmax.xlane.f32.xlu0 %v5722
    %v5724 = vpop.xlane.xlu0 %5723
    %v5725 = vsel %vm811, %v5701, -inf
    %5726 = vmax.xlane.f32.xlu0 %v5725
    %v5727 = vpop.xlane.xlu0 %5726
    %v5728 = vsel %vm811, %v5704, -inf
    %5729 = vmax.xlane.f32.xlu0 %v5728
    %v5730 = vpop.xlane.xlu0 %5729
    %v5731 = vsub.f32 %v5677, %v5709
    %v5732 = vsub.f32 %v5680, %v5712
    %v5733 = vsub.f32 %v5685, %v5715
    %v5734 = vsub.f32 %v5688, %v5718
    %v5735 = vsub.f32 %v5693, %v5721
    %v5736 = vsub.f32 %v5696, %v5724
    %v5737 = vsub.f32 %v5701, %v5727
    %v5738 = vsub.f32 %v5704, %v5730
    %v5739 = vmul.f32 %v5731, 1.442695
    %v5740 = vpow.pop %v5739
    %v5741 = vmul.f32 %v5732, 1.442695
    %v5742 = vpow.pop %v5741
    %v5743 = vmul.f32 %v5733, 1.442695
    %v5744 = vpow.pop %v5743
    %v5745 = vmul.f32 %v5734, 1.442695
    %v5746 = vpow.pop %v5745
    %v5747 = vmul.f32 %v5735, 1.442695
    %v5748 = vpow.pop %v5747
    %v5749 = vmul.f32 %v5736, 1.442695
    %v5750 = vpow.pop %v5749
    %v5751 = vmul.f32 %v5737, 1.442695
    %v5752 = vpow.pop %v5751
    %v5753 = vmul.f32 %v5738, 1.442695
    %v5754 = vpow.pop %v5753
    %v5755 = vsel %vm811, %v5740, 0.0
    %5756 = vadd.xlane.f32.xlu0 %v5755
    %v5757 = vpop.xlane.xlu0 %5756
    %v5758 = vsel %vm811, %v5742, 0.0
    %5759 = vadd.xlane.f32.xlu0 %v5758
    %v5760 = vpop.xlane.xlu0 %5759
    %v5761 = vsel %vm811, %v5744, 0.0
    %5762 = vadd.xlane.f32.xlu0 %v5761
    %v5763 = vpop.xlane.xlu0 %5762
    %v5764 = vsel %vm811, %v5746, 0.0
    %5765 = vadd.xlane.f32.xlu0 %v5764
    %v5766 = vpop.xlane.xlu0 %5765
    %v5767 = vsel %vm811, %v5748, 0.0
    %5768 = vadd.xlane.f32.xlu0 %v5767
    %v5769 = vpop.xlane.xlu0 %5768
    %v5770 = vsel %vm811, %v5750, 0.0
    %5771 = vadd.xlane.f32.xlu0 %v5770
    %v5772 = vpop.xlane.xlu0 %5771
    %v5773 = vsel %vm811, %v5752, 0.0
    %5774 = vadd.xlane.f32.xlu0 %v5773
    %v5775 = vpop.xlane.xlu0 %5774
    %v5776 = vsel %vm811, %v5754, 0.0
    %5777 = vadd.xlane.f32.xlu0 %v5776
    %v5778 = vpop.xlane.xlu0 %5777
    %v5779 = vpack.c.bf16 %v5742, %v5740
    %v5780 = vpack.c.bf16 %v5746, %v5744
    %v5781 = vpack.c.bf16 %v5750, %v5748
    %v5782 = vpack.c.bf16 %v5754, %v5752
    %5783 = vrot.lane.b32.xlu0 %v5602, 64
    %v5784 = vpop.permute.xlu0 %5783
    %5785 = vrot.lane.b32.xlu0 %v5603, 64
    %v5786 = vpop.permute.xlu0 %5785
    %5787 = vrot.lane.b32.xlu0 %v5604, 64
    %v5788 = vpop.permute.xlu0 %5787
    %5789 = vrot.lane.b32.xlu0 %v5605, 64
    %v5790 = vpop.permute.xlu0 %5789
    %v5796 = vsel %vm811, %v5779, 0
    %v5799 = vsel %vm811, %v5780, 0
    %v5802 = vsel %vm811, %v5781, 0
    %v5805 = vsel %vm811, %v5782, 0
    %5807 = vmatprep.subr.bf16.mxu0 0
    %5808 = vmatpush1.bf16.msra.mxu0 %v5784
    %5809 = vmatprep.subr.bf16.mxu0 0
    %5810 = vmatpush1.bf16.msra.mxu0 %v5786
    %5811 = vmatprep.subr.bf16.mxu0 0
    %5812 = vmatpush1.bf16.msra.mxu0 %v5788
    %5813 = vmatprep.subr.bf16.mxu0 0
    %5814 = vmatpush1.bf16.msra.mxu0 %v5790
    %5815 = vmatprep.subr.bf16.mxu0 0
    %5816 = vmatpush1.bf16.msra.mxu0 0
    %5817 = vmatprep.subr.bf16.mxu0 0
    %5818 = vmatpush1.bf16.msra.mxu0 0
    %5819 = vmatprep.subr.bf16.mxu0 0
    %5820 = vmatpush1.bf16.msra.mxu0 0
    %5821 = vmatprep.subr.bf16.mxu0 0
    %5822 = vmatpush1.bf16.msra.mxu0 0
    %5823 = vmatprep.subr.bf16.mxu0 0
    %5824 = vmatpush1.bf16.msra.mxu0 0
    %5825 = vmatprep.subr.bf16.mxu0 0
    %5826 = vmatpush1.bf16.msra.mxu0 0
    %5827 = vmatprep.subr.bf16.mxu0 0
    %5828 = vmatpush1.bf16.msra.mxu0 0
    %5829 = vmatprep.subr.bf16.mxu0 0
    %5830 = vmatpush1.bf16.msra.mxu0 0
    %5831 = vmatprep.subr.bf16.mxu0 0
    %5832 = vmatpush1.bf16.msra.mxu0 0
    %5833 = vmatprep.subr.bf16.mxu0 0
    %5834 = vmatpush1.bf16.msra.mxu0 0
    %5835 = vmatprep.subr.bf16.mxu0 0
    %5836 = vmatpush1.bf16.msra.mxu0 0
    %5837 = vmatprep.subr.bf16.mxu0 0
    %5838 = vmatpush1.bf16.msra.mxu0 0
    %5839 = vmatprep.mubr.bf16.mxu0 0
    %5840 = vmatmul.mubr.bf16.gmra.mrb[0].mxu0 %v5796
    %v5841 = vpop.f32.mrb[0].mxu0
    %v5842 = vadd.f32 0.0, %v5841
    %v5843 = vpop.f32.mrb[0].mxu0
    %v5844 = vpop.f32.mrb[0].mxu0
    %v5845 = vadd.f32 0.0, %v5844
    %v5846 = vpop.f32.mrb[0].mxu0
    %5847 = vmatprep.mubr.bf16.mxu0 0
    %5848 = vmatmul.mubr.bf16.gmra.mrb[0].mxu0 %v5799
    %v5849 = vpop.f32.mrb[0].mxu0
    %v5850 = vadd.f32 0.0, %v5849
    %v5851 = vpop.f32.mrb[0].mxu0
    %v5852 = vpop.f32.mrb[0].mxu0
    %v5853 = vadd.f32 0.0, %v5852
    %v5854 = vpop.f32.mrb[0].mxu0
    %5855 = vmatprep.mubr.bf16.mxu0 0
    %5856 = vmatmul.mubr.bf16.gmra.mrb[0].mxu0 %v5802
    %v5857 = vpop.f32.mrb[0].mxu0
    %v5858 = vadd.f32 0.0, %v5857
    %v5859 = vpop.f32.mrb[0].mxu0
    %v5860 = vpop.f32.mrb[0].mxu0
    %v5861 = vadd.f32 0.0, %v5860
    %v5862 = vpop.f32.mrb[0].mxu0
    %5863 = vmatprep.mubr.bf16.mxu0 0
    %5864 = vmatmul.mubr.bf16.gmra.mrb[0].mxu0 %v5805
    %v5865 = vpop.f32.mrb[0].mxu0
    %v5866 = vadd.f32 0.0, %v5865
    %v5867 = vpop.f32.mrb[0].mxu0
    %v5868 = vpop.f32.mrb[0].mxu0
    %v5869 = vadd.f32 0.0, %v5868
    %v5870 = vpop.f32.mrb[0].mxu0
    %5871 = vdwg.mxu0
    %v5872 = vrcp.pop %v5757
    %v5873 = vrcp.pop %v5760
    %v5874 = vrcp.pop %v5763
    %v5875 = vrcp.pop %v5766
    %v5876 = vrcp.pop %v5769
    %v5877 = vrcp.pop %v5772
    %v5878 = vrcp.pop %v5775
    %v5879 = vrcp.pop %v5778
    %v5880 = vmul.f32 %v5842, %v5872
    %v5881 = vmul.f32 %v5845, %v5873
    %v5882 = vmul.f32 %v5850, %v5874
    %v5883 = vmul.f32 %v5853, %v5875
    %v5884 = vmul.f32 %v5858, %v5876
    %v5885 = vmul.f32 %v5861, %v5877
    %v5886 = vmul.f32 %v5866, %v5878
    %v5887 = vmul.f32 %v5869, %v5879
    %v5888 = vpack.c.bf16 %v5881, %v5880
    %v5889 = vpack.c.bf16 %v5883, %v5882
    %v5890 = vpack.c.bf16 %v5885, %v5884
    %v5891 = vpack.c.bf16 %v5887, %v5886
    %5892 = vrot.lane.b32.xlu0 %v5602, 120
    %v5893 = vpop.permute.xlu0 %5892
    %5894 = vrot.lane.b32.xlu0 %v5603, 120
    %v5895 = vpop.permute.xlu0 %5894
    %5896 = vrot.lane.b32.xlu0 %v5604, 120
    %v5897 = vpop.permute.xlu0 %5896
    %5898 = vrot.lane.b32.xlu0 %v5605, 120
    %v5899 = vpop.permute.xlu0 %5898
    %5900 = vrot.lane.b32.xlu0 %v5602, 88
    %v5901 = vpop.permute.xlu0 %5900
    %5902 = vrot.lane.b32.xlu0 %v5603, 88
    %v5903 = vpop.permute.xlu0 %5902
    %5904 = vrot.lane.b32.xlu0 %v5604, 88
    %v5905 = vpop.permute.xlu0 %5904
    %5906 = vrot.lane.b32.xlu0 %v5605, 88
    %v5907 = vpop.permute.xlu0 %5906
    %v5909 = vsel %vm721, %v5893, 0
    %v5912 = vsel %vm721, %v5895, 0
    %v5915 = vsel %vm721, %v5897, 0
    %v5918 = vsel %vm721, %v5899, 0
    %v5921 = vsel %vm721, %v5901, 0
    %v5924 = vsel %vm721, %v5903, 0
    %v5927 = vsel %vm721, %v5905, 0
    %v5930 = vsel %vm721, %v5907, 0
    %5932 = vmatprep.subr.bf16.mxu0 0
    %5933 = vmatpush1.bf16.xpose.msra.mxu0 %v5921
    %5934 = vmatprep.subr.bf16.mxu0 0
    %5935 = vmatpush1.bf16.xpose.msra.mxu0 %v5924
    %5936 = vmatprep.subr.bf16.mxu0 0
    %5937 = vmatpush1.bf16.xpose.msra.mxu0 %v5927
    %5938 = vmatprep.subr.bf16.mxu0 0
    %5939 = vmatpush1.bf16.xpose.msra.mxu0 %v5930
    %5940 = vmatprep.subr.bf16.mxu0 0
    %5941 = vmatpush1.bf16.xpose.msra.mxu0 0
    %5942 = vmatprep.subr.bf16.mxu0 0
    %5943 = vmatpush1.bf16.xpose.msra.mxu0 0
    %5944 = vmatprep.subr.bf16.mxu0 0
    %5945 = vmatpush1.bf16.xpose.msra.mxu0 0
    %5946 = vmatprep.subr.bf16.mxu0 0
    %5947 = vmatpush1.bf16.xpose.msra.mxu0 0
    %5948 = vmatprep.subr.bf16.mxu0 0
    %5949 = vmatpush1.bf16.xpose.msra.mxu0 0
    %5950 = vmatprep.subr.bf16.mxu0 0
    %5951 = vmatpush1.bf16.xpose.msra.mxu0 0
    %5952 = vmatprep.subr.bf16.mxu0 0
    %5953 = vmatpush1.bf16.xpose.msra.mxu0 0
    %5954 = vmatprep.subr.bf16.mxu0 0
    %5955 = vmatpush1.bf16.xpose.msra.mxu0 0
    %5956 = vmatprep.subr.bf16.mxu0 0
    %5957 = vmatpush1.bf16.xpose.msra.mxu0 0
    %5958 = vmatprep.subr.bf16.mxu0 0
    %5959 = vmatpush1.bf16.xpose.msra.mxu0 0
    %5960 = vmatprep.subr.bf16.mxu0 0
    %5961 = vmatpush1.bf16.xpose.msra.mxu0 0
    %5962 = vmatprep.subr.bf16.mxu0 0
    %5963 = vmatpush1.bf16.xpose.msra.mxu0 0
    %5964 = vmatprep.mubr.bf16.mxu0 0
    %5965 = vmatmul.mubr.bf16.gmra.mrb[0].mxu0 %v5909
    %v5966 = vpop.f32.mrb[0].mxu0
    %v5967 = vadd.f32 %v302, %v5966
    %v5968 = vpop.f32.mrb[0].mxu0
    %v5969 = vpop.f32.mrb[0].mxu0
    %v5970 = vadd.f32 %v302, %v5969
    %v5971 = vpop.f32.mrb[0].mxu0
    %5972 = vmatprep.mubr.bf16.mxu0 0
    %5973 = vmatmul.mubr.bf16.gmra.mrb[0].mxu0 %v5912
    %v5974 = vpop.f32.mrb[0].mxu0
    %v5975 = vadd.f32 %v302, %v5974
    %v5976 = vpop.f32.mrb[0].mxu0
    %v5977 = vpop.f32.mrb[0].mxu0
    %v5978 = vadd.f32 %v302, %v5977
    %v5979 = vpop.f32.mrb[0].mxu0
    %5980 = vmatprep.mubr.bf16.mxu0 0
    %5981 = vmatmul.mubr.bf16.gmra.mrb[0].mxu0 %v5915
    %v5982 = vpop.f32.mrb[0].mxu0
    %v5983 = vadd.f32 %v302, %v5982
    %v5984 = vpop.f32.mrb[0].mxu0
    %v5985 = vpop.f32.mrb[0].mxu0
    %v5986 = vadd.f32 %v302, %v5985
    %v5987 = vpop.f32.mrb[0].mxu0
    %5988 = vmatprep.mubr.bf16.mxu0 0
    %5989 = vmatmul.mubr.bf16.gmra.mrb[0].mxu0 %v5918
    %v5990 = vpop.f32.mrb[0].mxu0
    %v5991 = vadd.f32 %v302, %v5990
    %v5992 = vpop.f32.mrb[0].mxu0
    %v5993 = vpop.f32.mrb[0].mxu0
    %v5994 = vadd.f32 %v302, %v5993
    %v5995 = vpop.f32.mrb[0].mxu0
    %5996 = vdwg.mxu0
    %v5997 = vsel %vm811, %v5967, -inf
    %5998 = vmax.xlane.f32.xlu0 %v5997
    %v5999 = vpop.xlane.xlu0 %5998
    %v6000 = vsel %vm811, %v5970, -inf
    %6001 = vmax.xlane.f32.xlu0 %v6000
    %v6002 = vpop.xlane.xlu0 %6001
    %v6003 = vsel %vm811, %v5975, -inf
    %6004 = vmax.xlane.f32.xlu0 %v6003
    %v6005 = vpop.xlane.xlu0 %6004
    %v6006 = vsel %vm811, %v5978, -inf
    %6007 = vmax.xlane.f32.xlu0 %v6006
    %v6008 = vpop.xlane.xlu0 %6007
    %v6009 = vsel %vm811, %v5983, -inf
    %6010 = vmax.xlane.f32.xlu0 %v6009
    %v6011 = vpop.xlane.xlu0 %6010
    %v6012 = vsel %vm811, %v5986, -inf
    %6013 = vmax.xlane.f32.xlu0 %v6012
    %v6014 = vpop.xlane.xlu0 %6013
    %v6015 = vsel %vm811, %v5991, -inf
    %6016 = vmax.xlane.f32.xlu0 %v6015
    %v6017 = vpop.xlane.xlu0 %6016
    %v6018 = vsel %vm811, %v5994, -inf
    %6019 = vmax.xlane.f32.xlu0 %v6018
    %v6020 = vpop.xlane.xlu0 %6019
    %v6021 = vsub.f32 %v5967, %v5999
    %v6022 = vsub.f32 %v5970, %v6002
    %v6023 = vsub.f32 %v5975, %v6005
    %v6024 = vsub.f32 %v5978, %v6008
    %v6025 = vsub.f32 %v5983, %v6011
    %v6026 = vsub.f32 %v5986, %v6014
    %v6027 = vsub.f32 %v5991, %v6017
    %v6028 = vsub.f32 %v5994, %v6020
    %v6029 = vmul.f32 %v6021, 1.442695
    %v6030 = vpow.pop %v6029
    %v6031 = vmul.f32 %v6022, 1.442695
    %v6032 = vpow.pop %v6031
    %v6033 = vmul.f32 %v6023, 1.442695
    %v6034 = vpow.pop %v6033
    %v6035 = vmul.f32 %v6024, 1.442695
    %v6036 = vpow.pop %v6035
    %v6037 = vmul.f32 %v6025, 1.442695
    %v6038 = vpow.pop %v6037
    %v6039 = vmul.f32 %v6026, 1.442695
    %v6040 = vpow.pop %v6039
    %v6041 = vmul.f32 %v6027, 1.442695
    %v6042 = vpow.pop %v6041
    %v6043 = vmul.f32 %v6028, 1.442695
    %v6044 = vpow.pop %v6043
    %v6045 = vsel %vm811, %v6030, 0.0
    %6046 = vadd.xlane.f32.xlu0 %v6045
    %v6047 = vpop.xlane.xlu0 %6046
    %v6048 = vsel %vm811, %v6032, 0.0
    %6049 = vadd.xlane.f32.xlu0 %v6048
    %v6050 = vpop.xlane.xlu0 %6049
    %v6051 = vsel %vm811, %v6034, 0.0
    %6052 = vadd.xlane.f32.xlu0 %v6051
    %v6053 = vpop.xlane.xlu0 %6052
    %v6054 = vsel %vm811, %v6036, 0.0
    %6055 = vadd.xlane.f32.xlu0 %v6054
    %v6056 = vpop.xlane.xlu0 %6055
    %v6057 = vsel %vm811, %v6038, 0.0
    %6058 = vadd.xlane.f32.xlu0 %v6057
    %v6059 = vpop.xlane.xlu0 %6058
    %v6060 = vsel %vm811, %v6040, 0.0
    %6061 = vadd.xlane.f32.xlu0 %v6060
    %v6062 = vpop.xlane.xlu0 %6061
    %v6063 = vsel %vm811, %v6042, 0.0
    %6064 = vadd.xlane.f32.xlu0 %v6063
    %v6065 = vpop.xlane.xlu0 %6064
    %v6066 = vsel %vm811, %v6044, 0.0
    %6067 = vadd.xlane.f32.xlu0 %v6066
    %v6068 = vpop.xlane.xlu0 %6067
    %v6069 = vpack.c.bf16 %v6032, %v6030
    %v6070 = vpack.c.bf16 %v6036, %v6034
    %v6071 = vpack.c.bf16 %v6040, %v6038
    %v6072 = vpack.c.bf16 %v6044, %v6042
    %6073 = vrot.lane.b32.xlu0 %v5602, 56
    %v6074 = vpop.permute.xlu0 %6073
    %6075 = vrot.lane.b32.xlu0 %v5603, 56
    %v6076 = vpop.permute.xlu0 %6075
    %6077 = vrot.lane.b32.xlu0 %v5604, 56
    %v6078 = vpop.permute.xlu0 %6077
    %6079 = vrot.lane.b32.xlu0 %v5605, 56
    %v6080 = vpop.permute.xlu0 %6079
    %v6086 = vsel %vm811, %v6069, 0
    %v6089 = vsel %vm811, %v6070, 0
    %v6092 = vsel %vm811, %v6071, 0
    %v6095 = vsel %vm811, %v6072, 0
    %6097 = vmatprep.subr.bf16.mxu0 0
    %6098 = vmatpush1.bf16.msra.mxu0 %v6074
    %6099 = vmatprep.subr.bf16.mxu0 0
    %6100 = vmatpush1.bf16.msra.mxu0 %v6076
    %6101 = vmatprep.subr.bf16.mxu0 0
    %6102 = vmatpush1.bf16.msra.mxu0 %v6078
    %6103 = vmatprep.subr.bf16.mxu0 0
    %6104 = vmatpush1.bf16.msra.mxu0 %v6080
    %6105 = vmatprep.subr.bf16.mxu0 0
    %6106 = vmatpush1.bf16.msra.mxu0 0
    %6107 = vmatprep.subr.bf16.mxu0 0
    %6108 = vmatpush1.bf16.msra.mxu0 0
    %6109 = vmatprep.subr.bf16.mxu0 0
    %6110 = vmatpush1.bf16.msra.mxu0 0
    %6111 = vmatprep.subr.bf16.mxu0 0
    %6112 = vmatpush1.bf16.msra.mxu0 0
    %6113 = vmatprep.subr.bf16.mxu0 0
    %6114 = vmatpush1.bf16.msra.mxu0 0
    %6115 = vmatprep.subr.bf16.mxu0 0
    %6116 = vmatpush1.bf16.msra.mxu0 0
    %6117 = vmatprep.subr.bf16.mxu0 0
    %6118 = vmatpush1.bf16.msra.mxu0 0
    %6119 = vmatprep.subr.bf16.mxu0 0
    %6120 = vmatpush1.bf16.msra.mxu0 0
    %6121 = vmatprep.subr.bf16.mxu0 0
    %6122 = vmatpush1.bf16.msra.mxu0 0
    %6123 = vmatprep.subr.bf16.mxu0 0
    %6124 = vmatpush1.bf16.msra.mxu0 0
    %6125 = vmatprep.subr.bf16.mxu0 0
    %6126 = vmatpush1.bf16.msra.mxu0 0
    %6127 = vmatprep.subr.bf16.mxu0 0
    %6128 = vmatpush1.bf16.msra.mxu0 0
    %6129 = vmatprep.mubr.bf16.mxu0 0
    %6130 = vmatmul.mubr.bf16.gmra.mrb[0].mxu0 %v6086
    %v6131 = vpop.f32.mrb[0].mxu0
    %v6132 = vadd.f32 0.0, %v6131
    %v6133 = vpop.f32.mrb[0].mxu0
    %v6134 = vpop.f32.mrb[0].mxu0
    %v6135 = vadd.f32 0.0, %v6134
    %v6136 = vpop.f32.mrb[0].mxu0
    %6137 = vmatprep.mubr.bf16.mxu0 0
    %6138 = vmatmul.mubr.bf16.gmra.mrb[0].mxu0 %v6089
    %v6139 = vpop.f32.mrb[0].mxu0
    %v6140 = vadd.f32 0.0, %v6139
    %v6141 = vpop.f32.mrb[0].mxu0
    %v6142 = vpop.f32.mrb[0].mxu0
    %v6143 = vadd.f32 0.0, %v6142
    %v6144 = vpop.f32.mrb[0].mxu0
    %6145 = vmatprep.mubr.bf16.mxu0 0
    %6146 = vmatmul.mubr.bf16.gmra.mrb[0].mxu0 %v6092
    %v6147 = vpop.f32.mrb[0].mxu0
    %v6148 = vadd.f32 0.0, %v6147
    %v6149 = vpop.f32.mrb[0].mxu0
    %v6150 = vpop.f32.mrb[0].mxu0
    %v6151 = vadd.f32 0.0, %v6150
    %v6152 = vpop.f32.mrb[0].mxu0
    %6153 = vmatprep.mubr.bf16.mxu0 0
    %6154 = vmatmul.mubr.bf16.gmra.mrb[0].mxu0 %v6095
    %v6155 = vpop.f32.mrb[0].mxu0
    %v6156 = vadd.f32 0.0, %v6155
    %v6157 = vpop.f32.mrb[0].mxu0
    %v6158 = vpop.f32.mrb[0].mxu0
    %v6159 = vadd.f32 0.0, %v6158
    %v6160 = vpop.f32.mrb[0].mxu0
    %6161 = vdwg.mxu0
    %v6162 = vrcp.pop %v6047
    %v6163 = vrcp.pop %v6050
    %v6164 = vrcp.pop %v6053
    %v6165 = vrcp.pop %v6056
    %v6166 = vrcp.pop %v6059
    %v6167 = vrcp.pop %v6062
    %v6168 = vrcp.pop %v6065
    %v6169 = vrcp.pop %v6068
    %v6170 = vmul.f32 %v6132, %v6162
    %v6171 = vmul.f32 %v6135, %v6163
    %v6172 = vmul.f32 %v6140, %v6164
    %v6173 = vmul.f32 %v6143, %v6165
    %v6174 = vmul.f32 %v6148, %v6166
    %v6175 = vmul.f32 %v6151, %v6167
    %v6176 = vmul.f32 %v6156, %v6168
    %v6177 = vmul.f32 %v6159, %v6169
    %v6178 = vpack.c.bf16 %v6171, %v6170
    %v6179 = vpack.c.bf16 %v6173, %v6172
    %v6180 = vpack.c.bf16 %v6175, %v6174
    %v6181 = vpack.c.bf16 %v6177, %v6176
    %6182 = vrot.lane.b32.xlu0 %v5602, 112
    %v6183 = vpop.permute.xlu0 %6182
    %6184 = vrot.lane.b32.xlu0 %v5603, 112
    %v6185 = vpop.permute.xlu0 %6184
    %6186 = vrot.lane.b32.xlu0 %v5604, 112
    %v6187 = vpop.permute.xlu0 %6186
    %6188 = vrot.lane.b32.xlu0 %v5605, 112
    %v6189 = vpop.permute.xlu0 %6188
    %6190 = vrot.lane.b32.xlu0 %v5602, 80
    %v6191 = vpop.permute.xlu0 %6190
    %6192 = vrot.lane.b32.xlu0 %v5603, 80
    %v6193 = vpop.permute.xlu0 %6192
    %6194 = vrot.lane.b32.xlu0 %v5604, 80
    %v6195 = vpop.permute.xlu0 %6194
    %6196 = vrot.lane.b32.xlu0 %v5605, 80
    %v6197 = vpop.permute.xlu0 %6196
    %v6199 = vsel %vm721, %v6183, 0
    %v6202 = vsel %vm721, %v6185, 0
    %v6205 = vsel %vm721, %v6187, 0
    %v6208 = vsel %vm721, %v6189, 0
    %v6211 = vsel %vm721, %v6191, 0
    %v6214 = vsel %vm721, %v6193, 0
    %v6217 = vsel %vm721, %v6195, 0
    %v6220 = vsel %vm721, %v6197, 0
    %6222 = vmatprep.subr.bf16.mxu0 0
    %6223 = vmatpush1.bf16.xpose.msra.mxu0 %v6211
    %6224 = vmatprep.subr.bf16.mxu0 0
    %6225 = vmatpush1.bf16.xpose.msra.mxu0 %v6214
    %6226 = vmatprep.subr.bf16.mxu0 0
    %6227 = vmatpush1.bf16.xpose.msra.mxu0 %v6217
    %6228 = vmatprep.subr.bf16.mxu0 0
    %6229 = vmatpush1.bf16.xpose.msra.mxu0 %v6220
    %6230 = vmatprep.subr.bf16.mxu0 0
    %6231 = vmatpush1.bf16.xpose.msra.mxu0 0
    %6232 = vmatprep.subr.bf16.mxu0 0
    %6233 = vmatpush1.bf16.xpose.msra.mxu0 0
    %6234 = vmatprep.subr.bf16.mxu0 0
    %6235 = vmatpush1.bf16.xpose.msra.mxu0 0
    %6236 = vmatprep.subr.bf16.mxu0 0
    %6237 = vmatpush1.bf16.xpose.msra.mxu0 0
    %6238 = vmatprep.subr.bf16.mxu0 0
    %6239 = vmatpush1.bf16.xpose.msra.mxu0 0
    %6240 = vmatprep.subr.bf16.mxu0 0
    %6241 = vmatpush1.bf16.xpose.msra.mxu0 0
    %6242 = vmatprep.subr.bf16.mxu0 0
    %6243 = vmatpush1.bf16.xpose.msra.mxu0 0
    %6244 = vmatprep.subr.bf16.mxu0 0
    %6245 = vmatpush1.bf16.xpose.msra.mxu0 0
    %6246 = vmatprep.subr.bf16.mxu0 0
    %6247 = vmatpush1.bf16.xpose.msra.mxu0 0
    %6248 = vmatprep.subr.bf16.mxu0 0
    %6249 = vmatpush1.bf16.xpose.msra.mxu0 0
    %6250 = vmatprep.subr.bf16.mxu0 0
    %6251 = vmatpush1.bf16.xpose.msra.mxu0 0
    %6252 = vmatprep.subr.bf16.mxu0 0
    %6253 = vmatpush1.bf16.xpose.msra.mxu0 0
    %6254 = vmatprep.mubr.bf16.mxu0 0
    %6255 = vmatmul.mubr.bf16.gmra.mrb[0].mxu0 %v6199
    %v6256 = vpop.f32.mrb[0].mxu0
    %v6257 = vadd.f32 %v302, %v6256
    %v6258 = vpop.f32.mrb[0].mxu0
    %v6259 = vpop.f32.mrb[0].mxu0
    %v6260 = vadd.f32 %v302, %v6259
    %v6261 = vpop.f32.mrb[0].mxu0
    %6262 = vmatprep.mubr.bf16.mxu0 0
    %6263 = vmatmul.mubr.bf16.gmra.mrb[0].mxu0 %v6202
    %v6264 = vpop.f32.mrb[0].mxu0
    %v6265 = vadd.f32 %v302, %v6264
    %v6266 = vpop.f32.mrb[0].mxu0
    %v6267 = vpop.f32.mrb[0].mxu0
    %v6268 = vadd.f32 %v302, %v6267
    %v6269 = vpop.f32.mrb[0].mxu0
    %6270 = vmatprep.mubr.bf16.mxu0 0
    %6271 = vmatmul.mubr.bf16.gmra.mrb[0].mxu0 %v6205
    %v6272 = vpop.f32.mrb[0].mxu0
    %v6273 = vadd.f32 %v302, %v6272
    %v6274 = vpop.f32.mrb[0].mxu0
    %v6275 = vpop.f32.mrb[0].mxu0
    %v6276 = vadd.f32 %v302, %v6275
    %v6277 = vpop.f32.mrb[0].mxu0
    %6278 = vmatprep.mubr.bf16.mxu0 0
    %6279 = vmatmul.mubr.bf16.gmra.mrb[0].mxu0 %v6208
    %v6280 = vpop.f32.mrb[0].mxu0
    %v6281 = vadd.f32 %v302, %v6280
    %v6282 = vpop.f32.mrb[0].mxu0
    %v6283 = vpop.f32.mrb[0].mxu0
    %v6284 = vadd.f32 %v302, %v6283
    %v6285 = vpop.f32.mrb[0].mxu0
    %6286 = vdwg.mxu0
    %v6287 = vsel %vm811, %v6257, -inf
    %6288 = vmax.xlane.f32.xlu0 %v6287
    %v6289 = vpop.xlane.xlu0 %6288
    %v6290 = vsel %vm811, %v6260, -inf
    %6291 = vmax.xlane.f32.xlu0 %v6290
    %v6292 = vpop.xlane.xlu0 %6291
    %v6293 = vsel %vm811, %v6265, -inf
    %6294 = vmax.xlane.f32.xlu0 %v6293
    %v6295 = vpop.xlane.xlu0 %6294
    %v6296 = vsel %vm811, %v6268, -inf
    %6297 = vmax.xlane.f32.xlu0 %v6296
    %v6298 = vpop.xlane.xlu0 %6297
    %v6299 = vsel %vm811, %v6273, -inf
    %6300 = vmax.xlane.f32.xlu0 %v6299
    %v6301 = vpop.xlane.xlu0 %6300
    %v6302 = vsel %vm811, %v6276, -inf
    %6303 = vmax.xlane.f32.xlu0 %v6302
    %v6304 = vpop.xlane.xlu0 %6303
    %v6305 = vsel %vm811, %v6281, -inf
    %6306 = vmax.xlane.f32.xlu0 %v6305
    %v6307 = vpop.xlane.xlu0 %6306
    %v6308 = vsel %vm811, %v6284, -inf
    %6309 = vmax.xlane.f32.xlu0 %v6308
    %v6310 = vpop.xlane.xlu0 %6309
    %v6311 = vsub.f32 %v6257, %v6289
    %v6312 = vsub.f32 %v6260, %v6292
    %v6313 = vsub.f32 %v6265, %v6295
    %v6314 = vsub.f32 %v6268, %v6298
    %v6315 = vsub.f32 %v6273, %v6301
    %v6316 = vsub.f32 %v6276, %v6304
    %v6317 = vsub.f32 %v6281, %v6307
    %v6318 = vsub.f32 %v6284, %v6310
    %v6319 = vmul.f32 %v6311, 1.442695
    %v6320 = vpow.pop %v6319
    %v6321 = vmul.f32 %v6312, 1.442695
    %v6322 = vpow.pop %v6321
    %v6323 = vmul.f32 %v6313, 1.442695
    %v6324 = vpow.pop %v6323
    %v6325 = vmul.f32 %v6314, 1.442695
    %v6326 = vpow.pop %v6325
    %v6327 = vmul.f32 %v6315, 1.442695
    %v6328 = vpow.pop %v6327
    %v6329 = vmul.f32 %v6316, 1.442695
    %v6330 = vpow.pop %v6329
    %v6331 = vmul.f32 %v6317, 1.442695
    %v6332 = vpow.pop %v6331
    %v6333 = vmul.f32 %v6318, 1.442695
    %v6334 = vpow.pop %v6333
    %v6335 = vsel %vm811, %v6320, 0.0
    %6336 = vadd.xlane.f32.xlu0 %v6335
    %v6337 = vpop.xlane.xlu0 %6336
    %v6338 = vsel %vm811, %v6322, 0.0
    %6339 = vadd.xlane.f32.xlu0 %v6338
    %v6340 = vpop.xlane.xlu0 %6339
    %v6341 = vsel %vm811, %v6324, 0.0
    %6342 = vadd.xlane.f32.xlu0 %v6341
    %v6343 = vpop.xlane.xlu0 %6342
    %v6344 = vsel %vm811, %v6326, 0.0
    %6345 = vadd.xlane.f32.xlu0 %v6344
    %v6346 = vpop.xlane.xlu0 %6345
    %v6347 = vsel %vm811, %v6328, 0.0
    %6348 = vadd.xlane.f32.xlu0 %v6347
    %v6349 = vpop.xlane.xlu0 %6348
    %v6350 = vsel %vm811, %v6330, 0.0
    %6351 = vadd.xlane.f32.xlu0 %v6350
    %v6352 = vpop.xlane.xlu0 %6351
    %v6353 = vsel %vm811, %v6332, 0.0
    %6354 = vadd.xlane.f32.xlu0 %v6353
    %v6355 = vpop.xlane.xlu0 %6354
    %v6356 = vsel %vm811, %v6334, 0.0
    %6357 = vadd.xlane.f32.xlu0 %v6356
    %v6358 = vpop.xlane.xlu0 %6357
    %v6359 = vpack.c.bf16 %v6322, %v6320
    %v6360 = vpack.c.bf16 %v6326, %v6324
    %v6361 = vpack.c.bf16 %v6330, %v6328
    %v6362 = vpack.c.bf16 %v6334, %v6332
    %6363 = vrot.lane.b32.xlu0 %v5602, 48
    %v6364 = vpop.permute.xlu0 %6363
    %6365 = vrot.lane.b32.xlu0 %v5603, 48
    %v6366 = vpop.permute.xlu0 %6365
    %6367 = vrot.lane.b32.xlu0 %v5604, 48
    %v6368 = vpop.permute.xlu0 %6367
    %6369 = vrot.lane.b32.xlu0 %v5605, 48
    %v6370 = vpop.permute.xlu0 %6369
    %v6376 = vsel %vm811, %v6359, 0
    %v6379 = vsel %vm811, %v6360, 0
    %v6382 = vsel %vm811, %v6361, 0
    %v6385 = vsel %vm811, %v6362, 0
    %6387 = vmatprep.subr.bf16.mxu0 0
    %6388 = vmatpush1.bf16.msra.mxu0 %v6364
    %6389 = vmatprep.subr.bf16.mxu0 0
    %6390 = vmatpush1.bf16.msra.mxu0 %v6366
    %6391 = vmatprep.subr.bf16.mxu0 0
    %6392 = vmatpush1.bf16.msra.mxu0 %v6368
    %6393 = vmatprep.subr.bf16.mxu0 0
    %6394 = vmatpush1.bf16.msra.mxu0 %v6370
    %6395 = vmatprep.subr.bf16.mxu0 0
    %6396 = vmatpush1.bf16.msra.mxu0 0
    %6397 = vmatprep.subr.bf16.mxu0 0
    %6398 = vmatpush1.bf16.msra.mxu0 0
    %6399 = vmatprep.subr.bf16.mxu0 0
    %6400 = vmatpush1.bf16.msra.mxu0 0
    %6401 = vmatprep.subr.bf16.mxu0 0
    %6402 = vmatpush1.bf16.msra.mxu0 0
    %6403 = vmatprep.subr.bf16.mxu0 0
    %6404 = vmatpush1.bf16.msra.mxu0 0
    %6405 = vmatprep.subr.bf16.mxu0 0
    %6406 = vmatpush1.bf16.msra.mxu0 0
    %6407 = vmatprep.subr.bf16.mxu0 0
    %6408 = vmatpush1.bf16.msra.mxu0 0
    %6409 = vmatprep.subr.bf16.mxu0 0
    %6410 = vmatpush1.bf16.msra.mxu0 0
    %6411 = vmatprep.subr.bf16.mxu0 0
    %6412 = vmatpush1.bf16.msra.mxu0 0
    %6413 = vmatprep.subr.bf16.mxu0 0
    %6414 = vmatpush1.bf16.msra.mxu0 0
    %6415 = vmatprep.subr.bf16.mxu0 0
    %6416 = vmatpush1.bf16.msra.mxu0 0
    %6417 = vmatprep.subr.bf16.mxu0 0
    %6418 = vmatpush1.bf16.msra.mxu0 0
    %6419 = vmatprep.mubr.bf16.mxu0 0
    %6420 = vmatmul.mubr.bf16.gmra.mrb[0].mxu0 %v6376
    %v6421 = vpop.f32.mrb[0].mxu0
    %v6422 = vadd.f32 0.0, %v6421
    %v6423 = vpop.f32.mrb[0].mxu0
    %v6424 = vpop.f32.mrb[0].mxu0
    %v6425 = vadd.f32 0.0, %v6424
    %v6426 = vpop.f32.mrb[0].mxu0
    %6427 = vmatprep.mubr.bf16.mxu0 0
    %6428 = vmatmul.mubr.bf16.gmra.mrb[0].mxu0 %v6379
    %v6429 = vpop.f32.mrb[0].mxu0
    %v6430 = vadd.f32 0.0, %v6429
    %v6431 = vpop.f32.mrb[0].mxu0
    %v6432 = vpop.f32.mrb[0].mxu0
    %v6433 = vadd.f32 0.0, %v6432
    %v6434 = vpop.f32.mrb[0].mxu0
    %6435 = vmatprep.mubr.bf16.mxu0 0
    %6436 = vmatmul.mubr.bf16.gmra.mrb[0].mxu0 %v6382
    %v6437 = vpop.f32.mrb[0].mxu0
    %v6438 = vadd.f32 0.0, %v6437
    %v6439 = vpop.f32.mrb[0].mxu0
    %v6440 = vpop.f32.mrb[0].mxu0
    %v6441 = vadd.f32 0.0, %v6440
    %v6442 = vpop.f32.mrb[0].mxu0
    %6443 = vmatprep.mubr.bf16.mxu0 0
    %6444 = vmatmul.mubr.bf16.gmra.mrb[0].mxu0 %v6385
    %v6445 = vpop.f32.mrb[0].mxu0
    %v6446 = vadd.f32 0.0, %v6445
    %v6447 = vpop.f32.mrb[0].mxu0
    %v6448 = vpop.f32.mrb[0].mxu0
    %v6449 = vadd.f32 0.0, %v6448
    %v6450 = vpop.f32.mrb[0].mxu0
    %6451 = vdwg.mxu0
    %v6452 = vrcp.pop %v6337
    %v6453 = vrcp.pop %v6340
    %v6454 = vrcp.pop %v6343
    %v6455 = vrcp.pop %v6346
    %v6456 = vrcp.pop %v6349
    %v6457 = vrcp.pop %v6352
    %v6458 = vrcp.pop %v6355
    %v6459 = vrcp.pop %v6358
    %v6460 = vmul.f32 %v6422, %v6452
    %v6461 = vmul.f32 %v6425, %v6453
    %v6462 = vmul.f32 %v6430, %v6454
    %v6463 = vmul.f32 %v6433, %v6455
    %v6464 = vmul.f32 %v6438, %v6456
    %v6465 = vmul.f32 %v6441, %v6457
    %v6466 = vmul.f32 %v6446, %v6458
    %v6467 = vmul.f32 %v6449, %v6459
    %v6468 = vpack.c.bf16 %v6461, %v6460
    %v6469 = vpack.c.bf16 %v6463, %v6462
    %v6470 = vpack.c.bf16 %v6465, %v6464
    %v6471 = vpack.c.bf16 %v6467, %v6466
    %6472 = vrot.lane.b32.xlu0 %v5602, 104
    %v6473 = vpop.permute.xlu0 %6472
    %6474 = vrot.lane.b32.xlu0 %v5603, 104
    %v6475 = vpop.permute.xlu0 %6474
    %6476 = vrot.lane.b32.xlu0 %v5604, 104
    %v6477 = vpop.permute.xlu0 %6476
    %6478 = vrot.lane.b32.xlu0 %v5605, 104
    %v6479 = vpop.permute.xlu0 %6478
    %6480 = vrot.lane.b32.xlu0 %v5602, 72
    %v6481 = vpop.permute.xlu0 %6480
    %6482 = vrot.lane.b32.xlu0 %v5603, 72
    %v6483 = vpop.permute.xlu0 %6482
    %6484 = vrot.lane.b32.xlu0 %v5604, 72
    %v6485 = vpop.permute.xlu0 %6484
    %6486 = vrot.lane.b32.xlu0 %v5605, 72
    %v6487 = vpop.permute.xlu0 %6486
    %v6489 = vsel %vm721, %v6473, 0
    %v6492 = vsel %vm721, %v6475, 0
    %v6495 = vsel %vm721, %v6477, 0
    %v6498 = vsel %vm721, %v6479, 0
    %v6501 = vsel %vm721, %v6481, 0
    %v6504 = vsel %vm721, %v6483, 0
    %v6507 = vsel %vm721, %v6485, 0
    %v6510 = vsel %vm721, %v6487, 0
    %6512 = vmatprep.subr.bf16.mxu0 0
    %6513 = vmatpush1.bf16.xpose.msra.mxu0 %v6501
    %6514 = vmatprep.subr.bf16.mxu0 0
    %6515 = vmatpush1.bf16.xpose.msra.mxu0 %v6504
    %6516 = vmatprep.subr.bf16.mxu0 0
    %6517 = vmatpush1.bf16.xpose.msra.mxu0 %v6507
    %6518 = vmatprep.subr.bf16.mxu0 0
    %6519 = vmatpush1.bf16.xpose.msra.mxu0 %v6510
    %6520 = vmatprep.subr.bf16.mxu0 0
    %6521 = vmatpush1.bf16.xpose.msra.mxu0 0
    %6522 = vmatprep.subr.bf16.mxu0 0
    %6523 = vmatpush1.bf16.xpose.msra.mxu0 0
    %6524 = vmatprep.subr.bf16.mxu0 0
    %6525 = vmatpush1.bf16.xpose.msra.mxu0 0
    %6526 = vmatprep.subr.bf16.mxu0 0
    %6527 = vmatpush1.bf16.xpose.msra.mxu0 0
    %6528 = vmatprep.subr.bf16.mxu0 0
    %6529 = vmatpush1.bf16.xpose.msra.mxu0 0
    %6530 = vmatprep.subr.bf16.mxu0 0
    %6531 = vmatpush1.bf16.xpose.msra.mxu0 0
    %6532 = vmatprep.subr.bf16.mxu0 0
    %6533 = vmatpush1.bf16.xpose.msra.mxu0 0
    %6534 = vmatprep.subr.bf16.mxu0 0
    %6535 = vmatpush1.bf16.xpose.msra.mxu0 0
    %6536 = vmatprep.subr.bf16.mxu0 0
    %6537 = vmatpush1.bf16.xpose.msra.mxu0 0
    %6538 = vmatprep.subr.bf16.mxu0 0
    %6539 = vmatpush1.bf16.xpose.msra.mxu0 0
    %6540 = vmatprep.subr.bf16.mxu0 0
    %6541 = vmatpush1.bf16.xpose.msra.mxu0 0
    %6542 = vmatprep.subr.bf16.mxu0 0
    %6543 = vmatpush1.bf16.xpose.msra.mxu0 0
    %6544 = vmatprep.mubr.bf16.mxu0 0
    %6545 = vmatmul.mubr.bf16.gmra.mrb[0].mxu0 %v6489
    %v6546 = vpop.f32.mrb[0].mxu0
    %v6547 = vadd.f32 %v302, %v6546
    %v6548 = vpop.f32.mrb[0].mxu0
    %v6549 = vpop.f32.mrb[0].mxu0
    %v6550 = vadd.f32 %v302, %v6549
    %v6551 = vpop.f32.mrb[0].mxu0
    %6552 = vmatprep.mubr.bf16.mxu0 0
    %6553 = vmatmul.mubr.bf16.gmra.mrb[0].mxu0 %v6492
    %v6554 = vpop.f32.mrb[0].mxu0
    %v6555 = vadd.f32 %v302, %v6554
    %v6556 = vpop.f32.mrb[0].mxu0
    %v6557 = vpop.f32.mrb[0].mxu0
    %v6558 = vadd.f32 %v302, %v6557
    %v6559 = vpop.f32.mrb[0].mxu0
    %6560 = vmatprep.mubr.bf16.mxu0 0
    %6561 = vmatmul.mubr.bf16.gmra.mrb[0].mxu0 %v6495
    %v6562 = vpop.f32.mrb[0].mxu0
    %v6563 = vadd.f32 %v302, %v6562
    %v6564 = vpop.f32.mrb[0].mxu0
    %v6565 = vpop.f32.mrb[0].mxu0
    %v6566 = vadd.f32 %v302, %v6565
    %v6567 = vpop.f32.mrb[0].mxu0
    %6568 = vmatprep.mubr.bf16.mxu0 0
    %6569 = vmatmul.mubr.bf16.gmra.mrb[0].mxu0 %v6498
    %v6570 = vpop.f32.mrb[0].mxu0
    %v6571 = vadd.f32 %v302, %v6570
    %v6572 = vpop.f32.mrb[0].mxu0
    %v6573 = vpop.f32.mrb[0].mxu0
    %v6574 = vadd.f32 %v302, %v6573
    %v6575 = vpop.f32.mrb[0].mxu0
    %6576 = vdwg.mxu0
    %v6577 = vsel %vm811, %v6547, -inf
    %6578 = vmax.xlane.f32.xlu0 %v6577
    %v6579 = vpop.xlane.xlu0 %6578
    %v6580 = vsel %vm811, %v6550, -inf
    %6581 = vmax.xlane.f32.xlu0 %v6580
    %v6582 = vpop.xlane.xlu0 %6581
    %v6583 = vsel %vm811, %v6555, -inf
    %6584 = vmax.xlane.f32.xlu0 %v6583
    %v6585 = vpop.xlane.xlu0 %6584
    %v6586 = vsel %vm811, %v6558, -inf
    %6587 = vmax.xlane.f32.xlu0 %v6586
    %v6588 = vpop.xlane.xlu0 %6587
    %v6589 = vsel %vm811, %v6563, -inf
    %6590 = vmax.xlane.f32.xlu0 %v6589
    %v6591 = vpop.xlane.xlu0 %6590
    %v6592 = vsel %vm811, %v6566, -inf
    %6593 = vmax.xlane.f32.xlu0 %v6592
    %v6594 = vpop.xlane.xlu0 %6593
    %v6595 = vsel %vm811, %v6571, -inf
    %6596 = vmax.xlane.f32.xlu0 %v6595
    %v6597 = vpop.xlane.xlu0 %6596
    %v6598 = vsel %vm811, %v6574, -inf
    %6599 = vmax.xlane.f32.xlu0 %v6598
    %v6600 = vpop.xlane.xlu0 %6599
    %v6601 = vsub.f32 %v6547, %v6579
    %v6602 = vsub.f32 %v6550, %v6582
    %v6603 = vsub.f32 %v6555, %v6585
    %v6604 = vsub.f32 %v6558, %v6588
    %v6605 = vsub.f32 %v6563, %v6591
    %v6606 = vsub.f32 %v6566, %v6594
    %v6607 = vsub.f32 %v6571, %v6597
    %v6608 = vsub.f32 %v6574, %v6600
    %v6609 = vmul.f32 %v6601, 1.442695
    %v6610 = vpow.pop %v6609
    %v6611 = vmul.f32 %v6602, 1.442695
    %v6612 = vpow.pop %v6611
    %v6613 = vmul.f32 %v6603, 1.442695
    %v6614 = vpow.pop %v6613
    %v6615 = vmul.f32 %v6604, 1.442695
    %v6616 = vpow.pop %v6615
    %v6617 = vmul.f32 %v6605, 1.442695
    %v6618 = vpow.pop %v6617
    %v6619 = vmul.f32 %v6606, 1.442695
    %v6620 = vpow.pop %v6619
    %v6621 = vmul.f32 %v6607, 1.442695
    %v6622 = vpow.pop %v6621
    %v6623 = vmul.f32 %v6608, 1.442695
    %v6624 = vpow.pop %v6623
    %v6625 = vsel %vm811, %v6610, 0.0
    %6626 = vadd.xlane.f32.xlu0 %v6625
    %v6627 = vpop.xlane.xlu0 %6626
    %v6628 = vsel %vm811, %v6612, 0.0
    %6629 = vadd.xlane.f32.xlu0 %v6628
    %v6630 = vpop.xlane.xlu0 %6629
    %v6631 = vsel %vm811, %v6614, 0.0
    %6632 = vadd.xlane.f32.xlu0 %v6631
    %v6633 = vpop.xlane.xlu0 %6632
    %v6634 = vsel %vm811, %v6616, 0.0
    %6635 = vadd.xlane.f32.xlu0 %v6634
    %v6636 = vpop.xlane.xlu0 %6635
    %v6637 = vsel %vm811, %v6618, 0.0
    %6638 = vadd.xlane.f32.xlu0 %v6637
    %v6639 = vpop.xlane.xlu0 %6638
    %v6640 = vsel %vm811, %v6620, 0.0
    %6641 = vadd.xlane.f32.xlu0 %v6640
    %v6642 = vpop.xlane.xlu0 %6641
    %v6643 = vsel %vm811, %v6622, 0.0
    %6644 = vadd.xlane.f32.xlu0 %v6643
    %v6645 = vpop.xlane.xlu0 %6644
    %v6646 = vsel %vm811, %v6624, 0.0
    %6647 = vadd.xlane.f32.xlu0 %v6646
    %v6648 = vpop.xlane.xlu0 %6647
    %v6649 = vpack.c.bf16 %v6612, %v6610
    %v6650 = vpack.c.bf16 %v6616, %v6614
    %v6651 = vpack.c.bf16 %v6620, %v6618
    %v6652 = vpack.c.bf16 %v6624, %v6622
    %6653 = vrot.lane.b32.xlu0 %v5602, 40
    %v6654 = vpop.permute.xlu0 %6653
    %6655 = vrot.lane.b32.xlu0 %v5603, 40
    %v6656 = vpop.permute.xlu0 %6655
    %6657 = vrot.lane.b32.xlu0 %v5604, 40
    %v6658 = vpop.permute.xlu0 %6657
    %6659 = vrot.lane.b32.xlu0 %v5605, 40
    %v6660 = vpop.permute.xlu0 %6659
    %v6666 = vsel %vm811, %v6649, 0
    %v6669 = vsel %vm811, %v6650, 0
    %v6672 = vsel %vm811, %v6651, 0
    %v6675 = vsel %vm811, %v6652, 0
    %6677 = vmatprep.subr.bf16.mxu0 0
    %6678 = vmatpush1.bf16.msra.mxu0 %v6654
    %6679 = vmatprep.subr.bf16.mxu0 0
    %6680 = vmatpush1.bf16.msra.mxu0 %v6656
    %6681 = vmatprep.subr.bf16.mxu0 0
    %6682 = vmatpush1.bf16.msra.mxu0 %v6658
    %6683 = vmatprep.subr.bf16.mxu0 0
    %6684 = vmatpush1.bf16.msra.mxu0 %v6660
    %6685 = vmatprep.subr.bf16.mxu0 0
    %6686 = vmatpush1.bf16.msra.mxu0 0
    %6687 = vmatprep.subr.bf16.mxu0 0
    %6688 = vmatpush1.bf16.msra.mxu0 0
    %6689 = vmatprep.subr.bf16.mxu0 0
    %6690 = vmatpush1.bf16.msra.mxu0 0
    %6691 = vmatprep.subr.bf16.mxu0 0
    %6692 = vmatpush1.bf16.msra.mxu0 0
    %6693 = vmatprep.subr.bf16.mxu0 0
    %6694 = vmatpush1.bf16.msra.mxu0 0
    %6695 = vmatprep.subr.bf16.mxu0 0
    %6696 = vmatpush1.bf16.msra.mxu0 0
    %6697 = vmatprep.subr.bf16.mxu0 0
    %6698 = vmatpush1.bf16.msra.mxu0 0
    %6699 = vmatprep.subr.bf16.mxu0 0
    %6700 = vmatpush1.bf16.msra.mxu0 0
    %6701 = vmatprep.subr.bf16.mxu0 0
    %6702 = vmatpush1.bf16.msra.mxu0 0
    %6703 = vmatprep.subr.bf16.mxu0 0
    %6704 = vmatpush1.bf16.msra.mxu0 0
    %6705 = vmatprep.subr.bf16.mxu0 0
    %6706 = vmatpush1.bf16.msra.mxu0 0
    %6707 = vmatprep.subr.bf16.mxu0 0
    %6708 = vmatpush1.bf16.msra.mxu0 0
    %6709 = vmatprep.mubr.bf16.mxu0 0
    %6710 = vmatmul.mubr.bf16.gmra.mrb[0].mxu0 %v6666
    %v6711 = vpop.f32.mrb[0].mxu0
    %v6712 = vadd.f32 0.0, %v6711
    %v6713 = vpop.f32.mrb[0].mxu0
    %v6714 = vpop.f32.mrb[0].mxu0
    %v6715 = vadd.f32 0.0, %v6714
    %v6716 = vpop.f32.mrb[0].mxu0
    %6717 = vmatprep.mubr.bf16.mxu0 0
    %6718 = vmatmul.mubr.bf16.gmra.mrb[0].mxu0 %v6669
    %v6719 = vpop.f32.mrb[0].mxu0
    %v6720 = vadd.f32 0.0, %v6719
    %v6721 = vpop.f32.mrb[0].mxu0
    %v6722 = vpop.f32.mrb[0].mxu0
    %v6723 = vadd.f32 0.0, %v6722
    %v6724 = vpop.f32.mrb[0].mxu0
    %6725 = vmatprep.mubr.bf16.mxu0 0
    %6726 = vmatmul.mubr.bf16.gmra.mrb[0].mxu0 %v6672
    %v6727 = vpop.f32.mrb[0].mxu0
    %v6728 = vadd.f32 0.0, %v6727
    %v6729 = vpop.f32.mrb[0].mxu0
    %v6730 = vpop.f32.mrb[0].mxu0
    %v6731 = vadd.f32 0.0, %v6730
    %v6732 = vpop.f32.mrb[0].mxu0
    %6733 = vmatprep.mubr.bf16.mxu0 0
    %6734 = vmatmul.mubr.bf16.gmra.mrb[0].mxu0 %v6675
    %v6735 = vpop.f32.mrb[0].mxu0
    %v6736 = vadd.f32 0.0, %v6735
    %v6737 = vpop.f32.mrb[0].mxu0
    %v6738 = vpop.f32.mrb[0].mxu0
    %v6739 = vadd.f32 0.0, %v6738
    %v6740 = vpop.f32.mrb[0].mxu0
    %6741 = vdwg.mxu0
    %v6742 = vrcp.pop %v6627
    %v6743 = vrcp.pop %v6630
    %v6744 = vrcp.pop %v6633
    %v6745 = vrcp.pop %v6636
    %v6746 = vrcp.pop %v6639
    %v6747 = vrcp.pop %v6642
    %v6748 = vrcp.pop %v6645
    %v6749 = vrcp.pop %v6648
    %v6750 = vmul.f32 %v6712, %v6742
    %v6751 = vmul.f32 %v6715, %v6743
    %v6752 = vmul.f32 %v6720, %v6744
    %v6753 = vmul.f32 %v6723, %v6745
    %v6754 = vmul.f32 %v6728, %v6746
    %v6755 = vmul.f32 %v6731, %v6747
    %v6756 = vmul.f32 %v6736, %v6748
    %v6757 = vmul.f32 %v6739, %v6749
    %v6758 = vpack.c.bf16 %v6751, %v6750
    %v6759 = vpack.c.bf16 %v6753, %v6752
    %v6760 = vpack.c.bf16 %v6755, %v6754
    %v6761 = vpack.c.bf16 %v6757, %v6756
    %6766 = vrot.lane.b32.xlu0 %v6178, 8
    %v6767 = vpop.permute.xlu0 %6766
    %6768 = vrot.lane.b32.xlu0 %v6179, 8
    %v6769 = vpop.permute.xlu0 %6768
    %6770 = vrot.lane.b32.xlu0 %v6180, 8
    %v6771 = vpop.permute.xlu0 %6770
    %6772 = vrot.lane.b32.xlu0 %v6181, 8
    %v6773 = vpop.permute.xlu0 %6772
    %6778 = vrot.lane.b32.xlu0 %v6468, 16
    %v6779 = vpop.permute.xlu0 %6778
    %6780 = vrot.lane.b32.xlu0 %v6469, 16
    %v6781 = vpop.permute.xlu0 %6780
    %6782 = vrot.lane.b32.xlu0 %v6470, 16
    %v6783 = vpop.permute.xlu0 %6782
    %6784 = vrot.lane.b32.xlu0 %v6471, 16
    %v6785 = vpop.permute.xlu0 %6784
    %6790 = vrot.lane.b32.xlu0 %v6758, 24
    %v6791 = vpop.permute.xlu0 %6790
    %6792 = vrot.lane.b32.xlu0 %v6759, 24
    %v6793 = vpop.permute.xlu0 %6792
    %6794 = vrot.lane.b32.xlu0 %v6760, 24
    %v6795 = vpop.permute.xlu0 %6794
    %6796 = vrot.lane.b32.xlu0 %v6761, 24
    %v6797 = vpop.permute.xlu0 %6796
    %v6800 = vsel %vm721, %v5888, %v6767
    %v6803 = vsel %vm721, %v5889, %v6769
    %v6806 = vsel %vm721, %v5890, %v6771
    %v6809 = vsel %vm721, %v5891, %v6773
    %v6811 = vsel %vm1915, %v6800, %v6779
    %v6813 = vsel %vm1915, %v6803, %v6781
    %v6815 = vsel %vm1915, %v6806, %v6783
    %v6817 = vsel %vm1915, %v6809, %v6785
    %v6819 = vsel %vm1924, %v6811, %v6791
    %v6821 = vsel %vm1924, %v6813, %v6793
    %v6823 = vsel %vm1924, %v6815, %v6795
    %v6825 = vsel %vm1924, %v6817, %v6797
    %s6826 = scalar_lea.vmem %s7, 16
    %v6827 = vld [vmem:[%s6826] sm:$0xf]
    %v6828 = vld [vmem:[%s6826 + $0x4] sm:$0xf]
    %v6829 = vld [vmem:[%s6826 + $0x8] sm:$0xf]
    %v6830 = vld [vmem:[%s6826 + $0xc] sm:$0xf]
    %v6831 = vld [vmem:[%s8 + $0x1] sm:$0x1]
    %v6832 = vlaneseq
    %v6833 = vshrl.u32 %v6832, 7
    %v6834 = vsub.s32 0, %v6833
    %v6835 = vrot.slane %v6831, %v6834
    %v6840 = vunpack.c.l.b16 %v6827
    %v6841 = vunpack.c.l.b16 %v6828
    %v6842 = vunpack.c.l.b16 %v6829
    %v6843 = vunpack.c.l.b16 %v6830
    %v6844 = vpack.c.b16 %v6841, %v6840
    %v6845 = vpack.c.b16 %v6843, %v6842
    %v6848 = vsel %vm305, %v5595, 0
    %v6850 = vsel %vm305, %v5597, 0
    %v6852 = vsel %vm305, %v5599, 0
    %v6854 = vsel %vm305, %v5601, 0
    %v6856 = vsel %vm305, %v6819, 0
    %v6858 = vsel %vm305, %v6821, 0
    %v6860 = vsel %vm305, %v6823, 0
    %v6862 = vsel %vm305, %v6825, 0
    %6864 = vmatprep.subr.bf16.mxu0 0
    %6865 = vmatpush1.bf16.msra.mxu0 %v6844
    %6866 = vmatprep.subr.bf16.mxu0 0
    %6867 = vmatpush1.bf16.msra.mxu0 %v6845
    %6868 = vmatprep.subr.bf16.mxu0 0
    %6869 = vmatpush1.bf16.msra.mxu0 0
    %6870 = vmatprep.subr.bf16.mxu0 0
    %6871 = vmatpush1.bf16.msra.mxu0 0
    %6872 = vmatprep.subr.bf16.mxu0 0
    %6873 = vmatpush1.bf16.msra.mxu0 0
    %6874 = vmatprep.subr.bf16.mxu0 0
    %6875 = vmatpush1.bf16.msra.mxu0 0
    %6876 = vmatprep.subr.bf16.mxu0 0
    %6877 = vmatpush1.bf16.msra.mxu0 0
    %6878 = vmatprep.subr.bf16.mxu0 0
    %6879 = vmatpush1.bf16.msra.mxu0 0
    %6880 = vmatprep.subr.bf16.mxu0 0
    %6881 = vmatpush1.bf16.msra.mxu0 0
    %6882 = vmatprep.subr.bf16.mxu0 0
    %6883 = vmatpush1.bf16.msra.mxu0 0
    %6884 = vmatprep.subr.bf16.mxu0 0
    %6885 = vmatpush1.bf16.msra.mxu0 0
    %6886 = vmatprep.subr.bf16.mxu0 0
    %6887 = vmatpush1.bf16.msra.mxu0 0
    %6888 = vmatprep.subr.bf16.mxu0 0
    %6889 = vmatpush1.bf16.msra.mxu0 0
    %6890 = vmatprep.subr.bf16.mxu0 0
    %6891 = vmatpush1.bf16.msra.mxu0 0
    %6892 = vmatprep.subr.bf16.mxu0 0
    %6893 = vmatpush1.bf16.msra.mxu0 0
    %6894 = vmatprep.subr.bf16.mxu0 0
    %6895 = vmatpush1.bf16.msra.mxu0 0
    %6896 = vmatprep.mubr.bf16.mxu0 0
    %6897 = vmatmul.mubr.bf16.gmra.mrb[0].mxu0 %v6848
    %v6898 = vpop.f32.mrb[0].mxu0
    %v6899 = vadd.f32 %v6835, %v6898
    %v6900 = vpop.f32.mrb[0].mxu0
    %v6901 = vpop.f32.mrb[0].mxu0
    %v6902 = vadd.f32 %v6835, %v6901
    %v6903 = vpop.f32.mrb[0].mxu0
    %6904 = vmatprep.mubr.bf16.mxu0 0
    %6905 = vmatmul.mubr.bf16.gmra.mrb[0].mxu0 %v6850
    %v6906 = vpop.f32.mrb[0].mxu0
    %v6907 = vadd.f32 %v6835, %v6906
    %v6908 = vpop.f32.mrb[0].mxu0
    %v6909 = vpop.f32.mrb[0].mxu0
    %v6910 = vadd.f32 %v6835, %v6909
    %v6911 = vpop.f32.mrb[0].mxu0
    %6912 = vmatprep.mubr.bf16.mxu0 0
    %6913 = vmatmul.mubr.bf16.gmra.mrb[0].mxu0 %v6852
    %v6914 = vpop.f32.mrb[0].mxu0
    %v6915 = vadd.f32 %v6835, %v6914
    %v6916 = vpop.f32.mrb[0].mxu0
    %v6917 = vpop.f32.mrb[0].mxu0
    %v6918 = vadd.f32 %v6835, %v6917
    %v6919 = vpop.f32.mrb[0].mxu0
    %6920 = vmatprep.mubr.bf16.mxu0 0
    %6921 = vmatmul.mubr.bf16.gmra.mrb[0].mxu0 %v6854
    %v6922 = vpop.f32.mrb[0].mxu0
    %v6923 = vadd.f32 %v6835, %v6922
    %v6924 = vpop.f32.mrb[0].mxu0
    %v6925 = vpop.f32.mrb[0].mxu0
    %v6926 = vadd.f32 %v6835, %v6925
    %v6927 = vpop.f32.mrb[0].mxu0
    %6928 = vmatprep.mubr.bf16.mxu0 0
    %6929 = vmatmul.mubr.bf16.gmra.mrb[0].mxu0 %v6856
    %v6930 = vpop.f32.mrb[0].mxu0
    %v6931 = vadd.f32 %v6835, %v6930
    %v6932 = vpop.f32.mrb[0].mxu0
    %v6933 = vpop.f32.mrb[0].mxu0
    %v6934 = vadd.f32 %v6835, %v6933
    %v6935 = vpop.f32.mrb[0].mxu0
    %6936 = vmatprep.mubr.bf16.mxu0 0
    %6937 = vmatmul.mubr.bf16.gmra.mrb[0].mxu0 %v6858
    %v6938 = vpop.f32.mrb[0].mxu0
    %v6939 = vadd.f32 %v6835, %v6938
    %v6940 = vpop.f32.mrb[0].mxu0
    %v6941 = vpop.f32.mrb[0].mxu0
    %v6942 = vadd.f32 %v6835, %v6941
    %v6943 = vpop.f32.mrb[0].mxu0
    %6944 = vmatprep.mubr.bf16.mxu0 0
    %6945 = vmatmul.mubr.bf16.gmra.mrb[0].mxu0 %v6860
    %v6946 = vpop.f32.mrb[0].mxu0
    %v6947 = vadd.f32 %v6835, %v6946
    %v6948 = vpop.f32.mrb[0].mxu0
    %v6949 = vpop.f32.mrb[0].mxu0
    %v6950 = vadd.f32 %v6835, %v6949
    %v6951 = vpop.f32.mrb[0].mxu0
    %6952 = vmatprep.mubr.bf16.mxu0 0
    %6953 = vmatmul.mubr.bf16.gmra.mrb[0].mxu0 %v6862
    %v6954 = vpop.f32.mrb[0].mxu0
    %v6955 = vadd.f32 %v6835, %v6954
    %v6956 = vpop.f32.mrb[0].mxu0
    %v6957 = vpop.f32.mrb[0].mxu0
    %v6958 = vadd.f32 %v6835, %v6957
    %v6959 = vpop.f32.mrb[0].mxu0
    %6960 = vdwg.mxu0
    %v6961 = vadd.f32 %v3961, %v6899
    %v6962 = vadd.f32 %v3962, %v6902
    %v6963 = vadd.f32 %v3963, %v6907
    %v6964 = vadd.f32 %v3964, %v6910
    %v6965 = vadd.f32 %v3965, %v6915
    %v6966 = vadd.f32 %v3966, %v6918
    %v6967 = vadd.f32 %v3967, %v6923
    %v6968 = vadd.f32 %v3968, %v6926
    %v6969 = vadd.f32 %v3969, %v6931
    %v6970 = vadd.f32 %v3970, %v6934
    %v6971 = vadd.f32 %v3971, %v6939
    %v6972 = vadd.f32 %v3972, %v6942
    %v6973 = vadd.f32 %v3973, %v6947
    %v6974 = vadd.f32 %v3974, %v6950
    %v6975 = vadd.f32 %v3975, %v6955
    %v6976 = vadd.f32 %v3976, %v6958
    %v6977 = vld [vmem:[%s9 + $0x1] sm:$0x1]
    %v6978 = vld [vmem:[%s10 + $0x1] sm:$0x1]
    %v6979 = vsel %vm305, %v6961, 0.0
    %6980 = vadd.xlane.f32.xlu0 %v6979
    %v6981 = vpop.xlane.xlu0 %6980
    %v6982 = vsel %vm305, %v6962, 0.0
    %6983 = vadd.xlane.f32.xlu0 %v6982
    %v6984 = vpop.xlane.xlu0 %6983
    %v6985 = vsel %vm305, %v6963, 0.0
    %6986 = vadd.xlane.f32.xlu0 %v6985
    %v6987 = vpop.xlane.xlu0 %6986
    %v6988 = vsel %vm305, %v6964, 0.0
    %6989 = vadd.xlane.f32.xlu0 %v6988
    %v6990 = vpop.xlane.xlu0 %6989
    %v6991 = vsel %vm305, %v6965, 0.0
    %6992 = vadd.xlane.f32.xlu0 %v6991
    %v6993 = vpop.xlane.xlu0 %6992
    %v6994 = vsel %vm305, %v6966, 0.0
    %6995 = vadd.xlane.f32.xlu0 %v6994
    %v6996 = vpop.xlane.xlu0 %6995
    %v6997 = vsel %vm305, %v6967, 0.0
    %6998 = vadd.xlane.f32.xlu0 %v6997
    %v6999 = vpop.xlane.xlu0 %6998
    %v7000 = vsel %vm305, %v6968, 0.0
    %7001 = vadd.xlane.f32.xlu0 %v7000
    %v7002 = vpop.xlane.xlu0 %7001
    %v7003 = vsel %vm305, %v6969, 0.0
    %7004 = vadd.xlane.f32.xlu0 %v7003
    %v7005 = vpop.xlane.xlu0 %7004
    %v7006 = vsel %vm305, %v6970, 0.0
    %7007 = vadd.xlane.f32.xlu0 %v7006
    %v7008 = vpop.xlane.xlu0 %7007
    %v7009 = vsel %vm305, %v6971, 0.0
    %7010 = vadd.xlane.f32.xlu0 %v7009
    %v7011 = vpop.xlane.xlu0 %7010
    %v7012 = vsel %vm305, %v6972, 0.0
    %7013 = vadd.xlane.f32.xlu0 %v7012
    %v7014 = vpop.xlane.xlu0 %7013
    %v7015 = vsel %vm305, %v6973, 0.0
    %7016 = vadd.xlane.f32.xlu0 %v7015
    %v7017 = vpop.xlane.xlu0 %7016
    %v7018 = vsel %vm305, %v6974, 0.0
    %7019 = vadd.xlane.f32.xlu0 %v7018
    %v7020 = vpop.xlane.xlu0 %7019
    %v7021 = vsel %vm305, %v6975, 0.0
    %7022 = vadd.xlane.f32.xlu0 %v7021
    %v7023 = vpop.xlane.xlu0 %7022
    %v7024 = vsel %vm305, %v6976, 0.0
    %7025 = vadd.xlane.f32.xlu0 %v7024
    %v7026 = vpop.xlane.xlu0 %7025
    %v7027 = vmul.f32 %v6981, %v354
    %v7028 = vmul.f32 %v6984, %v354
    %v7029 = vmul.f32 %v6987, %v354
    %v7030 = vmul.f32 %v6990, %v354
    %v7031 = vmul.f32 %v6993, %v354
    %v7032 = vmul.f32 %v6996, %v354
    %v7033 = vmul.f32 %v6999, %v354
    %v7034 = vmul.f32 %v7002, %v354
    %v7035 = vmul.f32 %v7005, %v354
    %v7036 = vmul.f32 %v7008, %v354
    %v7037 = vmul.f32 %v7011, %v354
    %v7038 = vmul.f32 %v7014, %v354
    %v7039 = vmul.f32 %v7017, %v354
    %v7040 = vmul.f32 %v7020, %v354
    %v7041 = vmul.f32 %v7023, %v354
    %v7042 = vmul.f32 %v7026, %v354
    %v7043 = vsub.f32 %v6961, %v7027
    %v7044 = vsub.f32 %v6962, %v7028
    %v7045 = vsub.f32 %v6963, %v7029
    %v7046 = vsub.f32 %v6964, %v7030
    %v7047 = vsub.f32 %v6965, %v7031
    %v7048 = vsub.f32 %v6966, %v7032
    %v7049 = vsub.f32 %v6967, %v7033
    %v7050 = vsub.f32 %v6968, %v7034
    %v7051 = vsub.f32 %v6969, %v7035
    %v7052 = vsub.f32 %v6970, %v7036
    %v7053 = vsub.f32 %v6971, %v7037
    %v7054 = vsub.f32 %v6972, %v7038
    %v7055 = vsub.f32 %v6973, %v7039
    %v7056 = vsub.f32 %v6974, %v7040
    %v7057 = vsub.f32 %v6975, %v7041
    %v7058 = vsub.f32 %v6976, %v7042
    %v7059 = vmul.f32 %v7043, %v7043
    %v7060 = vmul.f32 %v7044, %v7044
    %v7061 = vmul.f32 %v7045, %v7045
    %v7062 = vmul.f32 %v7046, %v7046
    %v7063 = vmul.f32 %v7047, %v7047
    %v7064 = vmul.f32 %v7048, %v7048
    %v7065 = vmul.f32 %v7049, %v7049
    %v7066 = vmul.f32 %v7050, %v7050
    %v7067 = vmul.f32 %v7051, %v7051
    %v7068 = vmul.f32 %v7052, %v7052
    %v7069 = vmul.f32 %v7053, %v7053
    %v7070 = vmul.f32 %v7054, %v7054
    %v7071 = vmul.f32 %v7055, %v7055
    %v7072 = vmul.f32 %v7056, %v7056
    %v7073 = vmul.f32 %v7057, %v7057
    %v7074 = vmul.f32 %v7058, %v7058
    %v7075 = vsel %vm305, %v7059, 0.0
    %7076 = vadd.xlane.f32.xlu0 %v7075
    %v7077 = vpop.xlane.xlu0 %7076
    %v7078 = vsel %vm305, %v7060, 0.0
    %7079 = vadd.xlane.f32.xlu0 %v7078
    %v7080 = vpop.xlane.xlu0 %7079
    %v7081 = vsel %vm305, %v7061, 0.0
    %7082 = vadd.xlane.f32.xlu0 %v7081
    %v7083 = vpop.xlane.xlu0 %7082
    %v7084 = vsel %vm305, %v7062, 0.0
    %7085 = vadd.xlane.f32.xlu0 %v7084
    %v7086 = vpop.xlane.xlu0 %7085
    %v7087 = vsel %vm305, %v7063, 0.0
    %7088 = vadd.xlane.f32.xlu0 %v7087
    %v7089 = vpop.xlane.xlu0 %7088
    %v7090 = vsel %vm305, %v7064, 0.0
    %7091 = vadd.xlane.f32.xlu0 %v7090
    %v7092 = vpop.xlane.xlu0 %7091
    %v7093 = vsel %vm305, %v7065, 0.0
    %7094 = vadd.xlane.f32.xlu0 %v7093
    %v7095 = vpop.xlane.xlu0 %7094
    %v7096 = vsel %vm305, %v7066, 0.0
    %7097 = vadd.xlane.f32.xlu0 %v7096
    %v7098 = vpop.xlane.xlu0 %7097
    %v7099 = vsel %vm305, %v7067, 0.0
    %7100 = vadd.xlane.f32.xlu0 %v7099
    %v7101 = vpop.xlane.xlu0 %7100
    %v7102 = vsel %vm305, %v7068, 0.0
    %7103 = vadd.xlane.f32.xlu0 %v7102
    %v7104 = vpop.xlane.xlu0 %7103
    %v7105 = vsel %vm305, %v7069, 0.0
    %7106 = vadd.xlane.f32.xlu0 %v7105
    %v7107 = vpop.xlane.xlu0 %7106
    %v7108 = vsel %vm305, %v7070, 0.0
    %7109 = vadd.xlane.f32.xlu0 %v7108
    %v7110 = vpop.xlane.xlu0 %7109
    %v7111 = vsel %vm305, %v7071, 0.0
    %7112 = vadd.xlane.f32.xlu0 %v7111
    %v7113 = vpop.xlane.xlu0 %7112
    %v7114 = vsel %vm305, %v7072, 0.0
    %7115 = vadd.xlane.f32.xlu0 %v7114
    %v7116 = vpop.xlane.xlu0 %7115
    %v7117 = vsel %vm305, %v7073, 0.0
    %7118 = vadd.xlane.f32.xlu0 %v7117
    %v7119 = vpop.xlane.xlu0 %7118
    %v7120 = vsel %vm305, %v7074, 0.0
    %7121 = vadd.xlane.f32.xlu0 %v7120
    %v7122 = vpop.xlane.xlu0 %7121
    %v7123 = vmul.f32 %v7077, %v354
    %v7124 = vmul.f32 %v7080, %v354
    %v7125 = vmul.f32 %v7083, %v354
    %v7126 = vmul.f32 %v7086, %v354
    %v7127 = vmul.f32 %v7089, %v354
    %v7128 = vmul.f32 %v7092, %v354
    %v7129 = vmul.f32 %v7095, %v354
    %v7130 = vmul.f32 %v7098, %v354
    %v7131 = vmul.f32 %v7101, %v354
    %v7132 = vmul.f32 %v7104, %v354
    %v7133 = vmul.f32 %v7107, %v354
    %v7134 = vmul.f32 %v7110, %v354
    %v7135 = vmul.f32 %v7113, %v354
    %v7136 = vmul.f32 %v7116, %v354
    %v7137 = vmul.f32 %v7119, %v354
    %v7138 = vmul.f32 %v7122, %v354
    %v7139 = vadd.f32 %v7123, 1e-06
    %v7140 = vadd.f32 %v7124, 1e-06
    %v7141 = vadd.f32 %v7125, 1e-06
    %v7142 = vadd.f32 %v7126, 1e-06
    %v7143 = vadd.f32 %v7127, 1e-06
    %v7144 = vadd.f32 %v7128, 1e-06
    %v7145 = vadd.f32 %v7129, 1e-06
    %v7146 = vadd.f32 %v7130, 1e-06
    %v7147 = vadd.f32 %v7131, 1e-06
    %v7148 = vadd.f32 %v7132, 1e-06
    %v7149 = vadd.f32 %v7133, 1e-06
    %v7150 = vadd.f32 %v7134, 1e-06
    %v7151 = vadd.f32 %v7135, 1e-06
    %v7152 = vadd.f32 %v7136, 1e-06
    %v7153 = vadd.f32 %v7137, 1e-06
    %v7154 = vadd.f32 %v7138, 1e-06
    %v7155 = vrsqrt.pop %v7139
    %v7156 = vrsqrt.pop %v7140
    %v7157 = vrsqrt.pop %v7141
    %v7158 = vrsqrt.pop %v7142
    %v7159 = vrsqrt.pop %v7143
    %v7160 = vrsqrt.pop %v7144
    %v7161 = vrsqrt.pop %v7145
    %v7162 = vrsqrt.pop %v7146
    %v7163 = vrsqrt.pop %v7147
    %v7164 = vrsqrt.pop %v7148
    %v7165 = vrsqrt.pop %v7149
    %v7166 = vrsqrt.pop %v7150
    %v7167 = vrsqrt.pop %v7151
    %v7168 = vrsqrt.pop %v7152
    %v7169 = vrsqrt.pop %v7153
    %v7170 = vrsqrt.pop %v7154
    %v7171 = vmul.f32 %v7043, %v7155
    %v7172 = vmul.f32 %v7044, %v7156
    %v7173 = vmul.f32 %v7045, %v7157
    %v7174 = vmul.f32 %v7046, %v7158
    %v7175 = vmul.f32 %v7047, %v7159
    %v7176 = vmul.f32 %v7048, %v7160
    %v7177 = vmul.f32 %v7049, %v7161
    %v7178 = vmul.f32 %v7050, %v7162
    %v7179 = vmul.f32 %v7051, %v7163
    %v7180 = vmul.f32 %v7052, %v7164
    %v7181 = vmul.f32 %v7053, %v7165
    %v7182 = vmul.f32 %v7054, %v7166
    %v7183 = vmul.f32 %v7055, %v7167
    %v7184 = vmul.f32 %v7056, %v7168
    %v7185 = vmul.f32 %v7057, %v7169
    %v7186 = vmul.f32 %v7058, %v7170
    %v7187 = vlaneseq
    %v7188 = vshrl.u32 %v7187, 7
    %v7189 = vsub.s32 0, %v7188
    %v7190 = vrot.slane %v6977, %v7189
    %v7191 = vmul.f32 %v7171, %v7190
    %v7192 = vmul.f32 %v7172, %v7190
    %v7193 = vmul.f32 %v7173, %v7190
    %v7194 = vmul.f32 %v7174, %v7190
    %v7195 = vmul.f32 %v7175, %v7190
    %v7196 = vmul.f32 %v7176, %v7190
    %v7197 = vmul.f32 %v7177, %v7190
    %v7198 = vmul.f32 %v7178, %v7190
    %v7199 = vmul.f32 %v7179, %v7190
    %v7200 = vmul.f32 %v7180, %v7190
    %v7201 = vmul.f32 %v7181, %v7190
    %v7202 = vmul.f32 %v7182, %v7190
    %v7203 = vmul.f32 %v7183, %v7190
    %v7204 = vmul.f32 %v7184, %v7190
    %v7205 = vmul.f32 %v7185, %v7190
    %v7206 = vmul.f32 %v7186, %v7190
    %v7207 = vlaneseq
    %v7208 = vshrl.u32 %v7207, 7
    %v7209 = vsub.s32 0, %v7208
    %v7210 = vrot.slane %v6978, %v7209
    %v7211 = vadd.f32 %v7191, %v7210
    %v7212 = vadd.f32 %v7192, %v7210
    %v7213 = vadd.f32 %v7193, %v7210
    %v7214 = vadd.f32 %v7194, %v7210
    %v7215 = vadd.f32 %v7195, %v7210
    %v7216 = vadd.f32 %v7196, %v7210
    %v7217 = vadd.f32 %v7197, %v7210
    %v7218 = vadd.f32 %v7198, %v7210
    %v7219 = vadd.f32 %v7199, %v7210
    %v7220 = vadd.f32 %v7200, %v7210
    %v7221 = vadd.f32 %v7201, %v7210
    %v7222 = vadd.f32 %v7202, %v7210
    %v7223 = vadd.f32 %v7203, %v7210
    %v7224 = vadd.f32 %v7204, %v7210
    %v7225 = vadd.f32 %v7205, %v7210
    %v7226 = vadd.f32 %v7206, %v7210
    %v7227 = vpack.c.bf16 %v7212, %v7211
    %v7228 = vpack.c.bf16 %v7214, %v7213
    %v7229 = vpack.c.bf16 %v7216, %v7215
    %v7230 = vpack.c.bf16 %v7218, %v7217
    %v7231 = vpack.c.bf16 %v7220, %v7219
    %v7232 = vpack.c.bf16 %v7222, %v7221
    %v7233 = vpack.c.bf16 %v7224, %v7223
    %v7234 = vpack.c.bf16 %v7226, %v7225
    %s7235 = scalar_lea.vmem %s11, 16
    %v7236 = vld [vmem:[%s7235] sm:$0xf]
    %v7237 = vld [vmem:[%s7235 + $0x4] sm:$0xf]
    %v7238 = vld [vmem:[%s7235 + $0x8] sm:$0xf]
    %v7239 = vld [vmem:[%s7235 + $0xc] sm:$0xf]
    %v7240 = vld [vmem:[%s12 + $0x1] sm:$0x1]
    %v7241 = vlaneseq
    %v7242 = vshrl.u32 %v7241, 7
    %v7243 = vsub.s32 0, %v7242
    %v7244 = vrot.slane %v7240, %v7243
    %v7249 = vunpack.c.l.b16 %v7236
    %v7250 = vunpack.c.l.b16 %v7237
    %v7251 = vunpack.c.l.b16 %v7238
    %v7252 = vunpack.c.l.b16 %v7239
    %v7253 = vpack.c.b16 %v7250, %v7249
    %v7254 = vpack.c.b16 %v7252, %v7251
    %v7258 = vsel %vm305, %v7227, 0
    %v7261 = vsel %vm305, %v7228, 0
    %v7264 = vsel %vm305, %v7229, 0
    %v7267 = vsel %vm305, %v7230, 0
    %v7270 = vsel %vm305, %v7231, 0
    %v7273 = vsel %vm305, %v7232, 0
    %v7276 = vsel %vm305, %v7233, 0
    %v7279 = vsel %vm305, %v7234, 0
    %7281 = vmatprep.subr.bf16.mxu0 0
    %7282 = vmatpush1.bf16.msra.mxu0 %v7253
    %7283 = vmatprep.subr.bf16.mxu0 0
    %7284 = vmatpush1.bf16.msra.mxu0 %v7254
    %7285 = vmatprep.subr.bf16.mxu0 0
    %7286 = vmatpush1.bf16.msra.mxu0 0
    %7287 = vmatprep.subr.bf16.mxu0 0
    %7288 = vmatpush1.bf16.msra.mxu0 0
    %7289 = vmatprep.subr.bf16.mxu0 0
    %7290 = vmatpush1.bf16.msra.mxu0 0
    %7291 = vmatprep.subr.bf16.mxu0 0
    %7292 = vmatpush1.bf16.msra.mxu0 0
    %7293 = vmatprep.subr.bf16.mxu0 0
    %7294 = vmatpush1.bf16.msra.mxu0 0
    %7295 = vmatprep.subr.bf16.mxu0 0
    %7296 = vmatpush1.bf16.msra.mxu0 0
    %7297 = vmatprep.subr.bf16.mxu0 0
    %7298 = vmatpush1.bf16.msra.mxu0 0
    %7299 = vmatprep.subr.bf16.mxu0 0
    %7300 = vmatpush1.bf16.msra.mxu0 0
    %7301 = vmatprep.subr.bf16.mxu0 0
    %7302 = vmatpush1.bf16.msra.mxu0 0
    %7303 = vmatprep.subr.bf16.mxu0 0
    %7304 = vmatpush1.bf16.msra.mxu0 0
    %7305 = vmatprep.subr.bf16.mxu0 0
    %7306 = vmatpush1.bf16.msra.mxu0 0
    %7307 = vmatprep.subr.bf16.mxu0 0
    %7308 = vmatpush1.bf16.msra.mxu0 0
    %7309 = vmatprep.subr.bf16.mxu0 0
    %7310 = vmatpush1.bf16.msra.mxu0 0
    %7311 = vmatprep.subr.bf16.mxu0 0
    %7312 = vmatpush1.bf16.msra.mxu0 0
    %7313 = vmatprep.mubr.bf16.mxu0 0
    %7314 = vmatmul.mubr.bf16.gmra.mrb[0].mxu0 %v7258
    %v7315 = vpop.f32.mrb[0].mxu0
    %v7316 = vadd.f32 %v7244, %v7315
    %v7317 = vpop.f32.mrb[0].mxu0
    %v7318 = vpop.f32.mrb[0].mxu0
    %v7319 = vadd.f32 %v7244, %v7318
    %v7320 = vpop.f32.mrb[0].mxu0
    %7321 = vmatprep.mubr.bf16.mxu0 0
    %7322 = vmatmul.mubr.bf16.gmra.mrb[0].mxu0 %v7261
    %v7323 = vpop.f32.mrb[0].mxu0
    %v7324 = vadd.f32 %v7244, %v7323
    %v7325 = vpop.f32.mrb[0].mxu0
    %v7326 = vpop.f32.mrb[0].mxu0
    %v7327 = vadd.f32 %v7244, %v7326
    %v7328 = vpop.f32.mrb[0].mxu0
    %7329 = vmatprep.mubr.bf16.mxu0 0
    %7330 = vmatmul.mubr.bf16.gmra.mrb[0].mxu0 %v7264
    %v7331 = vpop.f32.mrb[0].mxu0
    %v7332 = vadd.f32 %v7244, %v7331
    %v7333 = vpop.f32.mrb[0].mxu0
    %v7334 = vpop.f32.mrb[0].mxu0
    %v7335 = vadd.f32 %v7244, %v7334
    %v7336 = vpop.f32.mrb[0].mxu0
    %7337 = vmatprep.mubr.bf16.mxu0 0
    %7338 = vmatmul.mubr.bf16.gmra.mrb[0].mxu0 %v7267
    %v7339 = vpop.f32.mrb[0].mxu0
    %v7340 = vadd.f32 %v7244, %v7339
    %v7341 = vpop.f32.mrb[0].mxu0
    %v7342 = vpop.f32.mrb[0].mxu0
    %v7343 = vadd.f32 %v7244, %v7342
    %v7344 = vpop.f32.mrb[0].mxu0
    %7345 = vmatprep.mubr.bf16.mxu0 0
    %7346 = vmatmul.mubr.bf16.gmra.mrb[0].mxu0 %v7270
    %v7347 = vpop.f32.mrb[0].mxu0
    %v7348 = vadd.f32 %v7244, %v7347
    %v7349 = vpop.f32.mrb[0].mxu0
    %v7350 = vpop.f32.mrb[0].mxu0
    %v7351 = vadd.f32 %v7244, %v7350
    %v7352 = vpop.f32.mrb[0].mxu0
    %7353 = vmatprep.mubr.bf16.mxu0 0
    %7354 = vmatmul.mubr.bf16.gmra.mrb[0].mxu0 %v7273
    %v7355 = vpop.f32.mrb[0].mxu0
    %v7356 = vadd.f32 %v7244, %v7355
    %v7357 = vpop.f32.mrb[0].mxu0
    %v7358 = vpop.f32.mrb[0].mxu0
    %v7359 = vadd.f32 %v7244, %v7358
    %v7360 = vpop.f32.mrb[0].mxu0
    %7361 = vmatprep.mubr.bf16.mxu0 0
    %7362 = vmatmul.mubr.bf16.gmra.mrb[0].mxu0 %v7276
    %v7363 = vpop.f32.mrb[0].mxu0
    %v7364 = vadd.f32 %v7244, %v7363
    %v7365 = vpop.f32.mrb[0].mxu0
    %v7366 = vpop.f32.mrb[0].mxu0
    %v7367 = vadd.f32 %v7244, %v7366
    %v7368 = vpop.f32.mrb[0].mxu0
    %7369 = vmatprep.mubr.bf16.mxu0 0
    %7370 = vmatmul.mubr.bf16.gmra.mrb[0].mxu0 %v7279
    %v7371 = vpop.f32.mrb[0].mxu0
    %v7372 = vadd.f32 %v7244, %v7371
    %v7373 = vpop.f32.mrb[0].mxu0
    %v7374 = vpop.f32.mrb[0].mxu0
    %v7375 = vadd.f32 %v7244, %v7374
    %v7376 = vpop.f32.mrb[0].mxu0
    %7377 = vdwg.mxu0
    %v7378 = vmul.f32 %v7316, 0.5
    %v7379 = vmul.f32 %v7319, 0.5
    %v7380 = vmul.f32 %v7324, 0.5
    %v7381 = vmul.f32 %v7327, 0.5
    %v7382 = vmul.f32 %v7332, 0.5
    %v7383 = vmul.f32 %v7335, 0.5
    %v7384 = vmul.f32 %v7340, 0.5
    %v7385 = vmul.f32 %v7343, 0.5
    %v7386 = vmul.f32 %v7348, 0.5
    %v7387 = vmul.f32 %v7351, 0.5
    %v7388 = vmul.f32 %v7356, 0.5
    %v7389 = vmul.f32 %v7359, 0.5
    %v7390 = vmul.f32 %v7364, 0.5
    %v7391 = vmul.f32 %v7367, 0.5
    %v7392 = vmul.f32 %v7372, 0.5
    %v7393 = vmul.f32 %v7375, 0.5
    %v7394 = vmul.f32 %v7316, 0.70710677
    %v7395 = vmul.f32 %v7319, 0.70710677
    %v7396 = vmul.f32 %v7324, 0.70710677
    %v7397 = vmul.f32 %v7327, 0.70710677
    %v7398 = vmul.f32 %v7332, 0.70710677
    %v7399 = vmul.f32 %v7335, 0.70710677
    %v7400 = vmul.f32 %v7340, 0.70710677
    %v7401 = vmul.f32 %v7343, 0.70710677
    %v7402 = vmul.f32 %v7348, 0.70710677
    %v7403 = vmul.f32 %v7351, 0.70710677
    %v7404 = vmul.f32 %v7356, 0.70710677
    %v7405 = vmul.f32 %v7359, 0.70710677
    %v7406 = vmul.f32 %v7364, 0.70710677
    %v7407 = vmul.f32 %v7367, 0.70710677
    %v7408 = vmul.f32 %v7372, 0.70710677
    %v7409 = vmul.f32 %v7375, 0.70710677
    %v7410 = verf.f32.pop %v7394
    %v7411 = verf.f32.pop %v7395
    %v7412 = verf.f32.pop %v7396
    %v7413 = verf.f32.pop %v7397
    %v7414 = verf.f32.pop %v7398
    %v7415 = verf.f32.pop %v7399
    %v7416 = verf.f32.pop %v7400
    %v7417 = verf.f32.pop %v7401
    %v7418 = verf.f32.pop %v7402
    %v7419 = verf.f32.pop %v7403
    %v7420 = verf.f32.pop %v7404
    %v7421 = verf.f32.pop %v7405
    %v7422 = verf.f32.pop %v7406
    %v7423 = verf.f32.pop %v7407
    %v7424 = verf.f32.pop %v7408
    %v7425 = verf.f32.pop %v7409
    %v7426 = vadd.f32 %v7410, 1.0
    %v7427 = vadd.f32 %v7411, 1.0
    %v7428 = vadd.f32 %v7412, 1.0
    %v7429 = vadd.f32 %v7413, 1.0
    %v7430 = vadd.f32 %v7414, 1.0
    %v7431 = vadd.f32 %v7415, 1.0
    %v7432 = vadd.f32 %v7416, 1.0
    %v7433 = vadd.f32 %v7417, 1.0
    %v7434 = vadd.f32 %v7418, 1.0
    %v7435 = vadd.f32 %v7419, 1.0
    %v7436 = vadd.f32 %v7420, 1.0
    %v7437 = vadd.f32 %v7421, 1.0
    %v7438 = vadd.f32 %v7422, 1.0
    %v7439 = vadd.f32 %v7423, 1.0
    %v7440 = vadd.f32 %v7424, 1.0
    %v7441 = vadd.f32 %v7425, 1.0
    %v7442 = vmul.f32 %v7378, %v7426
    %v7443 = vmul.f32 %v7379, %v7427
    %v7444 = vmul.f32 %v7380, %v7428
    %v7445 = vmul.f32 %v7381, %v7429
    %v7446 = vmul.f32 %v7382, %v7430
    %v7447 = vmul.f32 %v7383, %v7431
    %v7448 = vmul.f32 %v7384, %v7432
    %v7449 = vmul.f32 %v7385, %v7433
    %v7450 = vmul.f32 %v7386, %v7434
    %v7451 = vmul.f32 %v7387, %v7435
    %v7452 = vmul.f32 %v7388, %v7436
    %v7453 = vmul.f32 %v7389, %v7437
    %v7454 = vmul.f32 %v7390, %v7438
    %v7455 = vmul.f32 %v7391, %v7439
    %v7456 = vmul.f32 %v7392, %v7440
    %v7457 = vmul.f32 %v7393, %v7441
    %v7458 = vpack.c.bf16 %v7443, %v7442
    %v7459 = vpack.c.bf16 %v7445, %v7444
    %v7460 = vpack.c.bf16 %v7447, %v7446
    %v7461 = vpack.c.bf16 %v7449, %v7448
    %v7462 = vpack.c.bf16 %v7451, %v7450
    %v7463 = vpack.c.bf16 %v7453, %v7452
    %v7464 = vpack.c.bf16 %v7455, %v7454
    %v7465 = vpack.c.bf16 %v7457, %v7456
    %s7466 = scalar_lea.vmem %s13, 64
    %v7467 = vld [vmem:[%s7466] sm:$0xf]
    %v7468 = vld [vmem:[%s7466 + $0x4] sm:$0xf]
    %v7469 = vld [vmem:[%s7466 + $0x8] sm:$0xf]
    %v7470 = vld [vmem:[%s7466 + $0xc] sm:$0xf]
    %v7471 = vld [vmem:[%s7466 + $0x10] sm:$0xf]
    %v7472 = vld [vmem:[%s7466 + $0x14] sm:$0xf]
    %v7473 = vld [vmem:[%s7466 + $0x18] sm:$0xf]
    %v7474 = vld [vmem:[%s7466 + $0x1c] sm:$0xf]
    %v7475 = vld [vmem:[%s7466 + $0x20] sm:$0xf]
    %v7476 = vld [vmem:[%s7466 + $0x24] sm:$0xf]
    %v7477 = vld [vmem:[%s7466 + $0x28] sm:$0xf]
    %v7478 = vld [vmem:[%s7466 + $0x2c] sm:$0xf]
    %v7479 = vld [vmem:[%s7466 + $0x30] sm:$0xf]
    %v7480 = vld [vmem:[%s7466 + $0x34] sm:$0xf]
    %v7481 = vld [vmem:[%s7466 + $0x38] sm:$0xf]
    %v7482 = vld [vmem:[%s7466 + $0x3c] sm:$0xf]
    %v7483 = vld [vmem:[%s14 + $0x1] sm:$0x1]
    %v7484 = vlaneseq
    %v7485 = vshrl.u32 %v7484, 7
    %v7486 = vsub.s32 0, %v7485
    %v7487 = vrot.slane %v7483, %v7486
    %v7504 = vunpack.c.l.b16 %v7467
    %v7505 = vunpack.c.l.b16 %v7468
    %v7506 = vunpack.c.l.b16 %v7469
    %v7507 = vunpack.c.l.b16 %v7470
    %v7508 = vunpack.c.l.b16 %v7471
    %v7509 = vunpack.c.l.b16 %v7472
    %v7510 = vunpack.c.l.b16 %v7473
    %v7511 = vunpack.c.l.b16 %v7474
    %v7512 = vunpack.c.l.b16 %v7475
    %v7513 = vunpack.c.l.b16 %v7476
    %v7514 = vunpack.c.l.b16 %v7477
    %v7515 = vunpack.c.l.b16 %v7478
    %v7516 = vunpack.c.l.b16 %v7479
    %v7517 = vunpack.c.l.b16 %v7480
    %v7518 = vunpack.c.l.b16 %v7481
    %v7519 = vunpack.c.l.b16 %v7482
    %v7520 = vpack.c.b16 %v7505, %v7504
    %v7521 = vpack.c.b16 %v7507, %v7506
    %v7522 = vpack.c.b16 %v7509, %v7508
    %v7523 = vpack.c.b16 %v7511, %v7510
    %v7524 = vpack.c.b16 %v7513, %v7512
    %v7525 = vpack.c.b16 %v7515, %v7514
    %v7526 = vpack.c.b16 %v7517, %v7516
    %v7527 = vpack.c.b16 %v7519, %v7518
    %7536 = vmatprep.subr.bf16.mxu0 0
    %7537 = vmatpush1.bf16.msra.mxu0 %v7520
    %7538 = vmatprep.subr.bf16.mxu0 0
    %7539 = vmatpush1.bf16.msra.mxu0 %v7521
    %7540 = vmatprep.subr.bf16.mxu0 0
    %7541 = vmatpush1.bf16.msra.mxu0 %v7522
    %7542 = vmatprep.subr.bf16.mxu0 0
    %7543 = vmatpush1.bf16.msra.mxu0 %v7523
    %7544 = vmatprep.subr.bf16.mxu0 0
    %7545 = vmatpush1.bf16.msra.mxu0 %v7524
    %7546 = vmatprep.subr.bf16.mxu0 0
    %7547 = vmatpush1.bf16.msra.mxu0 %v7525
    %7548 = vmatprep.subr.bf16.mxu0 0
    %7549 = vmatpush1.bf16.msra.mxu0 %v7526
    %7550 = vmatprep.subr.bf16.mxu0 0
    %7551 = vmatpush1.bf16.msra.mxu0 %v7527
    %7552 = vmatprep.subr.bf16.mxu0 0
    %7553 = vmatpush1.bf16.msra.mxu0 0
    %7554 = vmatprep.subr.bf16.mxu0 0
    %7555 = vmatpush1.bf16.msra.mxu0 0
    %7556 = vmatprep.subr.bf16.mxu0 0
    %7557 = vmatpush1.bf16.msra.mxu0 0
    %7558 = vmatprep.subr.bf16.mxu0 0
    %7559 = vmatpush1.bf16.msra.mxu0 0
    %7560 = vmatprep.subr.bf16.mxu0 0
    %7561 = vmatpush1.bf16.msra.mxu0 0
    %7562 = vmatprep.subr.bf16.mxu0 0
    %7563 = vmatpush1.bf16.msra.mxu0 0
    %7564 = vmatprep.subr.bf16.mxu0 0
    %7565 = vmatpush1.bf16.msra.mxu0 0
    %7566 = vmatprep.subr.bf16.mxu0 0
    %7567 = vmatpush1.bf16.msra.mxu0 0
    %7568 = vmatprep.mubr.bf16.mxu0 0
    %7569 = vmatmul.mubr.bf16.gmra.mrb[0].mxu0 %v7458
    %v7570 = vpop.f32.mrb[0].mxu0
    %v7571 = vadd.f32 %v7487, %v7570
    %v7572 = vpop.f32.mrb[0].mxu0
    %v7573 = vpop.f32.mrb[0].mxu0
    %v7574 = vpop.f32.mrb[0].mxu0
    %7575 = vmatprep.mubr.bf16.mxu0 0
    %7576 = vmatmul.mubr.bf16.gmra.mrb[0].mxu0 %v7459
    %v7577 = vpop.f32.mrb[0].mxu0
    %v7578 = vpop.f32.mrb[0].mxu0
    %v7579 = vpop.f32.mrb[0].mxu0
    %v7580 = vpop.f32.mrb[0].mxu0
    %7581 = vmatprep.mubr.bf16.mxu0 0
    %7582 = vmatmul.mubr.bf16.gmra.mrb[0].mxu0 %v7460
    %v7583 = vpop.f32.mrb[0].mxu0
    %v7584 = vpop.f32.mrb[0].mxu0
    %v7585 = vpop.f32.mrb[0].mxu0
    %v7586 = vpop.f32.mrb[0].mxu0
    %7587 = vmatprep.mubr.bf16.mxu0 0
    %7588 = vmatmul.mubr.bf16.gmra.mrb[0].mxu0 %v7461
    %v7589 = vpop.f32.mrb[0].mxu0
    %v7590 = vpop.f32.mrb[0].mxu0
    %v7591 = vpop.f32.mrb[0].mxu0
    %v7592 = vpop.f32.mrb[0].mxu0
    %7593 = vmatprep.mubr.bf16.mxu0 0
    %7594 = vmatmul.mubr.bf16.gmra.mrb[0].mxu0 %v7462
    %v7595 = vpop.f32.mrb[0].mxu0
    %v7596 = vadd.f32 %v7487, %v7595
    %v7597 = vpop.f32.mrb[0].mxu0
    %v7598 = vpop.f32.mrb[0].mxu0
    %v7599 = vpop.f32.mrb[0].mxu0
    %7600 = vmatprep.mubr.bf16.mxu0 0
    %7601 = vmatmul.mubr.bf16.gmra.mrb[0].mxu0 %v7463
    %v7602 = vpop.f32.mrb[0].mxu0
    %v7603 = vpop.f32.mrb[0].mxu0
    %v7604 = vpop.f32.mrb[0].mxu0
    %v7605 = vpop.f32.mrb[0].mxu0
    %7606 = vmatprep.mubr.bf16.mxu0 0
    %7607 = vmatmul.mubr.bf16.gmra.mrb[0].mxu0 %v7464
    %v7608 = vpop.f32.mrb[0].mxu0
    %v7609 = vpop.f32.mrb[0].mxu0
    %v7610 = vpop.f32.mrb[0].mxu0
    %v7611 = vpop.f32.mrb[0].mxu0
    %7612 = vmatprep.mubr.bf16.mxu0 0
    %7613 = vmatmul.mubr.bf16.gmra.mrb[0].mxu0 %v7465
    %v7614 = vpop.f32.mrb[0].mxu0
    %v7615 = vpop.f32.mrb[0].mxu0
    %v7616 = vpop.f32.mrb[0].mxu0
    %v7617 = vpop.f32.mrb[0].mxu0
    %7618 = vdwg.mxu0
    %v7619 = vadd.f32 %v6961, %v7571
    %v7620 = vadd.f32 %v6969, %v7596
    %v7621 = vld [vmem:[%s15] sm:$0x1]
    %v7622 = vld [vmem:[%s16] sm:$0x1]
    %v7625 = vrot.slane %v7620, 7
    %vm7626 = vcmask 1041409
    %v7627 = vsel %vm7626, %v7625, %v7619
    %vm7629 = vcmask 254976
    %v7630 = vsel %vm7629, %v7627, 0.0
    %7631 = vadd.xlane.f32.xlu0 %v7630
    %v7632 = vpop.xlane.xlu0 %7631
    %v7633 = vmul.f32 %v7632, %v354
    %v7635 = vrot.slane %v7633, 1
    %v7638 = vsub.f32 %v7619, %v7633
    %v7639 = vsub.f32 %v7620, %v7635
    %v7640 = vmul.f32 %v7638, %v7638
    %v7641 = vmul.f32 %v7639, %v7639
    %v7644 = vrot.slane %v7641, 7
    %v7645 = vsel %vm7626, %v7644, %v7640
    %v7647 = vsel %vm7629, %v7645, 0.0
    %7648 = vadd.xlane.f32.xlu0 %v7647
    %v7649 = vpop.xlane.xlu0 %7648
    %v7650 = vmul.f32 %v7649, %v354
    %v7651 = vadd.f32 %v7650, 1e-06
    %v7652 = vrsqrt.pop %v7651
    %v7654 = vrot.slane %v7652, 1
    %v7657 = vmul.f32 %v7638, %v7652
    %v7658 = vmul.f32 %v7639, %v7654
    %v7660 = vlaneseq
    %v7661 = vshrl.u32 %v7660, 7
    %v7662 = vsub.s32 0, %v7661
    %v7663 = vrot.slane %v7621, %v7662
    %v7665 = vmul.f32 %v7657, %v7663
    %v7666 = vmul.f32 %v7658, %v7663
    %v7668 = vlaneseq
    %v7669 = vshrl.u32 %v7668, 7
    %v7670 = vsub.s32 0, %v7669
    %v7671 = vrot.slane %v7622, %v7670
    %v7673 = vadd.f32 %v7665, %v7671
    %v7674 = vadd.f32 %v7666, %v7671
    %vm7675 = vcmask 253952
    %7676 = vst.msk [vmem:[#allocation2] sm:$0x1] %vm7675, %v7673
    %7677 = vst.msk [vmem:[#allocation2 + $0x1] sm:$0x1] %vm7675, %v7674
    // Predicated region
    $region70: #{vit_forward.1} parent=1 // pred_check
      _
    $region71: #{vit_forward.1} parent=1 // pred_check_branch
      %7679 = sbr.rel (0) target = $region73
    $region72: #{vit_forward.1} parent=1 // pred_region
      %s7681 = ssub.s32 32, 32
      %7682 = vsyncadd [#allocation3], %s7681
      %s7683 = sshll.u32 [#allocation2], 4
      %s7684 = int_to_ptr.vmem [resolvable:$true] %s7683
      %7689 = dma.vmem_to_hbm [thread:$0]  %s7684, 32, %s17, [#allocation3], 16, 16, 1
    $region73: #{vit_forward.1} parent=1 // pred_fallthru
      _
    // Predicated region
    $region74: #{vit_forward.1} parent=1 // pred_check
      _
    $region75: #{vit_forward.1} parent=1 // pred_check_branch
      %7691 = sbr.rel (0) target = $region77
    $region76: #{vit_forward.1} parent=1 // pred_region
      %7692 = dma.done [#allocation3], 32
    $region77: #{vit_forward.1} parent=1 // pred_fallthru
      _
    %7693 = vsyncpa [#allocation3], 1

</llo_original>
